<compile_context>
chip_gen: v7x
topology: tpu7x:2x2x1
jax: 0.10.0
libtpu: 0.0.40
codegen_flags: <defaults>
</compile_context>

<pallas_src>
import functools

import jax
import jax.numpy as jnp
from jax.experimental import pallas as pl
from jax.experimental.pallas import tpu as pltpu


# -----------------------------------------------------------------------------
# Pallas kernel: fused warp + PixelWeightedFusionSoftmax + weighted sum + Linear
# -----------------------------------------------------------------------------
def _fusion_kernel(rl_ref, feats_ref, winterp_ref, wm16_ref, w2_ref, w34_ref,
                   bias_ref, out_ref, *, n_max, c, p):
    """One grid step = one batch b.

    rl_ref      : (B,) int32 in SMEM (scalar prefetch) -> valid agents per batch
    feats_ref   : (n_max, c, p)        bf16  raw (un-warped) per-agent features
    winterp_ref : (n_max*n_max, p, p)  bf16  bilinear warp matrices; entry i*n_max+j
                  warps neighbor j into ego i's frame: warped = feats[j] @ W[i*n_max+j]
    wm16_ref    : (3, 16, 16) f32  [W1a (neighbor half of conv1_1), W1b (ego half), MLP]
    w2_ref      : (8, 16)     f32  conv1_2 (BN folded)
    w34_ref     : (2, 8, 8)   f32  [conv1_3 padded, conv1_4 padded] (BN folded)
    bias_ref    : (5, 16, 1)  f32  [b1, b2, b3, b4, b_mlp] (zero padded)
    out_ref     : (n_max, c, p) f32 fused + MLP'd feature per ego agent
    """
    f32 = jnp.float32
    b = pl.program_id(0)
    n_valid = rl_ref[b]

    w1a = wm16_ref[0]                    # (16, 16) neighbor half of conv1_1
    w1b = wm16_ref[1]                    # (16, 16) ego half of conv1_1
    wmlp = wm16_ref[2]                   # (16, 16) nn.Linear
    w2 = w2_ref[...]                     # (8, 16)
    w3 = w34_ref[0]                      # (8, 8)  rows 0-3 real
    w4 = w34_ref[1]                      # (8, 8)  row 0 real
    # Bias columns loaded once per grid step; the adds below lane-splat them (cheap).
    b1c = bias_ref[0]                    # (16, 1)
    b2c = bias_ref[1][0:8]               # (8, 1)
    b3c = bias_ref[2][0:8]               # (8, 1)
    b4c = bias_ref[3][0:1]               # (1, 1)
    bmc = bias_ref[4]                    # (16, 1)

    for i in range(n_max):               # static unroll over ego agents
        @pl.when(i < n_valid)            # skip padded egos entirely
        def _compute(i=i):
            ego = feats_ref[i].astype(f32)                               # (c, p)
            # ego half of conv1_1 is identical for every neighbor: compute once per ego.
            ego_pre = jnp.dot(w1b, ego, preferred_element_type=f32) + b1c

            nbs, logits = [], []
            for j in range(n_max):       # static unroll over neighbors
                # Fused warp: bilinear grid_sample as an MXU matmul (bf16 in, f32 acc).
                nb = jnp.dot(feats_ref[j], winterp_ref[i * n_max + j],
                             preferred_element_type=f32)                 # (c, p)
                h = jnp.maximum(jnp.dot(w1a, nb, preferred_element_type=f32)
                                + ego_pre, 0.0)                          # relu(bn1_1(conv1_1))
                h = jnp.maximum(jnp.dot(w2, h, preferred_element_type=f32)
                                + b2c, 0.0)                              # relu(bn1_2(conv1_2)), 8 rows
                h = jnp.maximum(jnp.dot(w3, h, preferred_element_type=f32)
                                + b3c, 0.0)                              # relu(bn1_3(conv1_3)), 8 rows
                logit = jnp.maximum(
                    jnp.dot(w4, h, preferred_element_type=f32)[0:1] + b4c, 0.0)  # relu(conv1_4), (1,p)
                # Mask padded neighbors out of the agent softmax (dim=0 in PyTorch).
                penalty = jnp.where(j < n_valid, jnp.float32(0.0), jnp.float32(-1e30))
                nbs.append(nb)
                logits.append(logit + penalty)

            # Softmax over agents fused with the weighted neighbor sum
            # (per-neighbor accumulation: no (c, n_max*p) temporaries).
            m = logits[0]
            for j in range(1, n_max):
                m = jnp.maximum(m, logits[j])
            es = [jnp.exp(l - m) for l in logits]
            denom = es[0]
            for j in range(1, n_max):
                denom = denom + es[j]
            inv = pl.reciprocal(denom, approx=True)                      # (1, p), EUP

            acc = nbs[0] * (es[0] * inv)
            for j in range(1, n_max):
                acc = acc + nbs[j] * (es[j] * inv)                       # (c, p)

            # Fused nn.Linear(16, 16) over channels.
            out_ref[i] = jnp.dot(wmlp, acc, preferred_element_type=f32) + bmc

        @pl.when(i >= n_valid)
        def _zero(i=i):
            out_ref[i] = jnp.zeros((c, p), f32)


def fused_disconet_pallas(record_len_arr, feats, winterp, params, n_max, p):
    """Single pallas_call over grid=(B,). Egos/neighbors are looped in-kernel."""
    B, _, c, _ = feats.shape
    kernel = functools.partial(_fusion_kernel, n_max=n_max, c=c, p=p)
    grid_spec = pltpu.PrefetchScalarGridSpec(
        num_scalar_prefetch=1,
        grid=(B,),
        in_specs=[
            pl.BlockSpec((None, n_max, c, p), lambda b, rl: (b, 0, 0, 0)),
            pl.BlockSpec((None, n_max * n_max, p, p), lambda b, rl: (b, 0, 0, 0)),
            pl.BlockSpec(params["wm16"].shape, lambda b, rl: (0, 0, 0)),
            pl.BlockSpec(params["w2"].shape, lambda b, rl: (0, 0)),
            pl.BlockSpec(params["w34"].shape, lambda b, rl: (0, 0, 0)),
            pl.BlockSpec(params["biases"].shape, lambda b, rl: (0, 0, 0)),
        ],
        out_specs=pl.BlockSpec((None, n_max, c, p), lambda b, rl: (b, 0, 0, 0)),
    )
    return pl.pallas_call(
        kernel,
        out_shape=jax.ShapeDtypeStruct((B, n_max, c, p), jnp.float32),
        grid_spec=grid_spec,
        compiler_params=pltpu.CompilerParams(
            dimension_semantics=("parallel",)),
    )(record_len_arr, feats, winterp, params["wm16"], params["w2"],
      params["w34"], params["biases"])


# -----------------------------------------------------------------------------
# Plain-JAX glue: transformation matrices + gather-free bilinear warp operands
# -----------------------------------------------------------------------------
def get_discretized_transformation_matrix(matrix, discrete_ratio, downsample_rate):
    sub = matrix[..., 0:2, :]                                   # rows x, y
    sub = jnp.take(sub, jnp.array([0, 1, 3]), axis=-1)          # cols x, y, t
    rot = sub[..., :2]
    trans = sub[..., 2:3] / (discrete_ratio * downsample_rate)
    return jnp.concatenate([rot, trans], axis=-1).astype(jnp.float32)


def get_transformation_matrix(M, dsize):
    # M: (N, 2, 3) pixel-space affine -> theta for a normalized affine grid.
    H, W = dsize
    N = M.shape[0]
    bottom = jnp.tile(jnp.array([[[0.0, 0.0, 1.0]]], jnp.float32), (N, 1, 1))
    M_h = jnp.concatenate([M, bottom], axis=1)                  # (N, 3, 3)
    norm = jnp.array([[2.0 / (W - 1), 0.0, -1.0],
                      [0.0, 2.0 / (H - 1), -1.0],
                      [0.0, 0.0, 1.0]], jnp.float32)
    dst_norm = norm[None] @ M_h @ jnp.linalg.inv(norm)[None]
    theta = jnp.linalg.inv(dst_norm)[:, :2, :]                  # (N, 2, 3)
    return theta


def build_bilinear_warp_matrices(theta, H, W):
    """theta: (N, 2, 3) normalized affine. Returns (N, P, P) matrices M such that
    warped(C, P) = src(C, P) @ M  (bilinear, zero padding, align_corners=True).
    Built with compares / one-hots only — no XLA gather."""
    P = H * W
    ys = jnp.linspace(-1.0, 1.0, H)
    xs = jnp.linspace(-1.0, 1.0, W)
    gy, gx = jnp.meshgrid(ys, xs, indexing="ij")
    base = jnp.stack([gx.ravel(), gy.ravel(), jnp.ones((P,), jnp.float32)], axis=-1)
    grid = jnp.einsum("nij,pj->npi", theta, base)               # (N, P, 2)
    x = (grid[..., 0] + 1.0) * (W - 1) / 2.0                    # source coords per out pixel
    y = (grid[..., 1] + 1.0) * (H - 1) / 2.0
    x0 = jnp.floor(x)
    y0 = jnp.floor(y)
    wx = x - x0
    wy = y - y0
    pin = jnp.arange(P, dtype=jnp.int32)                        # source pixel index

    def corner(xi, yi, w):
        valid = ((xi >= 0) & (xi <= W - 1) & (yi >= 0) & (yi <= H - 1)).astype(jnp.float32)
        idx = (jnp.clip(yi, 0, H - 1).astype(jnp.int32) * W
               + jnp.clip(xi, 0, W - 1).astype(jnp.int32))      # (N, P_out)
        onehot = (pin[None, :, None] == idx[:, None, :]).astype(jnp.float32)  # (N, Pin, Pout)
        return onehot * (w * valid)[:, None, :]

    return (corner(x0, y0, (1.0 - wx) * (1.0 - wy))
            + corner(x0 + 1.0, y0, wx * (1.0 - wy))
            + corner(x0, y0 + 1.0, (1.0 - wx) * wy)
            + corner(x0 + 1.0, y0 + 1.0, wx * wy))


# -----------------------------------------------------------------------------
# Parameter setup (deterministic, BN folded, packed for the kernel)
# -----------------------------------------------------------------------------
def init_params(key):
    ks = jax.random.split(key, 12)
    nrm = lambda k, s, sc: jax.random.normal(k, s, jnp.float32) * sc
    eps = 1e-5

    w1 = nrm(ks[0], (16, 32), 0.2); b1 = nrm(ks[1], (16,), 0.05)
    w2 = nrm(ks[2], (8, 16), 0.2);  b2 = nrm(ks[3], (8,), 0.05)
    w3 = nrm(ks[4], (4, 8), 0.2);   b3 = nrm(ks[5], (4,), 0.05)
    w4 = nrm(ks[6], (1, 4), 0.2);   b4 = nrm(ks[7], (1,), 0.05)

    def bn(k, c):
        k1, k2, k3, k4 = jax.random.split(k, 4)
        gamma = 1.0 + 0.1 * jax.random.normal(k1, (c,), jnp.float32)
        beta = 0.05 * jax.random.normal(k2, (c,), jnp.float32)
        mean = 0.05 * jax.random.normal(k3, (c,), jnp.float32)
        var = 0.5 + jax.random.uniform(k4, (c,), jnp.float32)
        return gamma, beta, mean, var

    def fold(w, b, g, be, m, v):
        s = g / jnp.sqrt(v + eps)
        return w * s[:, None], (b - m) * s + be

    w1f, b1f = fold(w1, b1, *bn(ks[8], 16))
    w2f, b2f = fold(w2, b2, *bn(ks[9], 8))
    w3f, b3f = fold(w3, b3, *bn(ks[10], 4))

    kmw, kmb = jax.random.split(ks[11])
    mlp_w = nrm(kmw, (16, 16), 0.2)
    mlp_b = nrm(kmb, (16,), 0.05)

    # conv1_1 acts on concat([neighbor, ego]); split into neighbor/ego halves.
    wm16 = jnp.stack([w1f[:, :16], w1f[:, 16:], mlp_w], axis=0)          # (3, 16, 16)

    def pad88(w):                                                        # 8-row padding is exact
        return jnp.zeros((8, 8), jnp.float32).at[:w.shape[0], :w.shape[1]].set(w)

    w34 = jnp.stack([pad88(w3f), pad88(w4)], axis=0)                     # (2, 8, 8)

    def padb(bv):
        return jnp.zeros((16, 1), jnp.float32).at[:bv.shape[0], 0].set(bv)

    biases = jnp.stack([padb(b1f), padb(b2f), padb(b3f), padb(b4),
                        padb(mlp_b)], axis=0)                            # (5, 16, 1)
    return {"wm16": wm16, "w2": w2f, "w34": w34, "biases": biases}


# -----------------------------------------------------------------------------
# DiscoNetFusion forward
# -----------------------------------------------------------------------------
def disconet_fusion_forward(x, record_len, pairwise_t_matrix, params,
                            discrete_ratio, downsample_rate):
    """x: (sum(record_len), C, H, W) NCHW float32; record_len: python list of ints."""
    _, C, H, W = x.shape
    P = H * W
    B, L = pairwise_t_matrix.shape[:2]
    N_max = max(record_len)

    t_mats = get_discretized_transformation_matrix(
        pairwise_t_matrix.reshape(-1, L, 4, 4), discrete_ratio, downsample_rate
    ).reshape(B, L, L, 2, 3)

    # regroup + pad raw (un-warped) features to (B, N_max, C, P).
    feats_list, start = [], 0
    for b in range(B):
        n = record_len[b]
        fb = x[start:start + n].reshape(n, C, P)
        start += n
        feats_list.append(jnp.zeros((N_max, C, P), jnp.float32).at[:n].set(fb))
    feats = jnp.stack(feats_list, axis=0)                                # (B, N_max, C, P)

    # Per-(ego i, neighbor j) bilinear warp expressed as a (P, P) matmul operand.
    # Original indexing: ego i uses t_matrix[:, i] -> pair (i, j) uses t_mats[b, j, i].
    M = jnp.swapaxes(t_mats[:, :N_max, :N_max], 1, 2)                    # (B, ego, nb, 2, 3)
    theta = get_transformation_matrix(M.reshape(B * N_max * N_max, 2, 3), (H, W))
    winterp = build_bilinear_warp_matrices(theta, H, W)                  # (B*N*N, P, P)
    winterp = winterp.reshape(B, N_max, N_max, P, P)

    # Zero padded (ego, neighbor) pairs, flatten the pair axis for the kernel.
    rl_arr = jnp.asarray(record_len, jnp.int32)                          # (B,)
    ag = jnp.arange(N_max)
    valid = ((ag[None, :, None] < rl_arr[:, None, None])
             & (ag[None, None, :] < rl_arr[:, None, None]))              # (B, N, N)
    winterp = jnp.where(valid[..., None, None], winterp, 0.0)
    winterp = winterp.reshape(B, N_max * N_max, P, P)

    # bf16 storage for the big HBM operands; the MXU accumulates in f32.
    fused = fused_disconet_pallas(rl_arr, feats.astype(jnp.bfloat16),
                                  winterp.astype(jnp.bfloat16), params, N_max, P)

    # As in the PyTorch module, only batch 0 is returned (MLP already fused in-kernel).
    N0 = record_len[0]
    return fused[0, :N0].reshape(N0, C, H, W)                            # NCHW


# -----------------------------------------------------------------------------
if __name__ == "__main__":
    key = jax.random.PRNGKey(0)
    kx, kp = jax.random.split(key)

    C, H, W = 16, 16, 16                # channel=16 is fixed by the module
    record_len = [3, 2]
    B, L = 2, 5
    discrete_ratio, downsample_rate = 0.4, 2

    x = jax.random.normal(kx, (sum(record_len), C, H, W), jnp.float32)

    eye = jnp.eye(4, dtype=jnp.float32)
    pairwise = jnp.tile(eye, (B, L, L, 1, 1))
    # small off-diagonal translations (meters) to exercise the warp
    pairwise = pairwise.at[:, :, :, 0, 3].set(0.8)
    pairwise = pairwise.at[:, :, :, 1, 3].set(-0.4)
    for b in range(B):
        for l in range(L):
            pairwise = pairwise.at[b, l, l].set(eye)

    params = init_params(kp)

    out = disconet_fusion_forward(x, record_len, pairwise, params,
                                  discrete_ratio, downsample_rate)
    out = jax.block_until_ready(out)
    assert out.shape == (record_len[0], C, H, W)
    assert jnp.all(jnp.isfinite(out))
    print("KERNEL_OK")
</pallas_src>

<mosaic_0001>
module attributes {stable_mosaic.version = 11 : i64} {
  func.func @_fusion_kernel(%arg0: i32, %arg1: memref<2xi32, #tpu.memory_space<smem>>, %arg2: memref<1x3x16x256xbf16, #tpu.memory_space<vmem>>, %arg3: memref<1x9x256x256xbf16, #tpu.memory_space<vmem>>, %arg4: memref<3x16x16xf32, #tpu.memory_space<vmem>>, %arg5: memref<8x16xf32, #tpu.memory_space<vmem>>, %arg6: memref<2x8x8xf32, #tpu.memory_space<vmem>>, %arg7: memref<5x16x1xf32, #tpu.memory_space<vmem>>, %arg8: memref<1x3x16x256xf32, #tpu.memory_space<vmem>>) attributes {dimension_semantics = [#tpu.dimension_semantics<parallel>], iteration_bounds = array<i64: 2>, scalar_prefetch = 1 : i64, scratch_operands = 0 : i64, tpu.core_type = #tpu.core_type<tc>, window_params = [{transform_indices = @transform_0, window_bounds = array<i64: 1, 3, 16, 256>}, {transform_indices = @transform_1, window_bounds = array<i64: 1, 9, 256, 256>}, {pipeline_mode = #tpu.pipeline_mode<synchronous>, transform_indices = @transform_2, window_bounds = array<i64: 3, 16, 16>}, {pipeline_mode = #tpu.pipeline_mode<synchronous>, transform_indices = @transform_3, window_bounds = array<i64: 8, 16>}, {pipeline_mode = #tpu.pipeline_mode<synchronous>, transform_indices = @transform_4, window_bounds = array<i64: 2, 8, 8>}, {pipeline_mode = #tpu.pipeline_mode<synchronous>, transform_indices = @transform_5, window_bounds = array<i64: 5, 16, 1>}, {transform_indices = @transform_6, window_bounds = array<i64: 1, 3, 16, 256>}]} {
    %0 = arith.index_cast %arg0 : i32 to index
    %1 = memref.load %arg1[%0] : memref<2xi32, #tpu.memory_space<smem>>
    %c0 = arith.constant 0 : index
    %c0_0 = arith.constant 0 : index
    %c0_1 = arith.constant 0 : index
    %2 = vector.load %arg4[%c0, %c0_0, %c0_1] : memref<3x16x16xf32, #tpu.memory_space<vmem>>, vector<1x16x16xf32>
    %3 = vector.shape_cast %2 : vector<1x16x16xf32> to vector<16x16xf32>
    %c1 = arith.constant 1 : index
    %c0_2 = arith.constant 0 : index
    %c0_3 = arith.constant 0 : index
    %4 = vector.load %arg4[%c1, %c0_2, %c0_3] : memref<3x16x16xf32, #tpu.memory_space<vmem>>, vector<1x16x16xf32>
    %5 = vector.shape_cast %4 : vector<1x16x16xf32> to vector<16x16xf32>
    %c2 = arith.constant 2 : index
    %c0_4 = arith.constant 0 : index
    %c0_5 = arith.constant 0 : index
    %6 = vector.load %arg4[%c2, %c0_4, %c0_5] : memref<3x16x16xf32, #tpu.memory_space<vmem>>, vector<1x16x16xf32>
    %7 = vector.shape_cast %6 : vector<1x16x16xf32> to vector<16x16xf32>
    %c0_6 = arith.constant 0 : index
    %c0_7 = arith.constant 0 : index
    %8 = vector.load %arg5[%c0_6, %c0_7] : memref<8x16xf32, #tpu.memory_space<vmem>>, vector<8x16xf32>
    %c0_8 = arith.constant 0 : index
    %c0_9 = arith.constant 0 : index
    %c0_10 = arith.constant 0 : index
    %9 = vector.load %arg6[%c0_8, %c0_9, %c0_10] : memref<2x8x8xf32, #tpu.memory_space<vmem>>, vector<1x8x8xf32>
    %10 = vector.shape_cast %9 : vector<1x8x8xf32> to vector<8x8xf32>
    %c1_11 = arith.constant 1 : index
    %c0_12 = arith.constant 0 : index
    %c0_13 = arith.constant 0 : index
    %11 = vector.load %arg6[%c1_11, %c0_12, %c0_13] : memref<2x8x8xf32, #tpu.memory_space<vmem>>, vector<1x8x8xf32>
    %12 = vector.shape_cast %11 : vector<1x8x8xf32> to vector<8x8xf32>
    %c0_14 = arith.constant 0 : index
    %c0_15 = arith.constant 0 : index
    %c0_16 = arith.constant 0 : index
    %13 = vector.load %arg7[%c0_14, %c0_15, %c0_16] : memref<5x16x1xf32, #tpu.memory_space<vmem>>, vector<1x16x1xf32>
    %14 = vector.shape_cast %13 : vector<1x16x1xf32> to vector<16x1xf32>
    %c1_17 = arith.constant 1 : index
    %c0_18 = arith.constant 0 : index
    %c0_19 = arith.constant 0 : index
    %15 = vector.load %arg7[%c1_17, %c0_18, %c0_19] : memref<5x16x1xf32, #tpu.memory_space<vmem>>, vector<1x16x1xf32>
    %16 = vector.shape_cast %15 : vector<1x16x1xf32> to vector<16x1xf32>
    %17 = vector.extract_strided_slice %16 {offsets = [0, 0], sizes = [8, 1], strides = [1, 1]} : vector<16x1xf32> to vector<8x1xf32>
    %c2_20 = arith.constant 2 : index
    %c0_21 = arith.constant 0 : index
    %c0_22 = arith.constant 0 : index
    %18 = vector.load %arg7[%c2_20, %c0_21, %c0_22] : memref<5x16x1xf32, #tpu.memory_space<vmem>>, vector<1x16x1xf32>
    %19 = vector.shape_cast %18 : vector<1x16x1xf32> to vector<16x1xf32>
    %20 = vector.extract_strided_slice %19 {offsets = [0, 0], sizes = [8, 1], strides = [1, 1]} : vector<16x1xf32> to vector<8x1xf32>
    %c3 = arith.constant 3 : index
    %c0_23 = arith.constant 0 : index
    %c0_24 = arith.constant 0 : index
    %21 = vector.load %arg7[%c3, %c0_23, %c0_24] : memref<5x16x1xf32, #tpu.memory_space<vmem>>, vector<1x16x1xf32>
    %22 = vector.shape_cast %21 : vector<1x16x1xf32> to vector<16x1xf32>
    %23 = vector.extract_strided_slice %22 {offsets = [0, 0], sizes = [1, 1], strides = [1, 1]} : vector<16x1xf32> to vector<1x1xf32>
    %c4 = arith.constant 4 : index
    %c0_25 = arith.constant 0 : index
    %c0_26 = arith.constant 0 : index
    %24 = vector.load %arg7[%c4, %c0_25, %c0_26] : memref<5x16x1xf32, #tpu.memory_space<vmem>>, vector<1x16x1xf32>
    %25 = vector.shape_cast %24 : vector<1x16x1xf32> to vector<16x1xf32>
    %c0_i32 = arith.constant 0 : i32
    %26 = arith.cmpi sgt, %1, %c0_i32 : i32
    %27 = arith.extui %26 : i1 to i32
    %c0_i32_27 = arith.constant 0 : i32
    %28 = arith.cmpi ne, %27, %c0_i32_27 : i32
    scf.if %28 {
      %c0_36 = arith.constant 0 : index
      %c0_37 = arith.constant 0 : index
      %c0_38 = arith.constant 0 : index
      %c0_39 = arith.constant 0 : index
      %44 = vector.load %arg2[%c0_36, %c0_37, %c0_38, %c0_39] : memref<1x3x16x256xbf16, #tpu.memory_space<vmem>>, vector<1x1x16x256xbf16>
      %45 = vector.shape_cast %44 : vector<1x1x16x256xbf16> to vector<16x256xbf16>
      %46 = arith.extf %45 : vector<16x256xbf16> to vector<16x256xf32>
      %cst = arith.constant dense<0.000000e+00> : vector<16x256xf32>
      %47 = tpu.matmul %5, %46, %cst {dimension_numbers = #tpu.dot_dimension_numbers<[1], [0], [0], [1], [0, 0, 1, 1], [], []>} : vector<16x16xf32>, vector<16x256xf32>, vector<16x256xf32> -> vector<16x256xf32>
      %48 = vector.broadcast %14 : vector<16x1xf32> to vector<16x256xf32>
      %49 = arith.addf %47, %48 : vector<16x256xf32>
      %c0_40 = arith.constant 0 : index
      %c0_41 = arith.constant 0 : index
      %c0_42 = arith.constant 0 : index
      %c0_43 = arith.constant 0 : index
      %50 = vector.load %arg2[%c0_40, %c0_41, %c0_42, %c0_43] : memref<1x3x16x256xbf16, #tpu.memory_space<vmem>>, vector<1x1x16x256xbf16>
      %51 = vector.shape_cast %50 : vector<1x1x16x256xbf16> to vector<16x256xbf16>
      %c0_44 = arith.constant 0 : index
      %c0_45 = arith.constant 0 : index
      %c0_46 = arith.constant 0 : index
      %c0_47 = arith.constant 0 : index
      %52 = vector.load %arg3[%c0_44, %c0_45, %c0_46, %c0_47] : memref<1x9x256x256xbf16, #tpu.memory_space<vmem>>, vector<1x1x256x256xbf16>
      %53 = vector.shape_cast %52 : vector<1x1x256x256xbf16> to vector<256x256xbf16>
      %cst_48 = arith.constant dense<0.000000e+00> : vector<16x256xf32>
      %54 = tpu.matmul %51, %53, %cst_48 {dimension_numbers = #tpu.dot_dimension_numbers<[1], [0], [0], [1], [0, 0, 1, 1], [], []>} : vector<16x256xbf16>, vector<256x256xbf16>, vector<16x256xf32> -> vector<16x256xf32>
      %cst_49 = arith.constant dense<0.000000e+00> : vector<16x256xf32>
      %55 = tpu.matmul %3, %54, %cst_49 {dimension_numbers = #tpu.dot_dimension_numbers<[1], [0], [0], [1], [0, 0, 1, 1], [], []>} : vector<16x16xf32>, vector<16x256xf32>, vector<16x256xf32> -> vector<16x256xf32>
      %56 = arith.addf %55, %49 : vector<16x256xf32>
      %cst_50 = arith.constant 0.000000e+00 : f32
      %57 = vector.broadcast %cst_50 : f32 to vector<16x256xf32>
      %58 = arith.maximumf %56, %57 : vector<16x256xf32>
      %cst_51 = arith.constant dense<0.000000e+00> : vector<8x256xf32>
      %59 = tpu.matmul %8, %58, %cst_51 {dimension_numbers = #tpu.dot_dimension_numbers<[1], [0], [0], [1], [0, 0, 1, 1], [], []>} : vector<8x16xf32>, vector<16x256xf32>, vector<8x256xf32> -> vector<8x256xf32>
      %60 = vector.broadcast %17 : vector<8x1xf32> to vector<8x256xf32>
      %61 = arith.addf %59, %60 : vector<8x256xf32>
      %cst_52 = arith.constant 0.000000e+00 : f32
      %62 = vector.broadcast %cst_52 : f32 to vector<8x256xf32>
      %63 = arith.maximumf %61, %62 : vector<8x256xf32>
      %cst_53 = arith.constant dense<0.000000e+00> : vector<8x256xf32>
      %64 = tpu.matmul %10, %63, %cst_53 {dimension_numbers = #tpu.dot_dimension_numbers<[1], [0], [0], [1], [0, 0, 1, 1], [], []>} : vector<8x8xf32>, vector<8x256xf32>, vector<8x256xf32> -> vector<8x256xf32>
      %65 = vector.broadcast %20 : vector<8x1xf32> to vector<8x256xf32>
      %66 = arith.addf %64, %65 : vector<8x256xf32>
      %cst_54 = arith.constant 0.000000e+00 : f32
      %67 = vector.broadcast %cst_54 : f32 to vector<8x256xf32>
      %68 = arith.maximumf %66, %67 : vector<8x256xf32>
      %cst_55 = arith.constant dense<0.000000e+00> : vector<8x256xf32>
      %69 = tpu.matmul %12, %68, %cst_55 {dimension_numbers = #tpu.dot_dimension_numbers<[1], [0], [0], [1], [0, 0, 1, 1], [], []>} : vector<8x8xf32>, vector<8x256xf32>, vector<8x256xf32> -> vector<8x256xf32>
      %70 = vector.extract_strided_slice %69 {offsets = [0, 0], sizes = [1, 256], strides = [1, 1]} : vector<8x256xf32> to vector<1x256xf32>
      %71 = vector.broadcast %23 : vector<1x1xf32> to vector<1x256xf32>
      %72 = arith.addf %70, %71 : vector<1x256xf32>
      %cst_56 = arith.constant 0.000000e+00 : f32
      %73 = vector.broadcast %cst_56 : f32 to vector<1x256xf32>
      %74 = arith.maximumf %72, %73 : vector<1x256xf32>
      %c0_i32_57 = arith.constant 0 : i32
      %75 = arith.cmpi sgt, %1, %c0_i32_57 : i32
      %cst_58 = arith.constant 0.000000e+00 : f32
      %cst_59 = arith.constant -1.000000e+30 : f32
      %76 = arith.select %75, %cst_58, %cst_59 : f32
      %77 = vector.broadcast %76 : f32 to vector<1x256xf32>
      %78 = arith.addf %74, %77 : vector<1x256xf32>
      %c0_60 = arith.constant 0 : index
      %c1_61 = arith.constant 1 : index
      %c0_62 = arith.constant 0 : index
      %c0_63 = arith.constant 0 : index
      %79 = vector.load %arg2[%c0_60, %c1_61, %c0_62, %c0_63] : memref<1x3x16x256xbf16, #tpu.memory_space<vmem>>, vector<1x1x16x256xbf16>
      %80 = vector.shape_cast %79 : vector<1x1x16x256xbf16> to vector<16x256xbf16>
      %c0_64 = arith.constant 0 : index
      %c1_65 = arith.constant 1 : index
      %c0_66 = arith.constant 0 : index
      %c0_67 = arith.constant 0 : index
      %81 = vector.load %arg3[%c0_64, %c1_65, %c0_66, %c0_67] : memref<1x9x256x256xbf16, #tpu.memory_space<vmem>>, vector<1x1x256x256xbf16>
      %82 = vector.shape_cast %81 : vector<1x1x256x256xbf16> to vector<256x256xbf16>
      %cst_68 = arith.constant dense<0.000000e+00> : vector<16x256xf32>
      %83 = tpu.matmul %80, %82, %cst_68 {dimension_numbers = #tpu.dot_dimension_numbers<[1], [0], [0], [1], [0, 0, 1, 1], [], []>} : vector<16x256xbf16>, vector<256x256xbf16>, vector<16x256xf32> -> vector<16x256xf32>
      %cst_69 = arith.constant dense<0.000000e+00> : vector<16x256xf32>
      %84 = tpu.matmul %3, %83, %cst_69 {dimension_numbers = #tpu.dot_dimension_numbers<[1], [0], [0], [1], [0, 0, 1, 1], [], []>} : vector<16x16xf32>, vector<16x256xf32>, vector<16x256xf32> -> vector<16x256xf32>
      %85 = arith.addf %84, %49 : vector<16x256xf32>
      %cst_70 = arith.constant 0.000000e+00 : f32
      %86 = vector.broadcast %cst_70 : f32 to vector<16x256xf32>
      %87 = arith.maximumf %85, %86 : vector<16x256xf32>
      %cst_71 = arith.constant dense<0.000000e+00> : vector<8x256xf32>
      %88 = tpu.matmul %8, %87, %cst_71 {dimension_numbers = #tpu.dot_dimension_numbers<[1], [0], [0], [1], [0, 0, 1, 1], [], []>} : vector<8x16xf32>, vector<16x256xf32>, vector<8x256xf32> -> vector<8x256xf32>
      %89 = vector.broadcast %17 : vector<8x1xf32> to vector<8x256xf32>
      %90 = arith.addf %88, %89 : vector<8x256xf32>
      %cst_72 = arith.constant 0.000000e+00 : f32
      %91 = vector.broadcast %cst_72 : f32 to vector<8x256xf32>
      %92 = arith.maximumf %90, %91 : vector<8x256xf32>
      %cst_73 = arith.constant dense<0.000000e+00> : vector<8x256xf32>
      %93 = tpu.matmul %10, %92, %cst_73 {dimension_numbers = #tpu.dot_dimension_numbers<[1], [0], [0], [1], [0, 0, 1, 1], [], []>} : vector<8x8xf32>, vector<8x256xf32>, vector<8x256xf32> -> vector<8x256xf32>
      %94 = vector.broadcast %20 : vector<8x1xf32> to vector<8x256xf32>
      %95 = arith.addf %93, %94 : vector<8x256xf32>
      %cst_74 = arith.constant 0.000000e+00 : f32
      %96 = vector.broadcast %cst_74 : f32 to vector<8x256xf32>
      %97 = arith.maximumf %95, %96 : vector<8x256xf32>
      %cst_75 = arith.constant dense<0.000000e+00> : vector<8x256xf32>
      %98 = tpu.matmul %12, %97, %cst_75 {dimension_numbers = #tpu.dot_dimension_numbers<[1], [0], [0], [1], [0, 0, 1, 1], [], []>} : vector<8x8xf32>, vector<8x256xf32>, vector<8x256xf32> -> vector<8x256xf32>
      %99 = vector.extract_strided_slice %98 {offsets = [0, 0], sizes = [1, 256], strides = [1, 1]} : vector<8x256xf32> to vector<1x256xf32>
      %100 = vector.broadcast %23 : vector<1x1xf32> to vector<1x256xf32>
      %101 = arith.addf %99, %100 : vector<1x256xf32>
      %cst_76 = arith.constant 0.000000e+00 : f32
      %102 = vector.broadcast %cst_76 : f32 to vector<1x256xf32>
      %103 = arith.maximumf %101, %102 : vector<1x256xf32>
      %c1_i32_77 = arith.constant 1 : i32
      %104 = arith.cmpi sgt, %1, %c1_i32_77 : i32
      %cst_78 = arith.constant 0.000000e+00 : f32
      %cst_79 = arith.constant -1.000000e+30 : f32
      %105 = arith.select %104, %cst_78, %cst_79 : f32
      %106 = vector.broadcast %105 : f32 to vector<1x256xf32>
      %107 = arith.addf %103, %106 : vector<1x256xf32>
      %c0_80 = arith.constant 0 : index
      %c2_81 = arith.constant 2 : index
      %c0_82 = arith.constant 0 : index
      %c0_83 = arith.constant 0 : index
      %108 = vector.load %arg2[%c0_80, %c2_81, %c0_82, %c0_83] : memref<1x3x16x256xbf16, #tpu.memory_space<vmem>>, vector<1x1x16x256xbf16>
      %109 = vector.shape_cast %108 : vector<1x1x16x256xbf16> to vector<16x256xbf16>
      %c0_84 = arith.constant 0 : index
      %c2_85 = arith.constant 2 : index
      %c0_86 = arith.constant 0 : index
      %c0_87 = arith.constant 0 : index
      %110 = vector.load %arg3[%c0_84, %c2_85, %c0_86, %c0_87] : memref<1x9x256x256xbf16, #tpu.memory_space<vmem>>, vector<1x1x256x256xbf16>
      %111 = vector.shape_cast %110 : vector<1x1x256x256xbf16> to vector<256x256xbf16>
      %cst_88 = arith.constant dense<0.000000e+00> : vector<16x256xf32>
      %112 = tpu.matmul %109, %111, %cst_88 {dimension_numbers = #tpu.dot_dimension_numbers<[1], [0], [0], [1], [0, 0, 1, 1], [], []>} : vector<16x256xbf16>, vector<256x256xbf16>, vector<16x256xf32> -> vector<16x256xf32>
      %cst_89 = arith.constant dense<0.000000e+00> : vector<16x256xf32>
      %113 = tpu.matmul %3, %112, %cst_89 {dimension_numbers = #tpu.dot_dimension_numbers<[1], [0], [0], [1], [0, 0, 1, 1], [], []>} : vector<16x16xf32>, vector<16x256xf32>, vector<16x256xf32> -> vector<16x256xf32>
      %114 = arith.addf %113, %49 : vector<16x256xf32>
      %cst_90 = arith.constant 0.000000e+00 : f32
      %115 = vector.broadcast %cst_90 : f32 to vector<16x256xf32>
      %116 = arith.maximumf %114, %115 : vector<16x256xf32>
      %cst_91 = arith.constant dense<0.000000e+00> : vector<8x256xf32>
      %117 = tpu.matmul %8, %116, %cst_91 {dimension_numbers = #tpu.dot_dimension_numbers<[1], [0], [0], [1], [0, 0, 1, 1], [], []>} : vector<8x16xf32>, vector<16x256xf32>, vector<8x256xf32> -> vector<8x256xf32>
      %118 = vector.broadcast %17 : vector<8x1xf32> to vector<8x256xf32>
      %119 = arith.addf %117, %118 : vector<8x256xf32>
      %cst_92 = arith.constant 0.000000e+00 : f32
      %120 = vector.broadcast %cst_92 : f32 to vector<8x256xf32>
      %121 = arith.maximumf %119, %120 : vector<8x256xf32>
      %cst_93 = arith.constant dense<0.000000e+00> : vector<8x256xf32>
      %122 = tpu.matmul %10, %121, %cst_93 {dimension_numbers = #tpu.dot_dimension_numbers<[1], [0], [0], [1], [0, 0, 1, 1], [], []>} : vector<8x8xf32>, vector<8x256xf32>, vector<8x256xf32> -> vector<8x256xf32>
      %123 = vector.broadcast %20 : vector<8x1xf32> to vector<8x256xf32>
      %124 = arith.addf %122, %123 : vector<8x256xf32>
      %cst_94 = arith.constant 0.000000e+00 : f32
      %125 = vector.broadcast %cst_94 : f32 to vector<8x256xf32>
      %126 = arith.maximumf %124, %125 : vector<8x256xf32>
      %cst_95 = arith.constant dense<0.000000e+00> : vector<8x256xf32>
      %127 = tpu.matmul %12, %126, %cst_95 {dimension_numbers = #tpu.dot_dimension_numbers<[1], [0], [0], [1], [0, 0, 1, 1], [], []>} : vector<8x8xf32>, vector<8x256xf32>, vector<8x256xf32> -> vector<8x256xf32>
      %128 = vector.extract_strided_slice %127 {offsets = [0, 0], sizes = [1, 256], strides = [1, 1]} : vector<8x256xf32> to vector<1x256xf32>
      %129 = vector.broadcast %23 : vector<1x1xf32> to vector<1x256xf32>
      %130 = arith.addf %128, %129 : vector<1x256xf32>
      %cst_96 = arith.constant 0.000000e+00 : f32
      %131 = vector.broadcast %cst_96 : f32 to vector<1x256xf32>
      %132 = arith.maximumf %130, %131 : vector<1x256xf32>
      %c2_i32_97 = arith.constant 2 : i32
      %133 = arith.cmpi sgt, %1, %c2_i32_97 : i32
      %cst_98 = arith.constant 0.000000e+00 : f32
      %cst_99 = arith.constant -1.000000e+30 : f32
      %134 = arith.select %133, %cst_98, %cst_99 : f32
      %135 = vector.broadcast %134 : f32 to vector<1x256xf32>
      %136 = arith.addf %132, %135 : vector<1x256xf32>
      %137 = arith.maximumf %78, %107 : vector<1x256xf32>
      %138 = arith.maximumf %137, %136 : vector<1x256xf32>
      %139 = arith.subf %78, %138 : vector<1x256xf32>
      %140 = math.exp %139 : vector<1x256xf32>
      %141 = arith.subf %107, %138 : vector<1x256xf32>
      %142 = math.exp %141 : vector<1x256xf32>
      %143 = arith.subf %136, %138 : vector<1x256xf32>
      %144 = math.exp %143 : vector<1x256xf32>
      %145 = arith.addf %140, %142 : vector<1x256xf32>
      %146 = arith.addf %145, %144 : vector<1x256xf32>
      %147 = tpu.reciprocal %146 {approx = true} : vector<1x256xf32> -> vector<1x256xf32>
      %148 = arith.mulf %140, %147 : vector<1x256xf32>
      %149 = vector.broadcast %148 : vector<1x256xf32> to vector<16x256xf32>
      %150 = arith.mulf %54, %149 : vector<16x256xf32>
      %151 = arith.mulf %142, %147 : vector<1x256xf32>
      %152 = vector.broadcast %151 : vector<1x256xf32> to vector<16x256xf32>
      %153 = arith.mulf %83, %152 : vector<16x256xf32>
      %154 = arith.addf %150, %153 : vector<16x256xf32>
      %155 = arith.mulf %144, %147 : vector<1x256xf32>
      %156 = vector.broadcast %155 : vector<1x256xf32> to vector<16x256xf32>
      %157 = arith.mulf %112, %156 : vector<16x256xf32>
      %158 = arith.addf %154, %157 : vector<16x256xf32>
      %cst_100 = arith.constant dense<0.000000e+00> : vector<16x256xf32>
      %159 = tpu.matmul %7, %158, %cst_100 {dimension_numbers = #tpu.dot_dimension_numbers<[1], [0], [0], [1], [0, 0, 1, 1], [], []>} : vector<16x16xf32>, vector<16x256xf32>, vector<16x256xf32> -> vector<16x256xf32>
      %160 = vector.broadcast %25 : vector<16x1xf32> to vector<16x256xf32>
      %161 = arith.addf %159, %160 : vector<16x256xf32>
      %c0_101 = arith.constant 0 : index
      %c0_102 = arith.constant 0 : index
      %c0_103 = arith.constant 0 : index
      %c0_104 = arith.constant 0 : index
      %162 = vector.load %arg8[%c0_101, %c0_102, %c0_103, %c0_104] : memref<1x3x16x256xf32, #tpu.memory_space<vmem>>, vector<1x1x16x256xf32>
      %163 = vector.shape_cast %162 : vector<1x1x16x256xf32> to vector<16x256xf32>
      %164 = vector.shape_cast %161 : vector<16x256xf32> to vector<1x1x16x256xf32>
      tpu.vector_store %arg8[%c0_101, %c0_102, %c0_103, %c0_104], %164 {strides = array<i32>} : memref<1x3x16x256xf32, #tpu.memory_space<vmem>>, vector<1x1x16x256xf32>,
    } else {
    }
    %c0_i32_28 = arith.constant 0 : i32
    %29 = arith.cmpi sle, %1, %c0_i32_28 : i32
    %30 = arith.extui %29 : i1 to i32
    %c0_i32_29 = arith.constant 0 : i32
    %31 = arith.cmpi ne, %30, %c0_i32_29 : i32
    scf.if %31 {
      %cst = arith.constant 0.000000e+00 : f32
      %44 = vector.broadcast %cst : f32 to vector<16x256xf32>
      %c0_36 = arith.constant 0 : index
      %c0_37 = arith.constant 0 : index
      %c0_38 = arith.constant 0 : index
      %c0_39 = arith.constant 0 : index
      %45 = vector.load %arg8[%c0_36, %c0_37, %c0_38, %c0_39] : memref<1x3x16x256xf32, #tpu.memory_space<vmem>>, vector<1x1x16x256xf32>
      %46 = vector.shape_cast %45 : vector<1x1x16x256xf32> to vector<16x256xf32>
      %47 = vector.shape_cast %44 : vector<16x256xf32> to vector<1x1x16x256xf32>
      tpu.vector_store %arg8[%c0_36, %c0_37, %c0_38, %c0_39], %47 {strides = array<i32>} : memref<1x3x16x256xf32, #tpu.memory_space<vmem>>, vector<1x1x16x256xf32>,
    } else {
    }
    %c1_i32 = arith.constant 1 : i32
    %32 = arith.cmpi sgt, %1, %c1_i32 : i32
    %33 = arith.extui %32 : i1 to i32
    %c0_i32_30 = arith.constant 0 : i32
    %34 = arith.cmpi ne, %33, %c0_i32_30 : i32
    scf.if %34 {
      %c0_36 = arith.constant 0 : index
      %c1_37 = arith.constant 1 : index
      %c0_38 = arith.constant 0 : index
      %c0_39 = arith.constant 0 : index
      %44 = vector.load %arg2[%c0_36, %c1_37, %c0_38, %c0_39] : memref<1x3x16x256xbf16, #tpu.memory_space<vmem>>, vector<1x1x16x256xbf16>
      %45 = vector.shape_cast %44 : vector<1x1x16x256xbf16> to vector<16x256xbf16>
      %46 = arith.extf %45 : vector<16x256xbf16> to vector<16x256xf32>
      %cst = arith.constant dense<0.000000e+00> : vector<16x256xf32>
      %47 = tpu.matmul %5, %46, %cst {dimension_numbers = #tpu.dot_dimension_numbers<[1], [0], [0], [1], [0, 0, 1, 1], [], []>} : vector<16x16xf32>, vector<16x256xf32>, vector<16x256xf32> -> vector<16x256xf32>
      %48 = vector.broadcast %14 : vector<16x1xf32> to vector<16x256xf32>
      %49 = arith.addf %47, %48 : vector<16x256xf32>
      %c0_40 = arith.constant 0 : index
      %c0_41 = arith.constant 0 : index
      %c0_42 = arith.constant 0 : index
      %c0_43 = arith.constant 0 : index
      %50 = vector.load %arg2[%c0_40, %c0_41, %c0_42, %c0_43] : memref<1x3x16x256xbf16, #tpu.memory_space<vmem>>, vector<1x1x16x256xbf16>
      %51 = vector.shape_cast %50 : vector<1x1x16x256xbf16> to vector<16x256xbf16>
      %c0_44 = arith.constant 0 : index
      %c3_45 = arith.constant 3 : index
      %c0_46 = arith.constant 0 : index
      %c0_47 = arith.constant 0 : index
      %52 = vector.load %arg3[%c0_44, %c3_45, %c0_46, %c0_47] : memref<1x9x256x256xbf16, #tpu.memory_space<vmem>>, vector<1x1x256x256xbf16>
      %53 = vector.shape_cast %52 : vector<1x1x256x256xbf16> to vector<256x256xbf16>
      %cst_48 = arith.constant dense<0.000000e+00> : vector<16x256xf32>
      %54 = tpu.matmul %51, %53, %cst_48 {dimension_numbers = #tpu.dot_dimension_numbers<[1], [0], [0], [1], [0, 0, 1, 1], [], []>} : vector<16x256xbf16>, vector<256x256xbf16>, vector<16x256xf32> -> vector<16x256xf32>
      %cst_49 = arith.constant dense<0.000000e+00> : vector<16x256xf32>
      %55 = tpu.matmul %3, %54, %cst_49 {dimension_numbers = #tpu.dot_dimension_numbers<[1], [0], [0], [1], [0, 0, 1, 1], [], []>} : vector<16x16xf32>, vector<16x256xf32>, vector<16x256xf32> -> vector<16x256xf32>
      %56 = arith.addf %55, %49 : vector<16x256xf32>
      %cst_50 = arith.constant 0.000000e+00 : f32
      %57 = vector.broadcast %cst_50 : f32 to vector<16x256xf32>
      %58 = arith.maximumf %56, %57 : vector<16x256xf32>
      %cst_51 = arith.constant dense<0.000000e+00> : vector<8x256xf32>
      %59 = tpu.matmul %8, %58, %cst_51 {dimension_numbers = #tpu.dot_dimension_numbers<[1], [0], [0], [1], [0, 0, 1, 1], [], []>} : vector<8x16xf32>, vector<16x256xf32>, vector<8x256xf32> -> vector<8x256xf32>
      %60 = vector.broadcast %17 : vector<8x1xf32> to vector<8x256xf32>
      %61 = arith.addf %59, %60 : vector<8x256xf32>
      %cst_52 = arith.constant 0.000000e+00 : f32
      %62 = vector.broadcast %cst_52 : f32 to vector<8x256xf32>
      %63 = arith.maximumf %61, %62 : vector<8x256xf32>
      %cst_53 = arith.constant dense<0.000000e+00> : vector<8x256xf32>
      %64 = tpu.matmul %10, %63, %cst_53 {dimension_numbers = #tpu.dot_dimension_numbers<[1], [0], [0], [1], [0, 0, 1, 1], [], []>} : vector<8x8xf32>, vector<8x256xf32>, vector<8x256xf32> -> vector<8x256xf32>
      %65 = vector.broadcast %20 : vector<8x1xf32> to vector<8x256xf32>
      %66 = arith.addf %64, %65 : vector<8x256xf32>
      %cst_54 = arith.constant 0.000000e+00 : f32
      %67 = vector.broadcast %cst_54 : f32 to vector<8x256xf32>
      %68 = arith.maximumf %66, %67 : vector<8x256xf32>
      %cst_55 = arith.constant dense<0.000000e+00> : vector<8x256xf32>
      %69 = tpu.matmul %12, %68, %cst_55 {dimension_numbers = #tpu.dot_dimension_numbers<[1], [0], [0], [1], [0, 0, 1, 1], [], []>} : vector<8x8xf32>, vector<8x256xf32>, vector<8x256xf32> -> vector<8x256xf32>
      %70 = vector.extract_strided_slice %69 {offsets = [0, 0], sizes = [1, 256], strides = [1, 1]} : vector<8x256xf32> to vector<1x256xf32>
      %71 = vector.broadcast %23 : vector<1x1xf32> to vector<1x256xf32>
      %72 = arith.addf %70, %71 : vector<1x256xf32>
      %cst_56 = arith.constant 0.000000e+00 : f32
      %73 = vector.broadcast %cst_56 : f32 to vector<1x256xf32>
      %74 = arith.maximumf %72, %73 : vector<1x256xf32>
      %c0_i32_57 = arith.constant 0 : i32
      %75 = arith.cmpi sgt, %1, %c0_i32_57 : i32
      %cst_58 = arith.constant 0.000000e+00 : f32
      %cst_59 = arith.constant -1.000000e+30 : f32
      %76 = arith.select %75, %cst_58, %cst_59 : f32
      %77 = vector.broadcast %76 : f32 to vector<1x256xf32>
      %78 = arith.addf %74, %77 : vector<1x256xf32>
      %c0_60 = arith.constant 0 : index
      %c1_61 = arith.constant 1 : index
      %c0_62 = arith.constant 0 : index
      %c0_63 = arith.constant 0 : index
      %79 = vector.load %arg2[%c0_60, %c1_61, %c0_62, %c0_63] : memref<1x3x16x256xbf16, #tpu.memory_space<vmem>>, vector<1x1x16x256xbf16>
      %80 = vector.shape_cast %79 : vector<1x1x16x256xbf16> to vector<16x256xbf16>
      %c0_64 = arith.constant 0 : index
      %c4_65 = arith.constant 4 : index
      %c0_66 = arith.constant 0 : index
      %c0_67 = arith.constant 0 : index
      %81 = vector.load %arg3[%c0_64, %c4_65, %c0_66, %c0_67] : memref<1x9x256x256xbf16, #tpu.memory_space<vmem>>, vector<1x1x256x256xbf16>
      %82 = vector.shape_cast %81 : vector<1x1x256x256xbf16> to vector<256x256xbf16>
      %cst_68 = arith.constant dense<0.000000e+00> : vector<16x256xf32>
      %83 = tpu.matmul %80, %82, %cst_68 {dimension_numbers = #tpu.dot_dimension_numbers<[1], [0], [0], [1], [0, 0, 1, 1], [], []>} : vector<16x256xbf16>, vector<256x256xbf16>, vector<16x256xf32> -> vector<16x256xf32>
      %cst_69 = arith.constant dense<0.000000e+00> : vector<16x256xf32>
      %84 = tpu.matmul %3, %83, %cst_69 {dimension_numbers = #tpu.dot_dimension_numbers<[1], [0], [0], [1], [0, 0, 1, 1], [], []>} : vector<16x16xf32>, vector<16x256xf32>, vector<16x256xf32> -> vector<16x256xf32>
      %85 = arith.addf %84, %49 : vector<16x256xf32>
      %cst_70 = arith.constant 0.000000e+00 : f32
      %86 = vector.broadcast %cst_70 : f32 to vector<16x256xf32>
      %87 = arith.maximumf %85, %86 : vector<16x256xf32>
      %cst_71 = arith.constant dense<0.000000e+00> : vector<8x256xf32>
      %88 = tpu.matmul %8, %87, %cst_71 {dimension_numbers = #tpu.dot_dimension_numbers<[1], [0], [0], [1], [0, 0, 1, 1], [], []>} : vector<8x16xf32>, vector<16x256xf32>, vector<8x256xf32> -> vector<8x256xf32>
      %89 = vector.broadcast %17 : vector<8x1xf32> to vector<8x256xf32>
      %90 = arith.addf %88, %89 : vector<8x256xf32>
      %cst_72 = arith.constant 0.000000e+00 : f32
      %91 = vector.broadcast %cst_72 : f32 to vector<8x256xf32>
      %92 = arith.maximumf %90, %91 : vector<8x256xf32>
      %cst_73 = arith.constant dense<0.000000e+00> : vector<8x256xf32>
      %93 = tpu.matmul %10, %92, %cst_73 {dimension_numbers = #tpu.dot_dimension_numbers<[1], [0], [0], [1], [0, 0, 1, 1], [], []>} : vector<8x8xf32>, vector<8x256xf32>, vector<8x256xf32> -> vector<8x256xf32>
      %94 = vector.broadcast %20 : vector<8x1xf32> to vector<8x256xf32>
      %95 = arith.addf %93, %94 : vector<8x256xf32>
      %cst_74 = arith.constant 0.000000e+00 : f32
      %96 = vector.broadcast %cst_74 : f32 to vector<8x256xf32>
      %97 = arith.maximumf %95, %96 : vector<8x256xf32>
      %cst_75 = arith.constant dense<0.000000e+00> : vector<8x256xf32>
      %98 = tpu.matmul %12, %97, %cst_75 {dimension_numbers = #tpu.dot_dimension_numbers<[1], [0], [0], [1], [0, 0, 1, 1], [], []>} : vector<8x8xf32>, vector<8x256xf32>, vector<8x256xf32> -> vector<8x256xf32>
      %99 = vector.extract_strided_slice %98 {offsets = [0, 0], sizes = [1, 256], strides = [1, 1]} : vector<8x256xf32> to vector<1x256xf32>
      %100 = vector.broadcast %23 : vector<1x1xf32> to vector<1x256xf32>
      %101 = arith.addf %99, %100 : vector<1x256xf32>
      %cst_76 = arith.constant 0.000000e+00 : f32
      %102 = vector.broadcast %cst_76 : f32 to vector<1x256xf32>
      %103 = arith.maximumf %101, %102 : vector<1x256xf32>
      %c1_i32_77 = arith.constant 1 : i32
      %104 = arith.cmpi sgt, %1, %c1_i32_77 : i32
      %cst_78 = arith.constant 0.000000e+00 : f32
      %cst_79 = arith.constant -1.000000e+30 : f32
      %105 = arith.select %104, %cst_78, %cst_79 : f32
      %106 = vector.broadcast %105 : f32 to vector<1x256xf32>
      %107 = arith.addf %103, %106 : vector<1x256xf32>
      %c0_80 = arith.constant 0 : index
      %c2_81 = arith.constant 2 : index
      %c0_82 = arith.constant 0 : index
      %c0_83 = arith.constant 0 : index
      %108 = vector.load %arg2[%c0_80, %c2_81, %c0_82, %c0_83] : memref<1x3x16x256xbf16, #tpu.memory_space<vmem>>, vector<1x1x16x256xbf16>
      %109 = vector.shape_cast %108 : vector<1x1x16x256xbf16> to vector<16x256xbf16>
      %c0_84 = arith.constant 0 : index
      %c5 = arith.constant 5 : index
      %c0_85 = arith.constant 0 : index
      %c0_86 = arith.constant 0 : index
      %110 = vector.load %arg3[%c0_84, %c5, %c0_85, %c0_86] : memref<1x9x256x256xbf16, #tpu.memory_space<vmem>>, vector<1x1x256x256xbf16>
      %111 = vector.shape_cast %110 : vector<1x1x256x256xbf16> to vector<256x256xbf16>
      %cst_87 = arith.constant dense<0.000000e+00> : vector<16x256xf32>
      %112 = tpu.matmul %109, %111, %cst_87 {dimension_numbers = #tpu.dot_dimension_numbers<[1], [0], [0], [1], [0, 0, 1, 1], [], []>} : vector<16x256xbf16>, vector<256x256xbf16>, vector<16x256xf32> -> vector<16x256xf32>
      %cst_88 = arith.constant dense<0.000000e+00> : vector<16x256xf32>
      %113 = tpu.matmul %3, %112, %cst_88 {dimension_numbers = #tpu.dot_dimension_numbers<[1], [0], [0], [1], [0, 0, 1, 1], [], []>} : vector<16x16xf32>, vector<16x256xf32>, vector<16x256xf32> -> vector<16x256xf32>
      %114 = arith.addf %113, %49 : vector<16x256xf32>
      %cst_89 = arith.constant 0.000000e+00 : f32
      %115 = vector.broadcast %cst_89 : f32 to vector<16x256xf32>
      %116 = arith.maximumf %114, %115 : vector<16x256xf32>
      %cst_90 = arith.constant dense<0.000000e+00> : vector<8x256xf32>
      %117 = tpu.matmul %8, %116, %cst_90 {dimension_numbers = #tpu.dot_dimension_numbers<[1], [0], [0], [1], [0, 0, 1, 1], [], []>} : vector<8x16xf32>, vector<16x256xf32>, vector<8x256xf32> -> vector<8x256xf32>
      %118 = vector.broadcast %17 : vector<8x1xf32> to vector<8x256xf32>
      %119 = arith.addf %117, %118 : vector<8x256xf32>
      %cst_91 = arith.constant 0.000000e+00 : f32
      %120 = vector.broadcast %cst_91 : f32 to vector<8x256xf32>
      %121 = arith.maximumf %119, %120 : vector<8x256xf32>
      %cst_92 = arith.constant dense<0.000000e+00> : vector<8x256xf32>
      %122 = tpu.matmul %10, %121, %cst_92 {dimension_numbers = #tpu.dot_dimension_numbers<[1], [0], [0], [1], [0, 0, 1, 1], [], []>} : vector<8x8xf32>, vector<8x256xf32>, vector<8x256xf32> -> vector<8x256xf32>
      %123 = vector.broadcast %20 : vector<8x1xf32> to vector<8x256xf32>
      %124 = arith.addf %122, %123 : vector<8x256xf32>
      %cst_93 = arith.constant 0.000000e+00 : f32
      %125 = vector.broadcast %cst_93 : f32 to vector<8x256xf32>
      %126 = arith.maximumf %124, %125 : vector<8x256xf32>
      %cst_94 = arith.constant dense<0.000000e+00> : vector<8x256xf32>
      %127 = tpu.matmul %12, %126, %cst_94 {dimension_numbers = #tpu.dot_dimension_numbers<[1], [0], [0], [1], [0, 0, 1, 1], [], []>} : vector<8x8xf32>, vector<8x256xf32>, vector<8x256xf32> -> vector<8x256xf32>
      %128 = vector.extract_strided_slice %127 {offsets = [0, 0], sizes = [1, 256], strides = [1, 1]} : vector<8x256xf32> to vector<1x256xf32>
      %129 = vector.broadcast %23 : vector<1x1xf32> to vector<1x256xf32>
      %130 = arith.addf %128, %129 : vector<1x256xf32>
      %cst_95 = arith.constant 0.000000e+00 : f32
      %131 = vector.broadcast %cst_95 : f32 to vector<1x256xf32>
      %132 = arith.maximumf %130, %131 : vector<1x256xf32>
      %c2_i32_96 = arith.constant 2 : i32
      %133 = arith.cmpi sgt, %1, %c2_i32_96 : i32
      %cst_97 = arith.constant 0.000000e+00 : f32
      %cst_98 = arith.constant -1.000000e+30 : f32
      %134 = arith.select %133, %cst_97, %cst_98 : f32
      %135 = vector.broadcast %134 : f32 to vector<1x256xf32>
      %136 = arith.addf %132, %135 : vector<1x256xf32>
      %137 = arith.maximumf %78, %107 : vector<1x256xf32>
      %138 = arith.maximumf %137, %136 : vector<1x256xf32>
      %139 = arith.subf %78, %138 : vector<1x256xf32>
      %140 = math.exp %139 : vector<1x256xf32>
      %141 = arith.subf %107, %138 : vector<1x256xf32>
      %142 = math.exp %141 : vector<1x256xf32>
      %143 = arith.subf %136, %138 : vector<1x256xf32>
      %144 = math.exp %143 : vector<1x256xf32>
      %145 = arith.addf %140, %142 : vector<1x256xf32>
      %146 = arith.addf %145, %144 : vector<1x256xf32>
      %147 = tpu.reciprocal %146 {approx = true} : vector<1x256xf32> -> vector<1x256xf32>
      %148 = arith.mulf %140, %147 : vector<1x256xf32>
      %149 = vector.broadcast %148 : vector<1x256xf32> to vector<16x256xf32>
      %150 = arith.mulf %54, %149 : vector<16x256xf32>
      %151 = arith.mulf %142, %147 : vector<1x256xf32>
      %152 = vector.broadcast %151 : vector<1x256xf32> to vector<16x256xf32>
      %153 = arith.mulf %83, %152 : vector<16x256xf32>
      %154 = arith.addf %150, %153 : vector<16x256xf32>
      %155 = arith.mulf %144, %147 : vector<1x256xf32>
      %156 = vector.broadcast %155 : vector<1x256xf32> to vector<16x256xf32>
      %157 = arith.mulf %112, %156 : vector<16x256xf32>
      %158 = arith.addf %154, %157 : vector<16x256xf32>
      %cst_99 = arith.constant dense<0.000000e+00> : vector<16x256xf32>
      %159 = tpu.matmul %7, %158, %cst_99 {dimension_numbers = #tpu.dot_dimension_numbers<[1], [0], [0], [1], [0, 0, 1, 1], [], []>} : vector<16x16xf32>, vector<16x256xf32>, vector<16x256xf32> -> vector<16x256xf32>
      %160 = vector.broadcast %25 : vector<16x1xf32> to vector<16x256xf32>
      %161 = arith.addf %159, %160 : vector<16x256xf32>
      %c0_100 = arith.constant 0 : index
      %c1_101 = arith.constant 1 : index
      %c0_102 = arith.constant 0 : index
      %c0_103 = arith.constant 0 : index
      %162 = vector.load %arg8[%c0_100, %c1_101, %c0_102, %c0_103] : memref<1x3x16x256xf32, #tpu.memory_space<vmem>>, vector<1x1x16x256xf32>
      %163 = vector.shape_cast %162 : vector<1x1x16x256xf32> to vector<16x256xf32>
      %164 = vector.shape_cast %161 : vector<16x256xf32> to vector<1x1x16x256xf32>
      tpu.vector_store %arg8[%c0_100, %c1_101, %c0_102, %c0_103], %164 {strides = array<i32>} : memref<1x3x16x256xf32, #tpu.memory_space<vmem>>, vector<1x1x16x256xf32>,
    } else {
    }
    %c1_i32_31 = arith.constant 1 : i32
    %35 = arith.cmpi sle, %1, %c1_i32_31 : i32
    %36 = arith.extui %35 : i1 to i32
    %c0_i32_32 = arith.constant 0 : i32
    %37 = arith.cmpi ne, %36, %c0_i32_32 : i32
    scf.if %37 {
      %cst = arith.constant 0.000000e+00 : f32
      %44 = vector.broadcast %cst : f32 to vector<16x256xf32>
      %c0_36 = arith.constant 0 : index
      %c1_37 = arith.constant 1 : index
      %c0_38 = arith.constant 0 : index
      %c0_39 = arith.constant 0 : index
      %45 = vector.load %arg8[%c0_36, %c1_37, %c0_38, %c0_39] : memref<1x3x16x256xf32, #tpu.memory_space<vmem>>, vector<1x1x16x256xf32>
      %46 = vector.shape_cast %45 : vector<1x1x16x256xf32> to vector<16x256xf32>
      %47 = vector.shape_cast %44 : vector<16x256xf32> to vector<1x1x16x256xf32>
      tpu.vector_store %arg8[%c0_36, %c1_37, %c0_38, %c0_39], %47 {strides = array<i32>} : memref<1x3x16x256xf32, #tpu.memory_space<vmem>>, vector<1x1x16x256xf32>,
    } else {
    }
    %c2_i32 = arith.constant 2 : i32
    %38 = arith.cmpi sgt, %1, %c2_i32 : i32
    %39 = arith.extui %38 : i1 to i32
    %c0_i32_33 = arith.constant 0 : i32
    %40 = arith.cmpi ne, %39, %c0_i32_33 : i32
    scf.if %40 {
      %c0_36 = arith.constant 0 : index
      %c2_37 = arith.constant 2 : index
      %c0_38 = arith.constant 0 : index
      %c0_39 = arith.constant 0 : index
      %44 = vector.load %arg2[%c0_36, %c2_37, %c0_38, %c0_39] : memref<1x3x16x256xbf16, #tpu.memory_space<vmem>>, vector<1x1x16x256xbf16>
      %45 = vector.shape_cast %44 : vector<1x1x16x256xbf16> to vector<16x256xbf16>
      %46 = arith.extf %45 : vector<16x256xbf16> to vector<16x256xf32>
      %cst = arith.constant dense<0.000000e+00> : vector<16x256xf32>
      %47 = tpu.matmul %5, %46, %cst {dimension_numbers = #tpu.dot_dimension_numbers<[1], [0], [0], [1], [0, 0, 1, 1], [], []>} : vector<16x16xf32>, vector<16x256xf32>, vector<16x256xf32> -> vector<16x256xf32>
      %48 = vector.broadcast %14 : vector<16x1xf32> to vector<16x256xf32>
      %49 = arith.addf %47, %48 : vector<16x256xf32>
      %c0_40 = arith.constant 0 : index
      %c0_41 = arith.constant 0 : index
      %c0_42 = arith.constant 0 : index
      %c0_43 = arith.constant 0 : index
      %50 = vector.load %arg2[%c0_40, %c0_41, %c0_42, %c0_43] : memref<1x3x16x256xbf16, #tpu.memory_space<vmem>>, vector<1x1x16x256xbf16>
      %51 = vector.shape_cast %50 : vector<1x1x16x256xbf16> to vector<16x256xbf16>
      %c0_44 = arith.constant 0 : index
      %c6 = arith.constant 6 : index
      %c0_45 = arith.constant 0 : index
      %c0_46 = arith.constant 0 : index
      %52 = vector.load %arg3[%c0_44, %c6, %c0_45, %c0_46] : memref<1x9x256x256xbf16, #tpu.memory_space<vmem>>, vector<1x1x256x256xbf16>
      %53 = vector.shape_cast %52 : vector<1x1x256x256xbf16> to vector<256x256xbf16>
      %cst_47 = arith.constant dense<0.000000e+00> : vector<16x256xf32>
      %54 = tpu.matmul %51, %53, %cst_47 {dimension_numbers = #tpu.dot_dimension_numbers<[1], [0], [0], [1], [0, 0, 1, 1], [], []>} : vector<16x256xbf16>, vector<256x256xbf16>, vector<16x256xf32> -> vector<16x256xf32>
      %cst_48 = arith.constant dense<0.000000e+00> : vector<16x256xf32>
      %55 = tpu.matmul %3, %54, %cst_48 {dimension_numbers = #tpu.dot_dimension_numbers<[1], [0], [0], [1], [0, 0, 1, 1], [], []>} : vector<16x16xf32>, vector<16x256xf32>, vector<16x256xf32> -> vector<16x256xf32>
      %56 = arith.addf %55, %49 : vector<16x256xf32>
      %cst_49 = arith.constant 0.000000e+00 : f32
      %57 = vector.broadcast %cst_49 : f32 to vector<16x256xf32>
      %58 = arith.maximumf %56, %57 : vector<16x256xf32>
      %cst_50 = arith.constant dense<0.000000e+00> : vector<8x256xf32>
      %59 = tpu.matmul %8, %58, %cst_50 {dimension_numbers = #tpu.dot_dimension_numbers<[1], [0], [0], [1], [0, 0, 1, 1], [], []>} : vector<8x16xf32>, vector<16x256xf32>, vector<8x256xf32> -> vector<8x256xf32>
      %60 = vector.broadcast %17 : vector<8x1xf32> to vector<8x256xf32>
      %61 = arith.addf %59, %60 : vector<8x256xf32>
      %cst_51 = arith.constant 0.000000e+00 : f32
      %62 = vector.broadcast %cst_51 : f32 to vector<8x256xf32>
      %63 = arith.maximumf %61, %62 : vector<8x256xf32>
      %cst_52 = arith.constant dense<0.000000e+00> : vector<8x256xf32>
      %64 = tpu.matmul %10, %63, %cst_52 {dimension_numbers = #tpu.dot_dimension_numbers<[1], [0], [0], [1], [0, 0, 1, 1], [], []>} : vector<8x8xf32>, vector<8x256xf32>, vector<8x256xf32> -> vector<8x256xf32>
      %65 = vector.broadcast %20 : vector<8x1xf32> to vector<8x256xf32>
      %66 = arith.addf %64, %65 : vector<8x256xf32>
      %cst_53 = arith.constant 0.000000e+00 : f32
      %67 = vector.broadcast %cst_53 : f32 to vector<8x256xf32>
      %68 = arith.maximumf %66, %67 : vector<8x256xf32>
      %cst_54 = arith.constant dense<0.000000e+00> : vector<8x256xf32>
      %69 = tpu.matmul %12, %68, %cst_54 {dimension_numbers = #tpu.dot_dimension_numbers<[1], [0], [0], [1], [0, 0, 1, 1], [], []>} : vector<8x8xf32>, vector<8x256xf32>, vector<8x256xf32> -> vector<8x256xf32>
      %70 = vector.extract_strided_slice %69 {offsets = [0, 0], sizes = [1, 256], strides = [1, 1]} : vector<8x256xf32> to vector<1x256xf32>
      %71 = vector.broadcast %23 : vector<1x1xf32> to vector<1x256xf32>
      %72 = arith.addf %70, %71 : vector<1x256xf32>
      %cst_55 = arith.constant 0.000000e+00 : f32
      %73 = vector.broadcast %cst_55 : f32 to vector<1x256xf32>
      %74 = arith.maximumf %72, %73 : vector<1x256xf32>
      %c0_i32_56 = arith.constant 0 : i32
      %75 = arith.cmpi sgt, %1, %c0_i32_56 : i32
      %cst_57 = arith.constant 0.000000e+00 : f32
      %cst_58 = arith.constant -1.000000e+30 : f32
      %76 = arith.select %75, %cst_57, %cst_58 : f32
      %77 = vector.broadcast %76 : f32 to vector<1x256xf32>
      %78 = arith.addf %74, %77 : vector<1x256xf32>
      %c0_59 = arith.constant 0 : index
      %c1_60 = arith.constant 1 : index
      %c0_61 = arith.constant 0 : index
      %c0_62 = arith.constant 0 : index
      %79 = vector.load %arg2[%c0_59, %c1_60, %c0_61, %c0_62] : memref<1x3x16x256xbf16, #tpu.memory_space<vmem>>, vector<1x1x16x256xbf16>
      %80 = vector.shape_cast %79 : vector<1x1x16x256xbf16> to vector<16x256xbf16>
      %c0_63 = arith.constant 0 : index
      %c7 = arith.constant 7 : index
      %c0_64 = arith.constant 0 : index
      %c0_65 = arith.constant 0 : index
      %81 = vector.load %arg3[%c0_63, %c7, %c0_64, %c0_65] : memref<1x9x256x256xbf16, #tpu.memory_space<vmem>>, vector<1x1x256x256xbf16>
      %82 = vector.shape_cast %81 : vector<1x1x256x256xbf16> to vector<256x256xbf16>
      %cst_66 = arith.constant dense<0.000000e+00> : vector<16x256xf32>
      %83 = tpu.matmul %80, %82, %cst_66 {dimension_numbers = #tpu.dot_dimension_numbers<[1], [0], [0], [1], [0, 0, 1, 1], [], []>} : vector<16x256xbf16>, vector<256x256xbf16>, vector<16x256xf32> -> vector<16x256xf32>
      %cst_67 = arith.constant dense<0.000000e+00> : vector<16x256xf32>
      %84 = tpu.matmul %3, %83, %cst_67 {dimension_numbers = #tpu.dot_dimension_numbers<[1], [0], [0], [1], [0, 0, 1, 1], [], []>} : vector<16x16xf32>, vector<16x256xf32>, vector<16x256xf32> -> vector<16x256xf32>
      %85 = arith.addf %84, %49 : vector<16x256xf32>
      %cst_68 = arith.constant 0.000000e+00 : f32
      %86 = vector.broadcast %cst_68 : f32 to vector<16x256xf32>
      %87 = arith.maximumf %85, %86 : vector<16x256xf32>
      %cst_69 = arith.constant dense<0.000000e+00> : vector<8x256xf32>
      %88 = tpu.matmul %8, %87, %cst_69 {dimension_numbers = #tpu.dot_dimension_numbers<[1], [0], [0], [1], [0, 0, 1, 1], [], []>} : vector<8x16xf32>, vector<16x256xf32>, vector<8x256xf32> -> vector<8x256xf32>
      %89 = vector.broadcast %17 : vector<8x1xf32> to vector<8x256xf32>
      %90 = arith.addf %88, %89 : vector<8x256xf32>
      %cst_70 = arith.constant 0.000000e+00 : f32
      %91 = vector.broadcast %cst_70 : f32 to vector<8x256xf32>
      %92 = arith.maximumf %90, %91 : vector<8x256xf32>
      %cst_71 = arith.constant dense<0.000000e+00> : vector<8x256xf32>
      %93 = tpu.matmul %10, %92, %cst_71 {dimension_numbers = #tpu.dot_dimension_numbers<[1], [0], [0], [1], [0, 0, 1, 1], [], []>} : vector<8x8xf32>, vector<8x256xf32>, vector<8x256xf32> -> vector<8x256xf32>
      %94 = vector.broadcast %20 : vector<8x1xf32> to vector<8x256xf32>
      %95 = arith.addf %93, %94 : vector<8x256xf32>
      %cst_72 = arith.constant 0.000000e+00 : f32
      %96 = vector.broadcast %cst_72 : f32 to vector<8x256xf32>
      %97 = arith.maximumf %95, %96 : vector<8x256xf32>
      %cst_73 = arith.constant dense<0.000000e+00> : vector<8x256xf32>
      %98 = tpu.matmul %12, %97, %cst_73 {dimension_numbers = #tpu.dot_dimension_numbers<[1], [0], [0], [1], [0, 0, 1, 1], [], []>} : vector<8x8xf32>, vector<8x256xf32>, vector<8x256xf32> -> vector<8x256xf32>
      %99 = vector.extract_strided_slice %98 {offsets = [0, 0], sizes = [1, 256], strides = [1, 1]} : vector<8x256xf32> to vector<1x256xf32>
      %100 = vector.broadcast %23 : vector<1x1xf32> to vector<1x256xf32>
      %101 = arith.addf %99, %100 : vector<1x256xf32>
      %cst_74 = arith.constant 0.000000e+00 : f32
      %102 = vector.broadcast %cst_74 : f32 to vector<1x256xf32>
      %103 = arith.maximumf %101, %102 : vector<1x256xf32>
      %c1_i32_75 = arith.constant 1 : i32
      %104 = arith.cmpi sgt, %1, %c1_i32_75 : i32
      %cst_76 = arith.constant 0.000000e+00 : f32
      %cst_77 = arith.constant -1.000000e+30 : f32
      %105 = arith.select %104, %cst_76, %cst_77 : f32
      %106 = vector.broadcast %105 : f32 to vector<1x256xf32>
      %107 = arith.addf %103, %106 : vector<1x256xf32>
      %c0_78 = arith.constant 0 : index
      %c2_79 = arith.constant 2 : index
      %c0_80 = arith.constant 0 : index
      %c0_81 = arith.constant 0 : index
      %108 = vector.load %arg2[%c0_78, %c2_79, %c0_80, %c0_81] : memref<1x3x16x256xbf16, #tpu.memory_space<vmem>>, vector<1x1x16x256xbf16>
      %109 = vector.shape_cast %108 : vector<1x1x16x256xbf16> to vector<16x256xbf16>
      %c0_82 = arith.constant 0 : index
      %c8 = arith.constant 8 : index
      %c0_83 = arith.constant 0 : index
      %c0_84 = arith.constant 0 : index
      %110 = vector.load %arg3[%c0_82, %c8, %c0_83, %c0_84] : memref<1x9x256x256xbf16, #tpu.memory_space<vmem>>, vector<1x1x256x256xbf16>
      %111 = vector.shape_cast %110 : vector<1x1x256x256xbf16> to vector<256x256xbf16>
      %cst_85 = arith.constant dense<0.000000e+00> : vector<16x256xf32>
      %112 = tpu.matmul %109, %111, %cst_85 {dimension_numbers = #tpu.dot_dimension_numbers<[1], [0], [0], [1], [0, 0, 1, 1], [], []>} : vector<16x256xbf16>, vector<256x256xbf16>, vector<16x256xf32> -> vector<16x256xf32>
      %cst_86 = arith.constant dense<0.000000e+00> : vector<16x256xf32>
      %113 = tpu.matmul %3, %112, %cst_86 {dimension_numbers = #tpu.dot_dimension_numbers<[1], [0], [0], [1], [0, 0, 1, 1], [], []>} : vector<16x16xf32>, vector<16x256xf32>, vector<16x256xf32> -> vector<16x256xf32>
      %114 = arith.addf %113, %49 : vector<16x256xf32>
      %cst_87 = arith.constant 0.000000e+00 : f32
      %115 = vector.broadcast %cst_87 : f32 to vector<16x256xf32>
      %116 = arith.maximumf %114, %115 : vector<16x256xf32>
      %cst_88 = arith.constant dense<0.000000e+00> : vector<8x256xf32>
      %117 = tpu.matmul %8, %116, %cst_88 {dimension_numbers = #tpu.dot_dimension_numbers<[1], [0], [0], [1], [0, 0, 1, 1], [], []>} : vector<8x16xf32>, vector<16x256xf32>, vector<8x256xf32> -> vector<8x256xf32>
      %118 = vector.broadcast %17 : vector<8x1xf32> to vector<8x256xf32>
      %119 = arith.addf %117, %118 : vector<8x256xf32>
      %cst_89 = arith.constant 0.000000e+00 : f32
      %120 = vector.broadcast %cst_89 : f32 to vector<8x256xf32>
      %121 = arith.maximumf %119, %120 : vector<8x256xf32>
      %cst_90 = arith.constant dense<0.000000e+00> : vector<8x256xf32>
      %122 = tpu.matmul %10, %121, %cst_90 {dimension_numbers = #tpu.dot_dimension_numbers<[1], [0], [0], [1], [0, 0, 1, 1], [], []>} : vector<8x8xf32>, vector<8x256xf32>, vector<8x256xf32> -> vector<8x256xf32>
      %123 = vector.broadcast %20 : vector<8x1xf32> to vector<8x256xf32>
      %124 = arith.addf %122, %123 : vector<8x256xf32>
      %cst_91 = arith.constant 0.000000e+00 : f32
      %125 = vector.broadcast %cst_91 : f32 to vector<8x256xf32>
      %126 = arith.maximumf %124, %125 : vector<8x256xf32>
      %cst_92 = arith.constant dense<0.000000e+00> : vector<8x256xf32>
      %127 = tpu.matmul %12, %126, %cst_92 {dimension_numbers = #tpu.dot_dimension_numbers<[1], [0], [0], [1], [0, 0, 1, 1], [], []>} : vector<8x8xf32>, vector<8x256xf32>, vector<8x256xf32> -> vector<8x256xf32>
      %128 = vector.extract_strided_slice %127 {offsets = [0, 0], sizes = [1, 256], strides = [1, 1]} : vector<8x256xf32> to vector<1x256xf32>
      %129 = vector.broadcast %23 : vector<1x1xf32> to vector<1x256xf32>
      %130 = arith.addf %128, %129 : vector<1x256xf32>
      %cst_93 = arith.constant 0.000000e+00 : f32
      %131 = vector.broadcast %cst_93 : f32 to vector<1x256xf32>
      %132 = arith.maximumf %130, %131 : vector<1x256xf32>
      %c2_i32_94 = arith.constant 2 : i32
      %133 = arith.cmpi sgt, %1, %c2_i32_94 : i32
      %cst_95 = arith.constant 0.000000e+00 : f32
      %cst_96 = arith.constant -1.000000e+30 : f32
      %134 = arith.select %133, %cst_95, %cst_96 : f32
      %135 = vector.broadcast %134 : f32 to vector<1x256xf32>
      %136 = arith.addf %132, %135 : vector<1x256xf32>
      %137 = arith.maximumf %78, %107 : vector<1x256xf32>
      %138 = arith.maximumf %137, %136 : vector<1x256xf32>
      %139 = arith.subf %78, %138 : vector<1x256xf32>
      %140 = math.exp %139 : vector<1x256xf32>
      %141 = arith.subf %107, %138 : vector<1x256xf32>
      %142 = math.exp %141 : vector<1x256xf32>
      %143 = arith.subf %136, %138 : vector<1x256xf32>
      %144 = math.exp %143 : vector<1x256xf32>
      %145 = arith.addf %140, %142 : vector<1x256xf32>
      %146 = arith.addf %145, %144 : vector<1x256xf32>
      %147 = tpu.reciprocal %146 {approx = true} : vector<1x256xf32> -> vector<1x256xf32>
      %148 = arith.mulf %140, %147 : vector<1x256xf32>
      %149 = vector.broadcast %148 : vector<1x256xf32> to vector<16x256xf32>
      %150 = arith.mulf %54, %149 : vector<16x256xf32>
      %151 = arith.mulf %142, %147 : vector<1x256xf32>
      %152 = vector.broadcast %151 : vector<1x256xf32> to vector<16x256xf32>
      %153 = arith.mulf %83, %152 : vector<16x256xf32>
      %154 = arith.addf %150, %153 : vector<16x256xf32>
      %155 = arith.mulf %144, %147 : vector<1x256xf32>
      %156 = vector.broadcast %155 : vector<1x256xf32> to vector<16x256xf32>
      %157 = arith.mulf %112, %156 : vector<16x256xf32>
      %158 = arith.addf %154, %157 : vector<16x256xf32>
      %cst_97 = arith.constant dense<0.000000e+00> : vector<16x256xf32>
      %159 = tpu.matmul %7, %158, %cst_97 {dimension_numbers = #tpu.dot_dimension_numbers<[1], [0], [0], [1], [0, 0, 1, 1], [], []>} : vector<16x16xf32>, vector<16x256xf32>, vector<16x256xf32> -> vector<16x256xf32>
      %160 = vector.broadcast %25 : vector<16x1xf32> to vector<16x256xf32>
      %161 = arith.addf %159, %160 : vector<16x256xf32>
      %c0_98 = arith.constant 0 : index
      %c2_99 = arith.constant 2 : index
      %c0_100 = arith.constant 0 : index
      %c0_101 = arith.constant 0 : index
      %162 = vector.load %arg8[%c0_98, %c2_99, %c0_100, %c0_101] : memref<1x3x16x256xf32, #tpu.memory_space<vmem>>, vector<1x1x16x256xf32>
      %163 = vector.shape_cast %162 : vector<1x1x16x256xf32> to vector<16x256xf32>
      %164 = vector.shape_cast %161 : vector<16x256xf32> to vector<1x1x16x256xf32>
      tpu.vector_store %arg8[%c0_98, %c2_99, %c0_100, %c0_101], %164 {strides = array<i32>} : memref<1x3x16x256xf32, #tpu.memory_space<vmem>>, vector<1x1x16x256xf32>,
    } else {
    }
    %c2_i32_34 = arith.constant 2 : i32
    %41 = arith.cmpi sle, %1, %c2_i32_34 : i32
    %42 = arith.extui %41 : i1 to i32
    %c0_i32_35 = arith.constant 0 : i32
    %43 = arith.cmpi ne, %42, %c0_i32_35 : i32
    scf.if %43 {
      %cst = arith.constant 0.000000e+00 : f32
      %44 = vector.broadcast %cst : f32 to vector<16x256xf32>
      %c0_36 = arith.constant 0 : index
      %c2_37 = arith.constant 2 : index
      %c0_38 = arith.constant 0 : index
      %c0_39 = arith.constant 0 : index
      %45 = vector.load %arg8[%c0_36, %c2_37, %c0_38, %c0_39] : memref<1x3x16x256xf32, #tpu.memory_space<vmem>>, vector<1x1x16x256xf32>
      %46 = vector.shape_cast %45 : vector<1x1x16x256xf32> to vector<16x256xf32>
      %47 = vector.shape_cast %44 : vector<16x256xf32> to vector<1x1x16x256xf32>
      tpu.vector_store %arg8[%c0_36, %c2_37, %c0_38, %c0_39], %47 {strides = array<i32>} : memref<1x3x16x256xf32, #tpu.memory_space<vmem>>, vector<1x1x16x256xf32>,
    } else {
    }
    return
  }
  func.func @transform_0(%arg0: i32, %arg1: memref<2xi32, #tpu.memory_space<smem>>) -> (i32, i32, i32, i32) {
    %c0_i32 = arith.constant 0 : i32
    %c0_i32_0 = arith.constant 0 : i32
    %c0_i32_1 = arith.constant 0 : i32
    %c0_i32_2 = arith.constant 0 : i32
    return %arg0, %c0_i32, %c0_i32_0, %c0_i32_1 : i32, i32, i32, i32
  }
  func.func @transform_1(%arg0: i32, %arg1: memref<2xi32, #tpu.memory_space<smem>>) -> (i32, i32, i32, i32) {
    %c0_i32 = arith.constant 0 : i32
    %c0_i32_0 = arith.constant 0 : i32
    %c0_i32_1 = arith.constant 0 : i32
    %c0_i32_2 = arith.constant 0 : i32
    return %arg0, %c0_i32, %c0_i32_0, %c0_i32_1 : i32, i32, i32, i32
  }
  func.func @transform_2(%arg0: i32, %arg1: memref<2xi32, #tpu.memory_space<smem>>) -> (i32, i32, i32) {
    %c0_i32 = arith.constant 0 : i32
    %c0_i32_0 = arith.constant 0 : i32
    %c0_i32_1 = arith.constant 0 : i32
    %c0_i32_2 = arith.constant 0 : i32
    return %c0_i32, %c0_i32_0, %c0_i32_1 : i32, i32, i32
  }
  func.func @transform_3(%arg0: i32, %arg1: memref<2xi32, #tpu.memory_space<smem>>) -> (i32, i32) {
    %c0_i32 = arith.constant 0 : i32
    %c0_i32_0 = arith.constant 0 : i32
    %c0_i32_1 = arith.constant 0 : i32
    return %c0_i32, %c0_i32_0 : i32, i32
  }
  func.func @transform_4(%arg0: i32, %arg1: memref<2xi32, #tpu.memory_space<smem>>) -> (i32, i32, i32) {
    %c0_i32 = arith.constant 0 : i32
    %c0_i32_0 = arith.constant 0 : i32
    %c0_i32_1 = arith.constant 0 : i32
    %c0_i32_2 = arith.constant 0 : i32
    return %c0_i32, %c0_i32_0, %c0_i32_1 : i32, i32, i32
  }
  func.func @transform_5(%arg0: i32, %arg1: memref<2xi32, #tpu.memory_space<smem>>) -> (i32, i32, i32) {
    %c0_i32 = arith.constant 0 : i32
    %c0_i32_0 = arith.constant 0 : i32
    %c0_i32_1 = arith.constant 0 : i32
    %c0_i32_2 = arith.constant 0 : i32
    return %c0_i32, %c0_i32_0, %c0_i32_1 : i32, i32, i32
  }
  func.func @transform_6(%arg0: i32, %arg1: memref<2xi32, #tpu.memory_space<smem>>) -> (i32, i32, i32, i32) {
    %c0_i32 = arith.constant 0 : i32
    %c0_i32_0 = arith.constant 0 : i32
    %c0_i32_1 = arith.constant 0 : i32
    %c0_i32_2 = arith.constant 0 : i32
    return %arg0, %c0_i32, %c0_i32_0, %c0_i32_1 : i32, i32, i32, i32
  }
}

</mosaic_0001>

<llo_original>
// kernel: tpu_custom_call.1
$region0: #{tpu_custom_call.1}
  #allocation0 [shape = 'u32[]', space=smem, size = 0x4, offset = 0x4, fixed_abs, tag = 'smem constant byte address 0x4 - core index']
  #allocation1 [shape = 'u32[144,128]{1,0:T(1,128)}', space=vmem, size = 0x12000, scoped, tag = 'internal scratch']
  #allocation2 [shape = 's32[1]{0}', space=sflag, size = 0x4, scoped, tag = 'scoped memory for tpu_custom_call.1']
  #allocation3 [shape = 'u8[512]{0}', space=smem, size = 0x200, scoped, tag = 'prefetched SMEM operand 0']
  %s0 = inlined_call_operand.hbm [shape: s32[2], index: 0, kind: input, shape index: {}]
  %s1 = inlined_call_operand.hbm [shape: bf16[2,3,16,256], index: 1, kind: input, shape index: {}]
  %s2 = inlined_call_operand.hbm [shape: bf16[2,9,256,256], index: 2, kind: input, shape index: {}]
  %s3 = inlined_call_operand.hbm [shape: f32[3,16,16], index: 3, kind: input, shape index: {}]
  %s4 = inlined_call_operand.hbm [shape: f32[8,16], index: 4, kind: input, shape index: {}]
  %s5 = inlined_call_operand.hbm [shape: f32[2,8,8], index: 5, kind: input, shape index: {}]
  %s6 = inlined_call_operand.vmem [shape: f32[5,16,1], index: 6, kind: input, shape index: {}]
  %s7 = inlined_call_operand.hbm [shape: f32[2,3,16,256], index: 7, kind: output, shape index: {}]
  %s8 = sld [smem:[#allocation0]]
  $region101: #{tpu_custom_call.1} parent=0
    _
  %s10 = ssub.s32 1, %s8
  %s11 = scalar_select 0, %s10, %s8
  %13 = dma.hbm_to_smem %s0, 16, [#allocation3], [#allocation2]
  %14 = dma.done [#allocation2], 16
  %15 = sfence
  $region1: #{tpu_custom_call.1} parent=0
    #allocation4 [shape = 'u8[49152]{0}', space=vmem, size = 0xc000, scoped, tag = 'input window, operand 1']
    #allocation5 [shape = 's32[2]{0}', space=sflag, size = 0x8, scoped, tag = 'scoped memory for tpu_custom_call.1']
    #allocation6 [shape = 's32[2]{0}', space=sflag, size = 0x8, scoped, tag = 'scoped memory for tpu_custom_call.1']
    #allocation7 [shape = 'u8[2359296]{0}', space=vmem, size = 0x240000, scoped, tag = 'input window, operand 2']
    #allocation8 [shape = 's32[2]{0}', space=sflag, size = 0x8, scoped, tag = 'scoped memory for tpu_custom_call.1']
    #allocation9 [shape = 'u8[24576]{0}', space=vmem, size = 0x6000, scoped, tag = 'input window, operand 3, single buffered']
    #allocation10 [shape = 'u8[4096]{0}', space=vmem, size = 0x1000, scoped, tag = 'input window, operand 4, single buffered']
    #allocation11 [shape = 's32[1]{0}', space=sflag, size = 0x4, scoped, tag = 'scoped memory for tpu_custom_call.1']
    #allocation12 [shape = 'u8[8192]{0}', space=vmem, size = 0x2000, scoped, tag = 'input window, operand 5, single buffered']
    #allocation13 [shape = 'u8[98304]{0}', space=vmem, size = 0x18000, scoped, tag = 'output window, operand 0']
    %16 = vsyncpa [#allocation5], 0
    %s17 = scalar_lea.sflag [#allocation5], 1
    %18 = vsyncpa %s17, 0
    %19 = vsyncpa [#allocation8], 0
    %s20 = scalar_lea.sflag [#allocation8], 1
    %21 = vsyncpa %s20, 0
    %22 = vsyncpa [#allocation11], 0
    %23 = vsyncpa [#allocation6], 0
    %s24 = scalar_lea.sflag [#allocation6], 1
    %25 = vsyncpa %s24, 0
    loop: start=0, step=1, limit=4
    $region2: #{tpu_custom_call.1} parent=1 // loop_pre_header
      _
    $region3: #{tpu_custom_call.1} parent=1 // loop_header
      %s27 = sphi 0, %s31
      %p28 = scmp.ge.s32.totalorder %s27, 4
      %s37 = sphi 0, %s39
      %s40 = sphi 0, %s37
      %s41 = sphi 0, %s40
      %s57 = sphi 0, %s41
      %s63 = sphi 0, %s65
      %s66 = sphi 0, %s63
      %s67 = sphi 0, %s66
      %s83 = sphi 0, %s67
      %s87 = sphi 0, %s87
      %s89 = sphi 0, %s87
      %s90 = sphi 0, %s89
      %s104 = sphi 0, %s90
      %s108 = sphi 0, %s108
      %s110 = sphi 0, %s108
      %s111 = sphi 0, %s110
      %s125 = sphi 0, %s111
      %s129 = sphi 0, %s129
      %s131 = sphi 0, %s129
      %s132 = sphi 0, %s131
      %s146 = sphi 0, %s132
      %s150 = sphi 0, %s150
      %s152 = sphi 0, %s150
      %s153 = sphi 0, %s152
      %s167 = sphi 0, %s153
      %s173 = sphi 0, %s175
      %s176 = sphi 0, %s173
      %s177 = sphi 0, %s176
      %s193 = sphi 0, %s177
    $region4: #{tpu_custom_call.1} parent=1 // loop_header_branch
      %30 = sbr.rel (%p28) target = $region8
    $region5: #{tpu_custom_call.1} parent=1 // loop_body
      %s32 = ssub.s32 %s27, 1
      %s33 = ssub.s32 %s27, 2
      %s34 = sadd.s32 %s27, 1
      %s35 = ssub.s32 %s27, %s34
      %p36 = scmp.eq.s32.totalorder %s35, 0
      %s38 = sadd.s32 %s37, 1
      %s39 = scalar_select %p36, %s37, %s38
      %p42 = pneg %p36
      %p43 = scmp.eq.s32.totalorder %s27, 1
      %p44 = por %p42, %p43
      %p45 = scmp.ne.s32.totalorder %s37, %s40
      %p46 = scmp.eq.s32.totalorder %s27, 0
      %p47 = por %p45, %p46
      %p48 = scmp.ne.s32.totalorder %s37, %s40
      %p49 = scmp.eq.s32.totalorder %s32, 1
      %p50 = por %p48, %p49
      %p51 = scmp.ne.s32.totalorder %s40, %s41
      %p52 = scmp.eq.s32.totalorder %s32, 0
      %p53 = por %p51, %p52
      %p54 = scmp.ne.s32.totalorder %s40, %s41
      %p55 = scmp.eq.s32.totalorder %s33, 1
      %p56 = por %p54, %p55
      %p58 = scmp.ne.s32.totalorder %s41, %s57
      %p59 = scmp.eq.s32.totalorder %s33, 0
      %p60 = por %p58, %p59
      %s61 = ssub.s32 %s27, %s34
      %p62 = scmp.eq.s32.totalorder %s61, 0
      %s64 = sadd.s32 %s63, 1
      %s65 = scalar_select %p62, %s63, %s64
      %p68 = pneg %p62
      %p69 = scmp.eq.s32.totalorder %s27, 1
      %p70 = por %p68, %p69
      %p71 = scmp.ne.s32.totalorder %s63, %s66
      %p72 = scmp.eq.s32.totalorder %s27, 0
      %p73 = por %p71, %p72
      %p74 = scmp.ne.s32.totalorder %s63, %s66
      %p75 = scmp.eq.s32.totalorder %s32, 1
      %p76 = por %p74, %p75
      %p77 = scmp.ne.s32.totalorder %s66, %s67
      %p78 = scmp.eq.s32.totalorder %s32, 0
      %p79 = por %p77, %p78
      %p80 = scmp.ne.s32.totalorder %s66, %s67
      %p81 = scmp.eq.s32.totalorder %s33, 1
      %p82 = por %p80, %p81
      %p84 = scmp.ne.s32.totalorder %s67, %s83
      %p85 = scmp.eq.s32.totalorder %s33, 0
      %p86 = por %p84, %p85
      %s88 = sadd.s32 %s87, 1
      %p91 = scmp.eq.s32.totalorder %s27, 1
      %p92 = scmp.ne.s32.totalorder %s87, %s89
      %p93 = scmp.eq.s32.totalorder %s27, 0
      %p94 = por %p92, %p93
      %p95 = scmp.ne.s32.totalorder %s87, %s89
      %p96 = scmp.eq.s32.totalorder %s32, 1
      %p97 = por %p95, %p96
      %p98 = scmp.ne.s32.totalorder %s89, %s90
      %p99 = scmp.eq.s32.totalorder %s32, 0
      %p100 = por %p98, %p99
      %p101 = scmp.ne.s32.totalorder %s89, %s90
      %p102 = scmp.eq.s32.totalorder %s33, 1
      %p103 = por %p101, %p102
      %p105 = scmp.ne.s32.totalorder %s90, %s104
      %p106 = scmp.eq.s32.totalorder %s33, 0
      %p107 = por %p105, %p106
      %s109 = sadd.s32 %s108, 1
      %p112 = scmp.eq.s32.totalorder %s27, 1
      %p113 = scmp.ne.s32.totalorder %s108, %s110
      %p114 = scmp.eq.s32.totalorder %s27, 0
      %p115 = por %p113, %p114
      %p116 = scmp.ne.s32.totalorder %s108, %s110
      %p117 = scmp.eq.s32.totalorder %s32, 1
      %p118 = por %p116, %p117
      %p119 = scmp.ne.s32.totalorder %s110, %s111
      %p120 = scmp.eq.s32.totalorder %s32, 0
      %p121 = por %p119, %p120
      %p122 = scmp.ne.s32.totalorder %s110, %s111
      %p123 = scmp.eq.s32.totalorder %s33, 1
      %p124 = por %p122, %p123
      %p126 = scmp.ne.s32.totalorder %s111, %s125
      %p127 = scmp.eq.s32.totalorder %s33, 0
      %p128 = por %p126, %p127
      %s130 = sadd.s32 %s129, 1
      %p133 = scmp.eq.s32.totalorder %s27, 1
      %p134 = scmp.ne.s32.totalorder %s129, %s131
      %p135 = scmp.eq.s32.totalorder %s27, 0
      %p136 = por %p134, %p135
      %p137 = scmp.ne.s32.totalorder %s129, %s131
      %p138 = scmp.eq.s32.totalorder %s32, 1
      %p139 = por %p137, %p138
      %p140 = scmp.ne.s32.totalorder %s131, %s132
      %p141 = scmp.eq.s32.totalorder %s32, 0
      %p142 = por %p140, %p141
      %p143 = scmp.ne.s32.totalorder %s131, %s132
      %p144 = scmp.eq.s32.totalorder %s33, 1
      %p145 = por %p143, %p144
      %p147 = scmp.ne.s32.totalorder %s132, %s146
      %p148 = scmp.eq.s32.totalorder %s33, 0
      %p149 = por %p147, %p148
      %s151 = sadd.s32 %s150, 1
      %p154 = scmp.eq.s32.totalorder %s27, 1
      %p155 = scmp.ne.s32.totalorder %s150, %s152
      %p156 = scmp.eq.s32.totalorder %s27, 0
      %p157 = por %p155, %p156
      %p158 = scmp.ne.s32.totalorder %s150, %s152
      %p159 = scmp.eq.s32.totalorder %s32, 1
      %p160 = por %p158, %p159
      %p161 = scmp.ne.s32.totalorder %s152, %s153
      %p162 = scmp.eq.s32.totalorder %s32, 0
      %p163 = por %p161, %p162
      %p164 = scmp.ne.s32.totalorder %s152, %s153
      %p165 = scmp.eq.s32.totalorder %s33, 1
      %p166 = por %p164, %p165
      %p168 = scmp.ne.s32.totalorder %s153, %s167
      %p169 = scmp.eq.s32.totalorder %s33, 0
      %p170 = por %p168, %p169
      %s171 = ssub.s32 %s27, %s34
      %p172 = scmp.eq.s32.totalorder %s171, 0
      %s174 = sadd.s32 %s173, 1
      %s175 = scalar_select %p172, %s173, %s174
      %p178 = pneg %p172
      %p179 = scmp.eq.s32.totalorder %s27, 1
      %p180 = por %p178, %p179
      %p181 = scmp.ne.s32.totalorder %s173, %s176
      %p182 = scmp.eq.s32.totalorder %s27, 0
      %p183 = por %p181, %p182
      %p184 = scmp.ne.s32.totalorder %s173, %s176
      %p185 = scmp.eq.s32.totalorder %s32, 1
      %p186 = por %p184, %p185
      %p187 = scmp.ne.s32.totalorder %s176, %s177
      %p188 = scmp.eq.s32.totalorder %s32, 0
      %p189 = por %p187, %p188
      %p190 = scmp.ne.s32.totalorder %s176, %s177
      %p191 = scmp.eq.s32.totalorder %s33, 1
      %p192 = por %p190, %p191
      %p194 = scmp.ne.s32.totalorder %s177, %s193
      %p195 = scmp.eq.s32.totalorder %s33, 0
      %p196 = por %p194, %p195
      %p197 = scmp.le.s32.totalorder 1, %s27
      %p198 = scmp.lt.s32.totalorder %s27, 3
      %p199 = pnand %p197, %p198
      %p200 = pneg %p199
      // Predicated region
      $region9: #{tpu_custom_call.1} parent=5 // pred_check
        _
      $region10: #{tpu_custom_call.1} parent=5 // pred_check_branch
        %202 = sbr.rel (%p199) target = $region12
      $region11: #{tpu_custom_call.1} parent=5 // pred_region
        %s203 = ssub.s32 %s27, 1
        // Predicated region
        $region13: #{tpu_custom_call.1} parent=11 // pred_check
          %p204 = pneg %p100
        $region14: #{tpu_custom_call.1} parent=11 // pred_check_branch
          %206 = sbr.rel (%p204) target = $region16
        $region15: #{tpu_custom_call.1} parent=11 // pred_region
          %s208 = ssub.s32 768, 768
          %209 = vsyncadd [#allocation8], %s208
          %s210 = sshll.u32 [#allocation9], 4
          %s211 = int_to_ptr.vmem [resolvable:$true] %s210
          %216 = dma.hbm_to_vmem [thread:$0]  %s3, 768, %s211, [#allocation8], 128, 128, 8
        $region16: #{tpu_custom_call.1} parent=11 // pred_fallthru
          _
        // Predicated region
        $region17: #{tpu_custom_call.1} parent=11 // pred_check
          %p217 = pneg %p121
        $region18: #{tpu_custom_call.1} parent=11 // pred_check_branch
          %219 = sbr.rel (%p217) target = $region20
        $region19: #{tpu_custom_call.1} parent=11 // pred_region
          %s221 = ssub.s32 128, 128
          %222 = vsyncadd [#allocation11], %s221
          %s224 = sshll.u32 [#allocation10], 4
          %s225 = int_to_ptr.vmem [resolvable:$true] %s224
          %227 = dma.hbm_to_vmem [thread:$0]  %s4, 128, %s225, [#allocation11]
        $region20: #{tpu_custom_call.1} parent=11 // pred_fallthru
          _
        // Predicated region
        $region21: #{tpu_custom_call.1} parent=11 // pred_check
          %p228 = pneg %p142
        $region22: #{tpu_custom_call.1} parent=11 // pred_check_branch
          %230 = sbr.rel (%p228) target = $region24
        $region23: #{tpu_custom_call.1} parent=11 // pred_region
          %s232 = ssub.s32 256, 256
          %233 = vsyncadd [#allocation11], %s232
          %s234 = sshll.u32 [#allocation12], 4
          %s235 = int_to_ptr.vmem [resolvable:$true] %s234
          %240 = dma.hbm_to_vmem [thread:$0]  %s5, 256, %s235, [#allocation11], 128, 128, 8
        $region24: #{tpu_custom_call.1} parent=11 // pred_fallthru
          _
        // Predicated region
        $region25: #{tpu_custom_call.1} parent=11 // pred_check
          %p241 = pneg %p163
        $region26: #{tpu_custom_call.1} parent=11 // pred_check_branch
          %243 = sbr.rel (%p241) target = $region28
        $region27: #{tpu_custom_call.1} parent=11 // pred_region
          _
        $region28: #{tpu_custom_call.1} parent=11 // pred_fallthru
          _
      $region12: #{tpu_custom_call.1} parent=5 // pred_fallthru
        _
      %p244 = scmp.lt.s32.totalorder %s27, 2
      // Predicated region
      $region29: #{tpu_custom_call.1} parent=5 // pred_check
        %p245 = pneg %p244
      $region30: #{tpu_custom_call.1} parent=5 // pred_check_branch
        %247 = sbr.rel (%p245) target = $region32
      $region31: #{tpu_custom_call.1} parent=5 // pred_region
        // Predicated region
        $region33: #{tpu_custom_call.1} parent=31 // pred_check
          %p248 = pneg %p47
        $region34: #{tpu_custom_call.1} parent=31 // pred_check_branch
          %250 = sbr.rel (%p248) target = $region36
        $region35: #{tpu_custom_call.1} parent=31 // pred_region
          %s251 = sand.u32 %s37, 1
          %s252 = scalar_lea.sflag [#allocation5], %s251
          %s253 = sand.u32 %s37, 1
          %s254 = smul.addr %s253, 48
          %s255 = scalar_lea.vmem [#allocation4], %s254
          %s257 = ssub.s32 768, 768
          %258 = vsyncadd %s252, %s257
          %s259 = smul.addr %s27, 12
          %s260 = smul.addr %s259, 64
          %s261 = scalar_lea.hbm %s1, %s260
          %s262 = sshll.u32 %s255, 4
          %s263 = int_to_ptr.vmem [resolvable:$true] %s262
          %268 = dma.hbm_to_vmem [thread:$0]  %s261, 768, %s263, %s252, 128, 128, 8
        $region36: #{tpu_custom_call.1} parent=31 // pred_fallthru
          _
        // Predicated region
        $region37: #{tpu_custom_call.1} parent=31 // pred_check
          %p269 = pneg %p73
        $region38: #{tpu_custom_call.1} parent=31 // pred_check_branch
          %271 = sbr.rel (%p269) target = $region40
        $region39: #{tpu_custom_call.1} parent=31 // pred_region
          %s272 = sand.u32 %s27, 1
          %s273 = scalar_lea.sflag [#allocation8], %s272
          %s274 = sand.u32 %s63, 1
          %s275 = smul.addr %s274, 2304
          %s276 = scalar_lea.vmem [#allocation7], %s275
          %s278 = ssub.s32 36864, 36864
          %279 = vsyncadd %s273, %s278
          %s280 = smul.addr %s27, 576
          %s281 = smul.addr %s280, 64
          %s282 = scalar_lea.hbm %s2, %s281
          %s283 = sshll.u32 %s276, 4
          %s284 = int_to_ptr.vmem [resolvable:$true] %s283
          %289 = dma.hbm_to_vmem [thread:$0]  %s282, 36864, %s284, %s273, 128, 128, 8
        $region40: #{tpu_custom_call.1} parent=31 // pred_fallthru
          _
      $region32: #{tpu_custom_call.1} parent=5 // pred_fallthru
        _
      %p290 = scmp.le.s32.totalorder 1, %s27
      %p291 = scmp.lt.s32.totalorder %s27, 3
      %p292 = pnand %p290, %p291
      %p293 = pneg %p292
      // Predicated region
      $region41: #{tpu_custom_call.1} parent=5 // pred_check
        _
      $region42: #{tpu_custom_call.1} parent=5 // pred_check_branch
        %295 = sbr.rel (%p292) target = $region44
      $region43: #{tpu_custom_call.1} parent=5 // pred_region
        %s296 = ssub.s32 %s27, 1
        %s297 = sand.u32 %s40, 1
        %s298 = scalar_lea.sflag [#allocation5], %s297
        %s299 = sand.u32 %s40, 1
        %s300 = smul.addr %s299, 48
        %s301 = scalar_lea.vmem [#allocation4], %s300
        // Predicated region
        $region45: #{tpu_custom_call.1} parent=43 // pred_check
          %p302 = pneg %p53
        $region46: #{tpu_custom_call.1} parent=43 // pred_check_branch
          %304 = sbr.rel (%p302) target = $region48
        $region47: #{tpu_custom_call.1} parent=43 // pred_region
          %305 = dma.done %s298, 768
        $region48: #{tpu_custom_call.1} parent=43 // pred_fallthru
          _
        %s306 = sand.u32 %s32, 1
        %s307 = scalar_lea.sflag [#allocation8], %s306
        %s308 = sand.u32 %s66, 1
        %s309 = smul.addr %s308, 2304
        %s310 = scalar_lea.vmem [#allocation7], %s309
        // Predicated region
        $region49: #{tpu_custom_call.1} parent=43 // pred_check
          %p311 = pneg %p79
        $region50: #{tpu_custom_call.1} parent=43 // pred_check_branch
          %313 = sbr.rel (%p311) target = $region52
        $region51: #{tpu_custom_call.1} parent=43 // pred_region
          %314 = dma.done %s307, 36864
        $region52: #{tpu_custom_call.1} parent=43 // pred_fallthru
          _
        // Predicated region
        $region53: #{tpu_custom_call.1} parent=43 // pred_check
          %p315 = pneg %p100
        $region54: #{tpu_custom_call.1} parent=43 // pred_check_branch
          %317 = sbr.rel (%p315) target = $region56
        $region55: #{tpu_custom_call.1} parent=43 // pred_region
          %318 = dma.done [#allocation8], 768
        $region56: #{tpu_custom_call.1} parent=43 // pred_fallthru
          _
        // Predicated region
        $region57: #{tpu_custom_call.1} parent=43 // pred_check
          %p319 = pneg %p121
        $region58: #{tpu_custom_call.1} parent=43 // pred_check_branch
          %321 = sbr.rel (%p319) target = $region60
        $region59: #{tpu_custom_call.1} parent=43 // pred_region
          %322 = dma.done [#allocation11], 128
        $region60: #{tpu_custom_call.1} parent=43 // pred_fallthru
          _
        // Predicated region
        $region61: #{tpu_custom_call.1} parent=43 // pred_check
          %p323 = pneg %p142
        $region62: #{tpu_custom_call.1} parent=43 // pred_check_branch
          %325 = sbr.rel (%p323) target = $region64
        $region63: #{tpu_custom_call.1} parent=43 // pred_region
          %326 = dma.done [#allocation11], 256
        $region64: #{tpu_custom_call.1} parent=43 // pred_fallthru
          _
        %s327 = sand.u32 %s40, 1
        %s328 = scalar_lea.sflag [#allocation5], %s327
        %s329 = sand.u32 %s40, 1
        %s330 = smul.addr %s329, 48
        %s331 = scalar_lea.vmem [#allocation4], %s330
        %p332 = pneg %p53
        %p333 = pneg %p50
        %s334 = sand.u32 %s32, 1
        %s335 = scalar_lea.sflag [#allocation8], %s334
        %s336 = sand.u32 %s66, 1
        %s337 = smul.addr %s336, 2304
        %s338 = scalar_lea.vmem [#allocation7], %s337
        %p339 = pneg %p79
        %p340 = pneg %p76
        %p341 = pneg %p100
        %p342 = pneg %p97
        %p343 = pneg %p121
        %p344 = pneg %p118
        %p345 = pneg %p142
        %p346 = pneg %p139
        %p347 = pneg %p163
        %p348 = pneg %p160
        %p349 = pneg %p189
        %p350 = pneg %p186
        %s351 = sand.u32 %s176, 1
        %s352 = scalar_lea.sflag [#allocation6], %s351
        %s353 = sand.u32 %s176, 1
        %s354 = smul.addr %s353, 96
        %s355 = scalar_lea.vmem [#allocation13], %s354
        %s356 = sld [smem:[#allocation3 + %s32]]
        %v357 = vld [vmem:[#allocation9] sm:$0xff]
        %v358 = vld [vmem:[#allocation9 + $0x8] sm:$0xff]
        %s359 = scalar_lea.vmem [#allocation9], 16
        %v360 = vld [vmem:[%s359] sm:$0xff]
        %v361 = vld [vmem:[%s359 + $0x8] sm:$0xff]
        %s362 = scalar_lea.vmem [#allocation9], 32
        %v363 = vld [vmem:[%s362] sm:$0xff]
        %v364 = vld [vmem:[%s362 + $0x8] sm:$0xff]
        %v365 = vld [vmem:[#allocation10] sm:$0xff]
        %v366 = vld [vmem:[#allocation12] sm:$0xff]
        %s367 = scalar_lea.vmem [#allocation12], 8
        %v368 = vld [vmem:[%s367] sm:$0xff]
        %v369 = vld [vmem:[%s6] sm:$0xff]
        %v370 = vld [vmem:[%s6 + $0x8] sm:$0xff]
        %s371 = scalar_lea.vmem %s6, 16
        %v372 = vld [vmem:[%s371] sm:$0xff]
        %s373 = scalar_lea.vmem %s6, 32
        %v374 = vld [vmem:[%s373] sm:$0xff]
        %s375 = scalar_lea.vmem %s6, 48
        %v376 = vld [vmem:[%s375] sm:$0xff]
        %s377 = scalar_lea.vmem %s6, 64
        %v378 = vld [vmem:[%s377] sm:$0xff]
        %v379 = vld [vmem:[%s377 + $0x8] sm:$0xff]
        %p380 = scmp.gt.s32.totalorder %s356, 0
        // Predicated region
        $region65: #{tpu_custom_call.1} parent=43 // pred_check
          %p381 = pneg %p380
        $region66: #{tpu_custom_call.1} parent=43 // pred_check_branch
          %383 = sbr.rel (%p381) target = $region68
        $region67: #{tpu_custom_call.1} parent=43 // pred_region
          %v384 = vld [vmem:[%s301] sm:$0xff]
          %v385 = vld [vmem:[%s301 + $0x8] sm:$0xff]
          %v386 = vunpack.c.l.bf16 %v384
          %v387 = vunpack.c.h.bf16 %v384
          %v388 = vunpack.c.l.bf16 %v385
          %v389 = vunpack.c.h.bf16 %v385
          %391 = vset.pattern.permute.xlu0 0
          %392 = vperm.xlu0 %391, %v369
          %v393 = vpop.permute.xlu0 %392
          %396 = vset.pattern.permute.xlu0 0
          %397 = vperm.xlu0 %396, %v370
          %v398 = vpop.permute.xlu0 %397
          %vm400 = vcmask 130048
          %v402 = vsel %vm400, %v360, 0
          %v405 = vsel %vm400, %v361, 0
          %407 = vmatprep.subr.mxu0 %v387
          %408 = vmatpush1.msra.mxu0 %v386
          %409 = vmatprep.subr.mxu0 %v389
          %410 = vmatpush1.msra.mxu0 %v388
          %411 = vmatprep.subr.mxu0 0.0
          %412 = vmatpush1.msra.mxu0 0.0
          %413 = vmatprep.subr.mxu0 0.0
          %414 = vmatpush1.msra.mxu0 0.0
          %415 = vmatprep.subr.mxu0 0.0
          %416 = vmatpush1.msra.mxu0 0.0
          %417 = vmatprep.subr.mxu0 0.0
          %418 = vmatpush1.msra.mxu0 0.0
          %419 = vmatprep.subr.mxu0 0.0
          %420 = vmatpush1.msra.mxu0 0.0
          %421 = vmatprep.subr.mxu0 0.0
          %422 = vmatpush1.msra.mxu0 0.0
          %423 = vmatprep.subr.mxu0 0.0
          %424 = vmatpush1.msra.mxu0 0.0
          %425 = vmatprep.subr.mxu0 0.0
          %426 = vmatpush1.msra.mxu0 0.0
          %427 = vmatprep.subr.mxu0 0.0
          %428 = vmatpush1.msra.mxu0 0.0
          %429 = vmatprep.subr.mxu0 0.0
          %430 = vmatpush1.msra.mxu0 0.0
          %431 = vmatprep.subr.mxu0 0.0
          %432 = vmatpush1.msra.mxu0 0.0
          %433 = vmatprep.subr.mxu0 0.0
          %434 = vmatpush1.msra.mxu0 0.0
          %435 = vmatprep.subr.mxu0 0.0
          %436 = vmatpush1.msra.mxu0 0.0
          %437 = vmatprep.subr.mxu0 0.0
          %438 = vmatpush1.msra.mxu0 0.0
          %439 = vmatprep.subr.mxu0 0.0
          %440 = vmatpush1.msra.mxu0 0.0
          %441 = vmatprep.subr.mxu0 0.0
          %442 = vmatpush1.msra.mxu0 0.0
          %443 = vmatprep.subr.mxu0 0.0
          %444 = vmatpush1.msra.mxu0 0.0
          %445 = vmatprep.subr.mxu0 0.0
          %446 = vmatpush1.msra.mxu0 0.0
          %447 = vmatprep.subr.mxu0 0.0
          %448 = vmatpush1.msra.mxu0 0.0
          %449 = vmatprep.subr.mxu0 0.0
          %450 = vmatpush1.msra.mxu0 0.0
          %451 = vmatprep.subr.mxu0 0.0
          %452 = vmatpush1.msra.mxu0 0.0
          %453 = vmatprep.subr.mxu0 0.0
          %454 = vmatpush1.msra.mxu0 0.0
          %455 = vmatprep.subr.mxu0 0.0
          %456 = vmatpush1.msra.mxu0 0.0
          %457 = vmatprep.subr.mxu0 0.0
          %458 = vmatpush1.msra.mxu0 0.0
          %459 = vmatprep.subr.mxu0 0.0
          %460 = vmatpush1.msra.mxu0 0.0
          %461 = vmatprep.subr.mxu0 0.0
          %462 = vmatpush1.msra.mxu0 0.0
          %463 = vmatprep.subr.mxu0 0.0
          %464 = vmatpush1.msra.mxu0 0.0
          %465 = vmatprep.subr.mxu0 0.0
          %466 = vmatpush1.msra.mxu0 0.0
          %467 = vmatprep.subr.mxu0 0.0
          %468 = vmatpush1.msra.mxu0 0.0
          %469 = vmatprep.subr.mxu0 0.0
          %470 = vmatpush1.msra.mxu0 0.0
          %471 = vmatprep.mubr.f32.mxu0 0.0
          %472 = vmatmul.mubr.f32.gmra.mrb[0].mxu0 %v402
          %v473 = vpop.f32.mrb[0].mxu0
          %v474 = vadd.f32 %v393, %v473
          %v475 = vpop.f32.mrb[0].mxu0
          %v476 = vadd.f32 %v393, %v475
          %477 = vmatprep.mubr.f32.mxu0 0.0
          %478 = vmatmul.mubr.f32.gmra.mrb[0].mxu0 %v405
          %v479 = vpop.f32.mrb[0].mxu0
          %v480 = vadd.f32 %v398, %v479
          %v481 = vpop.f32.mrb[0].mxu0
          %v482 = vadd.f32 %v398, %v481
          %483 = vdwg.mxu0
          %v484 = vld [vmem:[%s310] sm:$0xff]
          %v485 = vld [vmem:[%s310 + $0x8] sm:$0xff]
          %v486 = vld [vmem:[%s310 + $0x10] sm:$0xff]
          %v487 = vld [vmem:[%s310 + $0x18] sm:$0xff]
          %v488 = vld [vmem:[%s310 + $0x20] sm:$0xff]
          %v489 = vld [vmem:[%s310 + $0x28] sm:$0xff]
          %v490 = vld [vmem:[%s310 + $0x30] sm:$0xff]
          %v491 = vld [vmem:[%s310 + $0x38] sm:$0xff]
          %v492 = vld [vmem:[%s310 + $0x40] sm:$0xff]
          %v493 = vld [vmem:[%s310 + $0x48] sm:$0xff]
          %v494 = vld [vmem:[%s310 + $0x50] sm:$0xff]
          %v495 = vld [vmem:[%s310 + $0x58] sm:$0xff]
          %v496 = vld [vmem:[%s310 + $0x60] sm:$0xff]
          %v497 = vld [vmem:[%s310 + $0x68] sm:$0xff]
          %v498 = vld [vmem:[%s310 + $0x70] sm:$0xff]
          %v499 = vld [vmem:[%s310 + $0x78] sm:$0xff]
          %v500 = vld [vmem:[%s310 + $0x80] sm:$0xff]
          %v501 = vld [vmem:[%s310 + $0x88] sm:$0xff]
          %v502 = vld [vmem:[%s310 + $0x90] sm:$0xff]
          %v503 = vld [vmem:[%s310 + $0x98] sm:$0xff]
          %v504 = vld [vmem:[%s310 + $0xa0] sm:$0xff]
          %v505 = vld [vmem:[%s310 + $0xa8] sm:$0xff]
          %v506 = vld [vmem:[%s310 + $0xb0] sm:$0xff]
          %v507 = vld [vmem:[%s310 + $0xb8] sm:$0xff]
          %v508 = vld [vmem:[%s310 + $0xc0] sm:$0xff]
          %v509 = vld [vmem:[%s310 + $0xc8] sm:$0xff]
          %v510 = vld [vmem:[%s310 + $0xd0] sm:$0xff]
          %v511 = vld [vmem:[%s310 + $0xd8] sm:$0xff]
          %v512 = vld [vmem:[%s310 + $0xe0] sm:$0xff]
          %v513 = vld [vmem:[%s310 + $0xe8] sm:$0xff]
          %v514 = vld [vmem:[%s310 + $0xf0] sm:$0xff]
          %v515 = vld [vmem:[%s310 + $0xf8] sm:$0xff]
          %v518 = vunpack.c.l.b16 %v384
          %v519 = vunpack.c.h.b16 %v384
          %v520 = vunpack.c.l.b16 %v385
          %v521 = vunpack.c.h.b16 %v385
          %v522 = vpack.c.b16 %v520, %v518
          %v523 = vpack.c.b16 %v521, %v519
          %v558 = vunpack.c.l.b16 %v484
          %v559 = vunpack.c.h.b16 %v484
          %v560 = vunpack.c.l.b16 %v485
          %v561 = vunpack.c.h.b16 %v485
          %v562 = vunpack.c.l.b16 %v486
          %v563 = vunpack.c.h.b16 %v486
          %v564 = vunpack.c.l.b16 %v487
          %v565 = vunpack.c.h.b16 %v487
          %v566 = vunpack.c.l.b16 %v488
          %v567 = vunpack.c.h.b16 %v488
          %v568 = vunpack.c.l.b16 %v489
          %v569 = vunpack.c.h.b16 %v489
          %v570 = vunpack.c.l.b16 %v490
          %v571 = vunpack.c.h.b16 %v490
          %v572 = vunpack.c.l.b16 %v491
          %v573 = vunpack.c.h.b16 %v491
          %v574 = vunpack.c.l.b16 %v492
          %v575 = vunpack.c.h.b16 %v492
          %v576 = vunpack.c.l.b16 %v493
          %v577 = vunpack.c.h.b16 %v493
          %v578 = vunpack.c.l.b16 %v494
          %v579 = vunpack.c.h.b16 %v494
          %v580 = vunpack.c.l.b16 %v495
          %v581 = vunpack.c.h.b16 %v495
          %v582 = vunpack.c.l.b16 %v496
          %v583 = vunpack.c.h.b16 %v496
          %v584 = vunpack.c.l.b16 %v497
          %v585 = vunpack.c.h.b16 %v497
          %v586 = vunpack.c.l.b16 %v498
          %v587 = vunpack.c.h.b16 %v498
          %v588 = vunpack.c.l.b16 %v499
          %v589 = vunpack.c.h.b16 %v499
          %v590 = vunpack.c.l.b16 %v500
          %v591 = vunpack.c.h.b16 %v500
          %v592 = vunpack.c.l.b16 %v501
          %v593 = vunpack.c.h.b16 %v501
          %v594 = vunpack.c.l.b16 %v502
          %v595 = vunpack.c.h.b16 %v502
          %v596 = vunpack.c.l.b16 %v503
          %v597 = vunpack.c.h.b16 %v503
          %v598 = vunpack.c.l.b16 %v504
          %v599 = vunpack.c.h.b16 %v504
          %v600 = vunpack.c.l.b16 %v505
          %v601 = vunpack.c.h.b16 %v505
          %v602 = vunpack.c.l.b16 %v506
          %v603 = vunpack.c.h.b16 %v506
          %v604 = vunpack.c.l.b16 %v507
          %v605 = vunpack.c.h.b16 %v507
          %v606 = vunpack.c.l.b16 %v508
          %v607 = vunpack.c.h.b16 %v508
          %v608 = vunpack.c.l.b16 %v509
          %v609 = vunpack.c.h.b16 %v509
          %v610 = vunpack.c.l.b16 %v510
          %v611 = vunpack.c.h.b16 %v510
          %v612 = vunpack.c.l.b16 %v511
          %v613 = vunpack.c.h.b16 %v511
          %v614 = vunpack.c.l.b16 %v512
          %v615 = vunpack.c.h.b16 %v512
          %v616 = vunpack.c.l.b16 %v513
          %v617 = vunpack.c.h.b16 %v513
          %v618 = vunpack.c.l.b16 %v514
          %v619 = vunpack.c.h.b16 %v514
          %v620 = vunpack.c.l.b16 %v515
          %v621 = vunpack.c.h.b16 %v515
          %v622 = vpack.c.b16 %v560, %v558
          %v623 = vpack.c.b16 %v561, %v559
          %v624 = vpack.c.b16 %v564, %v562
          %v625 = vpack.c.b16 %v565, %v563
          %v626 = vpack.c.b16 %v568, %v566
          %v627 = vpack.c.b16 %v569, %v567
          %v628 = vpack.c.b16 %v572, %v570
          %v629 = vpack.c.b16 %v573, %v571
          %v630 = vpack.c.b16 %v576, %v574
          %v631 = vpack.c.b16 %v577, %v575
          %v632 = vpack.c.b16 %v580, %v578
          %v633 = vpack.c.b16 %v581, %v579
          %v634 = vpack.c.b16 %v584, %v582
          %v635 = vpack.c.b16 %v585, %v583
          %v636 = vpack.c.b16 %v588, %v586
          %v637 = vpack.c.b16 %v589, %v587
          %v638 = vpack.c.b16 %v592, %v590
          %v639 = vpack.c.b16 %v593, %v591
          %v640 = vpack.c.b16 %v596, %v594
          %v641 = vpack.c.b16 %v597, %v595
          %v642 = vpack.c.b16 %v600, %v598
          %v643 = vpack.c.b16 %v601, %v599
          %v644 = vpack.c.b16 %v604, %v602
          %v645 = vpack.c.b16 %v605, %v603
          %v646 = vpack.c.b16 %v608, %v606
          %v647 = vpack.c.b16 %v609, %v607
          %v648 = vpack.c.b16 %v612, %v610
          %v649 = vpack.c.b16 %v613, %v611
          %v650 = vpack.c.b16 %v616, %v614
          %v651 = vpack.c.b16 %v617, %v615
          %v652 = vpack.c.b16 %v620, %v618
          %v653 = vpack.c.b16 %v621, %v619
          %686 = vmatprep.subr.bf16.mxu0 %v623
          %687 = vmatpush1.bf16.msra.mxu0 %v622
          %688 = vmatprep.subr.bf16.mxu0 %v625
          %689 = vmatpush1.bf16.msra.mxu0 %v624
          %690 = vmatprep.subr.bf16.mxu0 %v627
          %691 = vmatpush1.bf16.msra.mxu0 %v626
          %692 = vmatprep.subr.bf16.mxu0 %v629
          %693 = vmatpush1.bf16.msra.mxu0 %v628
          %694 = vmatprep.subr.bf16.mxu0 %v631
          %695 = vmatpush1.bf16.msra.mxu0 %v630
          %696 = vmatprep.subr.bf16.mxu0 %v633
          %697 = vmatpush1.bf16.msra.mxu0 %v632
          %698 = vmatprep.subr.bf16.mxu0 %v635
          %699 = vmatpush1.bf16.msra.mxu0 %v634
          %700 = vmatprep.subr.bf16.mxu0 %v637
          %701 = vmatpush1.bf16.msra.mxu0 %v636
          %702 = vmatprep.subr.bf16.mxu0 %v639
          %703 = vmatpush1.bf16.msra.mxu0 %v638
          %704 = vmatprep.subr.bf16.mxu0 %v641
          %705 = vmatpush1.bf16.msra.mxu0 %v640
          %706 = vmatprep.subr.bf16.mxu0 %v643
          %707 = vmatpush1.bf16.msra.mxu0 %v642
          %708 = vmatprep.subr.bf16.mxu0 %v645
          %709 = vmatpush1.bf16.msra.mxu0 %v644
          %710 = vmatprep.subr.bf16.mxu0 %v647
          %711 = vmatpush1.bf16.msra.mxu0 %v646
          %712 = vmatprep.subr.bf16.mxu0 %v649
          %713 = vmatpush1.bf16.msra.mxu0 %v648
          %714 = vmatprep.subr.bf16.mxu0 %v651
          %715 = vmatpush1.bf16.msra.mxu0 %v650
          %716 = vmatprep.subr.bf16.mxu0 %v653
          %717 = vmatpush1.bf16.msra.mxu0 %v652
          %718 = vmatprep.mubr.bf16.mxu0 %v523
          %719 = vmatmul.mubr.bf16.gmra.mrb[0].mxu0 %v522
          %v720 = vpop.f32.mrb[0].mxu0
          %v721 = vadd.f32 0.0, %v720
          %v722 = vpop.f32.mrb[0].mxu0
          %v723 = vadd.f32 0.0, %v722
          %v724 = vpop.f32.mrb[0].mxu0
          %v725 = vadd.f32 0.0, %v724
          %v726 = vpop.f32.mrb[0].mxu0
          %v727 = vadd.f32 0.0, %v726
          %728 = vdwg.mxu0
          %v730 = vsel %vm400, %v357, 0
          %v733 = vsel %vm400, %v358, 0
          %735 = vmatprep.subr.mxu0 %v723
          %736 = vmatpush1.msra.mxu0 %v721
          %737 = vmatprep.subr.mxu0 %v727
          %738 = vmatpush1.msra.mxu0 %v725
          %739 = vmatprep.subr.mxu0 0.0
          %740 = vmatpush1.msra.mxu0 0.0
          %741 = vmatprep.subr.mxu0 0.0
          %742 = vmatpush1.msra.mxu0 0.0
          %743 = vmatprep.subr.mxu0 0.0
          %744 = vmatpush1.msra.mxu0 0.0
          %745 = vmatprep.subr.mxu0 0.0
          %746 = vmatpush1.msra.mxu0 0.0
          %747 = vmatprep.subr.mxu0 0.0
          %748 = vmatpush1.msra.mxu0 0.0
          %749 = vmatprep.subr.mxu0 0.0
          %750 = vmatpush1.msra.mxu0 0.0
          %751 = vmatprep.subr.mxu0 0.0
          %752 = vmatpush1.msra.mxu0 0.0
          %753 = vmatprep.subr.mxu0 0.0
          %754 = vmatpush1.msra.mxu0 0.0
          %755 = vmatprep.subr.mxu0 0.0
          %756 = vmatpush1.msra.mxu0 0.0
          %757 = vmatprep.subr.mxu0 0.0
          %758 = vmatpush1.msra.mxu0 0.0
          %759 = vmatprep.subr.mxu0 0.0
          %760 = vmatpush1.msra.mxu0 0.0
          %761 = vmatprep.subr.mxu0 0.0
          %762 = vmatpush1.msra.mxu0 0.0
          %763 = vmatprep.subr.mxu0 0.0
          %764 = vmatpush1.msra.mxu0 0.0
          %765 = vmatprep.subr.mxu0 0.0
          %766 = vmatpush1.msra.mxu0 0.0
          %767 = vmatprep.subr.mxu0 0.0
          %768 = vmatpush1.msra.mxu0 0.0
          %769 = vmatprep.subr.mxu0 0.0
          %770 = vmatpush1.msra.mxu0 0.0
          %771 = vmatprep.subr.mxu0 0.0
          %772 = vmatpush1.msra.mxu0 0.0
          %773 = vmatprep.subr.mxu0 0.0
          %774 = vmatpush1.msra.mxu0 0.0
          %775 = vmatprep.subr.mxu0 0.0
          %776 = vmatpush1.msra.mxu0 0.0
          %777 = vmatprep.subr.mxu0 0.0
          %778 = vmatpush1.msra.mxu0 0.0
          %779 = vmatprep.subr.mxu0 0.0
          %780 = vmatpush1.msra.mxu0 0.0
          %781 = vmatprep.subr.mxu0 0.0
          %782 = vmatpush1.msra.mxu0 0.0
          %783 = vmatprep.subr.mxu0 0.0
          %784 = vmatpush1.msra.mxu0 0.0
          %785 = vmatprep.subr.mxu0 0.0
          %786 = vmatpush1.msra.mxu0 0.0
          %787 = vmatprep.subr.mxu0 0.0
          %788 = vmatpush1.msra.mxu0 0.0
          %789 = vmatprep.subr.mxu0 0.0
          %790 = vmatpush1.msra.mxu0 0.0
          %791 = vmatprep.subr.mxu0 0.0
          %792 = vmatpush1.msra.mxu0 0.0
          %793 = vmatprep.subr.mxu0 0.0
          %794 = vmatpush1.msra.mxu0 0.0
          %795 = vmatprep.subr.mxu0 0.0
          %796 = vmatpush1.msra.mxu0 0.0
          %797 = vmatprep.subr.mxu0 0.0
          %798 = vmatpush1.msra.mxu0 0.0
          %799 = vmatprep.mubr.f32.mxu0 0.0
          %800 = vmatmul.mubr.f32.gmra.mrb[0].mxu0 %v730
          %v801 = vpop.f32.mrb[0].mxu0
          %v802 = vadd.f32 %v474, %v801
          %v803 = vpop.f32.mrb[0].mxu0
          %v804 = vadd.f32 %v476, %v803
          %805 = vmatprep.mubr.f32.mxu0 0.0
          %806 = vmatmul.mubr.f32.gmra.mrb[0].mxu0 %v733
          %v807 = vpop.f32.mrb[0].mxu0
          %v808 = vadd.f32 %v480, %v807
          %v809 = vpop.f32.mrb[0].mxu0
          %v810 = vadd.f32 %v482, %v809
          %811 = vdwg.mxu0
          %v812 = vmax.f32 %v802, 0.0
          %v813 = vmax.f32 %v804, 0.0
          %v814 = vmax.f32 %v808, 0.0
          %v815 = vmax.f32 %v810, 0.0
          %817 = vset.pattern.permute.xlu0 0
          %818 = vperm.xlu0 %817, %v372
          %v819 = vpop.permute.xlu0 %818
          %v822 = vsel %vm400, %v365, 0
          %824 = vmatprep.subr.mxu0 %v813
          %825 = vmatpush1.msra.mxu0 %v812
          %826 = vmatprep.subr.mxu0 %v815
          %827 = vmatpush1.msra.mxu0 %v814
          %828 = vmatprep.subr.mxu0 0.0
          %829 = vmatpush1.msra.mxu0 0.0
          %830 = vmatprep.subr.mxu0 0.0
          %831 = vmatpush1.msra.mxu0 0.0
          %832 = vmatprep.subr.mxu0 0.0
          %833 = vmatpush1.msra.mxu0 0.0
          %834 = vmatprep.subr.mxu0 0.0
          %835 = vmatpush1.msra.mxu0 0.0
          %836 = vmatprep.subr.mxu0 0.0
          %837 = vmatpush1.msra.mxu0 0.0
          %838 = vmatprep.subr.mxu0 0.0
          %839 = vmatpush1.msra.mxu0 0.0
          %840 = vmatprep.subr.mxu0 0.0
          %841 = vmatpush1.msra.mxu0 0.0
          %842 = vmatprep.subr.mxu0 0.0
          %843 = vmatpush1.msra.mxu0 0.0
          %844 = vmatprep.subr.mxu0 0.0
          %845 = vmatpush1.msra.mxu0 0.0
          %846 = vmatprep.subr.mxu0 0.0
          %847 = vmatpush1.msra.mxu0 0.0
          %848 = vmatprep.subr.mxu0 0.0
          %849 = vmatpush1.msra.mxu0 0.0
          %850 = vmatprep.subr.mxu0 0.0
          %851 = vmatpush1.msra.mxu0 0.0
          %852 = vmatprep.subr.mxu0 0.0
          %853 = vmatpush1.msra.mxu0 0.0
          %854 = vmatprep.subr.mxu0 0.0
          %855 = vmatpush1.msra.mxu0 0.0
          %856 = vmatprep.subr.mxu0 0.0
          %857 = vmatpush1.msra.mxu0 0.0
          %858 = vmatprep.subr.mxu0 0.0
          %859 = vmatpush1.msra.mxu0 0.0
          %860 = vmatprep.subr.mxu0 0.0
          %861 = vmatpush1.msra.mxu0 0.0
          %862 = vmatprep.subr.mxu0 0.0
          %863 = vmatpush1.msra.mxu0 0.0
          %864 = vmatprep.subr.mxu0 0.0
          %865 = vmatpush1.msra.mxu0 0.0
          %866 = vmatprep.subr.mxu0 0.0
          %867 = vmatpush1.msra.mxu0 0.0
          %868 = vmatprep.subr.mxu0 0.0
          %869 = vmatpush1.msra.mxu0 0.0
          %870 = vmatprep.subr.mxu0 0.0
          %871 = vmatpush1.msra.mxu0 0.0
          %872 = vmatprep.subr.mxu0 0.0
          %873 = vmatpush1.msra.mxu0 0.0
          %874 = vmatprep.subr.mxu0 0.0
          %875 = vmatpush1.msra.mxu0 0.0
          %876 = vmatprep.subr.mxu0 0.0
          %877 = vmatpush1.msra.mxu0 0.0
          %878 = vmatprep.subr.mxu0 0.0
          %879 = vmatpush1.msra.mxu0 0.0
          %880 = vmatprep.subr.mxu0 0.0
          %881 = vmatpush1.msra.mxu0 0.0
          %882 = vmatprep.subr.mxu0 0.0
          %883 = vmatpush1.msra.mxu0 0.0
          %884 = vmatprep.subr.mxu0 0.0
          %885 = vmatpush1.msra.mxu0 0.0
          %886 = vmatprep.subr.mxu0 0.0
          %887 = vmatpush1.msra.mxu0 0.0
          %888 = vmatprep.mubr.f32.mxu0 0.0
          %889 = vmatmul.mubr.f32.gmra.mrb[0].mxu0 %v822
          %v890 = vpop.f32.mrb[0].mxu0
          %v891 = vadd.f32 %v819, %v890
          %v892 = vpop.f32.mrb[0].mxu0
          %v893 = vadd.f32 %v819, %v892
          %894 = vdwg.mxu0
          %v895 = vmax.f32 %v891, 0.0
          %v896 = vmax.f32 %v893, 0.0
          %898 = vset.pattern.permute.xlu0 0
          %899 = vperm.xlu0 %898, %v374
          %v900 = vpop.permute.xlu0 %899
          %vm902 = vcmask 64512
          %v904 = vsel %vm902, %v366, 0
          %906 = vmatprep.subr.mxu0 %v896
          %907 = vmatpush1.msra.mxu0 %v895
          %908 = vmatprep.subr.mxu0 0.0
          %909 = vmatpush1.msra.mxu0 0.0
          %910 = vmatprep.subr.mxu0 0.0
          %911 = vmatpush1.msra.mxu0 0.0
          %912 = vmatprep.subr.mxu0 0.0
          %913 = vmatpush1.msra.mxu0 0.0
          %914 = vmatprep.subr.mxu0 0.0
          %915 = vmatpush1.msra.mxu0 0.0
          %916 = vmatprep.subr.mxu0 0.0
          %917 = vmatpush1.msra.mxu0 0.0
          %918 = vmatprep.subr.mxu0 0.0
          %919 = vmatpush1.msra.mxu0 0.0
          %920 = vmatprep.subr.mxu0 0.0
          %921 = vmatpush1.msra.mxu0 0.0
          %922 = vmatprep.subr.mxu0 0.0
          %923 = vmatpush1.msra.mxu0 0.0
          %924 = vmatprep.subr.mxu0 0.0
          %925 = vmatpush1.msra.mxu0 0.0
          %926 = vmatprep.subr.mxu0 0.0
          %927 = vmatpush1.msra.mxu0 0.0
          %928 = vmatprep.subr.mxu0 0.0
          %929 = vmatpush1.msra.mxu0 0.0
          %930 = vmatprep.subr.mxu0 0.0
          %931 = vmatpush1.msra.mxu0 0.0
          %932 = vmatprep.subr.mxu0 0.0
          %933 = vmatpush1.msra.mxu0 0.0
          %934 = vmatprep.subr.mxu0 0.0
          %935 = vmatpush1.msra.mxu0 0.0
          %936 = vmatprep.subr.mxu0 0.0
          %937 = vmatpush1.msra.mxu0 0.0
          %938 = vmatprep.subr.mxu0 0.0
          %939 = vmatpush1.msra.mxu0 0.0
          %940 = vmatprep.subr.mxu0 0.0
          %941 = vmatpush1.msra.mxu0 0.0
          %942 = vmatprep.subr.mxu0 0.0
          %943 = vmatpush1.msra.mxu0 0.0
          %944 = vmatprep.subr.mxu0 0.0
          %945 = vmatpush1.msra.mxu0 0.0
          %946 = vmatprep.subr.mxu0 0.0
          %947 = vmatpush1.msra.mxu0 0.0
          %948 = vmatprep.subr.mxu0 0.0
          %949 = vmatpush1.msra.mxu0 0.0
          %950 = vmatprep.subr.mxu0 0.0
          %951 = vmatpush1.msra.mxu0 0.0
          %952 = vmatprep.subr.mxu0 0.0
          %953 = vmatpush1.msra.mxu0 0.0
          %954 = vmatprep.subr.mxu0 0.0
          %955 = vmatpush1.msra.mxu0 0.0
          %956 = vmatprep.subr.mxu0 0.0
          %957 = vmatpush1.msra.mxu0 0.0
          %958 = vmatprep.subr.mxu0 0.0
          %959 = vmatpush1.msra.mxu0 0.0
          %960 = vmatprep.subr.mxu0 0.0
          %961 = vmatpush1.msra.mxu0 0.0
          %962 = vmatprep.subr.mxu0 0.0
          %963 = vmatpush1.msra.mxu0 0.0
          %964 = vmatprep.subr.mxu0 0.0
          %965 = vmatpush1.msra.mxu0 0.0
          %966 = vmatprep.subr.mxu0 0.0
          %967 = vmatpush1.msra.mxu0 0.0
          %968 = vmatprep.subr.mxu0 0.0
          %969 = vmatpush1.msra.mxu0 0.0
          %970 = vmatprep.mubr.f32.mxu0 0.0
          %971 = vmatmul.mubr.f32.gmra.mrb[0].mxu0 %v904
          %v972 = vpop.f32.mrb[0].mxu0
          %v973 = vadd.f32 %v900, %v972
          %v974 = vpop.f32.mrb[0].mxu0
          %v975 = vadd.f32 %v900, %v974
          %976 = vdwg.mxu0
          %v977 = vmax.f32 %v973, 0.0
          %v978 = vmax.f32 %v975, 0.0
          %v980 = vsel %vm902, %v368, 0
          %982 = vmatprep.subr.mxu0 %v978
          %983 = vmatpush1.msra.mxu0 %v977
          %984 = vmatprep.subr.mxu0 0.0
          %985 = vmatpush1.msra.mxu0 0.0
          %986 = vmatprep.subr.mxu0 0.0
          %987 = vmatpush1.msra.mxu0 0.0
          %988 = vmatprep.subr.mxu0 0.0
          %989 = vmatpush1.msra.mxu0 0.0
          %990 = vmatprep.subr.mxu0 0.0
          %991 = vmatpush1.msra.mxu0 0.0
          %992 = vmatprep.subr.mxu0 0.0
          %993 = vmatpush1.msra.mxu0 0.0
          %994 = vmatprep.subr.mxu0 0.0
          %995 = vmatpush1.msra.mxu0 0.0
          %996 = vmatprep.subr.mxu0 0.0
          %997 = vmatpush1.msra.mxu0 0.0
          %998 = vmatprep.subr.mxu0 0.0
          %999 = vmatpush1.msra.mxu0 0.0
          %1000 = vmatprep.subr.mxu0 0.0
          %1001 = vmatpush1.msra.mxu0 0.0
          %1002 = vmatprep.subr.mxu0 0.0
          %1003 = vmatpush1.msra.mxu0 0.0
          %1004 = vmatprep.subr.mxu0 0.0
          %1005 = vmatpush1.msra.mxu0 0.0
          %1006 = vmatprep.subr.mxu0 0.0
          %1007 = vmatpush1.msra.mxu0 0.0
          %1008 = vmatprep.subr.mxu0 0.0
          %1009 = vmatpush1.msra.mxu0 0.0
          %1010 = vmatprep.subr.mxu0 0.0
          %1011 = vmatpush1.msra.mxu0 0.0
          %1012 = vmatprep.subr.mxu0 0.0
          %1013 = vmatpush1.msra.mxu0 0.0
          %1014 = vmatprep.subr.mxu0 0.0
          %1015 = vmatpush1.msra.mxu0 0.0
          %1016 = vmatprep.subr.mxu0 0.0
          %1017 = vmatpush1.msra.mxu0 0.0
          %1018 = vmatprep.subr.mxu0 0.0
          %1019 = vmatpush1.msra.mxu0 0.0
          %1020 = vmatprep.subr.mxu0 0.0
          %1021 = vmatpush1.msra.mxu0 0.0
          %1022 = vmatprep.subr.mxu0 0.0
          %1023 = vmatpush1.msra.mxu0 0.0
          %1024 = vmatprep.subr.mxu0 0.0
          %1025 = vmatpush1.msra.mxu0 0.0
          %1026 = vmatprep.subr.mxu0 0.0
          %1027 = vmatpush1.msra.mxu0 0.0
          %1028 = vmatprep.subr.mxu0 0.0
          %1029 = vmatpush1.msra.mxu0 0.0
          %1030 = vmatprep.subr.mxu0 0.0
          %1031 = vmatpush1.msra.mxu0 0.0
          %1032 = vmatprep.subr.mxu0 0.0
          %1033 = vmatpush1.msra.mxu0 0.0
          %1034 = vmatprep.subr.mxu0 0.0
          %1035 = vmatpush1.msra.mxu0 0.0
          %1036 = vmatprep.subr.mxu0 0.0
          %1037 = vmatpush1.msra.mxu0 0.0
          %1038 = vmatprep.subr.mxu0 0.0
          %1039 = vmatpush1.msra.mxu0 0.0
          %1040 = vmatprep.subr.mxu0 0.0
          %1041 = vmatpush1.msra.mxu0 0.0
          %1042 = vmatprep.subr.mxu0 0.0
          %1043 = vmatpush1.msra.mxu0 0.0
          %1044 = vmatprep.subr.mxu0 0.0
          %1045 = vmatpush1.msra.mxu0 0.0
          %1046 = vmatprep.mubr.f32.mxu0 0.0
          %1047 = vmatmul.mubr.f32.gmra.mrb[0].mxu0 %v980
          %v1048 = vpop.f32.mrb[0].mxu0
          %v1049 = vadd.f32 0.0, %v1048
          %v1050 = vpop.f32.mrb[0].mxu0
          %v1051 = vadd.f32 0.0, %v1050
          %1052 = vdwg.mxu0
          %1054 = vset.pattern.permute.xlu0 0
          %1055 = vperm.xlu0 %1054, %v376
          %v1056 = vpop.permute.xlu0 %1055
          %v1058 = vadd.f32 %v1049, %v1056
          %v1059 = vadd.f32 %v1051, %v1056
          %v1060 = vmax.f32 %v1058, 0.0
          %v1061 = vmax.f32 %v1059, 0.0
          %v1062 = vadd.f32 %v1060, 0.0
          %v1063 = vadd.f32 %v1061, 0.0
          %s1064 = scalar_lea.vmem %s301, 16 [#allocation4]
          %v1065 = vld [vmem:[%s1064] sm:$0xff]
          %v1066 = vld [vmem:[%s1064 + $0x8] sm:$0xff]
          %s1067 = scalar_lea.vmem %s310, 256 [#allocation7]
          %v1068 = vld [vmem:[%s1067] sm:$0xff]
          %v1069 = vld [vmem:[%s1067 + $0x8] sm:$0xff]
          %v1070 = vld [vmem:[%s1067 + $0x10] sm:$0xff]
          %v1071 = vld [vmem:[%s1067 + $0x18] sm:$0xff]
          %v1072 = vld [vmem:[%s1067 + $0x20] sm:$0xff]
          %v1073 = vld [vmem:[%s1067 + $0x28] sm:$0xff]
          %v1074 = vld [vmem:[%s1067 + $0x30] sm:$0xff]
          %v1075 = vld [vmem:[%s1067 + $0x38] sm:$0xff]
          %v1076 = vld [vmem:[%s1067 + $0x40] sm:$0xff]
          %v1077 = vld [vmem:[%s1067 + $0x48] sm:$0xff]
          %v1078 = vld [vmem:[%s1067 + $0x50] sm:$0xff]
          %v1079 = vld [vmem:[%s1067 + $0x58] sm:$0xff]
          %v1080 = vld [vmem:[%s1067 + $0x60] sm:$0xff]
          %v1081 = vld [vmem:[%s1067 + $0x68] sm:$0xff]
          %v1082 = vld [vmem:[%s1067 + $0x70] sm:$0xff]
          %v1083 = vld [vmem:[%s1067 + $0x78] sm:$0xff]
          %v1084 = vld [vmem:[%s1067 + $0x80] sm:$0xff]
          %v1085 = vld [vmem:[%s1067 + $0x88] sm:$0xff]
          %v1086 = vld [vmem:[%s1067 + $0x90] sm:$0xff]
          %v1087 = vld [vmem:[%s1067 + $0x98] sm:$0xff]
          %v1088 = vld [vmem:[%s1067 + $0xa0] sm:$0xff]
          %v1089 = vld [vmem:[%s1067 + $0xa8] sm:$0xff]
          %v1090 = vld [vmem:[%s1067 + $0xb0] sm:$0xff]
          %v1091 = vld [vmem:[%s1067 + $0xb8] sm:$0xff]
          %v1092 = vld [vmem:[%s1067 + $0xc0] sm:$0xff]
          %v1093 = vld [vmem:[%s1067 + $0xc8] sm:$0xff]
          %v1094 = vld [vmem:[%s1067 + $0xd0] sm:$0xff]
          %v1095 = vld [vmem:[%s1067 + $0xd8] sm:$0xff]
          %v1096 = vld [vmem:[%s1067 + $0xe0] sm:$0xff]
          %v1097 = vld [vmem:[%s1067 + $0xe8] sm:$0xff]
          %v1098 = vld [vmem:[%s1067 + $0xf0] sm:$0xff]
          %v1099 = vld [vmem:[%s1067 + $0xf8] sm:$0xff]
          %v1102 = vunpack.c.l.b16 %v1065
          %v1103 = vunpack.c.h.b16 %v1065
          %v1104 = vunpack.c.l.b16 %v1066
          %v1105 = vunpack.c.h.b16 %v1066
          %v1106 = vpack.c.b16 %v1104, %v1102
          %v1107 = vpack.c.b16 %v1105, %v1103
          %v1142 = vunpack.c.l.b16 %v1068
          %v1143 = vunpack.c.h.b16 %v1068
          %v1144 = vunpack.c.l.b16 %v1069
          %v1145 = vunpack.c.h.b16 %v1069
          %v1146 = vunpack.c.l.b16 %v1070
          %v1147 = vunpack.c.h.b16 %v1070
          %v1148 = vunpack.c.l.b16 %v1071
          %v1149 = vunpack.c.h.b16 %v1071
          %v1150 = vunpack.c.l.b16 %v1072
          %v1151 = vunpack.c.h.b16 %v1072
          %v1152 = vunpack.c.l.b16 %v1073
          %v1153 = vunpack.c.h.b16 %v1073
          %v1154 = vunpack.c.l.b16 %v1074
          %v1155 = vunpack.c.h.b16 %v1074
          %v1156 = vunpack.c.l.b16 %v1075
          %v1157 = vunpack.c.h.b16 %v1075
          %v1158 = vunpack.c.l.b16 %v1076
          %v1159 = vunpack.c.h.b16 %v1076
          %v1160 = vunpack.c.l.b16 %v1077
          %v1161 = vunpack.c.h.b16 %v1077
          %v1162 = vunpack.c.l.b16 %v1078
          %v1163 = vunpack.c.h.b16 %v1078
          %v1164 = vunpack.c.l.b16 %v1079
          %v1165 = vunpack.c.h.b16 %v1079
          %v1166 = vunpack.c.l.b16 %v1080
          %v1167 = vunpack.c.h.b16 %v1080
          %v1168 = vunpack.c.l.b16 %v1081
          %v1169 = vunpack.c.h.b16 %v1081
          %v1170 = vunpack.c.l.b16 %v1082
          %v1171 = vunpack.c.h.b16 %v1082
          %v1172 = vunpack.c.l.b16 %v1083
          %v1173 = vunpack.c.h.b16 %v1083
          %v1174 = vunpack.c.l.b16 %v1084
          %v1175 = vunpack.c.h.b16 %v1084
          %v1176 = vunpack.c.l.b16 %v1085
          %v1177 = vunpack.c.h.b16 %v1085
          %v1178 = vunpack.c.l.b16 %v1086
          %v1179 = vunpack.c.h.b16 %v1086
          %v1180 = vunpack.c.l.b16 %v1087
          %v1181 = vunpack.c.h.b16 %v1087
          %v1182 = vunpack.c.l.b16 %v1088
          %v1183 = vunpack.c.h.b16 %v1088
          %v1184 = vunpack.c.l.b16 %v1089
          %v1185 = vunpack.c.h.b16 %v1089
          %v1186 = vunpack.c.l.b16 %v1090
          %v1187 = vunpack.c.h.b16 %v1090
          %v1188 = vunpack.c.l.b16 %v1091
          %v1189 = vunpack.c.h.b16 %v1091
          %v1190 = vunpack.c.l.b16 %v1092
          %v1191 = vunpack.c.h.b16 %v1092
          %v1192 = vunpack.c.l.b16 %v1093
          %v1193 = vunpack.c.h.b16 %v1093
          %v1194 = vunpack.c.l.b16 %v1094
          %v1195 = vunpack.c.h.b16 %v1094
          %v1196 = vunpack.c.l.b16 %v1095
          %v1197 = vunpack.c.h.b16 %v1095
          %v1198 = vunpack.c.l.b16 %v1096
          %v1199 = vunpack.c.h.b16 %v1096
          %v1200 = vunpack.c.l.b16 %v1097
          %v1201 = vunpack.c.h.b16 %v1097
          %v1202 = vunpack.c.l.b16 %v1098
          %v1203 = vunpack.c.h.b16 %v1098
          %v1204 = vunpack.c.l.b16 %v1099
          %v1205 = vunpack.c.h.b16 %v1099
          %v1206 = vpack.c.b16 %v1144, %v1142
          %v1207 = vpack.c.b16 %v1145, %v1143
          %v1208 = vpack.c.b16 %v1148, %v1146
          %v1209 = vpack.c.b16 %v1149, %v1147
          %v1210 = vpack.c.b16 %v1152, %v1150
          %v1211 = vpack.c.b16 %v1153, %v1151
          %v1212 = vpack.c.b16 %v1156, %v1154
          %v1213 = vpack.c.b16 %v1157, %v1155
          %v1214 = vpack.c.b16 %v1160, %v1158
          %v1215 = vpack.c.b16 %v1161, %v1159
          %v1216 = vpack.c.b16 %v1164, %v1162
          %v1217 = vpack.c.b16 %v1165, %v1163
          %v1218 = vpack.c.b16 %v1168, %v1166
          %v1219 = vpack.c.b16 %v1169, %v1167
          %v1220 = vpack.c.b16 %v1172, %v1170
          %v1221 = vpack.c.b16 %v1173, %v1171
          %v1222 = vpack.c.b16 %v1176, %v1174
          %v1223 = vpack.c.b16 %v1177, %v1175
          %v1224 = vpack.c.b16 %v1180, %v1178
          %v1225 = vpack.c.b16 %v1181, %v1179
          %v1226 = vpack.c.b16 %v1184, %v1182
          %v1227 = vpack.c.b16 %v1185, %v1183
          %v1228 = vpack.c.b16 %v1188, %v1186
          %v1229 = vpack.c.b16 %v1189, %v1187
          %v1230 = vpack.c.b16 %v1192, %v1190
          %v1231 = vpack.c.b16 %v1193, %v1191
          %v1232 = vpack.c.b16 %v1196, %v1194
          %v1233 = vpack.c.b16 %v1197, %v1195
          %v1234 = vpack.c.b16 %v1200, %v1198
          %v1235 = vpack.c.b16 %v1201, %v1199
          %v1236 = vpack.c.b16 %v1204, %v1202
          %v1237 = vpack.c.b16 %v1205, %v1203
          %1270 = vmatprep.subr.bf16.mxu0 %v1207
          %1271 = vmatpush1.bf16.msra.mxu0 %v1206
          %1272 = vmatprep.subr.bf16.mxu0 %v1209
          %1273 = vmatpush1.bf16.msra.mxu0 %v1208
          %1274 = vmatprep.subr.bf16.mxu0 %v1211
          %1275 = vmatpush1.bf16.msra.mxu0 %v1210
          %1276 = vmatprep.subr.bf16.mxu0 %v1213
          %1277 = vmatpush1.bf16.msra.mxu0 %v1212
          %1278 = vmatprep.subr.bf16.mxu0 %v1215
          %1279 = vmatpush1.bf16.msra.mxu0 %v1214
          %1280 = vmatprep.subr.bf16.mxu0 %v1217
          %1281 = vmatpush1.bf16.msra.mxu0 %v1216
          %1282 = vmatprep.subr.bf16.mxu0 %v1219
          %1283 = vmatpush1.bf16.msra.mxu0 %v1218
          %1284 = vmatprep.subr.bf16.mxu0 %v1221
          %1285 = vmatpush1.bf16.msra.mxu0 %v1220
          %1286 = vmatprep.subr.bf16.mxu0 %v1223
          %1287 = vmatpush1.bf16.msra.mxu0 %v1222
          %1288 = vmatprep.subr.bf16.mxu0 %v1225
          %1289 = vmatpush1.bf16.msra.mxu0 %v1224
          %1290 = vmatprep.subr.bf16.mxu0 %v1227
          %1291 = vmatpush1.bf16.msra.mxu0 %v1226
          %1292 = vmatprep.subr.bf16.mxu0 %v1229
          %1293 = vmatpush1.bf16.msra.mxu0 %v1228
          %1294 = vmatprep.subr.bf16.mxu0 %v1231
          %1295 = vmatpush1.bf16.msra.mxu0 %v1230
          %1296 = vmatprep.subr.bf16.mxu0 %v1233
          %1297 = vmatpush1.bf16.msra.mxu0 %v1232
          %1298 = vmatprep.subr.bf16.mxu0 %v1235
          %1299 = vmatpush1.bf16.msra.mxu0 %v1234
          %1300 = vmatprep.subr.bf16.mxu0 %v1237
          %1301 = vmatpush1.bf16.msra.mxu0 %v1236
          %1302 = vmatprep.mubr.bf16.mxu0 %v1107
          %1303 = vmatmul.mubr.bf16.gmra.mrb[0].mxu0 %v1106
          %v1304 = vpop.f32.mrb[0].mxu0
          %v1305 = vadd.f32 0.0, %v1304
          %v1306 = vpop.f32.mrb[0].mxu0
          %v1307 = vadd.f32 0.0, %v1306
          %v1308 = vpop.f32.mrb[0].mxu0
          %v1309 = vadd.f32 0.0, %v1308
          %v1310 = vpop.f32.mrb[0].mxu0
          %v1311 = vadd.f32 0.0, %v1310
          %1312 = vdwg.mxu0
          %1313 = vmatprep.subr.mxu0 %v1307
          %1314 = vmatpush1.msra.mxu0 %v1305
          %1315 = vmatprep.subr.mxu0 %v1311
          %1316 = vmatpush1.msra.mxu0 %v1309
          %1317 = vmatprep.subr.mxu0 0.0
          %1318 = vmatpush1.msra.mxu0 0.0
          %1319 = vmatprep.subr.mxu0 0.0
          %1320 = vmatpush1.msra.mxu0 0.0
          %1321 = vmatprep.subr.mxu0 0.0
          %1322 = vmatpush1.msra.mxu0 0.0
          %1323 = vmatprep.subr.mxu0 0.0
          %1324 = vmatpush1.msra.mxu0 0.0
          %1325 = vmatprep.subr.mxu0 0.0
          %1326 = vmatpush1.msra.mxu0 0.0
          %1327 = vmatprep.subr.mxu0 0.0
          %1328 = vmatpush1.msra.mxu0 0.0
          %1329 = vmatprep.subr.mxu0 0.0
          %1330 = vmatpush1.msra.mxu0 0.0
          %1331 = vmatprep.subr.mxu0 0.0
          %1332 = vmatpush1.msra.mxu0 0.0
          %1333 = vmatprep.subr.mxu0 0.0
          %1334 = vmatpush1.msra.mxu0 0.0
          %1335 = vmatprep.subr.mxu0 0.0
          %1336 = vmatpush1.msra.mxu0 0.0
          %1337 = vmatprep.subr.mxu0 0.0
          %1338 = vmatpush1.msra.mxu0 0.0
          %1339 = vmatprep.subr.mxu0 0.0
          %1340 = vmatpush1.msra.mxu0 0.0
          %1341 = vmatprep.subr.mxu0 0.0
          %1342 = vmatpush1.msra.mxu0 0.0
          %1343 = vmatprep.subr.mxu0 0.0
          %1344 = vmatpush1.msra.mxu0 0.0
          %1345 = vmatprep.subr.mxu0 0.0
          %1346 = vmatpush1.msra.mxu0 0.0
          %1347 = vmatprep.subr.mxu0 0.0
          %1348 = vmatpush1.msra.mxu0 0.0
          %1349 = vmatprep.subr.mxu0 0.0
          %1350 = vmatpush1.msra.mxu0 0.0
          %1351 = vmatprep.subr.mxu0 0.0
          %1352 = vmatpush1.msra.mxu0 0.0
          %1353 = vmatprep.subr.mxu0 0.0
          %1354 = vmatpush1.msra.mxu0 0.0
          %1355 = vmatprep.subr.mxu0 0.0
          %1356 = vmatpush1.msra.mxu0 0.0
          %1357 = vmatprep.subr.mxu0 0.0
          %1358 = vmatpush1.msra.mxu0 0.0
          %1359 = vmatprep.subr.mxu0 0.0
          %1360 = vmatpush1.msra.mxu0 0.0
          %1361 = vmatprep.subr.mxu0 0.0
          %1362 = vmatpush1.msra.mxu0 0.0
          %1363 = vmatprep.subr.mxu0 0.0
          %1364 = vmatpush1.msra.mxu0 0.0
          %1365 = vmatprep.subr.mxu0 0.0
          %1366 = vmatpush1.msra.mxu0 0.0
          %1367 = vmatprep.subr.mxu0 0.0
          %1368 = vmatpush1.msra.mxu0 0.0
          %1369 = vmatprep.subr.mxu0 0.0
          %1370 = vmatpush1.msra.mxu0 0.0
          %1371 = vmatprep.subr.mxu0 0.0
          %1372 = vmatpush1.msra.mxu0 0.0
          %1373 = vmatprep.subr.mxu0 0.0
          %1374 = vmatpush1.msra.mxu0 0.0
          %1375 = vmatprep.subr.mxu0 0.0
          %1376 = vmatpush1.msra.mxu0 0.0
          %1377 = vmatprep.mubr.f32.mxu0 0.0
          %1378 = vmatmul.mubr.f32.gmra.mrb[0].mxu0 %v730
          %v1379 = vpop.f32.mrb[0].mxu0
          %v1380 = vadd.f32 %v474, %v1379
          %v1381 = vpop.f32.mrb[0].mxu0
          %v1382 = vadd.f32 %v476, %v1381
          %1383 = vmatprep.mubr.f32.mxu0 0.0
          %1384 = vmatmul.mubr.f32.gmra.mrb[0].mxu0 %v733
          %v1385 = vpop.f32.mrb[0].mxu0
          %v1386 = vadd.f32 %v480, %v1385
          %v1387 = vpop.f32.mrb[0].mxu0
          %v1388 = vadd.f32 %v482, %v1387
          %1389 = vdwg.mxu0
          %v1390 = vmax.f32 %v1380, 0.0
          %v1391 = vmax.f32 %v1382, 0.0
          %v1392 = vmax.f32 %v1386, 0.0
          %v1393 = vmax.f32 %v1388, 0.0
          %1394 = vmatprep.subr.mxu0 %v1391
          %1395 = vmatpush1.msra.mxu0 %v1390
          %1396 = vmatprep.subr.mxu0 %v1393
          %1397 = vmatpush1.msra.mxu0 %v1392
          %1398 = vmatprep.subr.mxu0 0.0
          %1399 = vmatpush1.msra.mxu0 0.0
          %1400 = vmatprep.subr.mxu0 0.0
          %1401 = vmatpush1.msra.mxu0 0.0
          %1402 = vmatprep.subr.mxu0 0.0
          %1403 = vmatpush1.msra.mxu0 0.0
          %1404 = vmatprep.subr.mxu0 0.0
          %1405 = vmatpush1.msra.mxu0 0.0
          %1406 = vmatprep.subr.mxu0 0.0
          %1407 = vmatpush1.msra.mxu0 0.0
          %1408 = vmatprep.subr.mxu0 0.0
          %1409 = vmatpush1.msra.mxu0 0.0
          %1410 = vmatprep.subr.mxu0 0.0
          %1411 = vmatpush1.msra.mxu0 0.0
          %1412 = vmatprep.subr.mxu0 0.0
          %1413 = vmatpush1.msra.mxu0 0.0
          %1414 = vmatprep.subr.mxu0 0.0
          %1415 = vmatpush1.msra.mxu0 0.0
          %1416 = vmatprep.subr.mxu0 0.0
          %1417 = vmatpush1.msra.mxu0 0.0
          %1418 = vmatprep.subr.mxu0 0.0
          %1419 = vmatpush1.msra.mxu0 0.0
          %1420 = vmatprep.subr.mxu0 0.0
          %1421 = vmatpush1.msra.mxu0 0.0
          %1422 = vmatprep.subr.mxu0 0.0
          %1423 = vmatpush1.msra.mxu0 0.0
          %1424 = vmatprep.subr.mxu0 0.0
          %1425 = vmatpush1.msra.mxu0 0.0
          %1426 = vmatprep.subr.mxu0 0.0
          %1427 = vmatpush1.msra.mxu0 0.0
          %1428 = vmatprep.subr.mxu0 0.0
          %1429 = vmatpush1.msra.mxu0 0.0
          %1430 = vmatprep.subr.mxu0 0.0
          %1431 = vmatpush1.msra.mxu0 0.0
          %1432 = vmatprep.subr.mxu0 0.0
          %1433 = vmatpush1.msra.mxu0 0.0
          %1434 = vmatprep.subr.mxu0 0.0
          %1435 = vmatpush1.msra.mxu0 0.0
          %1436 = vmatprep.subr.mxu0 0.0
          %1437 = vmatpush1.msra.mxu0 0.0
          %1438 = vmatprep.subr.mxu0 0.0
          %1439 = vmatpush1.msra.mxu0 0.0
          %1440 = vmatprep.subr.mxu0 0.0
          %1441 = vmatpush1.msra.mxu0 0.0
          %1442 = vmatprep.subr.mxu0 0.0
          %1443 = vmatpush1.msra.mxu0 0.0
          %1444 = vmatprep.subr.mxu0 0.0
          %1445 = vmatpush1.msra.mxu0 0.0
          %1446 = vmatprep.subr.mxu0 0.0
          %1447 = vmatpush1.msra.mxu0 0.0
          %1448 = vmatprep.subr.mxu0 0.0
          %1449 = vmatpush1.msra.mxu0 0.0
          %1450 = vmatprep.subr.mxu0 0.0
          %1451 = vmatpush1.msra.mxu0 0.0
          %1452 = vmatprep.subr.mxu0 0.0
          %1453 = vmatpush1.msra.mxu0 0.0
          %1454 = vmatprep.subr.mxu0 0.0
          %1455 = vmatpush1.msra.mxu0 0.0
          %1456 = vmatprep.subr.mxu0 0.0
          %1457 = vmatpush1.msra.mxu0 0.0
          %1458 = vmatprep.mubr.f32.mxu0 0.0
          %1459 = vmatmul.mubr.f32.gmra.mrb[0].mxu0 %v822
          %v1460 = vpop.f32.mrb[0].mxu0
          %v1461 = vadd.f32 %v819, %v1460
          %v1462 = vpop.f32.mrb[0].mxu0
          %v1463 = vadd.f32 %v819, %v1462
          %1464 = vdwg.mxu0
          %v1465 = vmax.f32 %v1461, 0.0
          %v1466 = vmax.f32 %v1463, 0.0
          %1467 = vmatprep.subr.mxu0 %v1466
          %1468 = vmatpush1.msra.mxu0 %v1465
          %1469 = vmatprep.subr.mxu0 0.0
          %1470 = vmatpush1.msra.mxu0 0.0
          %1471 = vmatprep.subr.mxu0 0.0
          %1472 = vmatpush1.msra.mxu0 0.0
          %1473 = vmatprep.subr.mxu0 0.0
          %1474 = vmatpush1.msra.mxu0 0.0
          %1475 = vmatprep.subr.mxu0 0.0
          %1476 = vmatpush1.msra.mxu0 0.0
          %1477 = vmatprep.subr.mxu0 0.0
          %1478 = vmatpush1.msra.mxu0 0.0
          %1479 = vmatprep.subr.mxu0 0.0
          %1480 = vmatpush1.msra.mxu0 0.0
          %1481 = vmatprep.subr.mxu0 0.0
          %1482 = vmatpush1.msra.mxu0 0.0
          %1483 = vmatprep.subr.mxu0 0.0
          %1484 = vmatpush1.msra.mxu0 0.0
          %1485 = vmatprep.subr.mxu0 0.0
          %1486 = vmatpush1.msra.mxu0 0.0
          %1487 = vmatprep.subr.mxu0 0.0
          %1488 = vmatpush1.msra.mxu0 0.0
          %1489 = vmatprep.subr.mxu0 0.0
          %1490 = vmatpush1.msra.mxu0 0.0
          %1491 = vmatprep.subr.mxu0 0.0
          %1492 = vmatpush1.msra.mxu0 0.0
          %1493 = vmatprep.subr.mxu0 0.0
          %1494 = vmatpush1.msra.mxu0 0.0
          %1495 = vmatprep.subr.mxu0 0.0
          %1496 = vmatpush1.msra.mxu0 0.0
          %1497 = vmatprep.subr.mxu0 0.0
          %1498 = vmatpush1.msra.mxu0 0.0
          %1499 = vmatprep.subr.mxu0 0.0
          %1500 = vmatpush1.msra.mxu0 0.0
          %1501 = vmatprep.subr.mxu0 0.0
          %1502 = vmatpush1.msra.mxu0 0.0
          %1503 = vmatprep.subr.mxu0 0.0
          %1504 = vmatpush1.msra.mxu0 0.0
          %1505 = vmatprep.subr.mxu0 0.0
          %1506 = vmatpush1.msra.mxu0 0.0
          %1507 = vmatprep.subr.mxu0 0.0
          %1508 = vmatpush1.msra.mxu0 0.0
          %1509 = vmatprep.subr.mxu0 0.0
          %1510 = vmatpush1.msra.mxu0 0.0
          %1511 = vmatprep.subr.mxu0 0.0
          %1512 = vmatpush1.msra.mxu0 0.0
          %1513 = vmatprep.subr.mxu0 0.0
          %1514 = vmatpush1.msra.mxu0 0.0
          %1515 = vmatprep.subr.mxu0 0.0
          %1516 = vmatpush1.msra.mxu0 0.0
          %1517 = vmatprep.subr.mxu0 0.0
          %1518 = vmatpush1.msra.mxu0 0.0
          %1519 = vmatprep.subr.mxu0 0.0
          %1520 = vmatpush1.msra.mxu0 0.0
          %1521 = vmatprep.subr.mxu0 0.0
          %1522 = vmatpush1.msra.mxu0 0.0
          %1523 = vmatprep.subr.mxu0 0.0
          %1524 = vmatpush1.msra.mxu0 0.0
          %1525 = vmatprep.subr.mxu0 0.0
          %1526 = vmatpush1.msra.mxu0 0.0
          %1527 = vmatprep.subr.mxu0 0.0
          %1528 = vmatpush1.msra.mxu0 0.0
          %1529 = vmatprep.subr.mxu0 0.0
          %1530 = vmatpush1.msra.mxu0 0.0
          %1531 = vmatprep.mubr.f32.mxu0 0.0
          %1532 = vmatmul.mubr.f32.gmra.mrb[0].mxu0 %v904
          %v1533 = vpop.f32.mrb[0].mxu0
          %v1534 = vadd.f32 %v900, %v1533
          %v1535 = vpop.f32.mrb[0].mxu0
          %v1536 = vadd.f32 %v900, %v1535
          %1537 = vdwg.mxu0
          %v1538 = vmax.f32 %v1534, 0.0
          %v1539 = vmax.f32 %v1536, 0.0
          %1540 = vmatprep.subr.mxu0 %v1539
          %1541 = vmatpush1.msra.mxu0 %v1538
          %1542 = vmatprep.subr.mxu0 0.0
          %1543 = vmatpush1.msra.mxu0 0.0
          %1544 = vmatprep.subr.mxu0 0.0
          %1545 = vmatpush1.msra.mxu0 0.0
          %1546 = vmatprep.subr.mxu0 0.0
          %1547 = vmatpush1.msra.mxu0 0.0
          %1548 = vmatprep.subr.mxu0 0.0
          %1549 = vmatpush1.msra.mxu0 0.0
          %1550 = vmatprep.subr.mxu0 0.0
          %1551 = vmatpush1.msra.mxu0 0.0
          %1552 = vmatprep.subr.mxu0 0.0
          %1553 = vmatpush1.msra.mxu0 0.0
          %1554 = vmatprep.subr.mxu0 0.0
          %1555 = vmatpush1.msra.mxu0 0.0
          %1556 = vmatprep.subr.mxu0 0.0
          %1557 = vmatpush1.msra.mxu0 0.0
          %1558 = vmatprep.subr.mxu0 0.0
          %1559 = vmatpush1.msra.mxu0 0.0
          %1560 = vmatprep.subr.mxu0 0.0
          %1561 = vmatpush1.msra.mxu0 0.0
          %1562 = vmatprep.subr.mxu0 0.0
          %1563 = vmatpush1.msra.mxu0 0.0
          %1564 = vmatprep.subr.mxu0 0.0
          %1565 = vmatpush1.msra.mxu0 0.0
          %1566 = vmatprep.subr.mxu0 0.0
          %1567 = vmatpush1.msra.mxu0 0.0
          %1568 = vmatprep.subr.mxu0 0.0
          %1569 = vmatpush1.msra.mxu0 0.0
          %1570 = vmatprep.subr.mxu0 0.0
          %1571 = vmatpush1.msra.mxu0 0.0
          %1572 = vmatprep.subr.mxu0 0.0
          %1573 = vmatpush1.msra.mxu0 0.0
          %1574 = vmatprep.subr.mxu0 0.0
          %1575 = vmatpush1.msra.mxu0 0.0
          %1576 = vmatprep.subr.mxu0 0.0
          %1577 = vmatpush1.msra.mxu0 0.0
          %1578 = vmatprep.subr.mxu0 0.0
          %1579 = vmatpush1.msra.mxu0 0.0
          %1580 = vmatprep.subr.mxu0 0.0
          %1581 = vmatpush1.msra.mxu0 0.0
          %1582 = vmatprep.subr.mxu0 0.0
          %1583 = vmatpush1.msra.mxu0 0.0
          %1584 = vmatprep.subr.mxu0 0.0
          %1585 = vmatpush1.msra.mxu0 0.0
          %1586 = vmatprep.subr.mxu0 0.0
          %1587 = vmatpush1.msra.mxu0 0.0
          %1588 = vmatprep.subr.mxu0 0.0
          %1589 = vmatpush1.msra.mxu0 0.0
          %1590 = vmatprep.subr.mxu0 0.0
          %1591 = vmatpush1.msra.mxu0 0.0
          %1592 = vmatprep.subr.mxu0 0.0
          %1593 = vmatpush1.msra.mxu0 0.0
          %1594 = vmatprep.subr.mxu0 0.0
          %1595 = vmatpush1.msra.mxu0 0.0
          %1596 = vmatprep.subr.mxu0 0.0
          %1597 = vmatpush1.msra.mxu0 0.0
          %1598 = vmatprep.subr.mxu0 0.0
          %1599 = vmatpush1.msra.mxu0 0.0
          %1600 = vmatprep.subr.mxu0 0.0
          %1601 = vmatpush1.msra.mxu0 0.0
          %1602 = vmatprep.subr.mxu0 0.0
          %1603 = vmatpush1.msra.mxu0 0.0
          %1604 = vmatprep.mubr.f32.mxu0 0.0
          %1605 = vmatmul.mubr.f32.gmra.mrb[0].mxu0 %v980
          %v1606 = vpop.f32.mrb[0].mxu0
          %v1607 = vadd.f32 0.0, %v1606
          %v1608 = vpop.f32.mrb[0].mxu0
          %v1609 = vadd.f32 0.0, %v1608
          %1610 = vdwg.mxu0
          %v1611 = vadd.f32 %v1607, %v1056
          %v1612 = vadd.f32 %v1609, %v1056
          %v1613 = vmax.f32 %v1611, 0.0
          %v1614 = vmax.f32 %v1612, 0.0
          %p1615 = scmp.gt.s32.totalorder %s356, 1
          %s1616 = scalar_select %p1615, 0.0, -1e+30
          %v1617 = vstv %s1616
          %v1618 = vadd.f32 %v1613, %v1617
          %v1619 = vadd.f32 %v1614, %v1617
          %s1620 = scalar_lea.vmem %s301, 32 [#allocation4]
          %v1621 = vld [vmem:[%s1620] sm:$0xff]
          %v1622 = vld [vmem:[%s1620 + $0x8] sm:$0xff]
          %s1623 = scalar_lea.vmem %s310, 512 [#allocation7]
          %v1624 = vld [vmem:[%s1623] sm:$0xff]
          %v1625 = vld [vmem:[%s1623 + $0x8] sm:$0xff]
          %v1626 = vld [vmem:[%s1623 + $0x10] sm:$0xff]
          %v1627 = vld [vmem:[%s1623 + $0x18] sm:$0xff]
          %v1628 = vld [vmem:[%s1623 + $0x20] sm:$0xff]
          %v1629 = vld [vmem:[%s1623 + $0x28] sm:$0xff]
          %v1630 = vld [vmem:[%s1623 + $0x30] sm:$0xff]
          %v1631 = vld [vmem:[%s1623 + $0x38] sm:$0xff]
          %v1632 = vld [vmem:[%s1623 + $0x40] sm:$0xff]
          %v1633 = vld [vmem:[%s1623 + $0x48] sm:$0xff]
          %v1634 = vld [vmem:[%s1623 + $0x50] sm:$0xff]
          %v1635 = vld [vmem:[%s1623 + $0x58] sm:$0xff]
          %v1636 = vld [vmem:[%s1623 + $0x60] sm:$0xff]
          %v1637 = vld [vmem:[%s1623 + $0x68] sm:$0xff]
          %v1638 = vld [vmem:[%s1623 + $0x70] sm:$0xff]
          %v1639 = vld [vmem:[%s1623 + $0x78] sm:$0xff]
          %v1640 = vld [vmem:[%s1623 + $0x80] sm:$0xff]
          %v1641 = vld [vmem:[%s1623 + $0x88] sm:$0xff]
          %v1642 = vld [vmem:[%s1623 + $0x90] sm:$0xff]
          %v1643 = vld [vmem:[%s1623 + $0x98] sm:$0xff]
          %v1644 = vld [vmem:[%s1623 + $0xa0] sm:$0xff]
          %v1645 = vld [vmem:[%s1623 + $0xa8] sm:$0xff]
          %v1646 = vld [vmem:[%s1623 + $0xb0] sm:$0xff]
          %v1647 = vld [vmem:[%s1623 + $0xb8] sm:$0xff]
          %v1648 = vld [vmem:[%s1623 + $0xc0] sm:$0xff]
          %v1649 = vld [vmem:[%s1623 + $0xc8] sm:$0xff]
          %v1650 = vld [vmem:[%s1623 + $0xd0] sm:$0xff]
          %v1651 = vld [vmem:[%s1623 + $0xd8] sm:$0xff]
          %v1652 = vld [vmem:[%s1623 + $0xe0] sm:$0xff]
          %v1653 = vld [vmem:[%s1623 + $0xe8] sm:$0xff]
          %v1654 = vld [vmem:[%s1623 + $0xf0] sm:$0xff]
          %v1655 = vld [vmem:[%s1623 + $0xf8] sm:$0xff]
          %v1658 = vunpack.c.l.b16 %v1621
          %v1659 = vunpack.c.h.b16 %v1621
          %v1660 = vunpack.c.l.b16 %v1622
          %v1661 = vunpack.c.h.b16 %v1622
          %v1662 = vpack.c.b16 %v1660, %v1658
          %v1663 = vpack.c.b16 %v1661, %v1659
          %v1698 = vunpack.c.l.b16 %v1624
          %v1699 = vunpack.c.h.b16 %v1624
          %v1700 = vunpack.c.l.b16 %v1625
          %v1701 = vunpack.c.h.b16 %v1625
          %v1702 = vunpack.c.l.b16 %v1626
          %v1703 = vunpack.c.h.b16 %v1626
          %v1704 = vunpack.c.l.b16 %v1627
          %v1705 = vunpack.c.h.b16 %v1627
          %v1706 = vunpack.c.l.b16 %v1628
          %v1707 = vunpack.c.h.b16 %v1628
          %v1708 = vunpack.c.l.b16 %v1629
          %v1709 = vunpack.c.h.b16 %v1629
          %v1710 = vunpack.c.l.b16 %v1630
          %v1711 = vunpack.c.h.b16 %v1630
          %v1712 = vunpack.c.l.b16 %v1631
          %v1713 = vunpack.c.h.b16 %v1631
          %v1714 = vunpack.c.l.b16 %v1632
          %v1715 = vunpack.c.h.b16 %v1632
          %v1716 = vunpack.c.l.b16 %v1633
          %v1717 = vunpack.c.h.b16 %v1633
          %v1718 = vunpack.c.l.b16 %v1634
          %v1719 = vunpack.c.h.b16 %v1634
          %v1720 = vunpack.c.l.b16 %v1635
          %v1721 = vunpack.c.h.b16 %v1635
          %v1722 = vunpack.c.l.b16 %v1636
          %v1723 = vunpack.c.h.b16 %v1636
          %v1724 = vunpack.c.l.b16 %v1637
          %v1725 = vunpack.c.h.b16 %v1637
          %v1726 = vunpack.c.l.b16 %v1638
          %v1727 = vunpack.c.h.b16 %v1638
          %v1728 = vunpack.c.l.b16 %v1639
          %v1729 = vunpack.c.h.b16 %v1639
          %v1730 = vunpack.c.l.b16 %v1640
          %v1731 = vunpack.c.h.b16 %v1640
          %v1732 = vunpack.c.l.b16 %v1641
          %v1733 = vunpack.c.h.b16 %v1641
          %v1734 = vunpack.c.l.b16 %v1642
          %v1735 = vunpack.c.h.b16 %v1642
          %v1736 = vunpack.c.l.b16 %v1643
          %v1737 = vunpack.c.h.b16 %v1643
          %v1738 = vunpack.c.l.b16 %v1644
          %v1739 = vunpack.c.h.b16 %v1644
          %v1740 = vunpack.c.l.b16 %v1645
          %v1741 = vunpack.c.h.b16 %v1645
          %v1742 = vunpack.c.l.b16 %v1646
          %v1743 = vunpack.c.h.b16 %v1646
          %v1744 = vunpack.c.l.b16 %v1647
          %v1745 = vunpack.c.h.b16 %v1647
          %v1746 = vunpack.c.l.b16 %v1648
          %v1747 = vunpack.c.h.b16 %v1648
          %v1748 = vunpack.c.l.b16 %v1649
          %v1749 = vunpack.c.h.b16 %v1649
          %v1750 = vunpack.c.l.b16 %v1650
          %v1751 = vunpack.c.h.b16 %v1650
          %v1752 = vunpack.c.l.b16 %v1651
          %v1753 = vunpack.c.h.b16 %v1651
          %v1754 = vunpack.c.l.b16 %v1652
          %v1755 = vunpack.c.h.b16 %v1652
          %v1756 = vunpack.c.l.b16 %v1653
          %v1757 = vunpack.c.h.b16 %v1653
          %v1758 = vunpack.c.l.b16 %v1654
          %v1759 = vunpack.c.h.b16 %v1654
          %v1760 = vunpack.c.l.b16 %v1655
          %v1761 = vunpack.c.h.b16 %v1655
          %v1762 = vpack.c.b16 %v1700, %v1698
          %v1763 = vpack.c.b16 %v1701, %v1699
          %v1764 = vpack.c.b16 %v1704, %v1702
          %v1765 = vpack.c.b16 %v1705, %v1703
          %v1766 = vpack.c.b16 %v1708, %v1706
          %v1767 = vpack.c.b16 %v1709, %v1707
          %v1768 = vpack.c.b16 %v1712, %v1710
          %v1769 = vpack.c.b16 %v1713, %v1711
          %v1770 = vpack.c.b16 %v1716, %v1714
          %v1771 = vpack.c.b16 %v1717, %v1715
          %v1772 = vpack.c.b16 %v1720, %v1718
          %v1773 = vpack.c.b16 %v1721, %v1719
          %v1774 = vpack.c.b16 %v1724, %v1722
          %v1775 = vpack.c.b16 %v1725, %v1723
          %v1776 = vpack.c.b16 %v1728, %v1726
          %v1777 = vpack.c.b16 %v1729, %v1727
          %v1778 = vpack.c.b16 %v1732, %v1730
          %v1779 = vpack.c.b16 %v1733, %v1731
          %v1780 = vpack.c.b16 %v1736, %v1734
          %v1781 = vpack.c.b16 %v1737, %v1735
          %v1782 = vpack.c.b16 %v1740, %v1738
          %v1783 = vpack.c.b16 %v1741, %v1739
          %v1784 = vpack.c.b16 %v1744, %v1742
          %v1785 = vpack.c.b16 %v1745, %v1743
          %v1786 = vpack.c.b16 %v1748, %v1746
          %v1787 = vpack.c.b16 %v1749, %v1747
          %v1788 = vpack.c.b16 %v1752, %v1750
          %v1789 = vpack.c.b16 %v1753, %v1751
          %v1790 = vpack.c.b16 %v1756, %v1754
          %v1791 = vpack.c.b16 %v1757, %v1755
          %v1792 = vpack.c.b16 %v1760, %v1758
          %v1793 = vpack.c.b16 %v1761, %v1759
          %1826 = vmatprep.subr.bf16.mxu0 %v1763
          %1827 = vmatpush1.bf16.msra.mxu0 %v1762
          %1828 = vmatprep.subr.bf16.mxu0 %v1765
          %1829 = vmatpush1.bf16.msra.mxu0 %v1764
          %1830 = vmatprep.subr.bf16.mxu0 %v1767
          %1831 = vmatpush1.bf16.msra.mxu0 %v1766
          %1832 = vmatprep.subr.bf16.mxu0 %v1769
          %1833 = vmatpush1.bf16.msra.mxu0 %v1768
          %1834 = vmatprep.subr.bf16.mxu0 %v1771
          %1835 = vmatpush1.bf16.msra.mxu0 %v1770
          %1836 = vmatprep.subr.bf16.mxu0 %v1773
          %1837 = vmatpush1.bf16.msra.mxu0 %v1772
          %1838 = vmatprep.subr.bf16.mxu0 %v1775
          %1839 = vmatpush1.bf16.msra.mxu0 %v1774
          %1840 = vmatprep.subr.bf16.mxu0 %v1777
          %1841 = vmatpush1.bf16.msra.mxu0 %v1776
          %1842 = vmatprep.subr.bf16.mxu0 %v1779
          %1843 = vmatpush1.bf16.msra.mxu0 %v1778
          %1844 = vmatprep.subr.bf16.mxu0 %v1781
          %1845 = vmatpush1.bf16.msra.mxu0 %v1780
          %1846 = vmatprep.subr.bf16.mxu0 %v1783
          %1847 = vmatpush1.bf16.msra.mxu0 %v1782
          %1848 = vmatprep.subr.bf16.mxu0 %v1785
          %1849 = vmatpush1.bf16.msra.mxu0 %v1784
          %1850 = vmatprep.subr.bf16.mxu0 %v1787
          %1851 = vmatpush1.bf16.msra.mxu0 %v1786
          %1852 = vmatprep.subr.bf16.mxu0 %v1789
          %1853 = vmatpush1.bf16.msra.mxu0 %v1788
          %1854 = vmatprep.subr.bf16.mxu0 %v1791
          %1855 = vmatpush1.bf16.msra.mxu0 %v1790
          %1856 = vmatprep.subr.bf16.mxu0 %v1793
          %1857 = vmatpush1.bf16.msra.mxu0 %v1792
          %1858 = vmatprep.mubr.bf16.mxu0 %v1663
          %1859 = vmatmul.mubr.bf16.gmra.mrb[0].mxu0 %v1662
          %v1860 = vpop.f32.mrb[0].mxu0
          %v1861 = vadd.f32 0.0, %v1860
          %v1862 = vpop.f32.mrb[0].mxu0
          %v1863 = vadd.f32 0.0, %v1862
          %v1864 = vpop.f32.mrb[0].mxu0
          %v1865 = vadd.f32 0.0, %v1864
          %v1866 = vpop.f32.mrb[0].mxu0
          %v1867 = vadd.f32 0.0, %v1866
          %1868 = vdwg.mxu0
          %1869 = vmatprep.subr.mxu0 %v1863
          %1870 = vmatpush1.msra.mxu0 %v1861
          %1871 = vmatprep.subr.mxu0 %v1867
          %1872 = vmatpush1.msra.mxu0 %v1865
          %1873 = vmatprep.subr.mxu0 0.0
          %1874 = vmatpush1.msra.mxu0 0.0
          %1875 = vmatprep.subr.mxu0 0.0
          %1876 = vmatpush1.msra.mxu0 0.0
          %1877 = vmatprep.subr.mxu0 0.0
          %1878 = vmatpush1.msra.mxu0 0.0
          %1879 = vmatprep.subr.mxu0 0.0
          %1880 = vmatpush1.msra.mxu0 0.0
          %1881 = vmatprep.subr.mxu0 0.0
          %1882 = vmatpush1.msra.mxu0 0.0
          %1883 = vmatprep.subr.mxu0 0.0
          %1884 = vmatpush1.msra.mxu0 0.0
          %1885 = vmatprep.subr.mxu0 0.0
          %1886 = vmatpush1.msra.mxu0 0.0
          %1887 = vmatprep.subr.mxu0 0.0
          %1888 = vmatpush1.msra.mxu0 0.0
          %1889 = vmatprep.subr.mxu0 0.0
          %1890 = vmatpush1.msra.mxu0 0.0
          %1891 = vmatprep.subr.mxu0 0.0
          %1892 = vmatpush1.msra.mxu0 0.0
          %1893 = vmatprep.subr.mxu0 0.0
          %1894 = vmatpush1.msra.mxu0 0.0
          %1895 = vmatprep.subr.mxu0 0.0
          %1896 = vmatpush1.msra.mxu0 0.0
          %1897 = vmatprep.subr.mxu0 0.0
          %1898 = vmatpush1.msra.mxu0 0.0
          %1899 = vmatprep.subr.mxu0 0.0
          %1900 = vmatpush1.msra.mxu0 0.0
          %1901 = vmatprep.subr.mxu0 0.0
          %1902 = vmatpush1.msra.mxu0 0.0
          %1903 = vmatprep.subr.mxu0 0.0
          %1904 = vmatpush1.msra.mxu0 0.0
          %1905 = vmatprep.subr.mxu0 0.0
          %1906 = vmatpush1.msra.mxu0 0.0
          %1907 = vmatprep.subr.mxu0 0.0
          %1908 = vmatpush1.msra.mxu0 0.0
          %1909 = vmatprep.subr.mxu0 0.0
          %1910 = vmatpush1.msra.mxu0 0.0
          %1911 = vmatprep.subr.mxu0 0.0
          %1912 = vmatpush1.msra.mxu0 0.0
          %1913 = vmatprep.subr.mxu0 0.0
          %1914 = vmatpush1.msra.mxu0 0.0
          %1915 = vmatprep.subr.mxu0 0.0
          %1916 = vmatpush1.msra.mxu0 0.0
          %1917 = vmatprep.subr.mxu0 0.0
          %1918 = vmatpush1.msra.mxu0 0.0
          %1919 = vmatprep.subr.mxu0 0.0
          %1920 = vmatpush1.msra.mxu0 0.0
          %1921 = vmatprep.subr.mxu0 0.0
          %1922 = vmatpush1.msra.mxu0 0.0
          %1923 = vmatprep.subr.mxu0 0.0
          %1924 = vmatpush1.msra.mxu0 0.0
          %1925 = vmatprep.subr.mxu0 0.0
          %1926 = vmatpush1.msra.mxu0 0.0
          %1927 = vmatprep.subr.mxu0 0.0
          %1928 = vmatpush1.msra.mxu0 0.0
          %1929 = vmatprep.subr.mxu0 0.0
          %1930 = vmatpush1.msra.mxu0 0.0
          %1931 = vmatprep.subr.mxu0 0.0
          %1932 = vmatpush1.msra.mxu0 0.0
          %1933 = vmatprep.mubr.f32.mxu0 0.0
          %1934 = vmatmul.mubr.f32.gmra.mrb[0].mxu0 %v730
          %v1935 = vpop.f32.mrb[0].mxu0
          %v1936 = vadd.f32 %v474, %v1935
          %v1937 = vpop.f32.mrb[0].mxu0
          %v1938 = vadd.f32 %v476, %v1937
          %1939 = vmatprep.mubr.f32.mxu0 0.0
          %1940 = vmatmul.mubr.f32.gmra.mrb[0].mxu0 %v733
          %v1941 = vpop.f32.mrb[0].mxu0
          %v1942 = vadd.f32 %v480, %v1941
          %v1943 = vpop.f32.mrb[0].mxu0
          %v1944 = vadd.f32 %v482, %v1943
          %1945 = vdwg.mxu0
          %v1946 = vmax.f32 %v1936, 0.0
          %v1947 = vmax.f32 %v1938, 0.0
          %v1948 = vmax.f32 %v1942, 0.0
          %v1949 = vmax.f32 %v1944, 0.0
          %1950 = vmatprep.subr.mxu0 %v1947
          %1951 = vmatpush1.msra.mxu0 %v1946
          %1952 = vmatprep.subr.mxu0 %v1949
          %1953 = vmatpush1.msra.mxu0 %v1948
          %1954 = vmatprep.subr.mxu0 0.0
          %1955 = vmatpush1.msra.mxu0 0.0
          %1956 = vmatprep.subr.mxu0 0.0
          %1957 = vmatpush1.msra.mxu0 0.0
          %1958 = vmatprep.subr.mxu0 0.0
          %1959 = vmatpush1.msra.mxu0 0.0
          %1960 = vmatprep.subr.mxu0 0.0
          %1961 = vmatpush1.msra.mxu0 0.0
          %1962 = vmatprep.subr.mxu0 0.0
          %1963 = vmatpush1.msra.mxu0 0.0
          %1964 = vmatprep.subr.mxu0 0.0
          %1965 = vmatpush1.msra.mxu0 0.0
          %1966 = vmatprep.subr.mxu0 0.0
          %1967 = vmatpush1.msra.mxu0 0.0
          %1968 = vmatprep.subr.mxu0 0.0
          %1969 = vmatpush1.msra.mxu0 0.0
          %1970 = vmatprep.subr.mxu0 0.0
          %1971 = vmatpush1.msra.mxu0 0.0
          %1972 = vmatprep.subr.mxu0 0.0
          %1973 = vmatpush1.msra.mxu0 0.0
          %1974 = vmatprep.subr.mxu0 0.0
          %1975 = vmatpush1.msra.mxu0 0.0
          %1976 = vmatprep.subr.mxu0 0.0
          %1977 = vmatpush1.msra.mxu0 0.0
          %1978 = vmatprep.subr.mxu0 0.0
          %1979 = vmatpush1.msra.mxu0 0.0
          %1980 = vmatprep.subr.mxu0 0.0
          %1981 = vmatpush1.msra.mxu0 0.0
          %1982 = vmatprep.subr.mxu0 0.0
          %1983 = vmatpush1.msra.mxu0 0.0
          %1984 = vmatprep.subr.mxu0 0.0
          %1985 = vmatpush1.msra.mxu0 0.0
          %1986 = vmatprep.subr.mxu0 0.0
          %1987 = vmatpush1.msra.mxu0 0.0
          %1988 = vmatprep.subr.mxu0 0.0
          %1989 = vmatpush1.msra.mxu0 0.0
          %1990 = vmatprep.subr.mxu0 0.0
          %1991 = vmatpush1.msra.mxu0 0.0
          %1992 = vmatprep.subr.mxu0 0.0
          %1993 = vmatpush1.msra.mxu0 0.0
          %1994 = vmatprep.subr.mxu0 0.0
          %1995 = vmatpush1.msra.mxu0 0.0
          %1996 = vmatprep.subr.mxu0 0.0
          %1997 = vmatpush1.msra.mxu0 0.0
          %1998 = vmatprep.subr.mxu0 0.0
          %1999 = vmatpush1.msra.mxu0 0.0
          %2000 = vmatprep.subr.mxu0 0.0
          %2001 = vmatpush1.msra.mxu0 0.0
          %2002 = vmatprep.subr.mxu0 0.0
          %2003 = vmatpush1.msra.mxu0 0.0
          %2004 = vmatprep.subr.mxu0 0.0
          %2005 = vmatpush1.msra.mxu0 0.0
          %2006 = vmatprep.subr.mxu0 0.0
          %2007 = vmatpush1.msra.mxu0 0.0
          %2008 = vmatprep.subr.mxu0 0.0
          %2009 = vmatpush1.msra.mxu0 0.0
          %2010 = vmatprep.subr.mxu0 0.0
          %2011 = vmatpush1.msra.mxu0 0.0
          %2012 = vmatprep.subr.mxu0 0.0
          %2013 = vmatpush1.msra.mxu0 0.0
          %2014 = vmatprep.mubr.f32.mxu0 0.0
          %2015 = vmatmul.mubr.f32.gmra.mrb[0].mxu0 %v822
          %v2016 = vpop.f32.mrb[0].mxu0
          %v2017 = vadd.f32 %v819, %v2016
          %v2018 = vpop.f32.mrb[0].mxu0
          %v2019 = vadd.f32 %v819, %v2018
          %2020 = vdwg.mxu0
          %v2021 = vmax.f32 %v2017, 0.0
          %v2022 = vmax.f32 %v2019, 0.0
          %2023 = vmatprep.subr.mxu0 %v2022
          %2024 = vmatpush1.msra.mxu0 %v2021
          %2025 = vmatprep.subr.mxu0 0.0
          %2026 = vmatpush1.msra.mxu0 0.0
          %2027 = vmatprep.subr.mxu0 0.0
          %2028 = vmatpush1.msra.mxu0 0.0
          %2029 = vmatprep.subr.mxu0 0.0
          %2030 = vmatpush1.msra.mxu0 0.0
          %2031 = vmatprep.subr.mxu0 0.0
          %2032 = vmatpush1.msra.mxu0 0.0
          %2033 = vmatprep.subr.mxu0 0.0
          %2034 = vmatpush1.msra.mxu0 0.0
          %2035 = vmatprep.subr.mxu0 0.0
          %2036 = vmatpush1.msra.mxu0 0.0
          %2037 = vmatprep.subr.mxu0 0.0
          %2038 = vmatpush1.msra.mxu0 0.0
          %2039 = vmatprep.subr.mxu0 0.0
          %2040 = vmatpush1.msra.mxu0 0.0
          %2041 = vmatprep.subr.mxu0 0.0
          %2042 = vmatpush1.msra.mxu0 0.0
          %2043 = vmatprep.subr.mxu0 0.0
          %2044 = vmatpush1.msra.mxu0 0.0
          %2045 = vmatprep.subr.mxu0 0.0
          %2046 = vmatpush1.msra.mxu0 0.0
          %2047 = vmatprep.subr.mxu0 0.0
          %2048 = vmatpush1.msra.mxu0 0.0
          %2049 = vmatprep.subr.mxu0 0.0
          %2050 = vmatpush1.msra.mxu0 0.0
          %2051 = vmatprep.subr.mxu0 0.0
          %2052 = vmatpush1.msra.mxu0 0.0
          %2053 = vmatprep.subr.mxu0 0.0
          %2054 = vmatpush1.msra.mxu0 0.0
          %2055 = vmatprep.subr.mxu0 0.0
          %2056 = vmatpush1.msra.mxu0 0.0
          %2057 = vmatprep.subr.mxu0 0.0
          %2058 = vmatpush1.msra.mxu0 0.0
          %2059 = vmatprep.subr.mxu0 0.0
          %2060 = vmatpush1.msra.mxu0 0.0
          %2061 = vmatprep.subr.mxu0 0.0
          %2062 = vmatpush1.msra.mxu0 0.0
          %2063 = vmatprep.subr.mxu0 0.0
          %2064 = vmatpush1.msra.mxu0 0.0
          %2065 = vmatprep.subr.mxu0 0.0
          %2066 = vmatpush1.msra.mxu0 0.0
          %2067 = vmatprep.subr.mxu0 0.0
          %2068 = vmatpush1.msra.mxu0 0.0
          %2069 = vmatprep.subr.mxu0 0.0
          %2070 = vmatpush1.msra.mxu0 0.0
          %2071 = vmatprep.subr.mxu0 0.0
          %2072 = vmatpush1.msra.mxu0 0.0
          %2073 = vmatprep.subr.mxu0 0.0
          %2074 = vmatpush1.msra.mxu0 0.0
          %2075 = vmatprep.subr.mxu0 0.0
          %2076 = vmatpush1.msra.mxu0 0.0
          %2077 = vmatprep.subr.mxu0 0.0
          %2078 = vmatpush1.msra.mxu0 0.0
          %2079 = vmatprep.subr.mxu0 0.0
          %2080 = vmatpush1.msra.mxu0 0.0
          %2081 = vmatprep.subr.mxu0 0.0
          %2082 = vmatpush1.msra.mxu0 0.0
          %2083 = vmatprep.subr.mxu0 0.0
          %2084 = vmatpush1.msra.mxu0 0.0
          %2085 = vmatprep.subr.mxu0 0.0
          %2086 = vmatpush1.msra.mxu0 0.0
          %2087 = vmatprep.mubr.f32.mxu0 0.0
          %2088 = vmatmul.mubr.f32.gmra.mrb[0].mxu0 %v904
          %v2089 = vpop.f32.mrb[0].mxu0
          %v2090 = vadd.f32 %v900, %v2089
          %v2091 = vpop.f32.mrb[0].mxu0
          %v2092 = vadd.f32 %v900, %v2091
          %2093 = vdwg.mxu0
          %v2094 = vmax.f32 %v2090, 0.0
          %v2095 = vmax.f32 %v2092, 0.0
          %2096 = vmatprep.subr.mxu0 %v2095
          %2097 = vmatpush1.msra.mxu0 %v2094
          %2098 = vmatprep.subr.mxu0 0.0
          %2099 = vmatpush1.msra.mxu0 0.0
          %2100 = vmatprep.subr.mxu0 0.0
          %2101 = vmatpush1.msra.mxu0 0.0
          %2102 = vmatprep.subr.mxu0 0.0
          %2103 = vmatpush1.msra.mxu0 0.0
          %2104 = vmatprep.subr.mxu0 0.0
          %2105 = vmatpush1.msra.mxu0 0.0
          %2106 = vmatprep.subr.mxu0 0.0
          %2107 = vmatpush1.msra.mxu0 0.0
          %2108 = vmatprep.subr.mxu0 0.0
          %2109 = vmatpush1.msra.mxu0 0.0
          %2110 = vmatprep.subr.mxu0 0.0
          %2111 = vmatpush1.msra.mxu0 0.0
          %2112 = vmatprep.subr.mxu0 0.0
          %2113 = vmatpush1.msra.mxu0 0.0
          %2114 = vmatprep.subr.mxu0 0.0
          %2115 = vmatpush1.msra.mxu0 0.0
          %2116 = vmatprep.subr.mxu0 0.0
          %2117 = vmatpush1.msra.mxu0 0.0
          %2118 = vmatprep.subr.mxu0 0.0
          %2119 = vmatpush1.msra.mxu0 0.0
          %2120 = vmatprep.subr.mxu0 0.0
          %2121 = vmatpush1.msra.mxu0 0.0
          %2122 = vmatprep.subr.mxu0 0.0
          %2123 = vmatpush1.msra.mxu0 0.0
          %2124 = vmatprep.subr.mxu0 0.0
          %2125 = vmatpush1.msra.mxu0 0.0
          %2126 = vmatprep.subr.mxu0 0.0
          %2127 = vmatpush1.msra.mxu0 0.0
          %2128 = vmatprep.subr.mxu0 0.0
          %2129 = vmatpush1.msra.mxu0 0.0
          %2130 = vmatprep.subr.mxu0 0.0
          %2131 = vmatpush1.msra.mxu0 0.0
          %2132 = vmatprep.subr.mxu0 0.0
          %2133 = vmatpush1.msra.mxu0 0.0
          %2134 = vmatprep.subr.mxu0 0.0
          %2135 = vmatpush1.msra.mxu0 0.0
          %2136 = vmatprep.subr.mxu0 0.0
          %2137 = vmatpush1.msra.mxu0 0.0
          %2138 = vmatprep.subr.mxu0 0.0
          %2139 = vmatpush1.msra.mxu0 0.0
          %2140 = vmatprep.subr.mxu0 0.0
          %2141 = vmatpush1.msra.mxu0 0.0
          %2142 = vmatprep.subr.mxu0 0.0
          %2143 = vmatpush1.msra.mxu0 0.0
          %2144 = vmatprep.subr.mxu0 0.0
          %2145 = vmatpush1.msra.mxu0 0.0
          %2146 = vmatprep.subr.mxu0 0.0
          %2147 = vmatpush1.msra.mxu0 0.0
          %2148 = vmatprep.subr.mxu0 0.0
          %2149 = vmatpush1.msra.mxu0 0.0
          %2150 = vmatprep.subr.mxu0 0.0
          %2151 = vmatpush1.msra.mxu0 0.0
          %2152 = vmatprep.subr.mxu0 0.0
          %2153 = vmatpush1.msra.mxu0 0.0
          %2154 = vmatprep.subr.mxu0 0.0
          %2155 = vmatpush1.msra.mxu0 0.0
          %2156 = vmatprep.subr.mxu0 0.0
          %2157 = vmatpush1.msra.mxu0 0.0
          %2158 = vmatprep.subr.mxu0 0.0
          %2159 = vmatpush1.msra.mxu0 0.0
          %2160 = vmatprep.mubr.f32.mxu0 0.0
          %2161 = vmatmul.mubr.f32.gmra.mrb[0].mxu0 %v980
          %v2162 = vpop.f32.mrb[0].mxu0
          %v2163 = vadd.f32 0.0, %v2162
          %v2164 = vpop.f32.mrb[0].mxu0
          %v2165 = vadd.f32 0.0, %v2164
          %2166 = vdwg.mxu0
          %v2167 = vadd.f32 %v2163, %v1056
          %v2168 = vadd.f32 %v2165, %v1056
          %v2169 = vmax.f32 %v2167, 0.0
          %v2170 = vmax.f32 %v2168, 0.0
          %p2171 = scmp.gt.s32.totalorder %s356, 2
          %s2172 = scalar_select %p2171, 0.0, -1e+30
          %v2173 = vstv %s2172
          %v2174 = vadd.f32 %v2169, %v2173
          %v2175 = vadd.f32 %v2170, %v2173
          %v2176 = vmax.f32 %v1062, %v1618
          %v2177 = vmax.f32 %v1063, %v1619
          %v2178 = vmax.f32 %v2176, %v2174
          %v2179 = vmax.f32 %v2177, %v2175
          %v2180 = vsub.f32 %v1062, %v2178
          %v2181 = vsub.f32 %v1063, %v2179
          %v2182 = vmul.f32 %v2180, 1.442695
          %v2183 = vpow.pop %v2182
          %v2184 = vmul.f32 %v2181, 1.442695
          %v2185 = vpow.pop %v2184
          %v2186 = vsub.f32 %v1618, %v2178
          %v2187 = vsub.f32 %v1619, %v2179
          %v2188 = vmul.f32 %v2186, 1.442695
          %v2189 = vpow.pop %v2188
          %v2190 = vmul.f32 %v2187, 1.442695
          %v2191 = vpow.pop %v2190
          %v2192 = vsub.f32 %v2174, %v2178
          %v2193 = vsub.f32 %v2175, %v2179
          %v2194 = vmul.f32 %v2192, 1.442695
          %v2195 = vpow.pop %v2194
          %v2196 = vmul.f32 %v2193, 1.442695
          %v2197 = vpow.pop %v2196
          %v2198 = vadd.f32 %v2183, %v2189
          %v2199 = vadd.f32 %v2185, %v2191
          %v2200 = vadd.f32 %v2198, %v2195
          %v2201 = vadd.f32 %v2199, %v2197
          %v2202 = vrcp.pop %v2200
          %v2203 = vrcp.pop %v2201
          %v2204 = vmul.f32 %v2183, %v2202
          %v2205 = vmul.f32 %v2185, %v2203
          %v2206 = vlaneseq
          %v2207 = vshrl.u32 %v2206, 7
          %v2208 = vsub.s32 0, %v2207
          %v2209 = vrot.slane %v2204, %v2208
          %v2210 = vlaneseq
          %v2211 = vshrl.u32 %v2210, 7
          %v2212 = vsub.s32 0, %v2211
          %v2213 = vrot.slane %v2205, %v2212
          %v2214 = vmul.f32 %v721, %v2209
          %v2215 = vmul.f32 %v723, %v2213
          %v2216 = vmul.f32 %v725, %v2209
          %v2217 = vmul.f32 %v727, %v2213
          %v2218 = vmul.f32 %v2189, %v2202
          %v2219 = vmul.f32 %v2191, %v2203
          %v2220 = vlaneseq
          %v2221 = vshrl.u32 %v2220, 7
          %v2222 = vsub.s32 0, %v2221
          %v2223 = vrot.slane %v2218, %v2222
          %v2224 = vlaneseq
          %v2225 = vshrl.u32 %v2224, 7
          %v2226 = vsub.s32 0, %v2225
          %v2227 = vrot.slane %v2219, %v2226
          %v2228 = vmul.f32 %v1305, %v2223
          %v2229 = vmul.f32 %v1307, %v2227
          %v2230 = vmul.f32 %v1309, %v2223
          %v2231 = vmul.f32 %v1311, %v2227
          %v2232 = vadd.f32 %v2214, %v2228
          %v2233 = vadd.f32 %v2215, %v2229
          %v2234 = vadd.f32 %v2216, %v2230
          %v2235 = vadd.f32 %v2217, %v2231
          %v2236 = vmul.f32 %v2195, %v2202
          %v2237 = vmul.f32 %v2197, %v2203
          %v2238 = vlaneseq
          %v2239 = vshrl.u32 %v2238, 7
          %v2240 = vsub.s32 0, %v2239
          %v2241 = vrot.slane %v2236, %v2240
          %v2242 = vlaneseq
          %v2243 = vshrl.u32 %v2242, 7
          %v2244 = vsub.s32 0, %v2243
          %v2245 = vrot.slane %v2237, %v2244
          %v2246 = vmul.f32 %v1861, %v2241
          %v2247 = vmul.f32 %v1863, %v2245
          %v2248 = vmul.f32 %v1865, %v2241
          %v2249 = vmul.f32 %v1867, %v2245
          %v2250 = vadd.f32 %v2232, %v2246
          %v2251 = vadd.f32 %v2233, %v2247
          %v2252 = vadd.f32 %v2234, %v2248
          %v2253 = vadd.f32 %v2235, %v2249
          %2255 = vset.pattern.permute.xlu0 0
          %2256 = vperm.xlu0 %2255, %v378
          %v2257 = vpop.permute.xlu0 %2256
          %2260 = vset.pattern.permute.xlu0 0
          %2261 = vperm.xlu0 %2260, %v379
          %v2262 = vpop.permute.xlu0 %2261
          %v2265 = vsel %vm400, %v363, 0
          %v2268 = vsel %vm400, %v364, 0
          %2270 = vmatprep.subr.mxu0 %v2251
          %2271 = vmatpush1.msra.mxu0 %v2250
          %2272 = vmatprep.subr.mxu0 %v2253
          %2273 = vmatpush1.msra.mxu0 %v2252
          %2274 = vmatprep.subr.mxu0 0.0
          %2275 = vmatpush1.msra.mxu0 0.0
          %2276 = vmatprep.subr.mxu0 0.0
          %2277 = vmatpush1.msra.mxu0 0.0
          %2278 = vmatprep.subr.mxu0 0.0
          %2279 = vmatpush1.msra.mxu0 0.0
          %2280 = vmatprep.subr.mxu0 0.0
          %2281 = vmatpush1.msra.mxu0 0.0
          %2282 = vmatprep.subr.mxu0 0.0
          %2283 = vmatpush1.msra.mxu0 0.0
          %2284 = vmatprep.subr.mxu0 0.0
          %2285 = vmatpush1.msra.mxu0 0.0
          %2286 = vmatprep.subr.mxu0 0.0
          %2287 = vmatpush1.msra.mxu0 0.0
          %2288 = vmatprep.subr.mxu0 0.0
          %2289 = vmatpush1.msra.mxu0 0.0
          %2290 = vmatprep.subr.mxu0 0.0
          %2291 = vmatpush1.msra.mxu0 0.0
          %2292 = vmatprep.subr.mxu0 0.0
          %2293 = vmatpush1.msra.mxu0 0.0
          %2294 = vmatprep.subr.mxu0 0.0
          %2295 = vmatpush1.msra.mxu0 0.0
          %2296 = vmatprep.subr.mxu0 0.0
          %2297 = vmatpush1.msra.mxu0 0.0
          %2298 = vmatprep.subr.mxu0 0.0
          %2299 = vmatpush1.msra.mxu0 0.0
          %2300 = vmatprep.subr.mxu0 0.0
          %2301 = vmatpush1.msra.mxu0 0.0
          %2302 = vmatprep.subr.mxu0 0.0
          %2303 = vmatpush1.msra.mxu0 0.0
          %2304 = vmatprep.subr.mxu0 0.0
          %2305 = vmatpush1.msra.mxu0 0.0
          %2306 = vmatprep.subr.mxu0 0.0
          %2307 = vmatpush1.msra.mxu0 0.0
          %2308 = vmatprep.subr.mxu0 0.0
          %2309 = vmatpush1.msra.mxu0 0.0
          %2310 = vmatprep.subr.mxu0 0.0
          %2311 = vmatpush1.msra.mxu0 0.0
          %2312 = vmatprep.subr.mxu0 0.0
          %2313 = vmatpush1.msra.mxu0 0.0
          %2314 = vmatprep.subr.mxu0 0.0
          %2315 = vmatpush1.msra.mxu0 0.0
          %2316 = vmatprep.subr.mxu0 0.0
          %2317 = vmatpush1.msra.mxu0 0.0
          %2318 = vmatprep.subr.mxu0 0.0
          %2319 = vmatpush1.msra.mxu0 0.0
          %2320 = vmatprep.subr.mxu0 0.0
          %2321 = vmatpush1.msra.mxu0 0.0
          %2322 = vmatprep.subr.mxu0 0.0
          %2323 = vmatpush1.msra.mxu0 0.0
          %2324 = vmatprep.subr.mxu0 0.0
          %2325 = vmatpush1.msra.mxu0 0.0
          %2326 = vmatprep.subr.mxu0 0.0
          %2327 = vmatpush1.msra.mxu0 0.0
          %2328 = vmatprep.subr.mxu0 0.0
          %2329 = vmatpush1.msra.mxu0 0.0
          %2330 = vmatprep.subr.mxu0 0.0
          %2331 = vmatpush1.msra.mxu0 0.0
          %2332 = vmatprep.subr.mxu0 0.0
          %2333 = vmatpush1.msra.mxu0 0.0
          %2334 = vmatprep.mubr.f32.mxu0 0.0
          %2335 = vmatmul.mubr.f32.gmra.mrb[0].mxu0 %v2265
          %v2336 = vpop.f32.mrb[0].mxu0
          %v2337 = vadd.f32 %v2257, %v2336
          %v2338 = vpop.f32.mrb[0].mxu0
          %v2339 = vadd.f32 %v2257, %v2338
          %2340 = vmatprep.mubr.f32.mxu0 0.0
          %2341 = vmatmul.mubr.f32.gmra.mrb[0].mxu0 %v2268
          %v2342 = vpop.f32.mrb[0].mxu0
          %v2343 = vadd.f32 %v2262, %v2342
          %v2344 = vpop.f32.mrb[0].mxu0
          %v2345 = vadd.f32 %v2262, %v2344
          %2346 = vdwg.mxu0
          %2347 = vst [vmem:[%s355] sm:$0xff] %v2337
          %2348 = vst [vmem:[%s355 + $0x8] sm:$0xff] %v2339
          %2349 = vst [vmem:[%s355 + $0x10] sm:$0xff] %v2343
          %2350 = vst [vmem:[%s355 + $0x18] sm:$0xff] %v2345
        $region68: #{tpu_custom_call.1} parent=43 // pred_fallthru
          _
        %p2351 = scmp.le.s32.totalorder %s356, 0
        // Predicated region
        $region69: #{tpu_custom_call.1} parent=43 // pred_check
          %p2352 = pneg %p2351
        $region70: #{tpu_custom_call.1} parent=43 // pred_check_branch
          %2354 = sbr.rel (%p2352) target = $region72
        $region71: #{tpu_custom_call.1} parent=43 // pred_region
          %2355 = vst [vmem:[%s355] sm:$0xff] 0.0
          %2356 = vst [vmem:[%s355 + $0x8] sm:$0xff] 0.0
          %2357 = vst [vmem:[%s355 + $0x10] sm:$0xff] 0.0
          %2358 = vst [vmem:[%s355 + $0x18] sm:$0xff] 0.0
        $region72: #{tpu_custom_call.1} parent=43 // pred_fallthru
          _
        %p2359 = scmp.gt.s32.totalorder %s356, 1
        // Predicated region
        $region73: #{tpu_custom_call.1} parent=43 // pred_check
          %p2360 = pneg %p2359
        $region74: #{tpu_custom_call.1} parent=43 // pred_check_branch
          %2362 = sbr.rel (%p2360) target = $region76
        $region75: #{tpu_custom_call.1} parent=43 // pred_region
          %s2363 = scalar_lea.vmem %s301, 16 [#allocation4]
          %v2364 = vld [vmem:[%s2363] sm:$0xff]
          %v2365 = vld [vmem:[%s2363 + $0x8] sm:$0xff]
          %v2366 = vunpack.c.l.bf16 %v2364
          %v2367 = vunpack.c.h.bf16 %v2364
          %v2368 = vunpack.c.l.bf16 %v2365
          %v2369 = vunpack.c.h.bf16 %v2365
          %2371 = vset.pattern.permute.xlu0 0
          %2372 = vperm.xlu0 %2371, %v369
          %v2373 = vpop.permute.xlu0 %2372
          %2376 = vset.pattern.permute.xlu0 0
          %2377 = vperm.xlu0 %2376, %v370
          %v2378 = vpop.permute.xlu0 %2377
          %vm2380 = vcmask 130048
          %v2382 = vsel %vm2380, %v360, 0
          %v2385 = vsel %vm2380, %v361, 0
          %2387 = vmatprep.subr.mxu0 %v2367
          %2388 = vmatpush1.msra.mxu0 %v2366
          %2389 = vmatprep.subr.mxu0 %v2369
          %2390 = vmatpush1.msra.mxu0 %v2368
          %2391 = vmatprep.subr.mxu0 0.0
          %2392 = vmatpush1.msra.mxu0 0.0
          %2393 = vmatprep.subr.mxu0 0.0
          %2394 = vmatpush1.msra.mxu0 0.0
          %2395 = vmatprep.subr.mxu0 0.0
          %2396 = vmatpush1.msra.mxu0 0.0
          %2397 = vmatprep.subr.mxu0 0.0
          %2398 = vmatpush1.msra.mxu0 0.0
          %2399 = vmatprep.subr.mxu0 0.0
          %2400 = vmatpush1.msra.mxu0 0.0
          %2401 = vmatprep.subr.mxu0 0.0
          %2402 = vmatpush1.msra.mxu0 0.0
          %2403 = vmatprep.subr.mxu0 0.0
          %2404 = vmatpush1.msra.mxu0 0.0
          %2405 = vmatprep.subr.mxu0 0.0
          %2406 = vmatpush1.msra.mxu0 0.0
          %2407 = vmatprep.subr.mxu0 0.0
          %2408 = vmatpush1.msra.mxu0 0.0
          %2409 = vmatprep.subr.mxu0 0.0
          %2410 = vmatpush1.msra.mxu0 0.0
          %2411 = vmatprep.subr.mxu0 0.0
          %2412 = vmatpush1.msra.mxu0 0.0
          %2413 = vmatprep.subr.mxu0 0.0
          %2414 = vmatpush1.msra.mxu0 0.0
          %2415 = vmatprep.subr.mxu0 0.0
          %2416 = vmatpush1.msra.mxu0 0.0
          %2417 = vmatprep.subr.mxu0 0.0
          %2418 = vmatpush1.msra.mxu0 0.0
          %2419 = vmatprep.subr.mxu0 0.0
          %2420 = vmatpush1.msra.mxu0 0.0
          %2421 = vmatprep.subr.mxu0 0.0
          %2422 = vmatpush1.msra.mxu0 0.0
          %2423 = vmatprep.subr.mxu0 0.0
          %2424 = vmatpush1.msra.mxu0 0.0
          %2425 = vmatprep.subr.mxu0 0.0
          %2426 = vmatpush1.msra.mxu0 0.0
          %2427 = vmatprep.subr.mxu0 0.0
          %2428 = vmatpush1.msra.mxu0 0.0
          %2429 = vmatprep.subr.mxu0 0.0
          %2430 = vmatpush1.msra.mxu0 0.0
          %2431 = vmatprep.subr.mxu0 0.0
          %2432 = vmatpush1.msra.mxu0 0.0
          %2433 = vmatprep.subr.mxu0 0.0
          %2434 = vmatpush1.msra.mxu0 0.0
          %2435 = vmatprep.subr.mxu0 0.0
          %2436 = vmatpush1.msra.mxu0 0.0
          %2437 = vmatprep.subr.mxu0 0.0
          %2438 = vmatpush1.msra.mxu0 0.0
          %2439 = vmatprep.subr.mxu0 0.0
          %2440 = vmatpush1.msra.mxu0 0.0
          %2441 = vmatprep.subr.mxu0 0.0
          %2442 = vmatpush1.msra.mxu0 0.0
          %2443 = vmatprep.subr.mxu0 0.0
          %2444 = vmatpush1.msra.mxu0 0.0
          %2445 = vmatprep.subr.mxu0 0.0
          %2446 = vmatpush1.msra.mxu0 0.0
          %2447 = vmatprep.subr.mxu0 0.0
          %2448 = vmatpush1.msra.mxu0 0.0
          %2449 = vmatprep.subr.mxu0 0.0
          %2450 = vmatpush1.msra.mxu0 0.0
          %2451 = vmatprep.mubr.f32.mxu0 0.0
          %2452 = vmatmul.mubr.f32.gmra.mrb[0].mxu0 %v2382
          %v2453 = vpop.f32.mrb[0].mxu0
          %v2454 = vadd.f32 %v2373, %v2453
          %v2455 = vpop.f32.mrb[0].mxu0
          %v2456 = vadd.f32 %v2373, %v2455
          %2457 = vmatprep.mubr.f32.mxu0 0.0
          %2458 = vmatmul.mubr.f32.gmra.mrb[0].mxu0 %v2385
          %v2459 = vpop.f32.mrb[0].mxu0
          %v2460 = vadd.f32 %v2378, %v2459
          %v2461 = vpop.f32.mrb[0].mxu0
          %v2462 = vadd.f32 %v2378, %v2461
          %2463 = vdwg.mxu0
          %v2464 = vld [vmem:[%s301] sm:$0xff]
          %v2465 = vld [vmem:[%s301 + $0x8] sm:$0xff]
          %s2466 = scalar_lea.vmem %s310, 768 [#allocation7]
          %v2467 = vld [vmem:[%s2466] sm:$0xff]
          %v2468 = vld [vmem:[%s2466 + $0x8] sm:$0xff]
          %v2469 = vld [vmem:[%s2466 + $0x10] sm:$0xff]
          %v2470 = vld [vmem:[%s2466 + $0x18] sm:$0xff]
          %v2471 = vld [vmem:[%s2466 + $0x20] sm:$0xff]
          %v2472 = vld [vmem:[%s2466 + $0x28] sm:$0xff]
          %v2473 = vld [vmem:[%s2466 + $0x30] sm:$0xff]
          %v2474 = vld [vmem:[%s2466 + $0x38] sm:$0xff]
          %v2475 = vld [vmem:[%s2466 + $0x40] sm:$0xff]
          %v2476 = vld [vmem:[%s2466 + $0x48] sm:$0xff]
          %v2477 = vld [vmem:[%s2466 + $0x50] sm:$0xff]
          %v2478 = vld [vmem:[%s2466 + $0x58] sm:$0xff]
          %v2479 = vld [vmem:[%s2466 + $0x60] sm:$0xff]
          %v2480 = vld [vmem:[%s2466 + $0x68] sm:$0xff]
          %v2481 = vld [vmem:[%s2466 + $0x70] sm:$0xff]
          %v2482 = vld [vmem:[%s2466 + $0x78] sm:$0xff]
          %v2483 = vld [vmem:[%s2466 + $0x80] sm:$0xff]
          %v2484 = vld [vmem:[%s2466 + $0x88] sm:$0xff]
          %v2485 = vld [vmem:[%s2466 + $0x90] sm:$0xff]
          %v2486 = vld [vmem:[%s2466 + $0x98] sm:$0xff]
          %v2487 = vld [vmem:[%s2466 + $0xa0] sm:$0xff]
          %v2488 = vld [vmem:[%s2466 + $0xa8] sm:$0xff]
          %v2489 = vld [vmem:[%s2466 + $0xb0] sm:$0xff]
          %v2490 = vld [vmem:[%s2466 + $0xb8] sm:$0xff]
          %v2491 = vld [vmem:[%s2466 + $0xc0] sm:$0xff]
          %v2492 = vld [vmem:[%s2466 + $0xc8] sm:$0xff]
          %v2493 = vld [vmem:[%s2466 + $0xd0] sm:$0xff]
          %v2494 = vld [vmem:[%s2466 + $0xd8] sm:$0xff]
          %v2495 = vld [vmem:[%s2466 + $0xe0] sm:$0xff]
          %v2496 = vld [vmem:[%s2466 + $0xe8] sm:$0xff]
          %v2497 = vld [vmem:[%s2466 + $0xf0] sm:$0xff]
          %v2498 = vld [vmem:[%s2466 + $0xf8] sm:$0xff]
          %v2501 = vunpack.c.l.b16 %v2464
          %v2502 = vunpack.c.h.b16 %v2464
          %v2503 = vunpack.c.l.b16 %v2465
          %v2504 = vunpack.c.h.b16 %v2465
          %v2505 = vpack.c.b16 %v2503, %v2501
          %v2506 = vpack.c.b16 %v2504, %v2502
          %v2541 = vunpack.c.l.b16 %v2467
          %v2542 = vunpack.c.h.b16 %v2467
          %v2543 = vunpack.c.l.b16 %v2468
          %v2544 = vunpack.c.h.b16 %v2468
          %v2545 = vunpack.c.l.b16 %v2469
          %v2546 = vunpack.c.h.b16 %v2469
          %v2547 = vunpack.c.l.b16 %v2470
          %v2548 = vunpack.c.h.b16 %v2470
          %v2549 = vunpack.c.l.b16 %v2471
          %v2550 = vunpack.c.h.b16 %v2471
          %v2551 = vunpack.c.l.b16 %v2472
          %v2552 = vunpack.c.h.b16 %v2472
          %v2553 = vunpack.c.l.b16 %v2473
          %v2554 = vunpack.c.h.b16 %v2473
          %v2555 = vunpack.c.l.b16 %v2474
          %v2556 = vunpack.c.h.b16 %v2474
          %v2557 = vunpack.c.l.b16 %v2475
          %v2558 = vunpack.c.h.b16 %v2475
          %v2559 = vunpack.c.l.b16 %v2476
          %v2560 = vunpack.c.h.b16 %v2476
          %v2561 = vunpack.c.l.b16 %v2477
          %v2562 = vunpack.c.h.b16 %v2477
          %v2563 = vunpack.c.l.b16 %v2478
          %v2564 = vunpack.c.h.b16 %v2478
          %v2565 = vunpack.c.l.b16 %v2479
          %v2566 = vunpack.c.h.b16 %v2479
          %v2567 = vunpack.c.l.b16 %v2480
          %v2568 = vunpack.c.h.b16 %v2480
          %v2569 = vunpack.c.l.b16 %v2481
          %v2570 = vunpack.c.h.b16 %v2481
          %v2571 = vunpack.c.l.b16 %v2482
          %v2572 = vunpack.c.h.b16 %v2482
          %v2573 = vunpack.c.l.b16 %v2483
          %v2574 = vunpack.c.h.b16 %v2483
          %v2575 = vunpack.c.l.b16 %v2484
          %v2576 = vunpack.c.h.b16 %v2484
          %v2577 = vunpack.c.l.b16 %v2485
          %v2578 = vunpack.c.h.b16 %v2485
          %v2579 = vunpack.c.l.b16 %v2486
          %v2580 = vunpack.c.h.b16 %v2486
          %v2581 = vunpack.c.l.b16 %v2487
          %v2582 = vunpack.c.h.b16 %v2487
          %v2583 = vunpack.c.l.b16 %v2488
          %v2584 = vunpack.c.h.b16 %v2488
          %v2585 = vunpack.c.l.b16 %v2489
          %v2586 = vunpack.c.h.b16 %v2489
          %v2587 = vunpack.c.l.b16 %v2490
          %v2588 = vunpack.c.h.b16 %v2490
          %v2589 = vunpack.c.l.b16 %v2491
          %v2590 = vunpack.c.h.b16 %v2491
          %v2591 = vunpack.c.l.b16 %v2492
          %v2592 = vunpack.c.h.b16 %v2492
          %v2593 = vunpack.c.l.b16 %v2493
          %v2594 = vunpack.c.h.b16 %v2493
          %v2595 = vunpack.c.l.b16 %v2494
          %v2596 = vunpack.c.h.b16 %v2494
          %v2597 = vunpack.c.l.b16 %v2495
          %v2598 = vunpack.c.h.b16 %v2495
          %v2599 = vunpack.c.l.b16 %v2496
          %v2600 = vunpack.c.h.b16 %v2496
          %v2601 = vunpack.c.l.b16 %v2497
          %v2602 = vunpack.c.h.b16 %v2497
          %v2603 = vunpack.c.l.b16 %v2498
          %v2604 = vunpack.c.h.b16 %v2498
          %v2605 = vpack.c.b16 %v2543, %v2541
          %v2606 = vpack.c.b16 %v2544, %v2542
          %v2607 = vpack.c.b16 %v2547, %v2545
          %v2608 = vpack.c.b16 %v2548, %v2546
          %v2609 = vpack.c.b16 %v2551, %v2549
          %v2610 = vpack.c.b16 %v2552, %v2550
          %v2611 = vpack.c.b16 %v2555, %v2553
          %v2612 = vpack.c.b16 %v2556, %v2554
          %v2613 = vpack.c.b16 %v2559, %v2557
          %v2614 = vpack.c.b16 %v2560, %v2558
          %v2615 = vpack.c.b16 %v2563, %v2561
          %v2616 = vpack.c.b16 %v2564, %v2562
          %v2617 = vpack.c.b16 %v2567, %v2565
          %v2618 = vpack.c.b16 %v2568, %v2566
          %v2619 = vpack.c.b16 %v2571, %v2569
          %v2620 = vpack.c.b16 %v2572, %v2570
          %v2621 = vpack.c.b16 %v2575, %v2573
          %v2622 = vpack.c.b16 %v2576, %v2574
          %v2623 = vpack.c.b16 %v2579, %v2577
          %v2624 = vpack.c.b16 %v2580, %v2578
          %v2625 = vpack.c.b16 %v2583, %v2581
          %v2626 = vpack.c.b16 %v2584, %v2582
          %v2627 = vpack.c.b16 %v2587, %v2585
          %v2628 = vpack.c.b16 %v2588, %v2586
          %v2629 = vpack.c.b16 %v2591, %v2589
          %v2630 = vpack.c.b16 %v2592, %v2590
          %v2631 = vpack.c.b16 %v2595, %v2593
          %v2632 = vpack.c.b16 %v2596, %v2594
          %v2633 = vpack.c.b16 %v2599, %v2597
          %v2634 = vpack.c.b16 %v2600, %v2598
          %v2635 = vpack.c.b16 %v2603, %v2601
          %v2636 = vpack.c.b16 %v2604, %v2602
          %2669 = vmatprep.subr.bf16.mxu0 %v2606
          %2670 = vmatpush1.bf16.msra.mxu0 %v2605
          %2671 = vmatprep.subr.bf16.mxu0 %v2608
          %2672 = vmatpush1.bf16.msra.mxu0 %v2607
          %2673 = vmatprep.subr.bf16.mxu0 %v2610
          %2674 = vmatpush1.bf16.msra.mxu0 %v2609
          %2675 = vmatprep.subr.bf16.mxu0 %v2612
          %2676 = vmatpush1.bf16.msra.mxu0 %v2611
          %2677 = vmatprep.subr.bf16.mxu0 %v2614
          %2678 = vmatpush1.bf16.msra.mxu0 %v2613
          %2679 = vmatprep.subr.bf16.mxu0 %v2616
          %2680 = vmatpush1.bf16.msra.mxu0 %v2615
          %2681 = vmatprep.subr.bf16.mxu0 %v2618
          %2682 = vmatpush1.bf16.msra.mxu0 %v2617
          %2683 = vmatprep.subr.bf16.mxu0 %v2620
          %2684 = vmatpush1.bf16.msra.mxu0 %v2619
          %2685 = vmatprep.subr.bf16.mxu0 %v2622
          %2686 = vmatpush1.bf16.msra.mxu0 %v2621
          %2687 = vmatprep.subr.bf16.mxu0 %v2624
          %2688 = vmatpush1.bf16.msra.mxu0 %v2623
          %2689 = vmatprep.subr.bf16.mxu0 %v2626
          %2690 = vmatpush1.bf16.msra.mxu0 %v2625
          %2691 = vmatprep.subr.bf16.mxu0 %v2628
          %2692 = vmatpush1.bf16.msra.mxu0 %v2627
          %2693 = vmatprep.subr.bf16.mxu0 %v2630
          %2694 = vmatpush1.bf16.msra.mxu0 %v2629
          %2695 = vmatprep.subr.bf16.mxu0 %v2632
          %2696 = vmatpush1.bf16.msra.mxu0 %v2631
          %2697 = vmatprep.subr.bf16.mxu0 %v2634
          %2698 = vmatpush1.bf16.msra.mxu0 %v2633
          %2699 = vmatprep.subr.bf16.mxu0 %v2636
          %2700 = vmatpush1.bf16.msra.mxu0 %v2635
          %2701 = vmatprep.mubr.bf16.mxu0 %v2506
          %2702 = vmatmul.mubr.bf16.gmra.mrb[0].mxu0 %v2505
          %v2703 = vpop.f32.mrb[0].mxu0
          %v2704 = vadd.f32 0.0, %v2703
          %v2705 = vpop.f32.mrb[0].mxu0
          %v2706 = vadd.f32 0.0, %v2705
          %v2707 = vpop.f32.mrb[0].mxu0
          %v2708 = vadd.f32 0.0, %v2707
          %v2709 = vpop.f32.mrb[0].mxu0
          %v2710 = vadd.f32 0.0, %v2709
          %2711 = vdwg.mxu0
          %v2713 = vsel %vm2380, %v357, 0
          %v2716 = vsel %vm2380, %v358, 0
          %2718 = vmatprep.subr.mxu0 %v2706
          %2719 = vmatpush1.msra.mxu0 %v2704
          %2720 = vmatprep.subr.mxu0 %v2710
          %2721 = vmatpush1.msra.mxu0 %v2708
          %2722 = vmatprep.subr.mxu0 0.0
          %2723 = vmatpush1.msra.mxu0 0.0
          %2724 = vmatprep.subr.mxu0 0.0
          %2725 = vmatpush1.msra.mxu0 0.0
          %2726 = vmatprep.subr.mxu0 0.0
          %2727 = vmatpush1.msra.mxu0 0.0
          %2728 = vmatprep.subr.mxu0 0.0
          %2729 = vmatpush1.msra.mxu0 0.0
          %2730 = vmatprep.subr.mxu0 0.0
          %2731 = vmatpush1.msra.mxu0 0.0
          %2732 = vmatprep.subr.mxu0 0.0
          %2733 = vmatpush1.msra.mxu0 0.0
          %2734 = vmatprep.subr.mxu0 0.0
          %2735 = vmatpush1.msra.mxu0 0.0
          %2736 = vmatprep.subr.mxu0 0.0
          %2737 = vmatpush1.msra.mxu0 0.0
          %2738 = vmatprep.subr.mxu0 0.0
          %2739 = vmatpush1.msra.mxu0 0.0
          %2740 = vmatprep.subr.mxu0 0.0
          %2741 = vmatpush1.msra.mxu0 0.0
          %2742 = vmatprep.subr.mxu0 0.0
          %2743 = vmatpush1.msra.mxu0 0.0
          %2744 = vmatprep.subr.mxu0 0.0
          %2745 = vmatpush1.msra.mxu0 0.0
          %2746 = vmatprep.subr.mxu0 0.0
          %2747 = vmatpush1.msra.mxu0 0.0
          %2748 = vmatprep.subr.mxu0 0.0
          %2749 = vmatpush1.msra.mxu0 0.0
          %2750 = vmatprep.subr.mxu0 0.0
          %2751 = vmatpush1.msra.mxu0 0.0
          %2752 = vmatprep.subr.mxu0 0.0
          %2753 = vmatpush1.msra.mxu0 0.0
          %2754 = vmatprep.subr.mxu0 0.0
          %2755 = vmatpush1.msra.mxu0 0.0
          %2756 = vmatprep.subr.mxu0 0.0
          %2757 = vmatpush1.msra.mxu0 0.0
          %2758 = vmatprep.subr.mxu0 0.0
          %2759 = vmatpush1.msra.mxu0 0.0
          %2760 = vmatprep.subr.mxu0 0.0
          %2761 = vmatpush1.msra.mxu0 0.0
          %2762 = vmatprep.subr.mxu0 0.0
          %2763 = vmatpush1.msra.mxu0 0.0
          %2764 = vmatprep.subr.mxu0 0.0
          %2765 = vmatpush1.msra.mxu0 0.0
          %2766 = vmatprep.subr.mxu0 0.0
          %2767 = vmatpush1.msra.mxu0 0.0
          %2768 = vmatprep.subr.mxu0 0.0
          %2769 = vmatpush1.msra.mxu0 0.0
          %2770 = vmatprep.subr.mxu0 0.0
          %2771 = vmatpush1.msra.mxu0 0.0
          %2772 = vmatprep.subr.mxu0 0.0
          %2773 = vmatpush1.msra.mxu0 0.0
          %2774 = vmatprep.subr.mxu0 0.0
          %2775 = vmatpush1.msra.mxu0 0.0
          %2776 = vmatprep.subr.mxu0 0.0
          %2777 = vmatpush1.msra.mxu0 0.0
          %2778 = vmatprep.subr.mxu0 0.0
          %2779 = vmatpush1.msra.mxu0 0.0
          %2780 = vmatprep.subr.mxu0 0.0
          %2781 = vmatpush1.msra.mxu0 0.0
          %2782 = vmatprep.mubr.f32.mxu0 0.0
          %2783 = vmatmul.mubr.f32.gmra.mrb[0].mxu0 %v2713
          %v2784 = vpop.f32.mrb[0].mxu0
          %v2785 = vadd.f32 %v2454, %v2784
          %v2786 = vpop.f32.mrb[0].mxu0
          %v2787 = vadd.f32 %v2456, %v2786
          %2788 = vmatprep.mubr.f32.mxu0 0.0
          %2789 = vmatmul.mubr.f32.gmra.mrb[0].mxu0 %v2716
          %v2790 = vpop.f32.mrb[0].mxu0
          %v2791 = vadd.f32 %v2460, %v2790
          %v2792 = vpop.f32.mrb[0].mxu0
          %v2793 = vadd.f32 %v2462, %v2792
          %2794 = vdwg.mxu0
          %v2795 = vmax.f32 %v2785, 0.0
          %v2796 = vmax.f32 %v2787, 0.0
          %v2797 = vmax.f32 %v2791, 0.0
          %v2798 = vmax.f32 %v2793, 0.0
          %2800 = vset.pattern.permute.xlu0 0
          %2801 = vperm.xlu0 %2800, %v372
          %v2802 = vpop.permute.xlu0 %2801
          %v2805 = vsel %vm2380, %v365, 0
          %2807 = vmatprep.subr.mxu0 %v2796
          %2808 = vmatpush1.msra.mxu0 %v2795
          %2809 = vmatprep.subr.mxu0 %v2798
          %2810 = vmatpush1.msra.mxu0 %v2797
          %2811 = vmatprep.subr.mxu0 0.0
          %2812 = vmatpush1.msra.mxu0 0.0
          %2813 = vmatprep.subr.mxu0 0.0
          %2814 = vmatpush1.msra.mxu0 0.0
          %2815 = vmatprep.subr.mxu0 0.0
          %2816 = vmatpush1.msra.mxu0 0.0
          %2817 = vmatprep.subr.mxu0 0.0
          %2818 = vmatpush1.msra.mxu0 0.0
          %2819 = vmatprep.subr.mxu0 0.0
          %2820 = vmatpush1.msra.mxu0 0.0
          %2821 = vmatprep.subr.mxu0 0.0
          %2822 = vmatpush1.msra.mxu0 0.0
          %2823 = vmatprep.subr.mxu0 0.0
          %2824 = vmatpush1.msra.mxu0 0.0
          %2825 = vmatprep.subr.mxu0 0.0
          %2826 = vmatpush1.msra.mxu0 0.0
          %2827 = vmatprep.subr.mxu0 0.0
          %2828 = vmatpush1.msra.mxu0 0.0
          %2829 = vmatprep.subr.mxu0 0.0
          %2830 = vmatpush1.msra.mxu0 0.0
          %2831 = vmatprep.subr.mxu0 0.0
          %2832 = vmatpush1.msra.mxu0 0.0
          %2833 = vmatprep.subr.mxu0 0.0
          %2834 = vmatpush1.msra.mxu0 0.0
          %2835 = vmatprep.subr.mxu0 0.0
          %2836 = vmatpush1.msra.mxu0 0.0
          %2837 = vmatprep.subr.mxu0 0.0
          %2838 = vmatpush1.msra.mxu0 0.0
          %2839 = vmatprep.subr.mxu0 0.0
          %2840 = vmatpush1.msra.mxu0 0.0
          %2841 = vmatprep.subr.mxu0 0.0
          %2842 = vmatpush1.msra.mxu0 0.0
          %2843 = vmatprep.subr.mxu0 0.0
          %2844 = vmatpush1.msra.mxu0 0.0
          %2845 = vmatprep.subr.mxu0 0.0
          %2846 = vmatpush1.msra.mxu0 0.0
          %2847 = vmatprep.subr.mxu0 0.0
          %2848 = vmatpush1.msra.mxu0 0.0
          %2849 = vmatprep.subr.mxu0 0.0
          %2850 = vmatpush1.msra.mxu0 0.0
          %2851 = vmatprep.subr.mxu0 0.0
          %2852 = vmatpush1.msra.mxu0 0.0
          %2853 = vmatprep.subr.mxu0 0.0
          %2854 = vmatpush1.msra.mxu0 0.0
          %2855 = vmatprep.subr.mxu0 0.0
          %2856 = vmatpush1.msra.mxu0 0.0
          %2857 = vmatprep.subr.mxu0 0.0
          %2858 = vmatpush1.msra.mxu0 0.0
          %2859 = vmatprep.subr.mxu0 0.0
          %2860 = vmatpush1.msra.mxu0 0.0
          %2861 = vmatprep.subr.mxu0 0.0
          %2862 = vmatpush1.msra.mxu0 0.0
          %2863 = vmatprep.subr.mxu0 0.0
          %2864 = vmatpush1.msra.mxu0 0.0
          %2865 = vmatprep.subr.mxu0 0.0
          %2866 = vmatpush1.msra.mxu0 0.0
          %2867 = vmatprep.subr.mxu0 0.0
          %2868 = vmatpush1.msra.mxu0 0.0
          %2869 = vmatprep.subr.mxu0 0.0
          %2870 = vmatpush1.msra.mxu0 0.0
          %2871 = vmatprep.mubr.f32.mxu0 0.0
          %2872 = vmatmul.mubr.f32.gmra.mrb[0].mxu0 %v2805
          %v2873 = vpop.f32.mrb[0].mxu0
          %v2874 = vadd.f32 %v2802, %v2873
          %v2875 = vpop.f32.mrb[0].mxu0
          %v2876 = vadd.f32 %v2802, %v2875
          %2877 = vdwg.mxu0
          %v2878 = vmax.f32 %v2874, 0.0
          %v2879 = vmax.f32 %v2876, 0.0
          %2881 = vset.pattern.permute.xlu0 0
          %2882 = vperm.xlu0 %2881, %v374
          %v2883 = vpop.permute.xlu0 %2882
          %vm2885 = vcmask 64512
          %v2887 = vsel %vm2885, %v366, 0
          %2889 = vmatprep.subr.mxu0 %v2879
          %2890 = vmatpush1.msra.mxu0 %v2878
          %2891 = vmatprep.subr.mxu0 0.0
          %2892 = vmatpush1.msra.mxu0 0.0
          %2893 = vmatprep.subr.mxu0 0.0
          %2894 = vmatpush1.msra.mxu0 0.0
          %2895 = vmatprep.subr.mxu0 0.0
          %2896 = vmatpush1.msra.mxu0 0.0
          %2897 = vmatprep.subr.mxu0 0.0
          %2898 = vmatpush1.msra.mxu0 0.0
          %2899 = vmatprep.subr.mxu0 0.0
          %2900 = vmatpush1.msra.mxu0 0.0
          %2901 = vmatprep.subr.mxu0 0.0
          %2902 = vmatpush1.msra.mxu0 0.0
          %2903 = vmatprep.subr.mxu0 0.0
          %2904 = vmatpush1.msra.mxu0 0.0
          %2905 = vmatprep.subr.mxu0 0.0
          %2906 = vmatpush1.msra.mxu0 0.0
          %2907 = vmatprep.subr.mxu0 0.0
          %2908 = vmatpush1.msra.mxu0 0.0
          %2909 = vmatprep.subr.mxu0 0.0
          %2910 = vmatpush1.msra.mxu0 0.0
          %2911 = vmatprep.subr.mxu0 0.0
          %2912 = vmatpush1.msra.mxu0 0.0
          %2913 = vmatprep.subr.mxu0 0.0
          %2914 = vmatpush1.msra.mxu0 0.0
          %2915 = vmatprep.subr.mxu0 0.0
          %2916 = vmatpush1.msra.mxu0 0.0
          %2917 = vmatprep.subr.mxu0 0.0
          %2918 = vmatpush1.msra.mxu0 0.0
          %2919 = vmatprep.subr.mxu0 0.0
          %2920 = vmatpush1.msra.mxu0 0.0
          %2921 = vmatprep.subr.mxu0 0.0
          %2922 = vmatpush1.msra.mxu0 0.0
          %2923 = vmatprep.subr.mxu0 0.0
          %2924 = vmatpush1.msra.mxu0 0.0
          %2925 = vmatprep.subr.mxu0 0.0
          %2926 = vmatpush1.msra.mxu0 0.0
          %2927 = vmatprep.subr.mxu0 0.0
          %2928 = vmatpush1.msra.mxu0 0.0
          %2929 = vmatprep.subr.mxu0 0.0
          %2930 = vmatpush1.msra.mxu0 0.0
          %2931 = vmatprep.subr.mxu0 0.0
          %2932 = vmatpush1.msra.mxu0 0.0
          %2933 = vmatprep.subr.mxu0 0.0
          %2934 = vmatpush1.msra.mxu0 0.0
          %2935 = vmatprep.subr.mxu0 0.0
          %2936 = vmatpush1.msra.mxu0 0.0
          %2937 = vmatprep.subr.mxu0 0.0
          %2938 = vmatpush1.msra.mxu0 0.0
          %2939 = vmatprep.subr.mxu0 0.0
          %2940 = vmatpush1.msra.mxu0 0.0
          %2941 = vmatprep.subr.mxu0 0.0
          %2942 = vmatpush1.msra.mxu0 0.0
          %2943 = vmatprep.subr.mxu0 0.0
          %2944 = vmatpush1.msra.mxu0 0.0
          %2945 = vmatprep.subr.mxu0 0.0
          %2946 = vmatpush1.msra.mxu0 0.0
          %2947 = vmatprep.subr.mxu0 0.0
          %2948 = vmatpush1.msra.mxu0 0.0
          %2949 = vmatprep.subr.mxu0 0.0
          %2950 = vmatpush1.msra.mxu0 0.0
          %2951 = vmatprep.subr.mxu0 0.0
          %2952 = vmatpush1.msra.mxu0 0.0
          %2953 = vmatprep.mubr.f32.mxu0 0.0
          %2954 = vmatmul.mubr.f32.gmra.mrb[0].mxu0 %v2887
          %v2955 = vpop.f32.mrb[0].mxu0
          %v2956 = vadd.f32 %v2883, %v2955
          %v2957 = vpop.f32.mrb[0].mxu0
          %v2958 = vadd.f32 %v2883, %v2957
          %2959 = vdwg.mxu0
          %v2960 = vmax.f32 %v2956, 0.0
          %v2961 = vmax.f32 %v2958, 0.0
          %v2963 = vsel %vm2885, %v368, 0
          %2965 = vmatprep.subr.mxu0 %v2961
          %2966 = vmatpush1.msra.mxu0 %v2960
          %2967 = vmatprep.subr.mxu0 0.0
          %2968 = vmatpush1.msra.mxu0 0.0
          %2969 = vmatprep.subr.mxu0 0.0
          %2970 = vmatpush1.msra.mxu0 0.0
          %2971 = vmatprep.subr.mxu0 0.0
          %2972 = vmatpush1.msra.mxu0 0.0
          %2973 = vmatprep.subr.mxu0 0.0
          %2974 = vmatpush1.msra.mxu0 0.0
          %2975 = vmatprep.subr.mxu0 0.0
          %2976 = vmatpush1.msra.mxu0 0.0
          %2977 = vmatprep.subr.mxu0 0.0
          %2978 = vmatpush1.msra.mxu0 0.0
          %2979 = vmatprep.subr.mxu0 0.0
          %2980 = vmatpush1.msra.mxu0 0.0
          %2981 = vmatprep.subr.mxu0 0.0
          %2982 = vmatpush1.msra.mxu0 0.0
          %2983 = vmatprep.subr.mxu0 0.0
          %2984 = vmatpush1.msra.mxu0 0.0
          %2985 = vmatprep.subr.mxu0 0.0
          %2986 = vmatpush1.msra.mxu0 0.0
          %2987 = vmatprep.subr.mxu0 0.0
          %2988 = vmatpush1.msra.mxu0 0.0
          %2989 = vmatprep.subr.mxu0 0.0
          %2990 = vmatpush1.msra.mxu0 0.0
          %2991 = vmatprep.subr.mxu0 0.0
          %2992 = vmatpush1.msra.mxu0 0.0
          %2993 = vmatprep.subr.mxu0 0.0
          %2994 = vmatpush1.msra.mxu0 0.0
          %2995 = vmatprep.subr.mxu0 0.0
          %2996 = vmatpush1.msra.mxu0 0.0
          %2997 = vmatprep.subr.mxu0 0.0
          %2998 = vmatpush1.msra.mxu0 0.0
          %2999 = vmatprep.subr.mxu0 0.0
          %3000 = vmatpush1.msra.mxu0 0.0
          %3001 = vmatprep.subr.mxu0 0.0
          %3002 = vmatpush1.msra.mxu0 0.0
          %3003 = vmatprep.subr.mxu0 0.0
          %3004 = vmatpush1.msra.mxu0 0.0
          %3005 = vmatprep.subr.mxu0 0.0
          %3006 = vmatpush1.msra.mxu0 0.0
          %3007 = vmatprep.subr.mxu0 0.0
          %3008 = vmatpush1.msra.mxu0 0.0
          %3009 = vmatprep.subr.mxu0 0.0
          %3010 = vmatpush1.msra.mxu0 0.0
          %3011 = vmatprep.subr.mxu0 0.0
          %3012 = vmatpush1.msra.mxu0 0.0
          %3013 = vmatprep.subr.mxu0 0.0
          %3014 = vmatpush1.msra.mxu0 0.0
          %3015 = vmatprep.subr.mxu0 0.0
          %3016 = vmatpush1.msra.mxu0 0.0
          %3017 = vmatprep.subr.mxu0 0.0
          %3018 = vmatpush1.msra.mxu0 0.0
          %3019 = vmatprep.subr.mxu0 0.0
          %3020 = vmatpush1.msra.mxu0 0.0
          %3021 = vmatprep.subr.mxu0 0.0
          %3022 = vmatpush1.msra.mxu0 0.0
          %3023 = vmatprep.subr.mxu0 0.0
          %3024 = vmatpush1.msra.mxu0 0.0
          %3025 = vmatprep.subr.mxu0 0.0
          %3026 = vmatpush1.msra.mxu0 0.0
          %3027 = vmatprep.subr.mxu0 0.0
          %3028 = vmatpush1.msra.mxu0 0.0
          %3029 = vmatprep.mubr.f32.mxu0 0.0
          %3030 = vmatmul.mubr.f32.gmra.mrb[0].mxu0 %v2963
          %v3031 = vpop.f32.mrb[0].mxu0
          %v3032 = vadd.f32 0.0, %v3031
          %v3033 = vpop.f32.mrb[0].mxu0
          %v3034 = vadd.f32 0.0, %v3033
          %3035 = vdwg.mxu0
          %3037 = vset.pattern.permute.xlu0 0
          %3038 = vperm.xlu0 %3037, %v376
          %v3039 = vpop.permute.xlu0 %3038
          %v3041 = vadd.f32 %v3032, %v3039
          %v3042 = vadd.f32 %v3034, %v3039
          %v3043 = vmax.f32 %v3041, 0.0
          %v3044 = vmax.f32 %v3042, 0.0
          %s3045 = scalar_select %p380, 0.0, -1e+30
          %v3046 = vstv %s3045
          %v3047 = vadd.f32 %v3043, %v3046
          %v3048 = vadd.f32 %v3044, %v3046
          %s3049 = scalar_lea.vmem %s310, 1024 [#allocation7]
          %v3050 = vld [vmem:[%s3049] sm:$0xff]
          %v3051 = vld [vmem:[%s3049 + $0x8] sm:$0xff]
          %v3052 = vld [vmem:[%s3049 + $0x10] sm:$0xff]
          %v3053 = vld [vmem:[%s3049 + $0x18] sm:$0xff]
          %v3054 = vld [vmem:[%s3049 + $0x20] sm:$0xff]
          %v3055 = vld [vmem:[%s3049 + $0x28] sm:$0xff]
          %v3056 = vld [vmem:[%s3049 + $0x30] sm:$0xff]
          %v3057 = vld [vmem:[%s3049 + $0x38] sm:$0xff]
          %v3058 = vld [vmem:[%s3049 + $0x40] sm:$0xff]
          %v3059 = vld [vmem:[%s3049 + $0x48] sm:$0xff]
          %v3060 = vld [vmem:[%s3049 + $0x50] sm:$0xff]
          %v3061 = vld [vmem:[%s3049 + $0x58] sm:$0xff]
          %v3062 = vld [vmem:[%s3049 + $0x60] sm:$0xff]
          %v3063 = vld [vmem:[%s3049 + $0x68] sm:$0xff]
          %v3064 = vld [vmem:[%s3049 + $0x70] sm:$0xff]
          %v3065 = vld [vmem:[%s3049 + $0x78] sm:$0xff]
          %v3066 = vld [vmem:[%s3049 + $0x80] sm:$0xff]
          %v3067 = vld [vmem:[%s3049 + $0x88] sm:$0xff]
          %v3068 = vld [vmem:[%s3049 + $0x90] sm:$0xff]
          %v3069 = vld [vmem:[%s3049 + $0x98] sm:$0xff]
          %v3070 = vld [vmem:[%s3049 + $0xa0] sm:$0xff]
          %v3071 = vld [vmem:[%s3049 + $0xa8] sm:$0xff]
          %v3072 = vld [vmem:[%s3049 + $0xb0] sm:$0xff]
          %v3073 = vld [vmem:[%s3049 + $0xb8] sm:$0xff]
          %v3074 = vld [vmem:[%s3049 + $0xc0] sm:$0xff]
          %v3075 = vld [vmem:[%s3049 + $0xc8] sm:$0xff]
          %v3076 = vld [vmem:[%s3049 + $0xd0] sm:$0xff]
          %v3077 = vld [vmem:[%s3049 + $0xd8] sm:$0xff]
          %v3078 = vld [vmem:[%s3049 + $0xe0] sm:$0xff]
          %v3079 = vld [vmem:[%s3049 + $0xe8] sm:$0xff]
          %v3080 = vld [vmem:[%s3049 + $0xf0] sm:$0xff]
          %v3081 = vld [vmem:[%s3049 + $0xf8] sm:$0xff]
          %v3084 = vunpack.c.l.b16 %v2364
          %v3085 = vunpack.c.h.b16 %v2364
          %v3086 = vunpack.c.l.b16 %v2365
          %v3087 = vunpack.c.h.b16 %v2365
          %v3088 = vpack.c.b16 %v3086, %v3084
          %v3089 = vpack.c.b16 %v3087, %v3085
          %v3124 = vunpack.c.l.b16 %v3050
          %v3125 = vunpack.c.h.b16 %v3050
          %v3126 = vunpack.c.l.b16 %v3051
          %v3127 = vunpack.c.h.b16 %v3051
          %v3128 = vunpack.c.l.b16 %v3052
          %v3129 = vunpack.c.h.b16 %v3052
          %v3130 = vunpack.c.l.b16 %v3053
          %v3131 = vunpack.c.h.b16 %v3053
          %v3132 = vunpack.c.l.b16 %v3054
          %v3133 = vunpack.c.h.b16 %v3054
          %v3134 = vunpack.c.l.b16 %v3055
          %v3135 = vunpack.c.h.b16 %v3055
          %v3136 = vunpack.c.l.b16 %v3056
          %v3137 = vunpack.c.h.b16 %v3056
          %v3138 = vunpack.c.l.b16 %v3057
          %v3139 = vunpack.c.h.b16 %v3057
          %v3140 = vunpack.c.l.b16 %v3058
          %v3141 = vunpack.c.h.b16 %v3058
          %v3142 = vunpack.c.l.b16 %v3059
          %v3143 = vunpack.c.h.b16 %v3059
          %v3144 = vunpack.c.l.b16 %v3060
          %v3145 = vunpack.c.h.b16 %v3060
          %v3146 = vunpack.c.l.b16 %v3061
          %v3147 = vunpack.c.h.b16 %v3061
          %v3148 = vunpack.c.l.b16 %v3062
          %v3149 = vunpack.c.h.b16 %v3062
          %v3150 = vunpack.c.l.b16 %v3063
          %v3151 = vunpack.c.h.b16 %v3063
          %v3152 = vunpack.c.l.b16 %v3064
          %v3153 = vunpack.c.h.b16 %v3064
          %v3154 = vunpack.c.l.b16 %v3065
          %v3155 = vunpack.c.h.b16 %v3065
          %v3156 = vunpack.c.l.b16 %v3066
          %v3157 = vunpack.c.h.b16 %v3066
          %v3158 = vunpack.c.l.b16 %v3067
          %v3159 = vunpack.c.h.b16 %v3067
          %v3160 = vunpack.c.l.b16 %v3068
          %v3161 = vunpack.c.h.b16 %v3068
          %v3162 = vunpack.c.l.b16 %v3069
          %v3163 = vunpack.c.h.b16 %v3069
          %v3164 = vunpack.c.l.b16 %v3070
          %v3165 = vunpack.c.h.b16 %v3070
          %v3166 = vunpack.c.l.b16 %v3071
          %v3167 = vunpack.c.h.b16 %v3071
          %v3168 = vunpack.c.l.b16 %v3072
          %v3169 = vunpack.c.h.b16 %v3072
          %v3170 = vunpack.c.l.b16 %v3073
          %v3171 = vunpack.c.h.b16 %v3073
          %v3172 = vunpack.c.l.b16 %v3074
          %v3173 = vunpack.c.h.b16 %v3074
          %v3174 = vunpack.c.l.b16 %v3075
          %v3175 = vunpack.c.h.b16 %v3075
          %v3176 = vunpack.c.l.b16 %v3076
          %v3177 = vunpack.c.h.b16 %v3076
          %v3178 = vunpack.c.l.b16 %v3077
          %v3179 = vunpack.c.h.b16 %v3077
          %v3180 = vunpack.c.l.b16 %v3078
          %v3181 = vunpack.c.h.b16 %v3078
          %v3182 = vunpack.c.l.b16 %v3079
          %v3183 = vunpack.c.h.b16 %v3079
          %v3184 = vunpack.c.l.b16 %v3080
          %v3185 = vunpack.c.h.b16 %v3080
          %v3186 = vunpack.c.l.b16 %v3081
          %v3187 = vunpack.c.h.b16 %v3081
          %v3188 = vpack.c.b16 %v3126, %v3124
          %v3189 = vpack.c.b16 %v3127, %v3125
          %v3190 = vpack.c.b16 %v3130, %v3128
          %v3191 = vpack.c.b16 %v3131, %v3129
          %v3192 = vpack.c.b16 %v3134, %v3132
          %v3193 = vpack.c.b16 %v3135, %v3133
          %v3194 = vpack.c.b16 %v3138, %v3136
          %v3195 = vpack.c.b16 %v3139, %v3137
          %v3196 = vpack.c.b16 %v3142, %v3140
          %v3197 = vpack.c.b16 %v3143, %v3141
          %v3198 = vpack.c.b16 %v3146, %v3144
          %v3199 = vpack.c.b16 %v3147, %v3145
          %v3200 = vpack.c.b16 %v3150, %v3148
          %v3201 = vpack.c.b16 %v3151, %v3149
          %v3202 = vpack.c.b16 %v3154, %v3152
          %v3203 = vpack.c.b16 %v3155, %v3153
          %v3204 = vpack.c.b16 %v3158, %v3156
          %v3205 = vpack.c.b16 %v3159, %v3157
          %v3206 = vpack.c.b16 %v3162, %v3160
          %v3207 = vpack.c.b16 %v3163, %v3161
          %v3208 = vpack.c.b16 %v3166, %v3164
          %v3209 = vpack.c.b16 %v3167, %v3165
          %v3210 = vpack.c.b16 %v3170, %v3168
          %v3211 = vpack.c.b16 %v3171, %v3169
          %v3212 = vpack.c.b16 %v3174, %v3172
          %v3213 = vpack.c.b16 %v3175, %v3173
          %v3214 = vpack.c.b16 %v3178, %v3176
          %v3215 = vpack.c.b16 %v3179, %v3177
          %v3216 = vpack.c.b16 %v3182, %v3180
          %v3217 = vpack.c.b16 %v3183, %v3181
          %v3218 = vpack.c.b16 %v3186, %v3184
          %v3219 = vpack.c.b16 %v3187, %v3185
          %3252 = vmatprep.subr.bf16.mxu0 %v3189
          %3253 = vmatpush1.bf16.msra.mxu0 %v3188
          %3254 = vmatprep.subr.bf16.mxu0 %v3191
          %3255 = vmatpush1.bf16.msra.mxu0 %v3190
          %3256 = vmatprep.subr.bf16.mxu0 %v3193
          %3257 = vmatpush1.bf16.msra.mxu0 %v3192
          %3258 = vmatprep.subr.bf16.mxu0 %v3195
          %3259 = vmatpush1.bf16.msra.mxu0 %v3194
          %3260 = vmatprep.subr.bf16.mxu0 %v3197
          %3261 = vmatpush1.bf16.msra.mxu0 %v3196
          %3262 = vmatprep.subr.bf16.mxu0 %v3199
          %3263 = vmatpush1.bf16.msra.mxu0 %v3198
          %3264 = vmatprep.subr.bf16.mxu0 %v3201
          %3265 = vmatpush1.bf16.msra.mxu0 %v3200
          %3266 = vmatprep.subr.bf16.mxu0 %v3203
          %3267 = vmatpush1.bf16.msra.mxu0 %v3202
          %3268 = vmatprep.subr.bf16.mxu0 %v3205
          %3269 = vmatpush1.bf16.msra.mxu0 %v3204
          %3270 = vmatprep.subr.bf16.mxu0 %v3207
          %3271 = vmatpush1.bf16.msra.mxu0 %v3206
          %3272 = vmatprep.subr.bf16.mxu0 %v3209
          %3273 = vmatpush1.bf16.msra.mxu0 %v3208
          %3274 = vmatprep.subr.bf16.mxu0 %v3211
          %3275 = vmatpush1.bf16.msra.mxu0 %v3210
          %3276 = vmatprep.subr.bf16.mxu0 %v3213
          %3277 = vmatpush1.bf16.msra.mxu0 %v3212
          %3278 = vmatprep.subr.bf16.mxu0 %v3215
          %3279 = vmatpush1.bf16.msra.mxu0 %v3214
          %3280 = vmatprep.subr.bf16.mxu0 %v3217
          %3281 = vmatpush1.bf16.msra.mxu0 %v3216
          %3282 = vmatprep.subr.bf16.mxu0 %v3219
          %3283 = vmatpush1.bf16.msra.mxu0 %v3218
          %3284 = vmatprep.mubr.bf16.mxu0 %v3089
          %3285 = vmatmul.mubr.bf16.gmra.mrb[0].mxu0 %v3088
          %v3286 = vpop.f32.mrb[0].mxu0
          %v3287 = vadd.f32 0.0, %v3286
          %v3288 = vpop.f32.mrb[0].mxu0
          %v3289 = vadd.f32 0.0, %v3288
          %v3290 = vpop.f32.mrb[0].mxu0
          %v3291 = vadd.f32 0.0, %v3290
          %v3292 = vpop.f32.mrb[0].mxu0
          %v3293 = vadd.f32 0.0, %v3292
          %3294 = vdwg.mxu0
          %3295 = vmatprep.subr.mxu0 %v3289
          %3296 = vmatpush1.msra.mxu0 %v3287
          %3297 = vmatprep.subr.mxu0 %v3293
          %3298 = vmatpush1.msra.mxu0 %v3291
          %3299 = vmatprep.subr.mxu0 0.0
          %3300 = vmatpush1.msra.mxu0 0.0
          %3301 = vmatprep.subr.mxu0 0.0
          %3302 = vmatpush1.msra.mxu0 0.0
          %3303 = vmatprep.subr.mxu0 0.0
          %3304 = vmatpush1.msra.mxu0 0.0
          %3305 = vmatprep.subr.mxu0 0.0
          %3306 = vmatpush1.msra.mxu0 0.0
          %3307 = vmatprep.subr.mxu0 0.0
          %3308 = vmatpush1.msra.mxu0 0.0
          %3309 = vmatprep.subr.mxu0 0.0
          %3310 = vmatpush1.msra.mxu0 0.0
          %3311 = vmatprep.subr.mxu0 0.0
          %3312 = vmatpush1.msra.mxu0 0.0
          %3313 = vmatprep.subr.mxu0 0.0
          %3314 = vmatpush1.msra.mxu0 0.0
          %3315 = vmatprep.subr.mxu0 0.0
          %3316 = vmatpush1.msra.mxu0 0.0
          %3317 = vmatprep.subr.mxu0 0.0
          %3318 = vmatpush1.msra.mxu0 0.0
          %3319 = vmatprep.subr.mxu0 0.0
          %3320 = vmatpush1.msra.mxu0 0.0
          %3321 = vmatprep.subr.mxu0 0.0
          %3322 = vmatpush1.msra.mxu0 0.0
          %3323 = vmatprep.subr.mxu0 0.0
          %3324 = vmatpush1.msra.mxu0 0.0
          %3325 = vmatprep.subr.mxu0 0.0
          %3326 = vmatpush1.msra.mxu0 0.0
          %3327 = vmatprep.subr.mxu0 0.0
          %3328 = vmatpush1.msra.mxu0 0.0
          %3329 = vmatprep.subr.mxu0 0.0
          %3330 = vmatpush1.msra.mxu0 0.0
          %3331 = vmatprep.subr.mxu0 0.0
          %3332 = vmatpush1.msra.mxu0 0.0
          %3333 = vmatprep.subr.mxu0 0.0
          %3334 = vmatpush1.msra.mxu0 0.0
          %3335 = vmatprep.subr.mxu0 0.0
          %3336 = vmatpush1.msra.mxu0 0.0
          %3337 = vmatprep.subr.mxu0 0.0
          %3338 = vmatpush1.msra.mxu0 0.0
          %3339 = vmatprep.subr.mxu0 0.0
          %3340 = vmatpush1.msra.mxu0 0.0
          %3341 = vmatprep.subr.mxu0 0.0
          %3342 = vmatpush1.msra.mxu0 0.0
          %3343 = vmatprep.subr.mxu0 0.0
          %3344 = vmatpush1.msra.mxu0 0.0
          %3345 = vmatprep.subr.mxu0 0.0
          %3346 = vmatpush1.msra.mxu0 0.0
          %3347 = vmatprep.subr.mxu0 0.0
          %3348 = vmatpush1.msra.mxu0 0.0
          %3349 = vmatprep.subr.mxu0 0.0
          %3350 = vmatpush1.msra.mxu0 0.0
          %3351 = vmatprep.subr.mxu0 0.0
          %3352 = vmatpush1.msra.mxu0 0.0
          %3353 = vmatprep.subr.mxu0 0.0
          %3354 = vmatpush1.msra.mxu0 0.0
          %3355 = vmatprep.subr.mxu0 0.0
          %3356 = vmatpush1.msra.mxu0 0.0
          %3357 = vmatprep.subr.mxu0 0.0
          %3358 = vmatpush1.msra.mxu0 0.0
          %3359 = vmatprep.mubr.f32.mxu0 0.0
          %3360 = vmatmul.mubr.f32.gmra.mrb[0].mxu0 %v2713
          %v3361 = vpop.f32.mrb[0].mxu0
          %v3362 = vadd.f32 %v2454, %v3361
          %v3363 = vpop.f32.mrb[0].mxu0
          %v3364 = vadd.f32 %v2456, %v3363
          %3365 = vmatprep.mubr.f32.mxu0 0.0
          %3366 = vmatmul.mubr.f32.gmra.mrb[0].mxu0 %v2716
          %v3367 = vpop.f32.mrb[0].mxu0
          %v3368 = vadd.f32 %v2460, %v3367
          %v3369 = vpop.f32.mrb[0].mxu0
          %v3370 = vadd.f32 %v2462, %v3369
          %3371 = vdwg.mxu0
          %v3372 = vmax.f32 %v3362, 0.0
          %v3373 = vmax.f32 %v3364, 0.0
          %v3374 = vmax.f32 %v3368, 0.0
          %v3375 = vmax.f32 %v3370, 0.0
          %3376 = vmatprep.subr.mxu0 %v3373
          %3377 = vmatpush1.msra.mxu0 %v3372
          %3378 = vmatprep.subr.mxu0 %v3375
          %3379 = vmatpush1.msra.mxu0 %v3374
          %3380 = vmatprep.subr.mxu0 0.0
          %3381 = vmatpush1.msra.mxu0 0.0
          %3382 = vmatprep.subr.mxu0 0.0
          %3383 = vmatpush1.msra.mxu0 0.0
          %3384 = vmatprep.subr.mxu0 0.0
          %3385 = vmatpush1.msra.mxu0 0.0
          %3386 = vmatprep.subr.mxu0 0.0
          %3387 = vmatpush1.msra.mxu0 0.0
          %3388 = vmatprep.subr.mxu0 0.0
          %3389 = vmatpush1.msra.mxu0 0.0
          %3390 = vmatprep.subr.mxu0 0.0
          %3391 = vmatpush1.msra.mxu0 0.0
          %3392 = vmatprep.subr.mxu0 0.0
          %3393 = vmatpush1.msra.mxu0 0.0
          %3394 = vmatprep.subr.mxu0 0.0
          %3395 = vmatpush1.msra.mxu0 0.0
          %3396 = vmatprep.subr.mxu0 0.0
          %3397 = vmatpush1.msra.mxu0 0.0
          %3398 = vmatprep.subr.mxu0 0.0
          %3399 = vmatpush1.msra.mxu0 0.0
          %3400 = vmatprep.subr.mxu0 0.0
          %3401 = vmatpush1.msra.mxu0 0.0
          %3402 = vmatprep.subr.mxu0 0.0
          %3403 = vmatpush1.msra.mxu0 0.0
          %3404 = vmatprep.subr.mxu0 0.0
          %3405 = vmatpush1.msra.mxu0 0.0
          %3406 = vmatprep.subr.mxu0 0.0
          %3407 = vmatpush1.msra.mxu0 0.0
          %3408 = vmatprep.subr.mxu0 0.0
          %3409 = vmatpush1.msra.mxu0 0.0
          %3410 = vmatprep.subr.mxu0 0.0
          %3411 = vmatpush1.msra.mxu0 0.0
          %3412 = vmatprep.subr.mxu0 0.0
          %3413 = vmatpush1.msra.mxu0 0.0
          %3414 = vmatprep.subr.mxu0 0.0
          %3415 = vmatpush1.msra.mxu0 0.0
          %3416 = vmatprep.subr.mxu0 0.0
          %3417 = vmatpush1.msra.mxu0 0.0
          %3418 = vmatprep.subr.mxu0 0.0
          %3419 = vmatpush1.msra.mxu0 0.0
          %3420 = vmatprep.subr.mxu0 0.0
          %3421 = vmatpush1.msra.mxu0 0.0
          %3422 = vmatprep.subr.mxu0 0.0
          %3423 = vmatpush1.msra.mxu0 0.0
          %3424 = vmatprep.subr.mxu0 0.0
          %3425 = vmatpush1.msra.mxu0 0.0
          %3426 = vmatprep.subr.mxu0 0.0
          %3427 = vmatpush1.msra.mxu0 0.0
          %3428 = vmatprep.subr.mxu0 0.0
          %3429 = vmatpush1.msra.mxu0 0.0
          %3430 = vmatprep.subr.mxu0 0.0
          %3431 = vmatpush1.msra.mxu0 0.0
          %3432 = vmatprep.subr.mxu0 0.0
          %3433 = vmatpush1.msra.mxu0 0.0
          %3434 = vmatprep.subr.mxu0 0.0
          %3435 = vmatpush1.msra.mxu0 0.0
          %3436 = vmatprep.subr.mxu0 0.0
          %3437 = vmatpush1.msra.mxu0 0.0
          %3438 = vmatprep.subr.mxu0 0.0
          %3439 = vmatpush1.msra.mxu0 0.0
          %3440 = vmatprep.mubr.f32.mxu0 0.0
          %3441 = vmatmul.mubr.f32.gmra.mrb[0].mxu0 %v2805
          %v3442 = vpop.f32.mrb[0].mxu0
          %v3443 = vadd.f32 %v2802, %v3442
          %v3444 = vpop.f32.mrb[0].mxu0
          %v3445 = vadd.f32 %v2802, %v3444
          %3446 = vdwg.mxu0
          %v3447 = vmax.f32 %v3443, 0.0
          %v3448 = vmax.f32 %v3445, 0.0
          %3449 = vmatprep.subr.mxu0 %v3448
          %3450 = vmatpush1.msra.mxu0 %v3447
          %3451 = vmatprep.subr.mxu0 0.0
          %3452 = vmatpush1.msra.mxu0 0.0
          %3453 = vmatprep.subr.mxu0 0.0
          %3454 = vmatpush1.msra.mxu0 0.0
          %3455 = vmatprep.subr.mxu0 0.0
          %3456 = vmatpush1.msra.mxu0 0.0
          %3457 = vmatprep.subr.mxu0 0.0
          %3458 = vmatpush1.msra.mxu0 0.0
          %3459 = vmatprep.subr.mxu0 0.0
          %3460 = vmatpush1.msra.mxu0 0.0
          %3461 = vmatprep.subr.mxu0 0.0
          %3462 = vmatpush1.msra.mxu0 0.0
          %3463 = vmatprep.subr.mxu0 0.0
          %3464 = vmatpush1.msra.mxu0 0.0
          %3465 = vmatprep.subr.mxu0 0.0
          %3466 = vmatpush1.msra.mxu0 0.0
          %3467 = vmatprep.subr.mxu0 0.0
          %3468 = vmatpush1.msra.mxu0 0.0
          %3469 = vmatprep.subr.mxu0 0.0
          %3470 = vmatpush1.msra.mxu0 0.0
          %3471 = vmatprep.subr.mxu0 0.0
          %3472 = vmatpush1.msra.mxu0 0.0
          %3473 = vmatprep.subr.mxu0 0.0
          %3474 = vmatpush1.msra.mxu0 0.0
          %3475 = vmatprep.subr.mxu0 0.0
          %3476 = vmatpush1.msra.mxu0 0.0
          %3477 = vmatprep.subr.mxu0 0.0
          %3478 = vmatpush1.msra.mxu0 0.0
          %3479 = vmatprep.subr.mxu0 0.0
          %3480 = vmatpush1.msra.mxu0 0.0
          %3481 = vmatprep.subr.mxu0 0.0
          %3482 = vmatpush1.msra.mxu0 0.0
          %3483 = vmatprep.subr.mxu0 0.0
          %3484 = vmatpush1.msra.mxu0 0.0
          %3485 = vmatprep.subr.mxu0 0.0
          %3486 = vmatpush1.msra.mxu0 0.0
          %3487 = vmatprep.subr.mxu0 0.0
          %3488 = vmatpush1.msra.mxu0 0.0
          %3489 = vmatprep.subr.mxu0 0.0
          %3490 = vmatpush1.msra.mxu0 0.0
          %3491 = vmatprep.subr.mxu0 0.0
          %3492 = vmatpush1.msra.mxu0 0.0
          %3493 = vmatprep.subr.mxu0 0.0
          %3494 = vmatpush1.msra.mxu0 0.0
          %3495 = vmatprep.subr.mxu0 0.0
          %3496 = vmatpush1.msra.mxu0 0.0
          %3497 = vmatprep.subr.mxu0 0.0
          %3498 = vmatpush1.msra.mxu0 0.0
          %3499 = vmatprep.subr.mxu0 0.0
          %3500 = vmatpush1.msra.mxu0 0.0
          %3501 = vmatprep.subr.mxu0 0.0
          %3502 = vmatpush1.msra.mxu0 0.0
          %3503 = vmatprep.subr.mxu0 0.0
          %3504 = vmatpush1.msra.mxu0 0.0
          %3505 = vmatprep.subr.mxu0 0.0
          %3506 = vmatpush1.msra.mxu0 0.0
          %3507 = vmatprep.subr.mxu0 0.0
          %3508 = vmatpush1.msra.mxu0 0.0
          %3509 = vmatprep.subr.mxu0 0.0
          %3510 = vmatpush1.msra.mxu0 0.0
          %3511 = vmatprep.subr.mxu0 0.0
          %3512 = vmatpush1.msra.mxu0 0.0
          %3513 = vmatprep.mubr.f32.mxu0 0.0
          %3514 = vmatmul.mubr.f32.gmra.mrb[0].mxu0 %v2887
          %v3515 = vpop.f32.mrb[0].mxu0
          %v3516 = vadd.f32 %v2883, %v3515
          %v3517 = vpop.f32.mrb[0].mxu0
          %v3518 = vadd.f32 %v2883, %v3517
          %3519 = vdwg.mxu0
          %v3520 = vmax.f32 %v3516, 0.0
          %v3521 = vmax.f32 %v3518, 0.0
          %3522 = vmatprep.subr.mxu0 %v3521
          %3523 = vmatpush1.msra.mxu0 %v3520
          %3524 = vmatprep.subr.mxu0 0.0
          %3525 = vmatpush1.msra.mxu0 0.0
          %3526 = vmatprep.subr.mxu0 0.0
          %3527 = vmatpush1.msra.mxu0 0.0
          %3528 = vmatprep.subr.mxu0 0.0
          %3529 = vmatpush1.msra.mxu0 0.0
          %3530 = vmatprep.subr.mxu0 0.0
          %3531 = vmatpush1.msra.mxu0 0.0
          %3532 = vmatprep.subr.mxu0 0.0
          %3533 = vmatpush1.msra.mxu0 0.0
          %3534 = vmatprep.subr.mxu0 0.0
          %3535 = vmatpush1.msra.mxu0 0.0
          %3536 = vmatprep.subr.mxu0 0.0
          %3537 = vmatpush1.msra.mxu0 0.0
          %3538 = vmatprep.subr.mxu0 0.0
          %3539 = vmatpush1.msra.mxu0 0.0
          %3540 = vmatprep.subr.mxu0 0.0
          %3541 = vmatpush1.msra.mxu0 0.0
          %3542 = vmatprep.subr.mxu0 0.0
          %3543 = vmatpush1.msra.mxu0 0.0
          %3544 = vmatprep.subr.mxu0 0.0
          %3545 = vmatpush1.msra.mxu0 0.0
          %3546 = vmatprep.subr.mxu0 0.0
          %3547 = vmatpush1.msra.mxu0 0.0
          %3548 = vmatprep.subr.mxu0 0.0
          %3549 = vmatpush1.msra.mxu0 0.0
          %3550 = vmatprep.subr.mxu0 0.0
          %3551 = vmatpush1.msra.mxu0 0.0
          %3552 = vmatprep.subr.mxu0 0.0
          %3553 = vmatpush1.msra.mxu0 0.0
          %3554 = vmatprep.subr.mxu0 0.0
          %3555 = vmatpush1.msra.mxu0 0.0
          %3556 = vmatprep.subr.mxu0 0.0
          %3557 = vmatpush1.msra.mxu0 0.0
          %3558 = vmatprep.subr.mxu0 0.0
          %3559 = vmatpush1.msra.mxu0 0.0
          %3560 = vmatprep.subr.mxu0 0.0
          %3561 = vmatpush1.msra.mxu0 0.0
          %3562 = vmatprep.subr.mxu0 0.0
          %3563 = vmatpush1.msra.mxu0 0.0
          %3564 = vmatprep.subr.mxu0 0.0
          %3565 = vmatpush1.msra.mxu0 0.0
          %3566 = vmatprep.subr.mxu0 0.0
          %3567 = vmatpush1.msra.mxu0 0.0
          %3568 = vmatprep.subr.mxu0 0.0
          %3569 = vmatpush1.msra.mxu0 0.0
          %3570 = vmatprep.subr.mxu0 0.0
          %3571 = vmatpush1.msra.mxu0 0.0
          %3572 = vmatprep.subr.mxu0 0.0
          %3573 = vmatpush1.msra.mxu0 0.0
          %3574 = vmatprep.subr.mxu0 0.0
          %3575 = vmatpush1.msra.mxu0 0.0
          %3576 = vmatprep.subr.mxu0 0.0
          %3577 = vmatpush1.msra.mxu0 0.0
          %3578 = vmatprep.subr.mxu0 0.0
          %3579 = vmatpush1.msra.mxu0 0.0
          %3580 = vmatprep.subr.mxu0 0.0
          %3581 = vmatpush1.msra.mxu0 0.0
          %3582 = vmatprep.subr.mxu0 0.0
          %3583 = vmatpush1.msra.mxu0 0.0
          %3584 = vmatprep.subr.mxu0 0.0
          %3585 = vmatpush1.msra.mxu0 0.0
          %3586 = vmatprep.mubr.f32.mxu0 0.0
          %3587 = vmatmul.mubr.f32.gmra.mrb[0].mxu0 %v2963
          %v3588 = vpop.f32.mrb[0].mxu0
          %v3589 = vadd.f32 0.0, %v3588
          %v3590 = vpop.f32.mrb[0].mxu0
          %v3591 = vadd.f32 0.0, %v3590
          %3592 = vdwg.mxu0
          %v3593 = vadd.f32 %v3589, %v3039
          %v3594 = vadd.f32 %v3591, %v3039
          %v3595 = vmax.f32 %v3593, 0.0
          %v3596 = vmax.f32 %v3594, 0.0
          %v3597 = vadd.f32 %v3595, 0.0
          %v3598 = vadd.f32 %v3596, 0.0
          %s3599 = scalar_lea.vmem %s301, 32 [#allocation4]
          %v3600 = vld [vmem:[%s3599] sm:$0xff]
          %v3601 = vld [vmem:[%s3599 + $0x8] sm:$0xff]
          %s3602 = scalar_lea.vmem %s310, 1280 [#allocation7]
          %v3603 = vld [vmem:[%s3602] sm:$0xff]
          %v3604 = vld [vmem:[%s3602 + $0x8] sm:$0xff]
          %v3605 = vld [vmem:[%s3602 + $0x10] sm:$0xff]
          %v3606 = vld [vmem:[%s3602 + $0x18] sm:$0xff]
          %v3607 = vld [vmem:[%s3602 + $0x20] sm:$0xff]
          %v3608 = vld [vmem:[%s3602 + $0x28] sm:$0xff]
          %v3609 = vld [vmem:[%s3602 + $0x30] sm:$0xff]
          %v3610 = vld [vmem:[%s3602 + $0x38] sm:$0xff]
          %v3611 = vld [vmem:[%s3602 + $0x40] sm:$0xff]
          %v3612 = vld [vmem:[%s3602 + $0x48] sm:$0xff]
          %v3613 = vld [vmem:[%s3602 + $0x50] sm:$0xff]
          %v3614 = vld [vmem:[%s3602 + $0x58] sm:$0xff]
          %v3615 = vld [vmem:[%s3602 + $0x60] sm:$0xff]
          %v3616 = vld [vmem:[%s3602 + $0x68] sm:$0xff]
          %v3617 = vld [vmem:[%s3602 + $0x70] sm:$0xff]
          %v3618 = vld [vmem:[%s3602 + $0x78] sm:$0xff]
          %v3619 = vld [vmem:[%s3602 + $0x80] sm:$0xff]
          %v3620 = vld [vmem:[%s3602 + $0x88] sm:$0xff]
          %v3621 = vld [vmem:[%s3602 + $0x90] sm:$0xff]
          %v3622 = vld [vmem:[%s3602 + $0x98] sm:$0xff]
          %v3623 = vld [vmem:[%s3602 + $0xa0] sm:$0xff]
          %v3624 = vld [vmem:[%s3602 + $0xa8] sm:$0xff]
          %v3625 = vld [vmem:[%s3602 + $0xb0] sm:$0xff]
          %v3626 = vld [vmem:[%s3602 + $0xb8] sm:$0xff]
          %v3627 = vld [vmem:[%s3602 + $0xc0] sm:$0xff]
          %v3628 = vld [vmem:[%s3602 + $0xc8] sm:$0xff]
          %v3629 = vld [vmem:[%s3602 + $0xd0] sm:$0xff]
          %v3630 = vld [vmem:[%s3602 + $0xd8] sm:$0xff]
          %v3631 = vld [vmem:[%s3602 + $0xe0] sm:$0xff]
          %v3632 = vld [vmem:[%s3602 + $0xe8] sm:$0xff]
          %v3633 = vld [vmem:[%s3602 + $0xf0] sm:$0xff]
          %v3634 = vld [vmem:[%s3602 + $0xf8] sm:$0xff]
          %v3637 = vunpack.c.l.b16 %v3600
          %v3638 = vunpack.c.h.b16 %v3600
          %v3639 = vunpack.c.l.b16 %v3601
          %v3640 = vunpack.c.h.b16 %v3601
          %v3641 = vpack.c.b16 %v3639, %v3637
          %v3642 = vpack.c.b16 %v3640, %v3638
          %v3677 = vunpack.c.l.b16 %v3603
          %v3678 = vunpack.c.h.b16 %v3603
          %v3679 = vunpack.c.l.b16 %v3604
          %v3680 = vunpack.c.h.b16 %v3604
          %v3681 = vunpack.c.l.b16 %v3605
          %v3682 = vunpack.c.h.b16 %v3605
          %v3683 = vunpack.c.l.b16 %v3606
          %v3684 = vunpack.c.h.b16 %v3606
          %v3685 = vunpack.c.l.b16 %v3607
          %v3686 = vunpack.c.h.b16 %v3607
          %v3687 = vunpack.c.l.b16 %v3608
          %v3688 = vunpack.c.h.b16 %v3608
          %v3689 = vunpack.c.l.b16 %v3609
          %v3690 = vunpack.c.h.b16 %v3609
          %v3691 = vunpack.c.l.b16 %v3610
          %v3692 = vunpack.c.h.b16 %v3610
          %v3693 = vunpack.c.l.b16 %v3611
          %v3694 = vunpack.c.h.b16 %v3611
          %v3695 = vunpack.c.l.b16 %v3612
          %v3696 = vunpack.c.h.b16 %v3612
          %v3697 = vunpack.c.l.b16 %v3613
          %v3698 = vunpack.c.h.b16 %v3613
          %v3699 = vunpack.c.l.b16 %v3614
          %v3700 = vunpack.c.h.b16 %v3614
          %v3701 = vunpack.c.l.b16 %v3615
          %v3702 = vunpack.c.h.b16 %v3615
          %v3703 = vunpack.c.l.b16 %v3616
          %v3704 = vunpack.c.h.b16 %v3616
          %v3705 = vunpack.c.l.b16 %v3617
          %v3706 = vunpack.c.h.b16 %v3617
          %v3707 = vunpack.c.l.b16 %v3618
          %v3708 = vunpack.c.h.b16 %v3618
          %v3709 = vunpack.c.l.b16 %v3619
          %v3710 = vunpack.c.h.b16 %v3619
          %v3711 = vunpack.c.l.b16 %v3620
          %v3712 = vunpack.c.h.b16 %v3620
          %v3713 = vunpack.c.l.b16 %v3621
          %v3714 = vunpack.c.h.b16 %v3621
          %v3715 = vunpack.c.l.b16 %v3622
          %v3716 = vunpack.c.h.b16 %v3622
          %v3717 = vunpack.c.l.b16 %v3623
          %v3718 = vunpack.c.h.b16 %v3623
          %v3719 = vunpack.c.l.b16 %v3624
          %v3720 = vunpack.c.h.b16 %v3624
          %v3721 = vunpack.c.l.b16 %v3625
          %v3722 = vunpack.c.h.b16 %v3625
          %v3723 = vunpack.c.l.b16 %v3626
          %v3724 = vunpack.c.h.b16 %v3626
          %v3725 = vunpack.c.l.b16 %v3627
          %v3726 = vunpack.c.h.b16 %v3627
          %v3727 = vunpack.c.l.b16 %v3628
          %v3728 = vunpack.c.h.b16 %v3628
          %v3729 = vunpack.c.l.b16 %v3629
          %v3730 = vunpack.c.h.b16 %v3629
          %v3731 = vunpack.c.l.b16 %v3630
          %v3732 = vunpack.c.h.b16 %v3630
          %v3733 = vunpack.c.l.b16 %v3631
          %v3734 = vunpack.c.h.b16 %v3631
          %v3735 = vunpack.c.l.b16 %v3632
          %v3736 = vunpack.c.h.b16 %v3632
          %v3737 = vunpack.c.l.b16 %v3633
          %v3738 = vunpack.c.h.b16 %v3633
          %v3739 = vunpack.c.l.b16 %v3634
          %v3740 = vunpack.c.h.b16 %v3634
          %v3741 = vpack.c.b16 %v3679, %v3677
          %v3742 = vpack.c.b16 %v3680, %v3678
          %v3743 = vpack.c.b16 %v3683, %v3681
          %v3744 = vpack.c.b16 %v3684, %v3682
          %v3745 = vpack.c.b16 %v3687, %v3685
          %v3746 = vpack.c.b16 %v3688, %v3686
          %v3747 = vpack.c.b16 %v3691, %v3689
          %v3748 = vpack.c.b16 %v3692, %v3690
          %v3749 = vpack.c.b16 %v3695, %v3693
          %v3750 = vpack.c.b16 %v3696, %v3694
          %v3751 = vpack.c.b16 %v3699, %v3697
          %v3752 = vpack.c.b16 %v3700, %v3698
          %v3753 = vpack.c.b16 %v3703, %v3701
          %v3754 = vpack.c.b16 %v3704, %v3702
          %v3755 = vpack.c.b16 %v3707, %v3705
          %v3756 = vpack.c.b16 %v3708, %v3706
          %v3757 = vpack.c.b16 %v3711, %v3709
          %v3758 = vpack.c.b16 %v3712, %v3710
          %v3759 = vpack.c.b16 %v3715, %v3713
          %v3760 = vpack.c.b16 %v3716, %v3714
          %v3761 = vpack.c.b16 %v3719, %v3717
          %v3762 = vpack.c.b16 %v3720, %v3718
          %v3763 = vpack.c.b16 %v3723, %v3721
          %v3764 = vpack.c.b16 %v3724, %v3722
          %v3765 = vpack.c.b16 %v3727, %v3725
          %v3766 = vpack.c.b16 %v3728, %v3726
          %v3767 = vpack.c.b16 %v3731, %v3729
          %v3768 = vpack.c.b16 %v3732, %v3730
          %v3769 = vpack.c.b16 %v3735, %v3733
          %v3770 = vpack.c.b16 %v3736, %v3734
          %v3771 = vpack.c.b16 %v3739, %v3737
          %v3772 = vpack.c.b16 %v3740, %v3738
          %3805 = vmatprep.subr.bf16.mxu0 %v3742
          %3806 = vmatpush1.bf16.msra.mxu0 %v3741
          %3807 = vmatprep.subr.bf16.mxu0 %v3744
          %3808 = vmatpush1.bf16.msra.mxu0 %v3743
          %3809 = vmatprep.subr.bf16.mxu0 %v3746
          %3810 = vmatpush1.bf16.msra.mxu0 %v3745
          %3811 = vmatprep.subr.bf16.mxu0 %v3748
          %3812 = vmatpush1.bf16.msra.mxu0 %v3747
          %3813 = vmatprep.subr.bf16.mxu0 %v3750
          %3814 = vmatpush1.bf16.msra.mxu0 %v3749
          %3815 = vmatprep.subr.bf16.mxu0 %v3752
          %3816 = vmatpush1.bf16.msra.mxu0 %v3751
          %3817 = vmatprep.subr.bf16.mxu0 %v3754
          %3818 = vmatpush1.bf16.msra.mxu0 %v3753
          %3819 = vmatprep.subr.bf16.mxu0 %v3756
          %3820 = vmatpush1.bf16.msra.mxu0 %v3755
          %3821 = vmatprep.subr.bf16.mxu0 %v3758
          %3822 = vmatpush1.bf16.msra.mxu0 %v3757
          %3823 = vmatprep.subr.bf16.mxu0 %v3760
          %3824 = vmatpush1.bf16.msra.mxu0 %v3759
          %3825 = vmatprep.subr.bf16.mxu0 %v3762
          %3826 = vmatpush1.bf16.msra.mxu0 %v3761
          %3827 = vmatprep.subr.bf16.mxu0 %v3764
          %3828 = vmatpush1.bf16.msra.mxu0 %v3763
          %3829 = vmatprep.subr.bf16.mxu0 %v3766
          %3830 = vmatpush1.bf16.msra.mxu0 %v3765
          %3831 = vmatprep.subr.bf16.mxu0 %v3768
          %3832 = vmatpush1.bf16.msra.mxu0 %v3767
          %3833 = vmatprep.subr.bf16.mxu0 %v3770
          %3834 = vmatpush1.bf16.msra.mxu0 %v3769
          %3835 = vmatprep.subr.bf16.mxu0 %v3772
          %3836 = vmatpush1.bf16.msra.mxu0 %v3771
          %3837 = vmatprep.mubr.bf16.mxu0 %v3642
          %3838 = vmatmul.mubr.bf16.gmra.mrb[0].mxu0 %v3641
          %v3839 = vpop.f32.mrb[0].mxu0
          %v3840 = vadd.f32 0.0, %v3839
          %v3841 = vpop.f32.mrb[0].mxu0
          %v3842 = vadd.f32 0.0, %v3841
          %v3843 = vpop.f32.mrb[0].mxu0
          %v3844 = vadd.f32 0.0, %v3843
          %v3845 = vpop.f32.mrb[0].mxu0
          %v3846 = vadd.f32 0.0, %v3845
          %3847 = vdwg.mxu0
          %3848 = vmatprep.subr.mxu0 %v3842
          %3849 = vmatpush1.msra.mxu0 %v3840
          %3850 = vmatprep.subr.mxu0 %v3846
          %3851 = vmatpush1.msra.mxu0 %v3844
          %3852 = vmatprep.subr.mxu0 0.0
          %3853 = vmatpush1.msra.mxu0 0.0
          %3854 = vmatprep.subr.mxu0 0.0
          %3855 = vmatpush1.msra.mxu0 0.0
          %3856 = vmatprep.subr.mxu0 0.0
          %3857 = vmatpush1.msra.mxu0 0.0
          %3858 = vmatprep.subr.mxu0 0.0
          %3859 = vmatpush1.msra.mxu0 0.0
          %3860 = vmatprep.subr.mxu0 0.0
          %3861 = vmatpush1.msra.mxu0 0.0
          %3862 = vmatprep.subr.mxu0 0.0
          %3863 = vmatpush1.msra.mxu0 0.0
          %3864 = vmatprep.subr.mxu0 0.0
          %3865 = vmatpush1.msra.mxu0 0.0
          %3866 = vmatprep.subr.mxu0 0.0
          %3867 = vmatpush1.msra.mxu0 0.0
          %3868 = vmatprep.subr.mxu0 0.0
          %3869 = vmatpush1.msra.mxu0 0.0
          %3870 = vmatprep.subr.mxu0 0.0
          %3871 = vmatpush1.msra.mxu0 0.0
          %3872 = vmatprep.subr.mxu0 0.0
          %3873 = vmatpush1.msra.mxu0 0.0
          %3874 = vmatprep.subr.mxu0 0.0
          %3875 = vmatpush1.msra.mxu0 0.0
          %3876 = vmatprep.subr.mxu0 0.0
          %3877 = vmatpush1.msra.mxu0 0.0
          %3878 = vmatprep.subr.mxu0 0.0
          %3879 = vmatpush1.msra.mxu0 0.0
          %3880 = vmatprep.subr.mxu0 0.0
          %3881 = vmatpush1.msra.mxu0 0.0
          %3882 = vmatprep.subr.mxu0 0.0
          %3883 = vmatpush1.msra.mxu0 0.0
          %3884 = vmatprep.subr.mxu0 0.0
          %3885 = vmatpush1.msra.mxu0 0.0
          %3886 = vmatprep.subr.mxu0 0.0
          %3887 = vmatpush1.msra.mxu0 0.0
          %3888 = vmatprep.subr.mxu0 0.0
          %3889 = vmatpush1.msra.mxu0 0.0
          %3890 = vmatprep.subr.mxu0 0.0
          %3891 = vmatpush1.msra.mxu0 0.0
          %3892 = vmatprep.subr.mxu0 0.0
          %3893 = vmatpush1.msra.mxu0 0.0
          %3894 = vmatprep.subr.mxu0 0.0
          %3895 = vmatpush1.msra.mxu0 0.0
          %3896 = vmatprep.subr.mxu0 0.0
          %3897 = vmatpush1.msra.mxu0 0.0
          %3898 = vmatprep.subr.mxu0 0.0
          %3899 = vmatpush1.msra.mxu0 0.0
          %3900 = vmatprep.subr.mxu0 0.0
          %3901 = vmatpush1.msra.mxu0 0.0
          %3902 = vmatprep.subr.mxu0 0.0
          %3903 = vmatpush1.msra.mxu0 0.0
          %3904 = vmatprep.subr.mxu0 0.0
          %3905 = vmatpush1.msra.mxu0 0.0
          %3906 = vmatprep.subr.mxu0 0.0
          %3907 = vmatpush1.msra.mxu0 0.0
          %3908 = vmatprep.subr.mxu0 0.0
          %3909 = vmatpush1.msra.mxu0 0.0
          %3910 = vmatprep.subr.mxu0 0.0
          %3911 = vmatpush1.msra.mxu0 0.0
          %3912 = vmatprep.mubr.f32.mxu0 0.0
          %3913 = vmatmul.mubr.f32.gmra.mrb[0].mxu0 %v2713
          %v3914 = vpop.f32.mrb[0].mxu0
          %v3915 = vadd.f32 %v2454, %v3914
          %v3916 = vpop.f32.mrb[0].mxu0
          %v3917 = vadd.f32 %v2456, %v3916
          %3918 = vmatprep.mubr.f32.mxu0 0.0
          %3919 = vmatmul.mubr.f32.gmra.mrb[0].mxu0 %v2716
          %v3920 = vpop.f32.mrb[0].mxu0
          %v3921 = vadd.f32 %v2460, %v3920
          %v3922 = vpop.f32.mrb[0].mxu0
          %v3923 = vadd.f32 %v2462, %v3922
          %3924 = vdwg.mxu0
          %v3925 = vmax.f32 %v3915, 0.0
          %v3926 = vmax.f32 %v3917, 0.0
          %v3927 = vmax.f32 %v3921, 0.0
          %v3928 = vmax.f32 %v3923, 0.0
          %3929 = vmatprep.subr.mxu0 %v3926
          %3930 = vmatpush1.msra.mxu0 %v3925
          %3931 = vmatprep.subr.mxu0 %v3928
          %3932 = vmatpush1.msra.mxu0 %v3927
          %3933 = vmatprep.subr.mxu0 0.0
          %3934 = vmatpush1.msra.mxu0 0.0
          %3935 = vmatprep.subr.mxu0 0.0
          %3936 = vmatpush1.msra.mxu0 0.0
          %3937 = vmatprep.subr.mxu0 0.0
          %3938 = vmatpush1.msra.mxu0 0.0
          %3939 = vmatprep.subr.mxu0 0.0
          %3940 = vmatpush1.msra.mxu0 0.0
          %3941 = vmatprep.subr.mxu0 0.0
          %3942 = vmatpush1.msra.mxu0 0.0
          %3943 = vmatprep.subr.mxu0 0.0
          %3944 = vmatpush1.msra.mxu0 0.0
          %3945 = vmatprep.subr.mxu0 0.0
          %3946 = vmatpush1.msra.mxu0 0.0
          %3947 = vmatprep.subr.mxu0 0.0
          %3948 = vmatpush1.msra.mxu0 0.0
          %3949 = vmatprep.subr.mxu0 0.0
          %3950 = vmatpush1.msra.mxu0 0.0
          %3951 = vmatprep.subr.mxu0 0.0
          %3952 = vmatpush1.msra.mxu0 0.0
          %3953 = vmatprep.subr.mxu0 0.0
          %3954 = vmatpush1.msra.mxu0 0.0
          %3955 = vmatprep.subr.mxu0 0.0
          %3956 = vmatpush1.msra.mxu0 0.0
          %3957 = vmatprep.subr.mxu0 0.0
          %3958 = vmatpush1.msra.mxu0 0.0
          %3959 = vmatprep.subr.mxu0 0.0
          %3960 = vmatpush1.msra.mxu0 0.0
          %3961 = vmatprep.subr.mxu0 0.0
          %3962 = vmatpush1.msra.mxu0 0.0
          %3963 = vmatprep.subr.mxu0 0.0
          %3964 = vmatpush1.msra.mxu0 0.0
          %3965 = vmatprep.subr.mxu0 0.0
          %3966 = vmatpush1.msra.mxu0 0.0
          %3967 = vmatprep.subr.mxu0 0.0
          %3968 = vmatpush1.msra.mxu0 0.0
          %3969 = vmatprep.subr.mxu0 0.0
          %3970 = vmatpush1.msra.mxu0 0.0
          %3971 = vmatprep.subr.mxu0 0.0
          %3972 = vmatpush1.msra.mxu0 0.0
          %3973 = vmatprep.subr.mxu0 0.0
          %3974 = vmatpush1.msra.mxu0 0.0
          %3975 = vmatprep.subr.mxu0 0.0
          %3976 = vmatpush1.msra.mxu0 0.0
          %3977 = vmatprep.subr.mxu0 0.0
          %3978 = vmatpush1.msra.mxu0 0.0
          %3979 = vmatprep.subr.mxu0 0.0
          %3980 = vmatpush1.msra.mxu0 0.0
          %3981 = vmatprep.subr.mxu0 0.0
          %3982 = vmatpush1.msra.mxu0 0.0
          %3983 = vmatprep.subr.mxu0 0.0
          %3984 = vmatpush1.msra.mxu0 0.0
          %3985 = vmatprep.subr.mxu0 0.0
          %3986 = vmatpush1.msra.mxu0 0.0
          %3987 = vmatprep.subr.mxu0 0.0
          %3988 = vmatpush1.msra.mxu0 0.0
          %3989 = vmatprep.subr.mxu0 0.0
          %3990 = vmatpush1.msra.mxu0 0.0
          %3991 = vmatprep.subr.mxu0 0.0
          %3992 = vmatpush1.msra.mxu0 0.0
          %3993 = vmatprep.mubr.f32.mxu0 0.0
          %3994 = vmatmul.mubr.f32.gmra.mrb[0].mxu0 %v2805
          %v3995 = vpop.f32.mrb[0].mxu0
          %v3996 = vadd.f32 %v2802, %v3995
          %v3997 = vpop.f32.mrb[0].mxu0
          %v3998 = vadd.f32 %v2802, %v3997
          %3999 = vdwg.mxu0
          %v4000 = vmax.f32 %v3996, 0.0
          %v4001 = vmax.f32 %v3998, 0.0
          %4002 = vmatprep.subr.mxu0 %v4001
          %4003 = vmatpush1.msra.mxu0 %v4000
          %4004 = vmatprep.subr.mxu0 0.0
          %4005 = vmatpush1.msra.mxu0 0.0
          %4006 = vmatprep.subr.mxu0 0.0
          %4007 = vmatpush1.msra.mxu0 0.0
          %4008 = vmatprep.subr.mxu0 0.0
          %4009 = vmatpush1.msra.mxu0 0.0
          %4010 = vmatprep.subr.mxu0 0.0
          %4011 = vmatpush1.msra.mxu0 0.0
          %4012 = vmatprep.subr.mxu0 0.0
          %4013 = vmatpush1.msra.mxu0 0.0
          %4014 = vmatprep.subr.mxu0 0.0
          %4015 = vmatpush1.msra.mxu0 0.0
          %4016 = vmatprep.subr.mxu0 0.0
          %4017 = vmatpush1.msra.mxu0 0.0
          %4018 = vmatprep.subr.mxu0 0.0
          %4019 = vmatpush1.msra.mxu0 0.0
          %4020 = vmatprep.subr.mxu0 0.0
          %4021 = vmatpush1.msra.mxu0 0.0
          %4022 = vmatprep.subr.mxu0 0.0
          %4023 = vmatpush1.msra.mxu0 0.0
          %4024 = vmatprep.subr.mxu0 0.0
          %4025 = vmatpush1.msra.mxu0 0.0
          %4026 = vmatprep.subr.mxu0 0.0
          %4027 = vmatpush1.msra.mxu0 0.0
          %4028 = vmatprep.subr.mxu0 0.0
          %4029 = vmatpush1.msra.mxu0 0.0
          %4030 = vmatprep.subr.mxu0 0.0
          %4031 = vmatpush1.msra.mxu0 0.0
          %4032 = vmatprep.subr.mxu0 0.0
          %4033 = vmatpush1.msra.mxu0 0.0
          %4034 = vmatprep.subr.mxu0 0.0
          %4035 = vmatpush1.msra.mxu0 0.0
          %4036 = vmatprep.subr.mxu0 0.0
          %4037 = vmatpush1.msra.mxu0 0.0
          %4038 = vmatprep.subr.mxu0 0.0
          %4039 = vmatpush1.msra.mxu0 0.0
          %4040 = vmatprep.subr.mxu0 0.0
          %4041 = vmatpush1.msra.mxu0 0.0
          %4042 = vmatprep.subr.mxu0 0.0
          %4043 = vmatpush1.msra.mxu0 0.0
          %4044 = vmatprep.subr.mxu0 0.0
          %4045 = vmatpush1.msra.mxu0 0.0
          %4046 = vmatprep.subr.mxu0 0.0
          %4047 = vmatpush1.msra.mxu0 0.0
          %4048 = vmatprep.subr.mxu0 0.0
          %4049 = vmatpush1.msra.mxu0 0.0
          %4050 = vmatprep.subr.mxu0 0.0
          %4051 = vmatpush1.msra.mxu0 0.0
          %4052 = vmatprep.subr.mxu0 0.0
          %4053 = vmatpush1.msra.mxu0 0.0
          %4054 = vmatprep.subr.mxu0 0.0
          %4055 = vmatpush1.msra.mxu0 0.0
          %4056 = vmatprep.subr.mxu0 0.0
          %4057 = vmatpush1.msra.mxu0 0.0
          %4058 = vmatprep.subr.mxu0 0.0
          %4059 = vmatpush1.msra.mxu0 0.0
          %4060 = vmatprep.subr.mxu0 0.0
          %4061 = vmatpush1.msra.mxu0 0.0
          %4062 = vmatprep.subr.mxu0 0.0
          %4063 = vmatpush1.msra.mxu0 0.0
          %4064 = vmatprep.subr.mxu0 0.0
          %4065 = vmatpush1.msra.mxu0 0.0
          %4066 = vmatprep.mubr.f32.mxu0 0.0
          %4067 = vmatmul.mubr.f32.gmra.mrb[0].mxu0 %v2887
          %v4068 = vpop.f32.mrb[0].mxu0
          %v4069 = vadd.f32 %v2883, %v4068
          %v4070 = vpop.f32.mrb[0].mxu0
          %v4071 = vadd.f32 %v2883, %v4070
          %4072 = vdwg.mxu0
          %v4073 = vmax.f32 %v4069, 0.0
          %v4074 = vmax.f32 %v4071, 0.0
          %4075 = vmatprep.subr.mxu0 %v4074
          %4076 = vmatpush1.msra.mxu0 %v4073
          %4077 = vmatprep.subr.mxu0 0.0
          %4078 = vmatpush1.msra.mxu0 0.0
          %4079 = vmatprep.subr.mxu0 0.0
          %4080 = vmatpush1.msra.mxu0 0.0
          %4081 = vmatprep.subr.mxu0 0.0
          %4082 = vmatpush1.msra.mxu0 0.0
          %4083 = vmatprep.subr.mxu0 0.0
          %4084 = vmatpush1.msra.mxu0 0.0
          %4085 = vmatprep.subr.mxu0 0.0
          %4086 = vmatpush1.msra.mxu0 0.0
          %4087 = vmatprep.subr.mxu0 0.0
          %4088 = vmatpush1.msra.mxu0 0.0
          %4089 = vmatprep.subr.mxu0 0.0
          %4090 = vmatpush1.msra.mxu0 0.0
          %4091 = vmatprep.subr.mxu0 0.0
          %4092 = vmatpush1.msra.mxu0 0.0
          %4093 = vmatprep.subr.mxu0 0.0
          %4094 = vmatpush1.msra.mxu0 0.0
          %4095 = vmatprep.subr.mxu0 0.0
          %4096 = vmatpush1.msra.mxu0 0.0
          %4097 = vmatprep.subr.mxu0 0.0
          %4098 = vmatpush1.msra.mxu0 0.0
          %4099 = vmatprep.subr.mxu0 0.0
          %4100 = vmatpush1.msra.mxu0 0.0
          %4101 = vmatprep.subr.mxu0 0.0
          %4102 = vmatpush1.msra.mxu0 0.0
          %4103 = vmatprep.subr.mxu0 0.0
          %4104 = vmatpush1.msra.mxu0 0.0
          %4105 = vmatprep.subr.mxu0 0.0
          %4106 = vmatpush1.msra.mxu0 0.0
          %4107 = vmatprep.subr.mxu0 0.0
          %4108 = vmatpush1.msra.mxu0 0.0
          %4109 = vmatprep.subr.mxu0 0.0
          %4110 = vmatpush1.msra.mxu0 0.0
          %4111 = vmatprep.subr.mxu0 0.0
          %4112 = vmatpush1.msra.mxu0 0.0
          %4113 = vmatprep.subr.mxu0 0.0
          %4114 = vmatpush1.msra.mxu0 0.0
          %4115 = vmatprep.subr.mxu0 0.0
          %4116 = vmatpush1.msra.mxu0 0.0
          %4117 = vmatprep.subr.mxu0 0.0
          %4118 = vmatpush1.msra.mxu0 0.0
          %4119 = vmatprep.subr.mxu0 0.0
          %4120 = vmatpush1.msra.mxu0 0.0
          %4121 = vmatprep.subr.mxu0 0.0
          %4122 = vmatpush1.msra.mxu0 0.0
          %4123 = vmatprep.subr.mxu0 0.0
          %4124 = vmatpush1.msra.mxu0 0.0
          %4125 = vmatprep.subr.mxu0 0.0
          %4126 = vmatpush1.msra.mxu0 0.0
          %4127 = vmatprep.subr.mxu0 0.0
          %4128 = vmatpush1.msra.mxu0 0.0
          %4129 = vmatprep.subr.mxu0 0.0
          %4130 = vmatpush1.msra.mxu0 0.0
          %4131 = vmatprep.subr.mxu0 0.0
          %4132 = vmatpush1.msra.mxu0 0.0
          %4133 = vmatprep.subr.mxu0 0.0
          %4134 = vmatpush1.msra.mxu0 0.0
          %4135 = vmatprep.subr.mxu0 0.0
          %4136 = vmatpush1.msra.mxu0 0.0
          %4137 = vmatprep.subr.mxu0 0.0
          %4138 = vmatpush1.msra.mxu0 0.0
          %4139 = vmatprep.mubr.f32.mxu0 0.0
          %4140 = vmatmul.mubr.f32.gmra.mrb[0].mxu0 %v2963
          %v4141 = vpop.f32.mrb[0].mxu0
          %v4142 = vadd.f32 0.0, %v4141
          %v4143 = vpop.f32.mrb[0].mxu0
          %v4144 = vadd.f32 0.0, %v4143
          %4145 = vdwg.mxu0
          %v4146 = vadd.f32 %v4142, %v3039
          %v4147 = vadd.f32 %v4144, %v3039
          %v4148 = vmax.f32 %v4146, 0.0
          %v4149 = vmax.f32 %v4147, 0.0
          %p4150 = scmp.gt.s32.totalorder %s356, 2
          %s4151 = scalar_select %p4150, 0.0, -1e+30
          %v4152 = vstv %s4151
          %v4153 = vadd.f32 %v4148, %v4152
          %v4154 = vadd.f32 %v4149, %v4152
          %v4155 = vmax.f32 %v3047, %v3597
          %v4156 = vmax.f32 %v3048, %v3598
          %v4157 = vmax.f32 %v4155, %v4153
          %v4158 = vmax.f32 %v4156, %v4154
          %v4159 = vsub.f32 %v3047, %v4157
          %v4160 = vsub.f32 %v3048, %v4158
          %v4161 = vmul.f32 %v4159, 1.442695
          %v4162 = vpow.pop %v4161
          %v4163 = vmul.f32 %v4160, 1.442695
          %v4164 = vpow.pop %v4163
          %v4165 = vsub.f32 %v3597, %v4157
          %v4166 = vsub.f32 %v3598, %v4158
          %v4167 = vmul.f32 %v4165, 1.442695
          %v4168 = vpow.pop %v4167
          %v4169 = vmul.f32 %v4166, 1.442695
          %v4170 = vpow.pop %v4169
          %v4171 = vsub.f32 %v4153, %v4157
          %v4172 = vsub.f32 %v4154, %v4158
          %v4173 = vmul.f32 %v4171, 1.442695
          %v4174 = vpow.pop %v4173
          %v4175 = vmul.f32 %v4172, 1.442695
          %v4176 = vpow.pop %v4175
          %v4177 = vadd.f32 %v4162, %v4168
          %v4178 = vadd.f32 %v4164, %v4170
          %v4179 = vadd.f32 %v4177, %v4174
          %v4180 = vadd.f32 %v4178, %v4176
          %v4181 = vrcp.pop %v4179
          %v4182 = vrcp.pop %v4180
          %v4183 = vmul.f32 %v4162, %v4181
          %v4184 = vmul.f32 %v4164, %v4182
          %v4185 = vlaneseq
          %v4186 = vshrl.u32 %v4185, 7
          %v4187 = vsub.s32 0, %v4186
          %v4188 = vrot.slane %v4183, %v4187
          %v4189 = vlaneseq
          %v4190 = vshrl.u32 %v4189, 7
          %v4191 = vsub.s32 0, %v4190
          %v4192 = vrot.slane %v4184, %v4191
          %v4193 = vmul.f32 %v2704, %v4188
          %v4194 = vmul.f32 %v2706, %v4192
          %v4195 = vmul.f32 %v2708, %v4188
          %v4196 = vmul.f32 %v2710, %v4192
          %v4197 = vmul.f32 %v4168, %v4181
          %v4198 = vmul.f32 %v4170, %v4182
          %v4199 = vlaneseq
          %v4200 = vshrl.u32 %v4199, 7
          %v4201 = vsub.s32 0, %v4200
          %v4202 = vrot.slane %v4197, %v4201
          %v4203 = vlaneseq
          %v4204 = vshrl.u32 %v4203, 7
          %v4205 = vsub.s32 0, %v4204
          %v4206 = vrot.slane %v4198, %v4205
          %v4207 = vmul.f32 %v3287, %v4202
          %v4208 = vmul.f32 %v3289, %v4206
          %v4209 = vmul.f32 %v3291, %v4202
          %v4210 = vmul.f32 %v3293, %v4206
          %v4211 = vadd.f32 %v4193, %v4207
          %v4212 = vadd.f32 %v4194, %v4208
          %v4213 = vadd.f32 %v4195, %v4209
          %v4214 = vadd.f32 %v4196, %v4210
          %v4215 = vmul.f32 %v4174, %v4181
          %v4216 = vmul.f32 %v4176, %v4182
          %v4217 = vlaneseq
          %v4218 = vshrl.u32 %v4217, 7
          %v4219 = vsub.s32 0, %v4218
          %v4220 = vrot.slane %v4215, %v4219
          %v4221 = vlaneseq
          %v4222 = vshrl.u32 %v4221, 7
          %v4223 = vsub.s32 0, %v4222
          %v4224 = vrot.slane %v4216, %v4223
          %v4225 = vmul.f32 %v3840, %v4220
          %v4226 = vmul.f32 %v3842, %v4224
          %v4227 = vmul.f32 %v3844, %v4220
          %v4228 = vmul.f32 %v3846, %v4224
          %v4229 = vadd.f32 %v4211, %v4225
          %v4230 = vadd.f32 %v4212, %v4226
          %v4231 = vadd.f32 %v4213, %v4227
          %v4232 = vadd.f32 %v4214, %v4228
          %4234 = vset.pattern.permute.xlu0 0
          %4235 = vperm.xlu0 %4234, %v378
          %v4236 = vpop.permute.xlu0 %4235
          %4239 = vset.pattern.permute.xlu0 0
          %4240 = vperm.xlu0 %4239, %v379
          %v4241 = vpop.permute.xlu0 %4240
          %v4244 = vsel %vm2380, %v363, 0
          %v4247 = vsel %vm2380, %v364, 0
          %4249 = vmatprep.subr.mxu0 %v4230
          %4250 = vmatpush1.msra.mxu0 %v4229
          %4251 = vmatprep.subr.mxu0 %v4232
          %4252 = vmatpush1.msra.mxu0 %v4231
          %4253 = vmatprep.subr.mxu0 0.0
          %4254 = vmatpush1.msra.mxu0 0.0
          %4255 = vmatprep.subr.mxu0 0.0
          %4256 = vmatpush1.msra.mxu0 0.0
          %4257 = vmatprep.subr.mxu0 0.0
          %4258 = vmatpush1.msra.mxu0 0.0
          %4259 = vmatprep.subr.mxu0 0.0
          %4260 = vmatpush1.msra.mxu0 0.0
          %4261 = vmatprep.subr.mxu0 0.0
          %4262 = vmatpush1.msra.mxu0 0.0
          %4263 = vmatprep.subr.mxu0 0.0
          %4264 = vmatpush1.msra.mxu0 0.0
          %4265 = vmatprep.subr.mxu0 0.0
          %4266 = vmatpush1.msra.mxu0 0.0
          %4267 = vmatprep.subr.mxu0 0.0
          %4268 = vmatpush1.msra.mxu0 0.0
          %4269 = vmatprep.subr.mxu0 0.0
          %4270 = vmatpush1.msra.mxu0 0.0
          %4271 = vmatprep.subr.mxu0 0.0
          %4272 = vmatpush1.msra.mxu0 0.0
          %4273 = vmatprep.subr.mxu0 0.0
          %4274 = vmatpush1.msra.mxu0 0.0
          %4275 = vmatprep.subr.mxu0 0.0
          %4276 = vmatpush1.msra.mxu0 0.0
          %4277 = vmatprep.subr.mxu0 0.0
          %4278 = vmatpush1.msra.mxu0 0.0
          %4279 = vmatprep.subr.mxu0 0.0
          %4280 = vmatpush1.msra.mxu0 0.0
          %4281 = vmatprep.subr.mxu0 0.0
          %4282 = vmatpush1.msra.mxu0 0.0
          %4283 = vmatprep.subr.mxu0 0.0
          %4284 = vmatpush1.msra.mxu0 0.0
          %4285 = vmatprep.subr.mxu0 0.0
          %4286 = vmatpush1.msra.mxu0 0.0
          %4287 = vmatprep.subr.mxu0 0.0
          %4288 = vmatpush1.msra.mxu0 0.0
          %4289 = vmatprep.subr.mxu0 0.0
          %4290 = vmatpush1.msra.mxu0 0.0
          %4291 = vmatprep.subr.mxu0 0.0
          %4292 = vmatpush1.msra.mxu0 0.0
          %4293 = vmatprep.subr.mxu0 0.0
          %4294 = vmatpush1.msra.mxu0 0.0
          %4295 = vmatprep.subr.mxu0 0.0
          %4296 = vmatpush1.msra.mxu0 0.0
          %4297 = vmatprep.subr.mxu0 0.0
          %4298 = vmatpush1.msra.mxu0 0.0
          %4299 = vmatprep.subr.mxu0 0.0
          %4300 = vmatpush1.msra.mxu0 0.0
          %4301 = vmatprep.subr.mxu0 0.0
          %4302 = vmatpush1.msra.mxu0 0.0
          %4303 = vmatprep.subr.mxu0 0.0
          %4304 = vmatpush1.msra.mxu0 0.0
          %4305 = vmatprep.subr.mxu0 0.0
          %4306 = vmatpush1.msra.mxu0 0.0
          %4307 = vmatprep.subr.mxu0 0.0
          %4308 = vmatpush1.msra.mxu0 0.0
          %4309 = vmatprep.subr.mxu0 0.0
          %4310 = vmatpush1.msra.mxu0 0.0
          %4311 = vmatprep.subr.mxu0 0.0
          %4312 = vmatpush1.msra.mxu0 0.0
          %4313 = vmatprep.mubr.f32.mxu0 0.0
          %4314 = vmatmul.mubr.f32.gmra.mrb[0].mxu0 %v4244
          %v4315 = vpop.f32.mrb[0].mxu0
          %v4316 = vadd.f32 %v4236, %v4315
          %v4317 = vpop.f32.mrb[0].mxu0
          %v4318 = vadd.f32 %v4236, %v4317
          %4319 = vmatprep.mubr.f32.mxu0 0.0
          %4320 = vmatmul.mubr.f32.gmra.mrb[0].mxu0 %v4247
          %v4321 = vpop.f32.mrb[0].mxu0
          %v4322 = vadd.f32 %v4241, %v4321
          %v4323 = vpop.f32.mrb[0].mxu0
          %v4324 = vadd.f32 %v4241, %v4323
          %4325 = vdwg.mxu0
          %s4326 = scalar_lea.vmem %s355, 32 [#allocation13]
          %4327 = vst [vmem:[%s4326] sm:$0xff] %v4316
          %4328 = vst [vmem:[%s4326 + $0x8] sm:$0xff] %v4318
          %4329 = vst [vmem:[%s4326 + $0x10] sm:$0xff] %v4322
          %4330 = vst [vmem:[%s4326 + $0x18] sm:$0xff] %v4324
        $region76: #{tpu_custom_call.1} parent=43 // pred_fallthru
          _
        %p4331 = scmp.le.s32.totalorder %s356, 1
        // Predicated region
        $region77: #{tpu_custom_call.1} parent=43 // pred_check
          %p4332 = pneg %p4331
        $region78: #{tpu_custom_call.1} parent=43 // pred_check_branch
          %4334 = sbr.rel (%p4332) target = $region80
        $region79: #{tpu_custom_call.1} parent=43 // pred_region
          %s4335 = scalar_lea.vmem %s355, 32 [#allocation13]
          %4336 = vst [vmem:[%s4335] sm:$0xff] 0.0
          %4337 = vst [vmem:[%s4335 + $0x8] sm:$0xff] 0.0
          %4338 = vst [vmem:[%s4335 + $0x10] sm:$0xff] 0.0
          %4339 = vst [vmem:[%s4335 + $0x18] sm:$0xff] 0.0
        $region80: #{tpu_custom_call.1} parent=43 // pred_fallthru
          _
        %p4340 = scmp.gt.s32.totalorder %s356, 2
        // Predicated region
        $region81: #{tpu_custom_call.1} parent=43 // pred_check
          %p4341 = pneg %p4340
        $region82: #{tpu_custom_call.1} parent=43 // pred_check_branch
          %4343 = sbr.rel (%p4341) target = $region84
        $region83: #{tpu_custom_call.1} parent=43 // pred_region
          %s4344 = scalar_lea.vmem %s301, 32 [#allocation4]
          %v4345 = vld [vmem:[%s4344] sm:$0xff]
          %v4346 = vld [vmem:[%s4344 + $0x8] sm:$0xff]
          %v4347 = vunpack.c.l.bf16 %v4345
          %v4348 = vunpack.c.h.bf16 %v4345
          %v4349 = vunpack.c.l.bf16 %v4346
          %v4350 = vunpack.c.h.bf16 %v4346
          %4352 = vset.pattern.permute.xlu0 0
          %4353 = vperm.xlu0 %4352, %v369
          %v4354 = vpop.permute.xlu0 %4353
          %4357 = vset.pattern.permute.xlu0 0
          %4358 = vperm.xlu0 %4357, %v370
          %v4359 = vpop.permute.xlu0 %4358
          %vm4361 = vcmask 130048
          %v4363 = vsel %vm4361, %v360, 0
          %v4366 = vsel %vm4361, %v361, 0
          %4368 = vmatprep.subr.mxu0 %v4348
          %4369 = vmatpush1.msra.mxu0 %v4347
          %4370 = vmatprep.subr.mxu0 %v4350
          %4371 = vmatpush1.msra.mxu0 %v4349
          %4372 = vmatprep.subr.mxu0 0.0
          %4373 = vmatpush1.msra.mxu0 0.0
          %4374 = vmatprep.subr.mxu0 0.0
          %4375 = vmatpush1.msra.mxu0 0.0
          %4376 = vmatprep.subr.mxu0 0.0
          %4377 = vmatpush1.msra.mxu0 0.0
          %4378 = vmatprep.subr.mxu0 0.0
          %4379 = vmatpush1.msra.mxu0 0.0
          %4380 = vmatprep.subr.mxu0 0.0
          %4381 = vmatpush1.msra.mxu0 0.0
          %4382 = vmatprep.subr.mxu0 0.0
          %4383 = vmatpush1.msra.mxu0 0.0
          %4384 = vmatprep.subr.mxu0 0.0
          %4385 = vmatpush1.msra.mxu0 0.0
          %4386 = vmatprep.subr.mxu0 0.0
          %4387 = vmatpush1.msra.mxu0 0.0
          %4388 = vmatprep.subr.mxu0 0.0
          %4389 = vmatpush1.msra.mxu0 0.0
          %4390 = vmatprep.subr.mxu0 0.0
          %4391 = vmatpush1.msra.mxu0 0.0
          %4392 = vmatprep.subr.mxu0 0.0
          %4393 = vmatpush1.msra.mxu0 0.0
          %4394 = vmatprep.subr.mxu0 0.0
          %4395 = vmatpush1.msra.mxu0 0.0
          %4396 = vmatprep.subr.mxu0 0.0
          %4397 = vmatpush1.msra.mxu0 0.0
          %4398 = vmatprep.subr.mxu0 0.0
          %4399 = vmatpush1.msra.mxu0 0.0
          %4400 = vmatprep.subr.mxu0 0.0
          %4401 = vmatpush1.msra.mxu0 0.0
          %4402 = vmatprep.subr.mxu0 0.0
          %4403 = vmatpush1.msra.mxu0 0.0
          %4404 = vmatprep.subr.mxu0 0.0
          %4405 = vmatpush1.msra.mxu0 0.0
          %4406 = vmatprep.subr.mxu0 0.0
          %4407 = vmatpush1.msra.mxu0 0.0
          %4408 = vmatprep.subr.mxu0 0.0
          %4409 = vmatpush1.msra.mxu0 0.0
          %4410 = vmatprep.subr.mxu0 0.0
          %4411 = vmatpush1.msra.mxu0 0.0
          %4412 = vmatprep.subr.mxu0 0.0
          %4413 = vmatpush1.msra.mxu0 0.0
          %4414 = vmatprep.subr.mxu0 0.0
          %4415 = vmatpush1.msra.mxu0 0.0
          %4416 = vmatprep.subr.mxu0 0.0
          %4417 = vmatpush1.msra.mxu0 0.0
          %4418 = vmatprep.subr.mxu0 0.0
          %4419 = vmatpush1.msra.mxu0 0.0
          %4420 = vmatprep.subr.mxu0 0.0
          %4421 = vmatpush1.msra.mxu0 0.0
          %4422 = vmatprep.subr.mxu0 0.0
          %4423 = vmatpush1.msra.mxu0 0.0
          %4424 = vmatprep.subr.mxu0 0.0
          %4425 = vmatpush1.msra.mxu0 0.0
          %4426 = vmatprep.subr.mxu0 0.0
          %4427 = vmatpush1.msra.mxu0 0.0
          %4428 = vmatprep.subr.mxu0 0.0
          %4429 = vmatpush1.msra.mxu0 0.0
          %4430 = vmatprep.subr.mxu0 0.0
          %4431 = vmatpush1.msra.mxu0 0.0
          %4432 = vmatprep.mubr.f32.mxu0 0.0
          %4433 = vmatmul.mubr.f32.gmra.mrb[0].mxu0 %v4363
          %v4434 = vpop.f32.mrb[0].mxu0
          %v4435 = vadd.f32 %v4354, %v4434
          %v4436 = vpop.f32.mrb[0].mxu0
          %v4437 = vadd.f32 %v4354, %v4436
          %4438 = vmatprep.mubr.f32.mxu0 0.0
          %4439 = vmatmul.mubr.f32.gmra.mrb[0].mxu0 %v4366
          %v4440 = vpop.f32.mrb[0].mxu0
          %v4441 = vadd.f32 %v4359, %v4440
          %v4442 = vpop.f32.mrb[0].mxu0
          %v4443 = vadd.f32 %v4359, %v4442
          %4444 = vdwg.mxu0
          %v4445 = vld [vmem:[%s301] sm:$0xff]
          %v4446 = vld [vmem:[%s301 + $0x8] sm:$0xff]
          %s4447 = scalar_lea.vmem %s310, 1536 [#allocation7]
          %v4448 = vld [vmem:[%s4447] sm:$0xff]
          %v4449 = vld [vmem:[%s4447 + $0x8] sm:$0xff]
          %v4450 = vld [vmem:[%s4447 + $0x10] sm:$0xff]
          %v4451 = vld [vmem:[%s4447 + $0x18] sm:$0xff]
          %v4452 = vld [vmem:[%s4447 + $0x20] sm:$0xff]
          %v4453 = vld [vmem:[%s4447 + $0x28] sm:$0xff]
          %v4454 = vld [vmem:[%s4447 + $0x30] sm:$0xff]
          %v4455 = vld [vmem:[%s4447 + $0x38] sm:$0xff]
          %v4456 = vld [vmem:[%s4447 + $0x40] sm:$0xff]
          %v4457 = vld [vmem:[%s4447 + $0x48] sm:$0xff]
          %v4458 = vld [vmem:[%s4447 + $0x50] sm:$0xff]
          %v4459 = vld [vmem:[%s4447 + $0x58] sm:$0xff]
          %v4460 = vld [vmem:[%s4447 + $0x60] sm:$0xff]
          %v4461 = vld [vmem:[%s4447 + $0x68] sm:$0xff]
          %v4462 = vld [vmem:[%s4447 + $0x70] sm:$0xff]
          %v4463 = vld [vmem:[%s4447 + $0x78] sm:$0xff]
          %v4464 = vld [vmem:[%s4447 + $0x80] sm:$0xff]
          %v4465 = vld [vmem:[%s4447 + $0x88] sm:$0xff]
          %v4466 = vld [vmem:[%s4447 + $0x90] sm:$0xff]
          %v4467 = vld [vmem:[%s4447 + $0x98] sm:$0xff]
          %v4468 = vld [vmem:[%s4447 + $0xa0] sm:$0xff]
          %v4469 = vld [vmem:[%s4447 + $0xa8] sm:$0xff]
          %v4470 = vld [vmem:[%s4447 + $0xb0] sm:$0xff]
          %v4471 = vld [vmem:[%s4447 + $0xb8] sm:$0xff]
          %v4472 = vld [vmem:[%s4447 + $0xc0] sm:$0xff]
          %v4473 = vld [vmem:[%s4447 + $0xc8] sm:$0xff]
          %v4474 = vld [vmem:[%s4447 + $0xd0] sm:$0xff]
          %v4475 = vld [vmem:[%s4447 + $0xd8] sm:$0xff]
          %v4476 = vld [vmem:[%s4447 + $0xe0] sm:$0xff]
          %v4477 = vld [vmem:[%s4447 + $0xe8] sm:$0xff]
          %v4478 = vld [vmem:[%s4447 + $0xf0] sm:$0xff]
          %v4479 = vld [vmem:[%s4447 + $0xf8] sm:$0xff]
          %v4482 = vunpack.c.l.b16 %v4445
          %v4483 = vunpack.c.h.b16 %v4445
          %v4484 = vunpack.c.l.b16 %v4446
          %v4485 = vunpack.c.h.b16 %v4446
          %v4486 = vpack.c.b16 %v4484, %v4482
          %v4487 = vpack.c.b16 %v4485, %v4483
          %v4522 = vunpack.c.l.b16 %v4448
          %v4523 = vunpack.c.h.b16 %v4448
          %v4524 = vunpack.c.l.b16 %v4449
          %v4525 = vunpack.c.h.b16 %v4449
          %v4526 = vunpack.c.l.b16 %v4450
          %v4527 = vunpack.c.h.b16 %v4450
          %v4528 = vunpack.c.l.b16 %v4451
          %v4529 = vunpack.c.h.b16 %v4451
          %v4530 = vunpack.c.l.b16 %v4452
          %v4531 = vunpack.c.h.b16 %v4452
          %v4532 = vunpack.c.l.b16 %v4453
          %v4533 = vunpack.c.h.b16 %v4453
          %v4534 = vunpack.c.l.b16 %v4454
          %v4535 = vunpack.c.h.b16 %v4454
          %v4536 = vunpack.c.l.b16 %v4455
          %v4537 = vunpack.c.h.b16 %v4455
          %v4538 = vunpack.c.l.b16 %v4456
          %v4539 = vunpack.c.h.b16 %v4456
          %v4540 = vunpack.c.l.b16 %v4457
          %v4541 = vunpack.c.h.b16 %v4457
          %v4542 = vunpack.c.l.b16 %v4458
          %v4543 = vunpack.c.h.b16 %v4458
          %v4544 = vunpack.c.l.b16 %v4459
          %v4545 = vunpack.c.h.b16 %v4459
          %v4546 = vunpack.c.l.b16 %v4460
          %v4547 = vunpack.c.h.b16 %v4460
          %v4548 = vunpack.c.l.b16 %v4461
          %v4549 = vunpack.c.h.b16 %v4461
          %v4550 = vunpack.c.l.b16 %v4462
          %v4551 = vunpack.c.h.b16 %v4462
          %v4552 = vunpack.c.l.b16 %v4463
          %v4553 = vunpack.c.h.b16 %v4463
          %v4554 = vunpack.c.l.b16 %v4464
          %v4555 = vunpack.c.h.b16 %v4464
          %v4556 = vunpack.c.l.b16 %v4465
          %v4557 = vunpack.c.h.b16 %v4465
          %v4558 = vunpack.c.l.b16 %v4466
          %v4559 = vunpack.c.h.b16 %v4466
          %v4560 = vunpack.c.l.b16 %v4467
          %v4561 = vunpack.c.h.b16 %v4467
          %v4562 = vunpack.c.l.b16 %v4468
          %v4563 = vunpack.c.h.b16 %v4468
          %v4564 = vunpack.c.l.b16 %v4469
          %v4565 = vunpack.c.h.b16 %v4469
          %v4566 = vunpack.c.l.b16 %v4470
          %v4567 = vunpack.c.h.b16 %v4470
          %v4568 = vunpack.c.l.b16 %v4471
          %v4569 = vunpack.c.h.b16 %v4471
          %v4570 = vunpack.c.l.b16 %v4472
          %v4571 = vunpack.c.h.b16 %v4472
          %v4572 = vunpack.c.l.b16 %v4473
          %v4573 = vunpack.c.h.b16 %v4473
          %v4574 = vunpack.c.l.b16 %v4474
          %v4575 = vunpack.c.h.b16 %v4474
          %v4576 = vunpack.c.l.b16 %v4475
          %v4577 = vunpack.c.h.b16 %v4475
          %v4578 = vunpack.c.l.b16 %v4476
          %v4579 = vunpack.c.h.b16 %v4476
          %v4580 = vunpack.c.l.b16 %v4477
          %v4581 = vunpack.c.h.b16 %v4477
          %v4582 = vunpack.c.l.b16 %v4478
          %v4583 = vunpack.c.h.b16 %v4478
          %v4584 = vunpack.c.l.b16 %v4479
          %v4585 = vunpack.c.h.b16 %v4479
          %v4586 = vpack.c.b16 %v4524, %v4522
          %v4587 = vpack.c.b16 %v4525, %v4523
          %v4588 = vpack.c.b16 %v4528, %v4526
          %v4589 = vpack.c.b16 %v4529, %v4527
          %v4590 = vpack.c.b16 %v4532, %v4530
          %v4591 = vpack.c.b16 %v4533, %v4531
          %v4592 = vpack.c.b16 %v4536, %v4534
          %v4593 = vpack.c.b16 %v4537, %v4535
          %v4594 = vpack.c.b16 %v4540, %v4538
          %v4595 = vpack.c.b16 %v4541, %v4539
          %v4596 = vpack.c.b16 %v4544, %v4542
          %v4597 = vpack.c.b16 %v4545, %v4543
          %v4598 = vpack.c.b16 %v4548, %v4546
          %v4599 = vpack.c.b16 %v4549, %v4547
          %v4600 = vpack.c.b16 %v4552, %v4550
          %v4601 = vpack.c.b16 %v4553, %v4551
          %v4602 = vpack.c.b16 %v4556, %v4554
          %v4603 = vpack.c.b16 %v4557, %v4555
          %v4604 = vpack.c.b16 %v4560, %v4558
          %v4605 = vpack.c.b16 %v4561, %v4559
          %v4606 = vpack.c.b16 %v4564, %v4562
          %v4607 = vpack.c.b16 %v4565, %v4563
          %v4608 = vpack.c.b16 %v4568, %v4566
          %v4609 = vpack.c.b16 %v4569, %v4567
          %v4610 = vpack.c.b16 %v4572, %v4570
          %v4611 = vpack.c.b16 %v4573, %v4571
          %v4612 = vpack.c.b16 %v4576, %v4574
          %v4613 = vpack.c.b16 %v4577, %v4575
          %v4614 = vpack.c.b16 %v4580, %v4578
          %v4615 = vpack.c.b16 %v4581, %v4579
          %v4616 = vpack.c.b16 %v4584, %v4582
          %v4617 = vpack.c.b16 %v4585, %v4583
          %4650 = vmatprep.subr.bf16.mxu0 %v4587
          %4651 = vmatpush1.bf16.msra.mxu0 %v4586
          %4652 = vmatprep.subr.bf16.mxu0 %v4589
          %4653 = vmatpush1.bf16.msra.mxu0 %v4588
          %4654 = vmatprep.subr.bf16.mxu0 %v4591
          %4655 = vmatpush1.bf16.msra.mxu0 %v4590
          %4656 = vmatprep.subr.bf16.mxu0 %v4593
          %4657 = vmatpush1.bf16.msra.mxu0 %v4592
          %4658 = vmatprep.subr.bf16.mxu0 %v4595
          %4659 = vmatpush1.bf16.msra.mxu0 %v4594
          %4660 = vmatprep.subr.bf16.mxu0 %v4597
          %4661 = vmatpush1.bf16.msra.mxu0 %v4596
          %4662 = vmatprep.subr.bf16.mxu0 %v4599
          %4663 = vmatpush1.bf16.msra.mxu0 %v4598
          %4664 = vmatprep.subr.bf16.mxu0 %v4601
          %4665 = vmatpush1.bf16.msra.mxu0 %v4600
          %4666 = vmatprep.subr.bf16.mxu0 %v4603
          %4667 = vmatpush1.bf16.msra.mxu0 %v4602
          %4668 = vmatprep.subr.bf16.mxu0 %v4605
          %4669 = vmatpush1.bf16.msra.mxu0 %v4604
          %4670 = vmatprep.subr.bf16.mxu0 %v4607
          %4671 = vmatpush1.bf16.msra.mxu0 %v4606
          %4672 = vmatprep.subr.bf16.mxu0 %v4609
          %4673 = vmatpush1.bf16.msra.mxu0 %v4608
          %4674 = vmatprep.subr.bf16.mxu0 %v4611
          %4675 = vmatpush1.bf16.msra.mxu0 %v4610
          %4676 = vmatprep.subr.bf16.mxu0 %v4613
          %4677 = vmatpush1.bf16.msra.mxu0 %v4612
          %4678 = vmatprep.subr.bf16.mxu0 %v4615
          %4679 = vmatpush1.bf16.msra.mxu0 %v4614
          %4680 = vmatprep.subr.bf16.mxu0 %v4617
          %4681 = vmatpush1.bf16.msra.mxu0 %v4616
          %4682 = vmatprep.mubr.bf16.mxu0 %v4487
          %4683 = vmatmul.mubr.bf16.gmra.mrb[0].mxu0 %v4486
          %v4684 = vpop.f32.mrb[0].mxu0
          %v4685 = vadd.f32 0.0, %v4684
          %v4686 = vpop.f32.mrb[0].mxu0
          %v4687 = vadd.f32 0.0, %v4686
          %v4688 = vpop.f32.mrb[0].mxu0
          %v4689 = vadd.f32 0.0, %v4688
          %v4690 = vpop.f32.mrb[0].mxu0
          %v4691 = vadd.f32 0.0, %v4690
          %4692 = vdwg.mxu0
          %v4694 = vsel %vm4361, %v357, 0
          %v4697 = vsel %vm4361, %v358, 0
          %4699 = vmatprep.subr.mxu0 %v4687
          %4700 = vmatpush1.msra.mxu0 %v4685
          %4701 = vmatprep.subr.mxu0 %v4691
          %4702 = vmatpush1.msra.mxu0 %v4689
          %4703 = vmatprep.subr.mxu0 0.0
          %4704 = vmatpush1.msra.mxu0 0.0
          %4705 = vmatprep.subr.mxu0 0.0
          %4706 = vmatpush1.msra.mxu0 0.0
          %4707 = vmatprep.subr.mxu0 0.0
          %4708 = vmatpush1.msra.mxu0 0.0
          %4709 = vmatprep.subr.mxu0 0.0
          %4710 = vmatpush1.msra.mxu0 0.0
          %4711 = vmatprep.subr.mxu0 0.0
          %4712 = vmatpush1.msra.mxu0 0.0
          %4713 = vmatprep.subr.mxu0 0.0
          %4714 = vmatpush1.msra.mxu0 0.0
          %4715 = vmatprep.subr.mxu0 0.0
          %4716 = vmatpush1.msra.mxu0 0.0
          %4717 = vmatprep.subr.mxu0 0.0
          %4718 = vmatpush1.msra.mxu0 0.0
          %4719 = vmatprep.subr.mxu0 0.0
          %4720 = vmatpush1.msra.mxu0 0.0
          %4721 = vmatprep.subr.mxu0 0.0
          %4722 = vmatpush1.msra.mxu0 0.0
          %4723 = vmatprep.subr.mxu0 0.0
          %4724 = vmatpush1.msra.mxu0 0.0
          %4725 = vmatprep.subr.mxu0 0.0
          %4726 = vmatpush1.msra.mxu0 0.0
          %4727 = vmatprep.subr.mxu0 0.0
          %4728 = vmatpush1.msra.mxu0 0.0
          %4729 = vmatprep.subr.mxu0 0.0
          %4730 = vmatpush1.msra.mxu0 0.0
          %4731 = vmatprep.subr.mxu0 0.0
          %4732 = vmatpush1.msra.mxu0 0.0
          %4733 = vmatprep.subr.mxu0 0.0
          %4734 = vmatpush1.msra.mxu0 0.0
          %4735 = vmatprep.subr.mxu0 0.0
          %4736 = vmatpush1.msra.mxu0 0.0
          %4737 = vmatprep.subr.mxu0 0.0
          %4738 = vmatpush1.msra.mxu0 0.0
          %4739 = vmatprep.subr.mxu0 0.0
          %4740 = vmatpush1.msra.mxu0 0.0
          %4741 = vmatprep.subr.mxu0 0.0
          %4742 = vmatpush1.msra.mxu0 0.0
          %4743 = vmatprep.subr.mxu0 0.0
          %4744 = vmatpush1.msra.mxu0 0.0
          %4745 = vmatprep.subr.mxu0 0.0
          %4746 = vmatpush1.msra.mxu0 0.0
          %4747 = vmatprep.subr.mxu0 0.0
          %4748 = vmatpush1.msra.mxu0 0.0
          %4749 = vmatprep.subr.mxu0 0.0
          %4750 = vmatpush1.msra.mxu0 0.0
          %4751 = vmatprep.subr.mxu0 0.0
          %4752 = vmatpush1.msra.mxu0 0.0
          %4753 = vmatprep.subr.mxu0 0.0
          %4754 = vmatpush1.msra.mxu0 0.0
          %4755 = vmatprep.subr.mxu0 0.0
          %4756 = vmatpush1.msra.mxu0 0.0
          %4757 = vmatprep.subr.mxu0 0.0
          %4758 = vmatpush1.msra.mxu0 0.0
          %4759 = vmatprep.subr.mxu0 0.0
          %4760 = vmatpush1.msra.mxu0 0.0
          %4761 = vmatprep.subr.mxu0 0.0
          %4762 = vmatpush1.msra.mxu0 0.0
          %4763 = vmatprep.mubr.f32.mxu0 0.0
          %4764 = vmatmul.mubr.f32.gmra.mrb[0].mxu0 %v4694
          %v4765 = vpop.f32.mrb[0].mxu0
          %v4766 = vadd.f32 %v4435, %v4765
          %v4767 = vpop.f32.mrb[0].mxu0
          %v4768 = vadd.f32 %v4437, %v4767
          %4769 = vmatprep.mubr.f32.mxu0 0.0
          %4770 = vmatmul.mubr.f32.gmra.mrb[0].mxu0 %v4697
          %v4771 = vpop.f32.mrb[0].mxu0
          %v4772 = vadd.f32 %v4441, %v4771
          %v4773 = vpop.f32.mrb[0].mxu0
          %v4774 = vadd.f32 %v4443, %v4773
          %4775 = vdwg.mxu0
          %v4776 = vmax.f32 %v4766, 0.0
          %v4777 = vmax.f32 %v4768, 0.0
          %v4778 = vmax.f32 %v4772, 0.0
          %v4779 = vmax.f32 %v4774, 0.0
          %4781 = vset.pattern.permute.xlu0 0
          %4782 = vperm.xlu0 %4781, %v372
          %v4783 = vpop.permute.xlu0 %4782
          %v4786 = vsel %vm4361, %v365, 0
          %4788 = vmatprep.subr.mxu0 %v4777
          %4789 = vmatpush1.msra.mxu0 %v4776
          %4790 = vmatprep.subr.mxu0 %v4779
          %4791 = vmatpush1.msra.mxu0 %v4778
          %4792 = vmatprep.subr.mxu0 0.0
          %4793 = vmatpush1.msra.mxu0 0.0
          %4794 = vmatprep.subr.mxu0 0.0
          %4795 = vmatpush1.msra.mxu0 0.0
          %4796 = vmatprep.subr.mxu0 0.0
          %4797 = vmatpush1.msra.mxu0 0.0
          %4798 = vmatprep.subr.mxu0 0.0
          %4799 = vmatpush1.msra.mxu0 0.0
          %4800 = vmatprep.subr.mxu0 0.0
          %4801 = vmatpush1.msra.mxu0 0.0
          %4802 = vmatprep.subr.mxu0 0.0
          %4803 = vmatpush1.msra.mxu0 0.0
          %4804 = vmatprep.subr.mxu0 0.0
          %4805 = vmatpush1.msra.mxu0 0.0
          %4806 = vmatprep.subr.mxu0 0.0
          %4807 = vmatpush1.msra.mxu0 0.0
          %4808 = vmatprep.subr.mxu0 0.0
          %4809 = vmatpush1.msra.mxu0 0.0
          %4810 = vmatprep.subr.mxu0 0.0
          %4811 = vmatpush1.msra.mxu0 0.0
          %4812 = vmatprep.subr.mxu0 0.0
          %4813 = vmatpush1.msra.mxu0 0.0
          %4814 = vmatprep.subr.mxu0 0.0
          %4815 = vmatpush1.msra.mxu0 0.0
          %4816 = vmatprep.subr.mxu0 0.0
          %4817 = vmatpush1.msra.mxu0 0.0
          %4818 = vmatprep.subr.mxu0 0.0
          %4819 = vmatpush1.msra.mxu0 0.0
          %4820 = vmatprep.subr.mxu0 0.0
          %4821 = vmatpush1.msra.mxu0 0.0
          %4822 = vmatprep.subr.mxu0 0.0
          %4823 = vmatpush1.msra.mxu0 0.0
          %4824 = vmatprep.subr.mxu0 0.0
          %4825 = vmatpush1.msra.mxu0 0.0
          %4826 = vmatprep.subr.mxu0 0.0
          %4827 = vmatpush1.msra.mxu0 0.0
          %4828 = vmatprep.subr.mxu0 0.0
          %4829 = vmatpush1.msra.mxu0 0.0
          %4830 = vmatprep.subr.mxu0 0.0
          %4831 = vmatpush1.msra.mxu0 0.0
          %4832 = vmatprep.subr.mxu0 0.0
          %4833 = vmatpush1.msra.mxu0 0.0
          %4834 = vmatprep.subr.mxu0 0.0
          %4835 = vmatpush1.msra.mxu0 0.0
          %4836 = vmatprep.subr.mxu0 0.0
          %4837 = vmatpush1.msra.mxu0 0.0
          %4838 = vmatprep.subr.mxu0 0.0
          %4839 = vmatpush1.msra.mxu0 0.0
          %4840 = vmatprep.subr.mxu0 0.0
          %4841 = vmatpush1.msra.mxu0 0.0
          %4842 = vmatprep.subr.mxu0 0.0
          %4843 = vmatpush1.msra.mxu0 0.0
          %4844 = vmatprep.subr.mxu0 0.0
          %4845 = vmatpush1.msra.mxu0 0.0
          %4846 = vmatprep.subr.mxu0 0.0
          %4847 = vmatpush1.msra.mxu0 0.0
          %4848 = vmatprep.subr.mxu0 0.0
          %4849 = vmatpush1.msra.mxu0 0.0
          %4850 = vmatprep.subr.mxu0 0.0
          %4851 = vmatpush1.msra.mxu0 0.0
          %4852 = vmatprep.mubr.f32.mxu0 0.0
          %4853 = vmatmul.mubr.f32.gmra.mrb[0].mxu0 %v4786
          %v4854 = vpop.f32.mrb[0].mxu0
          %v4855 = vadd.f32 %v4783, %v4854
          %v4856 = vpop.f32.mrb[0].mxu0
          %v4857 = vadd.f32 %v4783, %v4856
          %4858 = vdwg.mxu0
          %v4859 = vmax.f32 %v4855, 0.0
          %v4860 = vmax.f32 %v4857, 0.0
          %4862 = vset.pattern.permute.xlu0 0
          %4863 = vperm.xlu0 %4862, %v374
          %v4864 = vpop.permute.xlu0 %4863
          %vm4866 = vcmask 64512
          %v4868 = vsel %vm4866, %v366, 0
          %4870 = vmatprep.subr.mxu0 %v4860
          %4871 = vmatpush1.msra.mxu0 %v4859
          %4872 = vmatprep.subr.mxu0 0.0
          %4873 = vmatpush1.msra.mxu0 0.0
          %4874 = vmatprep.subr.mxu0 0.0
          %4875 = vmatpush1.msra.mxu0 0.0
          %4876 = vmatprep.subr.mxu0 0.0
          %4877 = vmatpush1.msra.mxu0 0.0
          %4878 = vmatprep.subr.mxu0 0.0
          %4879 = vmatpush1.msra.mxu0 0.0
          %4880 = vmatprep.subr.mxu0 0.0
          %4881 = vmatpush1.msra.mxu0 0.0
          %4882 = vmatprep.subr.mxu0 0.0
          %4883 = vmatpush1.msra.mxu0 0.0
          %4884 = vmatprep.subr.mxu0 0.0
          %4885 = vmatpush1.msra.mxu0 0.0
          %4886 = vmatprep.subr.mxu0 0.0
          %4887 = vmatpush1.msra.mxu0 0.0
          %4888 = vmatprep.subr.mxu0 0.0
          %4889 = vmatpush1.msra.mxu0 0.0
          %4890 = vmatprep.subr.mxu0 0.0
          %4891 = vmatpush1.msra.mxu0 0.0
          %4892 = vmatprep.subr.mxu0 0.0
          %4893 = vmatpush1.msra.mxu0 0.0
          %4894 = vmatprep.subr.mxu0 0.0
          %4895 = vmatpush1.msra.mxu0 0.0
          %4896 = vmatprep.subr.mxu0 0.0
          %4897 = vmatpush1.msra.mxu0 0.0
          %4898 = vmatprep.subr.mxu0 0.0
          %4899 = vmatpush1.msra.mxu0 0.0
          %4900 = vmatprep.subr.mxu0 0.0
          %4901 = vmatpush1.msra.mxu0 0.0
          %4902 = vmatprep.subr.mxu0 0.0
          %4903 = vmatpush1.msra.mxu0 0.0
          %4904 = vmatprep.subr.mxu0 0.0
          %4905 = vmatpush1.msra.mxu0 0.0
          %4906 = vmatprep.subr.mxu0 0.0
          %4907 = vmatpush1.msra.mxu0 0.0
          %4908 = vmatprep.subr.mxu0 0.0
          %4909 = vmatpush1.msra.mxu0 0.0
          %4910 = vmatprep.subr.mxu0 0.0
          %4911 = vmatpush1.msra.mxu0 0.0
          %4912 = vmatprep.subr.mxu0 0.0
          %4913 = vmatpush1.msra.mxu0 0.0
          %4914 = vmatprep.subr.mxu0 0.0
          %4915 = vmatpush1.msra.mxu0 0.0
          %4916 = vmatprep.subr.mxu0 0.0
          %4917 = vmatpush1.msra.mxu0 0.0
          %4918 = vmatprep.subr.mxu0 0.0
          %4919 = vmatpush1.msra.mxu0 0.0
          %4920 = vmatprep.subr.mxu0 0.0
          %4921 = vmatpush1.msra.mxu0 0.0
          %4922 = vmatprep.subr.mxu0 0.0
          %4923 = vmatpush1.msra.mxu0 0.0
          %4924 = vmatprep.subr.mxu0 0.0
          %4925 = vmatpush1.msra.mxu0 0.0
          %4926 = vmatprep.subr.mxu0 0.0
          %4927 = vmatpush1.msra.mxu0 0.0
          %4928 = vmatprep.subr.mxu0 0.0
          %4929 = vmatpush1.msra.mxu0 0.0
          %4930 = vmatprep.subr.mxu0 0.0
          %4931 = vmatpush1.msra.mxu0 0.0
          %4932 = vmatprep.subr.mxu0 0.0
          %4933 = vmatpush1.msra.mxu0 0.0
          %4934 = vmatprep.mubr.f32.mxu0 0.0
          %4935 = vmatmul.mubr.f32.gmra.mrb[0].mxu0 %v4868
          %v4936 = vpop.f32.mrb[0].mxu0
          %v4937 = vadd.f32 %v4864, %v4936
          %v4938 = vpop.f32.mrb[0].mxu0
          %v4939 = vadd.f32 %v4864, %v4938
          %4940 = vdwg.mxu0
          %v4941 = vmax.f32 %v4937, 0.0
          %v4942 = vmax.f32 %v4939, 0.0
          %v4944 = vsel %vm4866, %v368, 0
          %4946 = vmatprep.subr.mxu0 %v4942
          %4947 = vmatpush1.msra.mxu0 %v4941
          %4948 = vmatprep.subr.mxu0 0.0
          %4949 = vmatpush1.msra.mxu0 0.0
          %4950 = vmatprep.subr.mxu0 0.0
          %4951 = vmatpush1.msra.mxu0 0.0
          %4952 = vmatprep.subr.mxu0 0.0
          %4953 = vmatpush1.msra.mxu0 0.0
          %4954 = vmatprep.subr.mxu0 0.0
          %4955 = vmatpush1.msra.mxu0 0.0
          %4956 = vmatprep.subr.mxu0 0.0
          %4957 = vmatpush1.msra.mxu0 0.0
          %4958 = vmatprep.subr.mxu0 0.0
          %4959 = vmatpush1.msra.mxu0 0.0
          %4960 = vmatprep.subr.mxu0 0.0
          %4961 = vmatpush1.msra.mxu0 0.0
          %4962 = vmatprep.subr.mxu0 0.0
          %4963 = vmatpush1.msra.mxu0 0.0
          %4964 = vmatprep.subr.mxu0 0.0
          %4965 = vmatpush1.msra.mxu0 0.0
          %4966 = vmatprep.subr.mxu0 0.0
          %4967 = vmatpush1.msra.mxu0 0.0
          %4968 = vmatprep.subr.mxu0 0.0
          %4969 = vmatpush1.msra.mxu0 0.0
          %4970 = vmatprep.subr.mxu0 0.0
          %4971 = vmatpush1.msra.mxu0 0.0
          %4972 = vmatprep.subr.mxu0 0.0
          %4973 = vmatpush1.msra.mxu0 0.0
          %4974 = vmatprep.subr.mxu0 0.0
          %4975 = vmatpush1.msra.mxu0 0.0
          %4976 = vmatprep.subr.mxu0 0.0
          %4977 = vmatpush1.msra.mxu0 0.0
          %4978 = vmatprep.subr.mxu0 0.0
          %4979 = vmatpush1.msra.mxu0 0.0
          %4980 = vmatprep.subr.mxu0 0.0
          %4981 = vmatpush1.msra.mxu0 0.0
          %4982 = vmatprep.subr.mxu0 0.0
          %4983 = vmatpush1.msra.mxu0 0.0
          %4984 = vmatprep.subr.mxu0 0.0
          %4985 = vmatpush1.msra.mxu0 0.0
          %4986 = vmatprep.subr.mxu0 0.0
          %4987 = vmatpush1.msra.mxu0 0.0
          %4988 = vmatprep.subr.mxu0 0.0
          %4989 = vmatpush1.msra.mxu0 0.0
          %4990 = vmatprep.subr.mxu0 0.0
          %4991 = vmatpush1.msra.mxu0 0.0
          %4992 = vmatprep.subr.mxu0 0.0
          %4993 = vmatpush1.msra.mxu0 0.0
          %4994 = vmatprep.subr.mxu0 0.0
          %4995 = vmatpush1.msra.mxu0 0.0
          %4996 = vmatprep.subr.mxu0 0.0
          %4997 = vmatpush1.msra.mxu0 0.0
          %4998 = vmatprep.subr.mxu0 0.0
          %4999 = vmatpush1.msra.mxu0 0.0
          %5000 = vmatprep.subr.mxu0 0.0
          %5001 = vmatpush1.msra.mxu0 0.0
          %5002 = vmatprep.subr.mxu0 0.0
          %5003 = vmatpush1.msra.mxu0 0.0
          %5004 = vmatprep.subr.mxu0 0.0
          %5005 = vmatpush1.msra.mxu0 0.0
          %5006 = vmatprep.subr.mxu0 0.0
          %5007 = vmatpush1.msra.mxu0 0.0
          %5008 = vmatprep.subr.mxu0 0.0
          %5009 = vmatpush1.msra.mxu0 0.0
          %5010 = vmatprep.mubr.f32.mxu0 0.0
          %5011 = vmatmul.mubr.f32.gmra.mrb[0].mxu0 %v4944
          %v5012 = vpop.f32.mrb[0].mxu0
          %v5013 = vadd.f32 0.0, %v5012
          %v5014 = vpop.f32.mrb[0].mxu0
          %v5015 = vadd.f32 0.0, %v5014
          %5016 = vdwg.mxu0
          %5018 = vset.pattern.permute.xlu0 0
          %5019 = vperm.xlu0 %5018, %v376
          %v5020 = vpop.permute.xlu0 %5019
          %v5022 = vadd.f32 %v5013, %v5020
          %v5023 = vadd.f32 %v5015, %v5020
          %v5024 = vmax.f32 %v5022, 0.0
          %v5025 = vmax.f32 %v5023, 0.0
          %s5026 = scalar_select %p380, 0.0, -1e+30
          %v5027 = vstv %s5026
          %v5028 = vadd.f32 %v5024, %v5027
          %v5029 = vadd.f32 %v5025, %v5027
          %s5030 = scalar_lea.vmem %s301, 16 [#allocation4]
          %v5031 = vld [vmem:[%s5030] sm:$0xff]
          %v5032 = vld [vmem:[%s5030 + $0x8] sm:$0xff]
          %s5033 = scalar_lea.vmem %s310, 1792 [#allocation7]
          %v5034 = vld [vmem:[%s5033] sm:$0xff]
          %v5035 = vld [vmem:[%s5033 + $0x8] sm:$0xff]
          %v5036 = vld [vmem:[%s5033 + $0x10] sm:$0xff]
          %v5037 = vld [vmem:[%s5033 + $0x18] sm:$0xff]
          %v5038 = vld [vmem:[%s5033 + $0x20] sm:$0xff]
          %v5039 = vld [vmem:[%s5033 + $0x28] sm:$0xff]
          %v5040 = vld [vmem:[%s5033 + $0x30] sm:$0xff]
          %v5041 = vld [vmem:[%s5033 + $0x38] sm:$0xff]
          %v5042 = vld [vmem:[%s5033 + $0x40] sm:$0xff]
          %v5043 = vld [vmem:[%s5033 + $0x48] sm:$0xff]
          %v5044 = vld [vmem:[%s5033 + $0x50] sm:$0xff]
          %v5045 = vld [vmem:[%s5033 + $0x58] sm:$0xff]
          %v5046 = vld [vmem:[%s5033 + $0x60] sm:$0xff]
          %v5047 = vld [vmem:[%s5033 + $0x68] sm:$0xff]
          %v5048 = vld [vmem:[%s5033 + $0x70] sm:$0xff]
          %v5049 = vld [vmem:[%s5033 + $0x78] sm:$0xff]
          %v5050 = vld [vmem:[%s5033 + $0x80] sm:$0xff]
          %v5051 = vld [vmem:[%s5033 + $0x88] sm:$0xff]
          %v5052 = vld [vmem:[%s5033 + $0x90] sm:$0xff]
          %v5053 = vld [vmem:[%s5033 + $0x98] sm:$0xff]
          %v5054 = vld [vmem:[%s5033 + $0xa0] sm:$0xff]
          %v5055 = vld [vmem:[%s5033 + $0xa8] sm:$0xff]
          %v5056 = vld [vmem:[%s5033 + $0xb0] sm:$0xff]
          %v5057 = vld [vmem:[%s5033 + $0xb8] sm:$0xff]
          %v5058 = vld [vmem:[%s5033 + $0xc0] sm:$0xff]
          %v5059 = vld [vmem:[%s5033 + $0xc8] sm:$0xff]
          %v5060 = vld [vmem:[%s5033 + $0xd0] sm:$0xff]
          %v5061 = vld [vmem:[%s5033 + $0xd8] sm:$0xff]
          %v5062 = vld [vmem:[%s5033 + $0xe0] sm:$0xff]
          %v5063 = vld [vmem:[%s5033 + $0xe8] sm:$0xff]
          %v5064 = vld [vmem:[%s5033 + $0xf0] sm:$0xff]
          %v5065 = vld [vmem:[%s5033 + $0xf8] sm:$0xff]
          %v5068 = vunpack.c.l.b16 %v5031
          %v5069 = vunpack.c.h.b16 %v5031
          %v5070 = vunpack.c.l.b16 %v5032
          %v5071 = vunpack.c.h.b16 %v5032
          %v5072 = vpack.c.b16 %v5070, %v5068
          %v5073 = vpack.c.b16 %v5071, %v5069
          %v5108 = vunpack.c.l.b16 %v5034
          %v5109 = vunpack.c.h.b16 %v5034
          %v5110 = vunpack.c.l.b16 %v5035
          %v5111 = vunpack.c.h.b16 %v5035
          %v5112 = vunpack.c.l.b16 %v5036
          %v5113 = vunpack.c.h.b16 %v5036
          %v5114 = vunpack.c.l.b16 %v5037
          %v5115 = vunpack.c.h.b16 %v5037
          %v5116 = vunpack.c.l.b16 %v5038
          %v5117 = vunpack.c.h.b16 %v5038
          %v5118 = vunpack.c.l.b16 %v5039
          %v5119 = vunpack.c.h.b16 %v5039
          %v5120 = vunpack.c.l.b16 %v5040
          %v5121 = vunpack.c.h.b16 %v5040
          %v5122 = vunpack.c.l.b16 %v5041
          %v5123 = vunpack.c.h.b16 %v5041
          %v5124 = vunpack.c.l.b16 %v5042
          %v5125 = vunpack.c.h.b16 %v5042
          %v5126 = vunpack.c.l.b16 %v5043
          %v5127 = vunpack.c.h.b16 %v5043
          %v5128 = vunpack.c.l.b16 %v5044
          %v5129 = vunpack.c.h.b16 %v5044
          %v5130 = vunpack.c.l.b16 %v5045
          %v5131 = vunpack.c.h.b16 %v5045
          %v5132 = vunpack.c.l.b16 %v5046
          %v5133 = vunpack.c.h.b16 %v5046
          %v5134 = vunpack.c.l.b16 %v5047
          %v5135 = vunpack.c.h.b16 %v5047
          %v5136 = vunpack.c.l.b16 %v5048
          %v5137 = vunpack.c.h.b16 %v5048
          %v5138 = vunpack.c.l.b16 %v5049
          %v5139 = vunpack.c.h.b16 %v5049
          %v5140 = vunpack.c.l.b16 %v5050
          %v5141 = vunpack.c.h.b16 %v5050
          %v5142 = vunpack.c.l.b16 %v5051
          %v5143 = vunpack.c.h.b16 %v5051
          %v5144 = vunpack.c.l.b16 %v5052
          %v5145 = vunpack.c.h.b16 %v5052
          %v5146 = vunpack.c.l.b16 %v5053
          %v5147 = vunpack.c.h.b16 %v5053
          %v5148 = vunpack.c.l.b16 %v5054
          %v5149 = vunpack.c.h.b16 %v5054
          %v5150 = vunpack.c.l.b16 %v5055
          %v5151 = vunpack.c.h.b16 %v5055
          %v5152 = vunpack.c.l.b16 %v5056
          %v5153 = vunpack.c.h.b16 %v5056
          %v5154 = vunpack.c.l.b16 %v5057
          %v5155 = vunpack.c.h.b16 %v5057
          %v5156 = vunpack.c.l.b16 %v5058
          %v5157 = vunpack.c.h.b16 %v5058
          %v5158 = vunpack.c.l.b16 %v5059
          %v5159 = vunpack.c.h.b16 %v5059
          %v5160 = vunpack.c.l.b16 %v5060
          %v5161 = vunpack.c.h.b16 %v5060
          %v5162 = vunpack.c.l.b16 %v5061
          %v5163 = vunpack.c.h.b16 %v5061
          %v5164 = vunpack.c.l.b16 %v5062
          %v5165 = vunpack.c.h.b16 %v5062
          %v5166 = vunpack.c.l.b16 %v5063
          %v5167 = vunpack.c.h.b16 %v5063
          %v5168 = vunpack.c.l.b16 %v5064
          %v5169 = vunpack.c.h.b16 %v5064
          %v5170 = vunpack.c.l.b16 %v5065
          %v5171 = vunpack.c.h.b16 %v5065
          %v5172 = vpack.c.b16 %v5110, %v5108
          %v5173 = vpack.c.b16 %v5111, %v5109
          %v5174 = vpack.c.b16 %v5114, %v5112
          %v5175 = vpack.c.b16 %v5115, %v5113
          %v5176 = vpack.c.b16 %v5118, %v5116
          %v5177 = vpack.c.b16 %v5119, %v5117
          %v5178 = vpack.c.b16 %v5122, %v5120
          %v5179 = vpack.c.b16 %v5123, %v5121
          %v5180 = vpack.c.b16 %v5126, %v5124
          %v5181 = vpack.c.b16 %v5127, %v5125
          %v5182 = vpack.c.b16 %v5130, %v5128
          %v5183 = vpack.c.b16 %v5131, %v5129
          %v5184 = vpack.c.b16 %v5134, %v5132
          %v5185 = vpack.c.b16 %v5135, %v5133
          %v5186 = vpack.c.b16 %v5138, %v5136
          %v5187 = vpack.c.b16 %v5139, %v5137
          %v5188 = vpack.c.b16 %v5142, %v5140
          %v5189 = vpack.c.b16 %v5143, %v5141
          %v5190 = vpack.c.b16 %v5146, %v5144
          %v5191 = vpack.c.b16 %v5147, %v5145
          %v5192 = vpack.c.b16 %v5150, %v5148
          %v5193 = vpack.c.b16 %v5151, %v5149
          %v5194 = vpack.c.b16 %v5154, %v5152
          %v5195 = vpack.c.b16 %v5155, %v5153
          %v5196 = vpack.c.b16 %v5158, %v5156
          %v5197 = vpack.c.b16 %v5159, %v5157
          %v5198 = vpack.c.b16 %v5162, %v5160
          %v5199 = vpack.c.b16 %v5163, %v5161
          %v5200 = vpack.c.b16 %v5166, %v5164
          %v5201 = vpack.c.b16 %v5167, %v5165
          %v5202 = vpack.c.b16 %v5170, %v5168
          %v5203 = vpack.c.b16 %v5171, %v5169
          %5236 = vmatprep.subr.bf16.mxu0 %v5173
          %5237 = vmatpush1.bf16.msra.mxu0 %v5172
          %5238 = vmatprep.subr.bf16.mxu0 %v5175
          %5239 = vmatpush1.bf16.msra.mxu0 %v5174
          %5240 = vmatprep.subr.bf16.mxu0 %v5177
          %5241 = vmatpush1.bf16.msra.mxu0 %v5176
          %5242 = vmatprep.subr.bf16.mxu0 %v5179
          %5243 = vmatpush1.bf16.msra.mxu0 %v5178
          %5244 = vmatprep.subr.bf16.mxu0 %v5181
          %5245 = vmatpush1.bf16.msra.mxu0 %v5180
          %5246 = vmatprep.subr.bf16.mxu0 %v5183
          %5247 = vmatpush1.bf16.msra.mxu0 %v5182
          %5248 = vmatprep.subr.bf16.mxu0 %v5185
          %5249 = vmatpush1.bf16.msra.mxu0 %v5184
          %5250 = vmatprep.subr.bf16.mxu0 %v5187
          %5251 = vmatpush1.bf16.msra.mxu0 %v5186
          %5252 = vmatprep.subr.bf16.mxu0 %v5189
          %5253 = vmatpush1.bf16.msra.mxu0 %v5188
          %5254 = vmatprep.subr.bf16.mxu0 %v5191
          %5255 = vmatpush1.bf16.msra.mxu0 %v5190
          %5256 = vmatprep.subr.bf16.mxu0 %v5193
          %5257 = vmatpush1.bf16.msra.mxu0 %v5192
          %5258 = vmatprep.subr.bf16.mxu0 %v5195
          %5259 = vmatpush1.bf16.msra.mxu0 %v5194
          %5260 = vmatprep.subr.bf16.mxu0 %v5197
          %5261 = vmatpush1.bf16.msra.mxu0 %v5196
          %5262 = vmatprep.subr.bf16.mxu0 %v5199
          %5263 = vmatpush1.bf16.msra.mxu0 %v5198
          %5264 = vmatprep.subr.bf16.mxu0 %v5201
          %5265 = vmatpush1.bf16.msra.mxu0 %v5200
          %5266 = vmatprep.subr.bf16.mxu0 %v5203
          %5267 = vmatpush1.bf16.msra.mxu0 %v5202
          %5268 = vmatprep.mubr.bf16.mxu0 %v5073
          %5269 = vmatmul.mubr.bf16.gmra.mrb[0].mxu0 %v5072
          %v5270 = vpop.f32.mrb[0].mxu0
          %v5271 = vadd.f32 0.0, %v5270
          %v5272 = vpop.f32.mrb[0].mxu0
          %v5273 = vadd.f32 0.0, %v5272
          %v5274 = vpop.f32.mrb[0].mxu0
          %v5275 = vadd.f32 0.0, %v5274
          %v5276 = vpop.f32.mrb[0].mxu0
          %v5277 = vadd.f32 0.0, %v5276
          %5278 = vdwg.mxu0
          %5279 = vmatprep.subr.mxu0 %v5273
          %5280 = vmatpush1.msra.mxu0 %v5271
          %5281 = vmatprep.subr.mxu0 %v5277
          %5282 = vmatpush1.msra.mxu0 %v5275
          %5283 = vmatprep.subr.mxu0 0.0
          %5284 = vmatpush1.msra.mxu0 0.0
          %5285 = vmatprep.subr.mxu0 0.0
          %5286 = vmatpush1.msra.mxu0 0.0
          %5287 = vmatprep.subr.mxu0 0.0
          %5288 = vmatpush1.msra.mxu0 0.0
          %5289 = vmatprep.subr.mxu0 0.0
          %5290 = vmatpush1.msra.mxu0 0.0
          %5291 = vmatprep.subr.mxu0 0.0
          %5292 = vmatpush1.msra.mxu0 0.0
          %5293 = vmatprep.subr.mxu0 0.0
          %5294 = vmatpush1.msra.mxu0 0.0
          %5295 = vmatprep.subr.mxu0 0.0
          %5296 = vmatpush1.msra.mxu0 0.0
          %5297 = vmatprep.subr.mxu0 0.0
          %5298 = vmatpush1.msra.mxu0 0.0
          %5299 = vmatprep.subr.mxu0 0.0
          %5300 = vmatpush1.msra.mxu0 0.0
          %5301 = vmatprep.subr.mxu0 0.0
          %5302 = vmatpush1.msra.mxu0 0.0
          %5303 = vmatprep.subr.mxu0 0.0
          %5304 = vmatpush1.msra.mxu0 0.0
          %5305 = vmatprep.subr.mxu0 0.0
          %5306 = vmatpush1.msra.mxu0 0.0
          %5307 = vmatprep.subr.mxu0 0.0
          %5308 = vmatpush1.msra.mxu0 0.0
          %5309 = vmatprep.subr.mxu0 0.0
          %5310 = vmatpush1.msra.mxu0 0.0
          %5311 = vmatprep.subr.mxu0 0.0
          %5312 = vmatpush1.msra.mxu0 0.0
          %5313 = vmatprep.subr.mxu0 0.0
          %5314 = vmatpush1.msra.mxu0 0.0
          %5315 = vmatprep.subr.mxu0 0.0
          %5316 = vmatpush1.msra.mxu0 0.0
          %5317 = vmatprep.subr.mxu0 0.0
          %5318 = vmatpush1.msra.mxu0 0.0
          %5319 = vmatprep.subr.mxu0 0.0
          %5320 = vmatpush1.msra.mxu0 0.0
          %5321 = vmatprep.subr.mxu0 0.0
          %5322 = vmatpush1.msra.mxu0 0.0
          %5323 = vmatprep.subr.mxu0 0.0
          %5324 = vmatpush1.msra.mxu0 0.0
          %5325 = vmatprep.subr.mxu0 0.0
          %5326 = vmatpush1.msra.mxu0 0.0
          %5327 = vmatprep.subr.mxu0 0.0
          %5328 = vmatpush1.msra.mxu0 0.0
          %5329 = vmatprep.subr.mxu0 0.0
          %5330 = vmatpush1.msra.mxu0 0.0
          %5331 = vmatprep.subr.mxu0 0.0
          %5332 = vmatpush1.msra.mxu0 0.0
          %5333 = vmatprep.subr.mxu0 0.0
          %5334 = vmatpush1.msra.mxu0 0.0
          %5335 = vmatprep.subr.mxu0 0.0
          %5336 = vmatpush1.msra.mxu0 0.0
          %5337 = vmatprep.subr.mxu0 0.0
          %5338 = vmatpush1.msra.mxu0 0.0
          %5339 = vmatprep.subr.mxu0 0.0
          %5340 = vmatpush1.msra.mxu0 0.0
          %5341 = vmatprep.subr.mxu0 0.0
          %5342 = vmatpush1.msra.mxu0 0.0
          %5343 = vmatprep.mubr.f32.mxu0 0.0
          %5344 = vmatmul.mubr.f32.gmra.mrb[0].mxu0 %v4694
          %v5345 = vpop.f32.mrb[0].mxu0
          %v5346 = vadd.f32 %v4435, %v5345
          %v5347 = vpop.f32.mrb[0].mxu0
          %v5348 = vadd.f32 %v4437, %v5347
          %5349 = vmatprep.mubr.f32.mxu0 0.0
          %5350 = vmatmul.mubr.f32.gmra.mrb[0].mxu0 %v4697
          %v5351 = vpop.f32.mrb[0].mxu0
          %v5352 = vadd.f32 %v4441, %v5351
          %v5353 = vpop.f32.mrb[0].mxu0
          %v5354 = vadd.f32 %v4443, %v5353
          %5355 = vdwg.mxu0
          %v5356 = vmax.f32 %v5346, 0.0
          %v5357 = vmax.f32 %v5348, 0.0
          %v5358 = vmax.f32 %v5352, 0.0
          %v5359 = vmax.f32 %v5354, 0.0
          %5360 = vmatprep.subr.mxu0 %v5357
          %5361 = vmatpush1.msra.mxu0 %v5356
          %5362 = vmatprep.subr.mxu0 %v5359
          %5363 = vmatpush1.msra.mxu0 %v5358
          %5364 = vmatprep.subr.mxu0 0.0
          %5365 = vmatpush1.msra.mxu0 0.0
          %5366 = vmatprep.subr.mxu0 0.0
          %5367 = vmatpush1.msra.mxu0 0.0
          %5368 = vmatprep.subr.mxu0 0.0
          %5369 = vmatpush1.msra.mxu0 0.0
          %5370 = vmatprep.subr.mxu0 0.0
          %5371 = vmatpush1.msra.mxu0 0.0
          %5372 = vmatprep.subr.mxu0 0.0
          %5373 = vmatpush1.msra.mxu0 0.0
          %5374 = vmatprep.subr.mxu0 0.0
          %5375 = vmatpush1.msra.mxu0 0.0
          %5376 = vmatprep.subr.mxu0 0.0
          %5377 = vmatpush1.msra.mxu0 0.0
          %5378 = vmatprep.subr.mxu0 0.0
          %5379 = vmatpush1.msra.mxu0 0.0
          %5380 = vmatprep.subr.mxu0 0.0
          %5381 = vmatpush1.msra.mxu0 0.0
          %5382 = vmatprep.subr.mxu0 0.0
          %5383 = vmatpush1.msra.mxu0 0.0
          %5384 = vmatprep.subr.mxu0 0.0
          %5385 = vmatpush1.msra.mxu0 0.0
          %5386 = vmatprep.subr.mxu0 0.0
          %5387 = vmatpush1.msra.mxu0 0.0
          %5388 = vmatprep.subr.mxu0 0.0
          %5389 = vmatpush1.msra.mxu0 0.0
          %5390 = vmatprep.subr.mxu0 0.0
          %5391 = vmatpush1.msra.mxu0 0.0
          %5392 = vmatprep.subr.mxu0 0.0
          %5393 = vmatpush1.msra.mxu0 0.0
          %5394 = vmatprep.subr.mxu0 0.0
          %5395 = vmatpush1.msra.mxu0 0.0
          %5396 = vmatprep.subr.mxu0 0.0
          %5397 = vmatpush1.msra.mxu0 0.0
          %5398 = vmatprep.subr.mxu0 0.0
          %5399 = vmatpush1.msra.mxu0 0.0
          %5400 = vmatprep.subr.mxu0 0.0
          %5401 = vmatpush1.msra.mxu0 0.0
          %5402 = vmatprep.subr.mxu0 0.0
          %5403 = vmatpush1.msra.mxu0 0.0
          %5404 = vmatprep.subr.mxu0 0.0
          %5405 = vmatpush1.msra.mxu0 0.0
          %5406 = vmatprep.subr.mxu0 0.0
          %5407 = vmatpush1.msra.mxu0 0.0
          %5408 = vmatprep.subr.mxu0 0.0
          %5409 = vmatpush1.msra.mxu0 0.0
          %5410 = vmatprep.subr.mxu0 0.0
          %5411 = vmatpush1.msra.mxu0 0.0
          %5412 = vmatprep.subr.mxu0 0.0
          %5413 = vmatpush1.msra.mxu0 0.0
          %5414 = vmatprep.subr.mxu0 0.0
          %5415 = vmatpush1.msra.mxu0 0.0
          %5416 = vmatprep.subr.mxu0 0.0
          %5417 = vmatpush1.msra.mxu0 0.0
          %5418 = vmatprep.subr.mxu0 0.0
          %5419 = vmatpush1.msra.mxu0 0.0
          %5420 = vmatprep.subr.mxu0 0.0
          %5421 = vmatpush1.msra.mxu0 0.0
          %5422 = vmatprep.subr.mxu0 0.0
          %5423 = vmatpush1.msra.mxu0 0.0
          %5424 = vmatprep.mubr.f32.mxu0 0.0
          %5425 = vmatmul.mubr.f32.gmra.mrb[0].mxu0 %v4786
          %v5426 = vpop.f32.mrb[0].mxu0
          %v5427 = vadd.f32 %v4783, %v5426
          %v5428 = vpop.f32.mrb[0].mxu0
          %v5429 = vadd.f32 %v4783, %v5428
          %5430 = vdwg.mxu0
          %v5431 = vmax.f32 %v5427, 0.0
          %v5432 = vmax.f32 %v5429, 0.0
          %5433 = vmatprep.subr.mxu0 %v5432
          %5434 = vmatpush1.msra.mxu0 %v5431
          %5435 = vmatprep.subr.mxu0 0.0
          %5436 = vmatpush1.msra.mxu0 0.0
          %5437 = vmatprep.subr.mxu0 0.0
          %5438 = vmatpush1.msra.mxu0 0.0
          %5439 = vmatprep.subr.mxu0 0.0
          %5440 = vmatpush1.msra.mxu0 0.0
          %5441 = vmatprep.subr.mxu0 0.0
          %5442 = vmatpush1.msra.mxu0 0.0
          %5443 = vmatprep.subr.mxu0 0.0
          %5444 = vmatpush1.msra.mxu0 0.0
          %5445 = vmatprep.subr.mxu0 0.0
          %5446 = vmatpush1.msra.mxu0 0.0
          %5447 = vmatprep.subr.mxu0 0.0
          %5448 = vmatpush1.msra.mxu0 0.0
          %5449 = vmatprep.subr.mxu0 0.0
          %5450 = vmatpush1.msra.mxu0 0.0
          %5451 = vmatprep.subr.mxu0 0.0
          %5452 = vmatpush1.msra.mxu0 0.0
          %5453 = vmatprep.subr.mxu0 0.0
          %5454 = vmatpush1.msra.mxu0 0.0
          %5455 = vmatprep.subr.mxu0 0.0
          %5456 = vmatpush1.msra.mxu0 0.0
          %5457 = vmatprep.subr.mxu0 0.0
          %5458 = vmatpush1.msra.mxu0 0.0
          %5459 = vmatprep.subr.mxu0 0.0
          %5460 = vmatpush1.msra.mxu0 0.0
          %5461 = vmatprep.subr.mxu0 0.0
          %5462 = vmatpush1.msra.mxu0 0.0
          %5463 = vmatprep.subr.mxu0 0.0
          %5464 = vmatpush1.msra.mxu0 0.0
          %5465 = vmatprep.subr.mxu0 0.0
          %5466 = vmatpush1.msra.mxu0 0.0
          %5467 = vmatprep.subr.mxu0 0.0
          %5468 = vmatpush1.msra.mxu0 0.0
          %5469 = vmatprep.subr.mxu0 0.0
          %5470 = vmatpush1.msra.mxu0 0.0
          %5471 = vmatprep.subr.mxu0 0.0
          %5472 = vmatpush1.msra.mxu0 0.0
          %5473 = vmatprep.subr.mxu0 0.0
          %5474 = vmatpush1.msra.mxu0 0.0
          %5475 = vmatprep.subr.mxu0 0.0
          %5476 = vmatpush1.msra.mxu0 0.0
          %5477 = vmatprep.subr.mxu0 0.0
          %5478 = vmatpush1.msra.mxu0 0.0
          %5479 = vmatprep.subr.mxu0 0.0
          %5480 = vmatpush1.msra.mxu0 0.0
          %5481 = vmatprep.subr.mxu0 0.0
          %5482 = vmatpush1.msra.mxu0 0.0
          %5483 = vmatprep.subr.mxu0 0.0
          %5484 = vmatpush1.msra.mxu0 0.0
          %5485 = vmatprep.subr.mxu0 0.0
          %5486 = vmatpush1.msra.mxu0 0.0
          %5487 = vmatprep.subr.mxu0 0.0
          %5488 = vmatpush1.msra.mxu0 0.0
          %5489 = vmatprep.subr.mxu0 0.0
          %5490 = vmatpush1.msra.mxu0 0.0
          %5491 = vmatprep.subr.mxu0 0.0
          %5492 = vmatpush1.msra.mxu0 0.0
          %5493 = vmatprep.subr.mxu0 0.0
          %5494 = vmatpush1.msra.mxu0 0.0
          %5495 = vmatprep.subr.mxu0 0.0
          %5496 = vmatpush1.msra.mxu0 0.0
          %5497 = vmatprep.mubr.f32.mxu0 0.0
          %5498 = vmatmul.mubr.f32.gmra.mrb[0].mxu0 %v4868
          %v5499 = vpop.f32.mrb[0].mxu0
          %v5500 = vadd.f32 %v4864, %v5499
          %v5501 = vpop.f32.mrb[0].mxu0
          %v5502 = vadd.f32 %v4864, %v5501
          %5503 = vdwg.mxu0
          %v5504 = vmax.f32 %v5500, 0.0
          %v5505 = vmax.f32 %v5502, 0.0
          %5506 = vmatprep.subr.mxu0 %v5505
          %5507 = vmatpush1.msra.mxu0 %v5504
          %5508 = vmatprep.subr.mxu0 0.0
          %5509 = vmatpush1.msra.mxu0 0.0
          %5510 = vmatprep.subr.mxu0 0.0
          %5511 = vmatpush1.msra.mxu0 0.0
          %5512 = vmatprep.subr.mxu0 0.0
          %5513 = vmatpush1.msra.mxu0 0.0
          %5514 = vmatprep.subr.mxu0 0.0
          %5515 = vmatpush1.msra.mxu0 0.0
          %5516 = vmatprep.subr.mxu0 0.0
          %5517 = vmatpush1.msra.mxu0 0.0
          %5518 = vmatprep.subr.mxu0 0.0
          %5519 = vmatpush1.msra.mxu0 0.0
          %5520 = vmatprep.subr.mxu0 0.0
          %5521 = vmatpush1.msra.mxu0 0.0
          %5522 = vmatprep.subr.mxu0 0.0
          %5523 = vmatpush1.msra.mxu0 0.0
          %5524 = vmatprep.subr.mxu0 0.0
          %5525 = vmatpush1.msra.mxu0 0.0
          %5526 = vmatprep.subr.mxu0 0.0
          %5527 = vmatpush1.msra.mxu0 0.0
          %5528 = vmatprep.subr.mxu0 0.0
          %5529 = vmatpush1.msra.mxu0 0.0
          %5530 = vmatprep.subr.mxu0 0.0
          %5531 = vmatpush1.msra.mxu0 0.0
          %5532 = vmatprep.subr.mxu0 0.0
          %5533 = vmatpush1.msra.mxu0 0.0
          %5534 = vmatprep.subr.mxu0 0.0
          %5535 = vmatpush1.msra.mxu0 0.0
          %5536 = vmatprep.subr.mxu0 0.0
          %5537 = vmatpush1.msra.mxu0 0.0
          %5538 = vmatprep.subr.mxu0 0.0
          %5539 = vmatpush1.msra.mxu0 0.0
          %5540 = vmatprep.subr.mxu0 0.0
          %5541 = vmatpush1.msra.mxu0 0.0
          %5542 = vmatprep.subr.mxu0 0.0
          %5543 = vmatpush1.msra.mxu0 0.0
          %5544 = vmatprep.subr.mxu0 0.0
          %5545 = vmatpush1.msra.mxu0 0.0
          %5546 = vmatprep.subr.mxu0 0.0
          %5547 = vmatpush1.msra.mxu0 0.0
          %5548 = vmatprep.subr.mxu0 0.0
          %5549 = vmatpush1.msra.mxu0 0.0
          %5550 = vmatprep.subr.mxu0 0.0
          %5551 = vmatpush1.msra.mxu0 0.0
          %5552 = vmatprep.subr.mxu0 0.0
          %5553 = vmatpush1.msra.mxu0 0.0
          %5554 = vmatprep.subr.mxu0 0.0
          %5555 = vmatpush1.msra.mxu0 0.0
          %5556 = vmatprep.subr.mxu0 0.0
          %5557 = vmatpush1.msra.mxu0 0.0
          %5558 = vmatprep.subr.mxu0 0.0
          %5559 = vmatpush1.msra.mxu0 0.0
          %5560 = vmatprep.subr.mxu0 0.0
          %5561 = vmatpush1.msra.mxu0 0.0
          %5562 = vmatprep.subr.mxu0 0.0
          %5563 = vmatpush1.msra.mxu0 0.0
          %5564 = vmatprep.subr.mxu0 0.0
          %5565 = vmatpush1.msra.mxu0 0.0
          %5566 = vmatprep.subr.mxu0 0.0
          %5567 = vmatpush1.msra.mxu0 0.0
          %5568 = vmatprep.subr.mxu0 0.0
          %5569 = vmatpush1.msra.mxu0 0.0
          %5570 = vmatprep.mubr.f32.mxu0 0.0
          %5571 = vmatmul.mubr.f32.gmra.mrb[0].mxu0 %v4944
          %v5572 = vpop.f32.mrb[0].mxu0
          %v5573 = vadd.f32 0.0, %v5572
          %v5574 = vpop.f32.mrb[0].mxu0
          %v5575 = vadd.f32 0.0, %v5574
          %5576 = vdwg.mxu0
          %v5577 = vadd.f32 %v5573, %v5020
          %v5578 = vadd.f32 %v5575, %v5020
          %v5579 = vmax.f32 %v5577, 0.0
          %v5580 = vmax.f32 %v5578, 0.0
          %s5581 = scalar_select %p2359, 0.0, -1e+30
          %v5582 = vstv %s5581
          %v5583 = vadd.f32 %v5579, %v5582
          %v5584 = vadd.f32 %v5580, %v5582
          %s5585 = scalar_lea.vmem %s310, 2048 [#allocation7]
          %v5586 = vld [vmem:[%s5585] sm:$0xff]
          %v5587 = vld [vmem:[%s5585 + $0x8] sm:$0xff]
          %v5588 = vld [vmem:[%s5585 + $0x10] sm:$0xff]
          %v5589 = vld [vmem:[%s5585 + $0x18] sm:$0xff]
          %v5590 = vld [vmem:[%s5585 + $0x20] sm:$0xff]
          %v5591 = vld [vmem:[%s5585 + $0x28] sm:$0xff]
          %v5592 = vld [vmem:[%s5585 + $0x30] sm:$0xff]
          %v5593 = vld [vmem:[%s5585 + $0x38] sm:$0xff]
          %v5594 = vld [vmem:[%s5585 + $0x40] sm:$0xff]
          %v5595 = vld [vmem:[%s5585 + $0x48] sm:$0xff]
          %v5596 = vld [vmem:[%s5585 + $0x50] sm:$0xff]
          %v5597 = vld [vmem:[%s5585 + $0x58] sm:$0xff]
          %v5598 = vld [vmem:[%s5585 + $0x60] sm:$0xff]
          %v5599 = vld [vmem:[%s5585 + $0x68] sm:$0xff]
          %v5600 = vld [vmem:[%s5585 + $0x70] sm:$0xff]
          %v5601 = vld [vmem:[%s5585 + $0x78] sm:$0xff]
          %v5602 = vld [vmem:[%s5585 + $0x80] sm:$0xff]
          %v5603 = vld [vmem:[%s5585 + $0x88] sm:$0xff]
          %v5604 = vld [vmem:[%s5585 + $0x90] sm:$0xff]
          %v5605 = vld [vmem:[%s5585 + $0x98] sm:$0xff]
          %v5606 = vld [vmem:[%s5585 + $0xa0] sm:$0xff]
          %v5607 = vld [vmem:[%s5585 + $0xa8] sm:$0xff]
          %v5608 = vld [vmem:[%s5585 + $0xb0] sm:$0xff]
          %v5609 = vld [vmem:[%s5585 + $0xb8] sm:$0xff]
          %v5610 = vld [vmem:[%s5585 + $0xc0] sm:$0xff]
          %v5611 = vld [vmem:[%s5585 + $0xc8] sm:$0xff]
          %v5612 = vld [vmem:[%s5585 + $0xd0] sm:$0xff]
          %v5613 = vld [vmem:[%s5585 + $0xd8] sm:$0xff]
          %v5614 = vld [vmem:[%s5585 + $0xe0] sm:$0xff]
          %v5615 = vld [vmem:[%s5585 + $0xe8] sm:$0xff]
          %v5616 = vld [vmem:[%s5585 + $0xf0] sm:$0xff]
          %v5617 = vld [vmem:[%s5585 + $0xf8] sm:$0xff]
          %v5620 = vunpack.c.l.b16 %v4345
          %v5621 = vunpack.c.h.b16 %v4345
          %v5622 = vunpack.c.l.b16 %v4346
          %v5623 = vunpack.c.h.b16 %v4346
          %v5624 = vpack.c.b16 %v5622, %v5620
          %v5625 = vpack.c.b16 %v5623, %v5621
          %v5660 = vunpack.c.l.b16 %v5586
          %v5661 = vunpack.c.h.b16 %v5586
          %v5662 = vunpack.c.l.b16 %v5587
          %v5663 = vunpack.c.h.b16 %v5587
          %v5664 = vunpack.c.l.b16 %v5588
          %v5665 = vunpack.c.h.b16 %v5588
          %v5666 = vunpack.c.l.b16 %v5589
          %v5667 = vunpack.c.h.b16 %v5589
          %v5668 = vunpack.c.l.b16 %v5590
          %v5669 = vunpack.c.h.b16 %v5590
          %v5670 = vunpack.c.l.b16 %v5591
          %v5671 = vunpack.c.h.b16 %v5591
          %v5672 = vunpack.c.l.b16 %v5592
          %v5673 = vunpack.c.h.b16 %v5592
          %v5674 = vunpack.c.l.b16 %v5593
          %v5675 = vunpack.c.h.b16 %v5593
          %v5676 = vunpack.c.l.b16 %v5594
          %v5677 = vunpack.c.h.b16 %v5594
          %v5678 = vunpack.c.l.b16 %v5595
          %v5679 = vunpack.c.h.b16 %v5595
          %v5680 = vunpack.c.l.b16 %v5596
          %v5681 = vunpack.c.h.b16 %v5596
          %v5682 = vunpack.c.l.b16 %v5597
          %v5683 = vunpack.c.h.b16 %v5597
          %v5684 = vunpack.c.l.b16 %v5598
          %v5685 = vunpack.c.h.b16 %v5598
          %v5686 = vunpack.c.l.b16 %v5599
          %v5687 = vunpack.c.h.b16 %v5599
          %v5688 = vunpack.c.l.b16 %v5600
          %v5689 = vunpack.c.h.b16 %v5600
          %v5690 = vunpack.c.l.b16 %v5601
          %v5691 = vunpack.c.h.b16 %v5601
          %v5692 = vunpack.c.l.b16 %v5602
          %v5693 = vunpack.c.h.b16 %v5602
          %v5694 = vunpack.c.l.b16 %v5603
          %v5695 = vunpack.c.h.b16 %v5603
          %v5696 = vunpack.c.l.b16 %v5604
          %v5697 = vunpack.c.h.b16 %v5604
          %v5698 = vunpack.c.l.b16 %v5605
          %v5699 = vunpack.c.h.b16 %v5605
          %v5700 = vunpack.c.l.b16 %v5606
          %v5701 = vunpack.c.h.b16 %v5606
          %v5702 = vunpack.c.l.b16 %v5607
          %v5703 = vunpack.c.h.b16 %v5607
          %v5704 = vunpack.c.l.b16 %v5608
          %v5705 = vunpack.c.h.b16 %v5608
          %v5706 = vunpack.c.l.b16 %v5609
          %v5707 = vunpack.c.h.b16 %v5609
          %v5708 = vunpack.c.l.b16 %v5610
          %v5709 = vunpack.c.h.b16 %v5610
          %v5710 = vunpack.c.l.b16 %v5611
          %v5711 = vunpack.c.h.b16 %v5611
          %v5712 = vunpack.c.l.b16 %v5612
          %v5713 = vunpack.c.h.b16 %v5612
          %v5714 = vunpack.c.l.b16 %v5613
          %v5715 = vunpack.c.h.b16 %v5613
          %v5716 = vunpack.c.l.b16 %v5614
          %v5717 = vunpack.c.h.b16 %v5614
          %v5718 = vunpack.c.l.b16 %v5615
          %v5719 = vunpack.c.h.b16 %v5615
          %v5720 = vunpack.c.l.b16 %v5616
          %v5721 = vunpack.c.h.b16 %v5616
          %v5722 = vunpack.c.l.b16 %v5617
          %v5723 = vunpack.c.h.b16 %v5617
          %v5724 = vpack.c.b16 %v5662, %v5660
          %v5725 = vpack.c.b16 %v5663, %v5661
          %v5726 = vpack.c.b16 %v5666, %v5664
          %v5727 = vpack.c.b16 %v5667, %v5665
          %v5728 = vpack.c.b16 %v5670, %v5668
          %v5729 = vpack.c.b16 %v5671, %v5669
          %v5730 = vpack.c.b16 %v5674, %v5672
          %v5731 = vpack.c.b16 %v5675, %v5673
          %v5732 = vpack.c.b16 %v5678, %v5676
          %v5733 = vpack.c.b16 %v5679, %v5677
          %v5734 = vpack.c.b16 %v5682, %v5680
          %v5735 = vpack.c.b16 %v5683, %v5681
          %v5736 = vpack.c.b16 %v5686, %v5684
          %v5737 = vpack.c.b16 %v5687, %v5685
          %v5738 = vpack.c.b16 %v5690, %v5688
          %v5739 = vpack.c.b16 %v5691, %v5689
          %v5740 = vpack.c.b16 %v5694, %v5692
          %v5741 = vpack.c.b16 %v5695, %v5693
          %v5742 = vpack.c.b16 %v5698, %v5696
          %v5743 = vpack.c.b16 %v5699, %v5697
          %v5744 = vpack.c.b16 %v5702, %v5700
          %v5745 = vpack.c.b16 %v5703, %v5701
          %v5746 = vpack.c.b16 %v5706, %v5704
          %v5747 = vpack.c.b16 %v5707, %v5705
          %v5748 = vpack.c.b16 %v5710, %v5708
          %v5749 = vpack.c.b16 %v5711, %v5709
          %v5750 = vpack.c.b16 %v5714, %v5712
          %v5751 = vpack.c.b16 %v5715, %v5713
          %v5752 = vpack.c.b16 %v5718, %v5716
          %v5753 = vpack.c.b16 %v5719, %v5717
          %v5754 = vpack.c.b16 %v5722, %v5720
          %v5755 = vpack.c.b16 %v5723, %v5721
          %5788 = vmatprep.subr.bf16.mxu0 %v5725
          %5789 = vmatpush1.bf16.msra.mxu0 %v5724
          %5790 = vmatprep.subr.bf16.mxu0 %v5727
          %5791 = vmatpush1.bf16.msra.mxu0 %v5726
          %5792 = vmatprep.subr.bf16.mxu0 %v5729
          %5793 = vmatpush1.bf16.msra.mxu0 %v5728
          %5794 = vmatprep.subr.bf16.mxu0 %v5731
          %5795 = vmatpush1.bf16.msra.mxu0 %v5730
          %5796 = vmatprep.subr.bf16.mxu0 %v5733
          %5797 = vmatpush1.bf16.msra.mxu0 %v5732
          %5798 = vmatprep.subr.bf16.mxu0 %v5735
          %5799 = vmatpush1.bf16.msra.mxu0 %v5734
          %5800 = vmatprep.subr.bf16.mxu0 %v5737
          %5801 = vmatpush1.bf16.msra.mxu0 %v5736
          %5802 = vmatprep.subr.bf16.mxu0 %v5739
          %5803 = vmatpush1.bf16.msra.mxu0 %v5738
          %5804 = vmatprep.subr.bf16.mxu0 %v5741
          %5805 = vmatpush1.bf16.msra.mxu0 %v5740
          %5806 = vmatprep.subr.bf16.mxu0 %v5743
          %5807 = vmatpush1.bf16.msra.mxu0 %v5742
          %5808 = vmatprep.subr.bf16.mxu0 %v5745
          %5809 = vmatpush1.bf16.msra.mxu0 %v5744
          %5810 = vmatprep.subr.bf16.mxu0 %v5747
          %5811 = vmatpush1.bf16.msra.mxu0 %v5746
          %5812 = vmatprep.subr.bf16.mxu0 %v5749
          %5813 = vmatpush1.bf16.msra.mxu0 %v5748
          %5814 = vmatprep.subr.bf16.mxu0 %v5751
          %5815 = vmatpush1.bf16.msra.mxu0 %v5750
          %5816 = vmatprep.subr.bf16.mxu0 %v5753
          %5817 = vmatpush1.bf16.msra.mxu0 %v5752
          %5818 = vmatprep.subr.bf16.mxu0 %v5755
          %5819 = vmatpush1.bf16.msra.mxu0 %v5754
          %5820 = vmatprep.mubr.bf16.mxu0 %v5625
          %5821 = vmatmul.mubr.bf16.gmra.mrb[0].mxu0 %v5624
          %v5822 = vpop.f32.mrb[0].mxu0
          %v5823 = vadd.f32 0.0, %v5822
          %v5824 = vpop.f32.mrb[0].mxu0
          %v5825 = vadd.f32 0.0, %v5824
          %v5826 = vpop.f32.mrb[0].mxu0
          %v5827 = vadd.f32 0.0, %v5826
          %v5828 = vpop.f32.mrb[0].mxu0
          %v5829 = vadd.f32 0.0, %v5828
          %5830 = vdwg.mxu0
          %5831 = vmatprep.subr.mxu0 %v5825
          %5832 = vmatpush1.msra.mxu0 %v5823
          %5833 = vmatprep.subr.mxu0 %v5829
          %5834 = vmatpush1.msra.mxu0 %v5827
          %5835 = vmatprep.subr.mxu0 0.0
          %5836 = vmatpush1.msra.mxu0 0.0
          %5837 = vmatprep.subr.mxu0 0.0
          %5838 = vmatpush1.msra.mxu0 0.0
          %5839 = vmatprep.subr.mxu0 0.0
          %5840 = vmatpush1.msra.mxu0 0.0
          %5841 = vmatprep.subr.mxu0 0.0
          %5842 = vmatpush1.msra.mxu0 0.0
          %5843 = vmatprep.subr.mxu0 0.0
          %5844 = vmatpush1.msra.mxu0 0.0
          %5845 = vmatprep.subr.mxu0 0.0
          %5846 = vmatpush1.msra.mxu0 0.0
          %5847 = vmatprep.subr.mxu0 0.0
          %5848 = vmatpush1.msra.mxu0 0.0
          %5849 = vmatprep.subr.mxu0 0.0
          %5850 = vmatpush1.msra.mxu0 0.0
          %5851 = vmatprep.subr.mxu0 0.0
          %5852 = vmatpush1.msra.mxu0 0.0
          %5853 = vmatprep.subr.mxu0 0.0
          %5854 = vmatpush1.msra.mxu0 0.0
          %5855 = vmatprep.subr.mxu0 0.0
          %5856 = vmatpush1.msra.mxu0 0.0
          %5857 = vmatprep.subr.mxu0 0.0
          %5858 = vmatpush1.msra.mxu0 0.0
          %5859 = vmatprep.subr.mxu0 0.0
          %5860 = vmatpush1.msra.mxu0 0.0
          %5861 = vmatprep.subr.mxu0 0.0
          %5862 = vmatpush1.msra.mxu0 0.0
          %5863 = vmatprep.subr.mxu0 0.0
          %5864 = vmatpush1.msra.mxu0 0.0
          %5865 = vmatprep.subr.mxu0 0.0
          %5866 = vmatpush1.msra.mxu0 0.0
          %5867 = vmatprep.subr.mxu0 0.0
          %5868 = vmatpush1.msra.mxu0 0.0
          %5869 = vmatprep.subr.mxu0 0.0
          %5870 = vmatpush1.msra.mxu0 0.0
          %5871 = vmatprep.subr.mxu0 0.0
          %5872 = vmatpush1.msra.mxu0 0.0
          %5873 = vmatprep.subr.mxu0 0.0
          %5874 = vmatpush1.msra.mxu0 0.0
          %5875 = vmatprep.subr.mxu0 0.0
          %5876 = vmatpush1.msra.mxu0 0.0
          %5877 = vmatprep.subr.mxu0 0.0
          %5878 = vmatpush1.msra.mxu0 0.0
          %5879 = vmatprep.subr.mxu0 0.0
          %5880 = vmatpush1.msra.mxu0 0.0
          %5881 = vmatprep.subr.mxu0 0.0
          %5882 = vmatpush1.msra.mxu0 0.0
          %5883 = vmatprep.subr.mxu0 0.0
          %5884 = vmatpush1.msra.mxu0 0.0
          %5885 = vmatprep.subr.mxu0 0.0
          %5886 = vmatpush1.msra.mxu0 0.0
          %5887 = vmatprep.subr.mxu0 0.0
          %5888 = vmatpush1.msra.mxu0 0.0
          %5889 = vmatprep.subr.mxu0 0.0
          %5890 = vmatpush1.msra.mxu0 0.0
          %5891 = vmatprep.subr.mxu0 0.0
          %5892 = vmatpush1.msra.mxu0 0.0
          %5893 = vmatprep.subr.mxu0 0.0
          %5894 = vmatpush1.msra.mxu0 0.0
          %5895 = vmatprep.mubr.f32.mxu0 0.0
          %5896 = vmatmul.mubr.f32.gmra.mrb[0].mxu0 %v4694
          %v5897 = vpop.f32.mrb[0].mxu0
          %v5898 = vadd.f32 %v4435, %v5897
          %v5899 = vpop.f32.mrb[0].mxu0
          %v5900 = vadd.f32 %v4437, %v5899
          %5901 = vmatprep.mubr.f32.mxu0 0.0
          %5902 = vmatmul.mubr.f32.gmra.mrb[0].mxu0 %v4697
          %v5903 = vpop.f32.mrb[0].mxu0
          %v5904 = vadd.f32 %v4441, %v5903
          %v5905 = vpop.f32.mrb[0].mxu0
          %v5906 = vadd.f32 %v4443, %v5905
          %5907 = vdwg.mxu0
          %v5908 = vmax.f32 %v5898, 0.0
          %v5909 = vmax.f32 %v5900, 0.0
          %v5910 = vmax.f32 %v5904, 0.0
          %v5911 = vmax.f32 %v5906, 0.0
          %5912 = vmatprep.subr.mxu0 %v5909
          %5913 = vmatpush1.msra.mxu0 %v5908
          %5914 = vmatprep.subr.mxu0 %v5911
          %5915 = vmatpush1.msra.mxu0 %v5910
          %5916 = vmatprep.subr.mxu0 0.0
          %5917 = vmatpush1.msra.mxu0 0.0
          %5918 = vmatprep.subr.mxu0 0.0
          %5919 = vmatpush1.msra.mxu0 0.0
          %5920 = vmatprep.subr.mxu0 0.0
          %5921 = vmatpush1.msra.mxu0 0.0
          %5922 = vmatprep.subr.mxu0 0.0
          %5923 = vmatpush1.msra.mxu0 0.0
          %5924 = vmatprep.subr.mxu0 0.0
          %5925 = vmatpush1.msra.mxu0 0.0
          %5926 = vmatprep.subr.mxu0 0.0
          %5927 = vmatpush1.msra.mxu0 0.0
          %5928 = vmatprep.subr.mxu0 0.0
          %5929 = vmatpush1.msra.mxu0 0.0
          %5930 = vmatprep.subr.mxu0 0.0
          %5931 = vmatpush1.msra.mxu0 0.0
          %5932 = vmatprep.subr.mxu0 0.0
          %5933 = vmatpush1.msra.mxu0 0.0
          %5934 = vmatprep.subr.mxu0 0.0
          %5935 = vmatpush1.msra.mxu0 0.0
          %5936 = vmatprep.subr.mxu0 0.0
          %5937 = vmatpush1.msra.mxu0 0.0
          %5938 = vmatprep.subr.mxu0 0.0
          %5939 = vmatpush1.msra.mxu0 0.0
          %5940 = vmatprep.subr.mxu0 0.0
          %5941 = vmatpush1.msra.mxu0 0.0
          %5942 = vmatprep.subr.mxu0 0.0
          %5943 = vmatpush1.msra.mxu0 0.0
          %5944 = vmatprep.subr.mxu0 0.0
          %5945 = vmatpush1.msra.mxu0 0.0
          %5946 = vmatprep.subr.mxu0 0.0
          %5947 = vmatpush1.msra.mxu0 0.0
          %5948 = vmatprep.subr.mxu0 0.0
          %5949 = vmatpush1.msra.mxu0 0.0
          %5950 = vmatprep.subr.mxu0 0.0
          %5951 = vmatpush1.msra.mxu0 0.0
          %5952 = vmatprep.subr.mxu0 0.0
          %5953 = vmatpush1.msra.mxu0 0.0
          %5954 = vmatprep.subr.mxu0 0.0
          %5955 = vmatpush1.msra.mxu0 0.0
          %5956 = vmatprep.subr.mxu0 0.0
          %5957 = vmatpush1.msra.mxu0 0.0
          %5958 = vmatprep.subr.mxu0 0.0
          %5959 = vmatpush1.msra.mxu0 0.0
          %5960 = vmatprep.subr.mxu0 0.0
          %5961 = vmatpush1.msra.mxu0 0.0
          %5962 = vmatprep.subr.mxu0 0.0
          %5963 = vmatpush1.msra.mxu0 0.0
          %5964 = vmatprep.subr.mxu0 0.0
          %5965 = vmatpush1.msra.mxu0 0.0
          %5966 = vmatprep.subr.mxu0 0.0
          %5967 = vmatpush1.msra.mxu0 0.0
          %5968 = vmatprep.subr.mxu0 0.0
          %5969 = vmatpush1.msra.mxu0 0.0
          %5970 = vmatprep.subr.mxu0 0.0
          %5971 = vmatpush1.msra.mxu0 0.0
          %5972 = vmatprep.subr.mxu0 0.0
          %5973 = vmatpush1.msra.mxu0 0.0
          %5974 = vmatprep.subr.mxu0 0.0
          %5975 = vmatpush1.msra.mxu0 0.0
          %5976 = vmatprep.mubr.f32.mxu0 0.0
          %5977 = vmatmul.mubr.f32.gmra.mrb[0].mxu0 %v4786
          %v5978 = vpop.f32.mrb[0].mxu0
          %v5979 = vadd.f32 %v4783, %v5978
          %v5980 = vpop.f32.mrb[0].mxu0
          %v5981 = vadd.f32 %v4783, %v5980
          %5982 = vdwg.mxu0
          %v5983 = vmax.f32 %v5979, 0.0
          %v5984 = vmax.f32 %v5981, 0.0
          %5985 = vmatprep.subr.mxu0 %v5984
          %5986 = vmatpush1.msra.mxu0 %v5983
          %5987 = vmatprep.subr.mxu0 0.0
          %5988 = vmatpush1.msra.mxu0 0.0
          %5989 = vmatprep.subr.mxu0 0.0
          %5990 = vmatpush1.msra.mxu0 0.0
          %5991 = vmatprep.subr.mxu0 0.0
          %5992 = vmatpush1.msra.mxu0 0.0
          %5993 = vmatprep.subr.mxu0 0.0
          %5994 = vmatpush1.msra.mxu0 0.0
          %5995 = vmatprep.subr.mxu0 0.0
          %5996 = vmatpush1.msra.mxu0 0.0
          %5997 = vmatprep.subr.mxu0 0.0
          %5998 = vmatpush1.msra.mxu0 0.0
          %5999 = vmatprep.subr.mxu0 0.0
          %6000 = vmatpush1.msra.mxu0 0.0
          %6001 = vmatprep.subr.mxu0 0.0
          %6002 = vmatpush1.msra.mxu0 0.0
          %6003 = vmatprep.subr.mxu0 0.0
          %6004 = vmatpush1.msra.mxu0 0.0
          %6005 = vmatprep.subr.mxu0 0.0
          %6006 = vmatpush1.msra.mxu0 0.0
          %6007 = vmatprep.subr.mxu0 0.0
          %6008 = vmatpush1.msra.mxu0 0.0
          %6009 = vmatprep.subr.mxu0 0.0
          %6010 = vmatpush1.msra.mxu0 0.0
          %6011 = vmatprep.subr.mxu0 0.0
          %6012 = vmatpush1.msra.mxu0 0.0
          %6013 = vmatprep.subr.mxu0 0.0
          %6014 = vmatpush1.msra.mxu0 0.0
          %6015 = vmatprep.subr.mxu0 0.0
          %6016 = vmatpush1.msra.mxu0 0.0
          %6017 = vmatprep.subr.mxu0 0.0
          %6018 = vmatpush1.msra.mxu0 0.0
          %6019 = vmatprep.subr.mxu0 0.0
          %6020 = vmatpush1.msra.mxu0 0.0
          %6021 = vmatprep.subr.mxu0 0.0
          %6022 = vmatpush1.msra.mxu0 0.0
          %6023 = vmatprep.subr.mxu0 0.0
          %6024 = vmatpush1.msra.mxu0 0.0
          %6025 = vmatprep.subr.mxu0 0.0
          %6026 = vmatpush1.msra.mxu0 0.0
          %6027 = vmatprep.subr.mxu0 0.0
          %6028 = vmatpush1.msra.mxu0 0.0
          %6029 = vmatprep.subr.mxu0 0.0
          %6030 = vmatpush1.msra.mxu0 0.0
          %6031 = vmatprep.subr.mxu0 0.0
          %6032 = vmatpush1.msra.mxu0 0.0
          %6033 = vmatprep.subr.mxu0 0.0
          %6034 = vmatpush1.msra.mxu0 0.0
          %6035 = vmatprep.subr.mxu0 0.0
          %6036 = vmatpush1.msra.mxu0 0.0
          %6037 = vmatprep.subr.mxu0 0.0
          %6038 = vmatpush1.msra.mxu0 0.0
          %6039 = vmatprep.subr.mxu0 0.0
          %6040 = vmatpush1.msra.mxu0 0.0
          %6041 = vmatprep.subr.mxu0 0.0
          %6042 = vmatpush1.msra.mxu0 0.0
          %6043 = vmatprep.subr.mxu0 0.0
          %6044 = vmatpush1.msra.mxu0 0.0
          %6045 = vmatprep.subr.mxu0 0.0
          %6046 = vmatpush1.msra.mxu0 0.0
          %6047 = vmatprep.subr.mxu0 0.0
          %6048 = vmatpush1.msra.mxu0 0.0
          %6049 = vmatprep.mubr.f32.mxu0 0.0
          %6050 = vmatmul.mubr.f32.gmra.mrb[0].mxu0 %v4868
          %v6051 = vpop.f32.mrb[0].mxu0
          %v6052 = vadd.f32 %v4864, %v6051
          %v6053 = vpop.f32.mrb[0].mxu0
          %v6054 = vadd.f32 %v4864, %v6053
          %6055 = vdwg.mxu0
          %v6056 = vmax.f32 %v6052, 0.0
          %v6057 = vmax.f32 %v6054, 0.0
          %6058 = vmatprep.subr.mxu0 %v6057
          %6059 = vmatpush1.msra.mxu0 %v6056
          %6060 = vmatprep.subr.mxu0 0.0
          %6061 = vmatpush1.msra.mxu0 0.0
          %6062 = vmatprep.subr.mxu0 0.0
          %6063 = vmatpush1.msra.mxu0 0.0
          %6064 = vmatprep.subr.mxu0 0.0
          %6065 = vmatpush1.msra.mxu0 0.0
          %6066 = vmatprep.subr.mxu0 0.0
          %6067 = vmatpush1.msra.mxu0 0.0
          %6068 = vmatprep.subr.mxu0 0.0
          %6069 = vmatpush1.msra.mxu0 0.0
          %6070 = vmatprep.subr.mxu0 0.0
          %6071 = vmatpush1.msra.mxu0 0.0
          %6072 = vmatprep.subr.mxu0 0.0
          %6073 = vmatpush1.msra.mxu0 0.0
          %6074 = vmatprep.subr.mxu0 0.0
          %6075 = vmatpush1.msra.mxu0 0.0
          %6076 = vmatprep.subr.mxu0 0.0
          %6077 = vmatpush1.msra.mxu0 0.0
          %6078 = vmatprep.subr.mxu0 0.0
          %6079 = vmatpush1.msra.mxu0 0.0
          %6080 = vmatprep.subr.mxu0 0.0
          %6081 = vmatpush1.msra.mxu0 0.0
          %6082 = vmatprep.subr.mxu0 0.0
          %6083 = vmatpush1.msra.mxu0 0.0
          %6084 = vmatprep.subr.mxu0 0.0
          %6085 = vmatpush1.msra.mxu0 0.0
          %6086 = vmatprep.subr.mxu0 0.0
          %6087 = vmatpush1.msra.mxu0 0.0
          %6088 = vmatprep.subr.mxu0 0.0
          %6089 = vmatpush1.msra.mxu0 0.0
          %6090 = vmatprep.subr.mxu0 0.0
          %6091 = vmatpush1.msra.mxu0 0.0
          %6092 = vmatprep.subr.mxu0 0.0
          %6093 = vmatpush1.msra.mxu0 0.0
          %6094 = vmatprep.subr.mxu0 0.0
          %6095 = vmatpush1.msra.mxu0 0.0
          %6096 = vmatprep.subr.mxu0 0.0
          %6097 = vmatpush1.msra.mxu0 0.0
          %6098 = vmatprep.subr.mxu0 0.0
          %6099 = vmatpush1.msra.mxu0 0.0
          %6100 = vmatprep.subr.mxu0 0.0
          %6101 = vmatpush1.msra.mxu0 0.0
          %6102 = vmatprep.subr.mxu0 0.0
          %6103 = vmatpush1.msra.mxu0 0.0
          %6104 = vmatprep.subr.mxu0 0.0
          %6105 = vmatpush1.msra.mxu0 0.0
          %6106 = vmatprep.subr.mxu0 0.0
          %6107 = vmatpush1.msra.mxu0 0.0
          %6108 = vmatprep.subr.mxu0 0.0
          %6109 = vmatpush1.msra.mxu0 0.0
          %6110 = vmatprep.subr.mxu0 0.0
          %6111 = vmatpush1.msra.mxu0 0.0
          %6112 = vmatprep.subr.mxu0 0.0
          %6113 = vmatpush1.msra.mxu0 0.0
          %6114 = vmatprep.subr.mxu0 0.0
          %6115 = vmatpush1.msra.mxu0 0.0
          %6116 = vmatprep.subr.mxu0 0.0
          %6117 = vmatpush1.msra.mxu0 0.0
          %6118 = vmatprep.subr.mxu0 0.0
          %6119 = vmatpush1.msra.mxu0 0.0
          %6120 = vmatprep.subr.mxu0 0.0
          %6121 = vmatpush1.msra.mxu0 0.0
          %6122 = vmatprep.mubr.f32.mxu0 0.0
          %6123 = vmatmul.mubr.f32.gmra.mrb[0].mxu0 %v4944
          %v6124 = vpop.f32.mrb[0].mxu0
          %v6125 = vadd.f32 0.0, %v6124
          %v6126 = vpop.f32.mrb[0].mxu0
          %v6127 = vadd.f32 0.0, %v6126
          %6128 = vdwg.mxu0
          %v6129 = vadd.f32 %v6125, %v5020
          %v6130 = vadd.f32 %v6127, %v5020
          %v6131 = vmax.f32 %v6129, 0.0
          %v6132 = vmax.f32 %v6130, 0.0
          %v6133 = vadd.f32 %v6131, 0.0
          %v6134 = vadd.f32 %v6132, 0.0
          %v6135 = vmax.f32 %v5028, %v5583
          %v6136 = vmax.f32 %v5029, %v5584
          %v6137 = vmax.f32 %v6135, %v6133
          %v6138 = vmax.f32 %v6136, %v6134
          %v6139 = vsub.f32 %v5028, %v6137
          %v6140 = vsub.f32 %v5029, %v6138
          %v6141 = vmul.f32 %v6139, 1.442695
          %v6142 = vpow.pop %v6141
          %v6143 = vmul.f32 %v6140, 1.442695
          %v6144 = vpow.pop %v6143
          %v6145 = vsub.f32 %v5583, %v6137
          %v6146 = vsub.f32 %v5584, %v6138
          %v6147 = vmul.f32 %v6145, 1.442695
          %v6148 = vpow.pop %v6147
          %v6149 = vmul.f32 %v6146, 1.442695
          %v6150 = vpow.pop %v6149
          %v6151 = vsub.f32 %v6133, %v6137
          %v6152 = vsub.f32 %v6134, %v6138
          %v6153 = vmul.f32 %v6151, 1.442695
          %v6154 = vpow.pop %v6153
          %v6155 = vmul.f32 %v6152, 1.442695
          %v6156 = vpow.pop %v6155
          %v6157 = vadd.f32 %v6142, %v6148
          %v6158 = vadd.f32 %v6144, %v6150
          %v6159 = vadd.f32 %v6157, %v6154
          %v6160 = vadd.f32 %v6158, %v6156
          %v6161 = vrcp.pop %v6159
          %v6162 = vrcp.pop %v6160
          %v6163 = vmul.f32 %v6142, %v6161
          %v6164 = vmul.f32 %v6144, %v6162
          %v6165 = vlaneseq
          %v6166 = vshrl.u32 %v6165, 7
          %v6167 = vsub.s32 0, %v6166
          %v6168 = vrot.slane %v6163, %v6167
          %v6169 = vlaneseq
          %v6170 = vshrl.u32 %v6169, 7
          %v6171 = vsub.s32 0, %v6170
          %v6172 = vrot.slane %v6164, %v6171
          %v6173 = vmul.f32 %v4685, %v6168
          %v6174 = vmul.f32 %v4687, %v6172
          %v6175 = vmul.f32 %v4689, %v6168
          %v6176 = vmul.f32 %v4691, %v6172
          %v6177 = vmul.f32 %v6148, %v6161
          %v6178 = vmul.f32 %v6150, %v6162
          %v6179 = vlaneseq
          %v6180 = vshrl.u32 %v6179, 7
          %v6181 = vsub.s32 0, %v6180
          %v6182 = vrot.slane %v6177, %v6181
          %v6183 = vlaneseq
          %v6184 = vshrl.u32 %v6183, 7
          %v6185 = vsub.s32 0, %v6184
          %v6186 = vrot.slane %v6178, %v6185
          %v6187 = vmul.f32 %v5271, %v6182
          %v6188 = vmul.f32 %v5273, %v6186
          %v6189 = vmul.f32 %v5275, %v6182
          %v6190 = vmul.f32 %v5277, %v6186
          %v6191 = vadd.f32 %v6173, %v6187
          %v6192 = vadd.f32 %v6174, %v6188
          %v6193 = vadd.f32 %v6175, %v6189
          %v6194 = vadd.f32 %v6176, %v6190
          %v6195 = vmul.f32 %v6154, %v6161
          %v6196 = vmul.f32 %v6156, %v6162
          %v6197 = vlaneseq
          %v6198 = vshrl.u32 %v6197, 7
          %v6199 = vsub.s32 0, %v6198
          %v6200 = vrot.slane %v6195, %v6199
          %v6201 = vlaneseq
          %v6202 = vshrl.u32 %v6201, 7
          %v6203 = vsub.s32 0, %v6202
          %v6204 = vrot.slane %v6196, %v6203
          %v6205 = vmul.f32 %v5823, %v6200
          %v6206 = vmul.f32 %v5825, %v6204
          %v6207 = vmul.f32 %v5827, %v6200
          %v6208 = vmul.f32 %v5829, %v6204
          %v6209 = vadd.f32 %v6191, %v6205
          %v6210 = vadd.f32 %v6192, %v6206
          %v6211 = vadd.f32 %v6193, %v6207
          %v6212 = vadd.f32 %v6194, %v6208
          %6214 = vset.pattern.permute.xlu0 0
          %6215 = vperm.xlu0 %6214, %v378
          %v6216 = vpop.permute.xlu0 %6215
          %6219 = vset.pattern.permute.xlu0 0
          %6220 = vperm.xlu0 %6219, %v379
          %v6221 = vpop.permute.xlu0 %6220
          %v6224 = vsel %vm4361, %v363, 0
          %v6227 = vsel %vm4361, %v364, 0
          %6229 = vmatprep.subr.mxu0 %v6210
          %6230 = vmatpush1.msra.mxu0 %v6209
          %6231 = vmatprep.subr.mxu0 %v6212
          %6232 = vmatpush1.msra.mxu0 %v6211
          %6233 = vmatprep.subr.mxu0 0.0
          %6234 = vmatpush1.msra.mxu0 0.0
          %6235 = vmatprep.subr.mxu0 0.0
          %6236 = vmatpush1.msra.mxu0 0.0
          %6237 = vmatprep.subr.mxu0 0.0
          %6238 = vmatpush1.msra.mxu0 0.0
          %6239 = vmatprep.subr.mxu0 0.0
          %6240 = vmatpush1.msra.mxu0 0.0
          %6241 = vmatprep.subr.mxu0 0.0
          %6242 = vmatpush1.msra.mxu0 0.0
          %6243 = vmatprep.subr.mxu0 0.0
          %6244 = vmatpush1.msra.mxu0 0.0
          %6245 = vmatprep.subr.mxu0 0.0
          %6246 = vmatpush1.msra.mxu0 0.0
          %6247 = vmatprep.subr.mxu0 0.0
          %6248 = vmatpush1.msra.mxu0 0.0
          %6249 = vmatprep.subr.mxu0 0.0
          %6250 = vmatpush1.msra.mxu0 0.0
          %6251 = vmatprep.subr.mxu0 0.0
          %6252 = vmatpush1.msra.mxu0 0.0
          %6253 = vmatprep.subr.mxu0 0.0
          %6254 = vmatpush1.msra.mxu0 0.0
          %6255 = vmatprep.subr.mxu0 0.0
          %6256 = vmatpush1.msra.mxu0 0.0
          %6257 = vmatprep.subr.mxu0 0.0
          %6258 = vmatpush1.msra.mxu0 0.0
          %6259 = vmatprep.subr.mxu0 0.0
          %6260 = vmatpush1.msra.mxu0 0.0
          %6261 = vmatprep.subr.mxu0 0.0
          %6262 = vmatpush1.msra.mxu0 0.0
          %6263 = vmatprep.subr.mxu0 0.0
          %6264 = vmatpush1.msra.mxu0 0.0
          %6265 = vmatprep.subr.mxu0 0.0
          %6266 = vmatpush1.msra.mxu0 0.0
          %6267 = vmatprep.subr.mxu0 0.0
          %6268 = vmatpush1.msra.mxu0 0.0
          %6269 = vmatprep.subr.mxu0 0.0
          %6270 = vmatpush1.msra.mxu0 0.0
          %6271 = vmatprep.subr.mxu0 0.0
          %6272 = vmatpush1.msra.mxu0 0.0
          %6273 = vmatprep.subr.mxu0 0.0
          %6274 = vmatpush1.msra.mxu0 0.0
          %6275 = vmatprep.subr.mxu0 0.0
          %6276 = vmatpush1.msra.mxu0 0.0
          %6277 = vmatprep.subr.mxu0 0.0
          %6278 = vmatpush1.msra.mxu0 0.0
          %6279 = vmatprep.subr.mxu0 0.0
          %6280 = vmatpush1.msra.mxu0 0.0
          %6281 = vmatprep.subr.mxu0 0.0
          %6282 = vmatpush1.msra.mxu0 0.0
          %6283 = vmatprep.subr.mxu0 0.0
          %6284 = vmatpush1.msra.mxu0 0.0
          %6285 = vmatprep.subr.mxu0 0.0
          %6286 = vmatpush1.msra.mxu0 0.0
          %6287 = vmatprep.subr.mxu0 0.0
          %6288 = vmatpush1.msra.mxu0 0.0
          %6289 = vmatprep.subr.mxu0 0.0
          %6290 = vmatpush1.msra.mxu0 0.0
          %6291 = vmatprep.subr.mxu0 0.0
          %6292 = vmatpush1.msra.mxu0 0.0
          %6293 = vmatprep.mubr.f32.mxu0 0.0
          %6294 = vmatmul.mubr.f32.gmra.mrb[0].mxu0 %v6224
          %v6295 = vpop.f32.mrb[0].mxu0
          %v6296 = vadd.f32 %v6216, %v6295
          %v6297 = vpop.f32.mrb[0].mxu0
          %v6298 = vadd.f32 %v6216, %v6297
          %6299 = vmatprep.mubr.f32.mxu0 0.0
          %6300 = vmatmul.mubr.f32.gmra.mrb[0].mxu0 %v6227
          %v6301 = vpop.f32.mrb[0].mxu0
          %v6302 = vadd.f32 %v6221, %v6301
          %v6303 = vpop.f32.mrb[0].mxu0
          %v6304 = vadd.f32 %v6221, %v6303
          %6305 = vdwg.mxu0
          %s6306 = scalar_lea.vmem %s355, 64 [#allocation13]
          %6307 = vst [vmem:[%s6306] sm:$0xff] %v6296
          %6308 = vst [vmem:[%s6306 + $0x8] sm:$0xff] %v6298
          %6309 = vst [vmem:[%s6306 + $0x10] sm:$0xff] %v6302
          %6310 = vst [vmem:[%s6306 + $0x18] sm:$0xff] %v6304
        $region84: #{tpu_custom_call.1} parent=43 // pred_fallthru
          _
        %p6311 = scmp.le.s32.totalorder %s356, 2
        // Predicated region
        $region85: #{tpu_custom_call.1} parent=43 // pred_check
          %p6312 = pneg %p6311
        $region86: #{tpu_custom_call.1} parent=43 // pred_check_branch
          %6314 = sbr.rel (%p6312) target = $region88
        $region87: #{tpu_custom_call.1} parent=43 // pred_region
          %s6315 = scalar_lea.vmem %s355, 64 [#allocation13]
          %6316 = vst [vmem:[%s6315] sm:$0xff] 0.0
          %6317 = vst [vmem:[%s6315 + $0x8] sm:$0xff] 0.0
          %6318 = vst [vmem:[%s6315 + $0x10] sm:$0xff] 0.0
          %6319 = vst [vmem:[%s6315 + $0x18] sm:$0xff] 0.0
        $region88: #{tpu_custom_call.1} parent=43 // pred_fallthru
          _
        %s6320 = sand.u32 %s176, 1
        %s6321 = scalar_lea.sflag [#allocation6], %s6320
        %s6322 = sand.u32 %s176, 1
        %s6323 = smul.addr %s6322, 96
        %s6324 = scalar_lea.vmem [#allocation13], %s6323
        // Predicated region
        $region89: #{tpu_custom_call.1} parent=43 // pred_check
          %p6325 = pneg %p186
        $region90: #{tpu_custom_call.1} parent=43 // pred_check_branch
          %6327 = sbr.rel (%p6325) target = $region92
        $region91: #{tpu_custom_call.1} parent=43 // pred_region
          %s6329 = ssub.s32 1536, 1536
          %6330 = vsyncadd %s6321, %s6329
          %s6331 = smul.addr %s32, 12
          %s6332 = smul.addr %s6331, 128
          %s6333 = scalar_lea.hbm %s7, %s6332
          %s6334 = sshll.u32 %s6324, 4
          %s6335 = int_to_ptr.vmem [resolvable:$true] %s6334
          %6340 = dma.vmem_to_hbm [thread:$0]  %s6335, 1536, %s6333, %s6321, 256, 256, 16
        $region92: #{tpu_custom_call.1} parent=43 // pred_fallthru
          _
      $region44: #{tpu_custom_call.1} parent=5 // pred_fallthru
        _
      %p6341 = scmp.le.s32.totalorder 2, %s27
      // Predicated region
      $region93: #{tpu_custom_call.1} parent=5 // pred_check
        %p6342 = pneg %p6341
      $region94: #{tpu_custom_call.1} parent=5 // pred_check_branch
        %6344 = sbr.rel (%p6342) target = $region96
      $region95: #{tpu_custom_call.1} parent=5 // pred_region
        %s6345 = ssub.s32 %s27, 2
        // Predicated region
        $region97: #{tpu_custom_call.1} parent=95 // pred_check
          %p6346 = pneg %p192
        $region98: #{tpu_custom_call.1} parent=95 // pred_check_branch
          %6348 = sbr.rel (%p6346) target = $region100
        $region99: #{tpu_custom_call.1} parent=95 // pred_region
          %s6349 = sand.u32 %s177, 1
          %s6350 = scalar_lea.sflag [#allocation6], %s6349
          %s6351 = sand.u32 %s177, 1
          %s6352 = smul.addr %s6351, 96
          %s6353 = scalar_lea.vmem [#allocation13], %s6352
          %6354 = dma.done %s6350, 1536
        $region100: #{tpu_custom_call.1} parent=95 // pred_fallthru
          _
      $region96: #{tpu_custom_call.1} parent=5 // pred_fallthru
        _
    $region6: #{tpu_custom_call.1} parent=1 // loop_footer
      %s31 = sadd.s32 1, %s27
    $region7: #{tpu_custom_call.1} parent=1 // loop_footer_branch
      %26 = sbr.rel target = $region3
    $region8: #{tpu_custom_call.1} parent=1 // loop_exit
      _
    %6355 = vsyncpa [#allocation5], 1
    %s6356 = scalar_lea.sflag [#allocation5], 1
    %6357 = vsyncpa %s6356, 1
    %6358 = vsyncpa [#allocation8], 1
    %s6359 = scalar_lea.sflag [#allocation8], 1
    %6360 = vsyncpa %s6359, 1
    %6361 = vsyncpa [#allocation11], 1
    %6362 = vsyncpa [#allocation6], 1
    %s6363 = scalar_lea.sflag [#allocation6], 1
    %6364 = vsyncpa %s6363, 1

</llo_original>
